<compile_context>
chip_gen: v6e
topology: v6e:2x2x1
jax: 0.10.0
libtpu: 0.0.40
codegen_flags: <defaults>
</compile_context>

<pallas_src>
import functools

import jax
import jax.numpy as jnp
import numpy as np
from jax.experimental import pallas as pl
from jax.experimental.pallas import tpu as pltpu

EPS = 1e-5


# ---------------- small helpers ----------------

def _round_up(x, m):
    return (x + m - 1) // m * m


def _pick_plane_tile(nd, hw, max_rows=2048):
    """Largest plane-block TB dividing N*D with TB*H*W <= max_rows and >= 2 grid steps."""
    best = 1
    for tb in range(1, nd + 1):
        if nd % tb:
            continue
        if tb * hw > max_rows:
            break
        if nd == 1 or nd // tb >= 2:
            best = tb
    return best


def _moments_into(y, s_ref):
    """Partial BN moments of y (rows, C) -> s_ref (8, C): row0=sum, row1=sum(y^2)."""
    c = y.shape[-1]
    row = jax.lax.broadcasted_iota(jnp.int32, (8, c), 0)
    s = jnp.broadcast_to(jnp.sum(y, axis=0, keepdims=True), (8, c))
    ss = jnp.broadcast_to(jnp.sum(y * y, axis=0, keepdims=True), (8, c))
    s_ref[...] = jnp.where(row == 0, s, jnp.where(row == 1, ss, 0.0))


def _bn_fold(stats, gamma, beta, count):
    """Fold batch stats + affine into per-channel scale/shift (tiny JAX glue)."""
    tot = jnp.sum(stats.reshape(-1, 8, stats.shape[-1]), axis=0)
    mean = tot[0] / count
    var = jnp.maximum(tot[1] / count - mean * mean, 0.0)
    scale = gamma * jax.lax.rsqrt(var + EPS)
    shift = beta - mean * scale
    return scale.reshape(1, -1).astype(jnp.float32), shift.reshape(1, -1).astype(jnp.float32)


# ---------------- Pallas kernels ----------------

def _stem_kernel(x_ref, w1_ref, y1_ref, s1_ref):
    xb = x_ref[...].astype(jnp.bfloat16)
    y1 = jnp.dot(xb, w1_ref[...], preferred_element_type=jnp.float32)
    _moments_into(y1, s1_ref)                 # exact f32 moments before the bf16 cast
    y1_ref[...] = y1.astype(y1_ref.dtype)


def _stem_shortcut_kernel(x_ref, w1_ref, ws_ref, y1_ref, s1_ref, ys_ref, ss_ref):
    xb = x_ref[...].astype(jnp.bfloat16)
    y1 = jnp.dot(xb, w1_ref[...], preferred_element_type=jnp.float32)
    _moments_into(y1, s1_ref)
    y1_ref[...] = y1.astype(y1_ref.dtype)
    ys = jnp.dot(xb, ws_ref[...], preferred_element_type=jnp.float32)
    _moments_into(ys, ss_ref)
    ys_ref[...] = ys.astype(ys_ref.dtype)


def _dilated_conv_kernel(p0_ref, p1_ref, p2_ref, sc_ref, sh_ref, w2_ref,
                         y2_ref, s2_ref, acc_ref, cat_ref, *, D, H, W, dil, MP):
    """Fused BN1+ReLU + dilated 3x3x3 conv for one (n, d) output plane.

    The 3 kw taps are lane-concatenated into a (Hp, W, 3*MP) bf16 scratch so the 27
    taps become 9 GEMMs of K=3*MP accumulated in a VMEM f32 scratch.  Halo voxels
    (spatial pad and out-of-range depth planes) are forced to exact zero *after* the
    fused BN+ReLU so they match the conv's zero padding semantics."""
    d = pl.program_id(1)
    acc_ref[...] = jnp.zeros_like(acc_ref)
    sc = sc_ref[...].reshape(1, 1, MP)
    sh = sh_ref[...].reshape(1, 1, MP)
    Hp = H + 2 * dil
    row = jax.lax.broadcasted_iota(jnp.int32, (Hp, W, 1), 0)
    col = jax.lax.broadcasted_iota(jnp.int32, (Hp, W, 1), 1)
    row_ok = jnp.logical_and(row >= dil, row < H + dil)
    planes = (p0_ref, p1_ref, p2_ref)
    for kd in range(3):
        d_in = d + (kd - 1) * dil                                   # true input depth
        depth_ok = jnp.logical_and(d_in >= 0, d_in < D)
        for kw in range(3):                       # build the lane-concatenated kw patch
            part = planes[kd][:, kw * dil:kw * dil + W, :].astype(jnp.float32)
            lo_c = max(dil - kw * dil, 0)         # static per-kw valid-column bounds
            hi_c = min(W + dil - kw * dil, W)
            ok = jnp.logical_and(row_ok, jnp.logical_and(col >= lo_c, col < hi_c))
            ok = jnp.logical_and(ok, depth_ok)
            h = jnp.where(ok, jnp.maximum(part * sc + sh, 0.0), 0.0)
            cat_ref[:, :, kw * MP:(kw + 1) * MP] = h.astype(jnp.bfloat16)
        for kh in range(3):                       # 3 GEMMs of K=3*MP per input plane
            lhs = cat_ref[kh * dil:kh * dil + H, :, :].reshape(H * W, 3 * MP)
            acc_ref[...] += jnp.dot(lhs, w2_ref[kd * 3 + kh],
                                    preferred_element_type=jnp.float32)
    y2 = acc_ref[...]
    _moments_into(y2, s2_ref)
    y2_ref[...] = y2.astype(y2_ref.dtype)


def _bn_relu_matmul_kernel(y2_ref, sc_ref, sh_ref, w3_ref, y3_ref, s3_ref):
    h2 = jnp.maximum(y2_ref[...].astype(jnp.float32) * sc_ref[...] + sh_ref[...], 0.0)
    y3 = jnp.dot(h2.astype(jnp.bfloat16), w3_ref[...], preferred_element_type=jnp.float32)
    _moments_into(y3, s3_ref)
    y3_ref[...] = y3.astype(y3_ref.dtype)


def _residual_out_conv_kernel(y3_ref, sc3_ref, sh3_ref, ys_ref, scs_ref, shs_ref, o_ref):
    left = y3_ref[...].astype(jnp.float32) * sc3_ref[...] + sh3_ref[...]
    right = ys_ref[...].astype(jnp.float32) * scs_ref[...] + shs_ref[...]
    o_ref[...] = jnp.maximum(left + right, 0.0)


def _residual_out_id_kernel(y3_ref, sc3_ref, sh3_ref, x_ref, o_ref):
    left = y3_ref[...].astype(jnp.float32) * sc3_ref[...] + sh3_ref[...]
    o_ref[...] = jnp.maximum(left + x_ref[...], 0.0)


# ---------------- wrapper ----------------

def dilated_residual_unit_3d(x_ncdhw, params, dilation=2):
    (w1, b1, g1, be1, w2, b2, g2, be2, w3, b3, g3, be3, ws, bs, gs, bes) = params
    del b1, b2, b3, bs  # pre-BN conv biases are cancelled exactly by training-mode BN

    N, Cin, D, H, W = x_ncdhw.shape
    mid, outC, dil = w1.shape[0], w3.shape[0], dilation
    conv_sc = (Cin != outC)  # stride is always 1 in this module
    if W % 8 != 0:
        # TODO(synk): general W needs a relayout-safe patch flatten; only W % 8 == 0 here.
        raise NotImplementedError("W must be a multiple of 8")

    f32, bf16 = jnp.float32, jnp.bfloat16
    HW, ND = H * W, N * D
    R = ND * HW
    CinP, MP, OP = _round_up(Cin, 128), _round_up(mid, 128), _round_up(outC, 128)
    # TODO(synk): on v6e/v7x with mid/outC > 128, rounding channels to 256 better fills
    # the 256-wide MXU; 128 kept here because the demo channel counts are tiny.
    TB = _pick_plane_tile(ND, HW)
    TR = TB * HW
    nt = ND // TB

    # ---- layout prep (pure data-movement glue) ----
    x_rows = jnp.transpose(x_ncdhw, (0, 2, 3, 4, 1)).astype(f32).reshape(R, Cin)
    x_rows = jnp.pad(x_rows, ((0, 0), (0, CinP - Cin)))

    w1m = jnp.pad(jnp.transpose(w1[:, :, 0, 0, 0]),
                  ((0, CinP - Cin), (0, MP - mid))).astype(bf16)
    w3m = jnp.pad(jnp.transpose(w3[:, :, 0, 0, 0]),
                  ((0, MP - mid), (0, OP - outC))).astype(bf16)
    # dilated-conv weights: per (kd, kh) a (3*MP, MP) block with the kw taps stacked
    # along K, matching the lane-concatenated patches built in-kernel.
    w2m = jnp.transpose(w2, (2, 3, 4, 1, 0))                       # (kd, kh, kw, ci, co)
    w2m = jnp.pad(w2m, ((0, 0), (0, 0), (0, 0), (0, MP - mid), (0, MP - mid)))
    w2m = w2m.reshape(9, 3 * MP, MP).astype(bf16)
    g1p, be1p = jnp.pad(g1, (0, MP - mid)), jnp.pad(be1, (0, MP - mid))
    g2p, be2p = jnp.pad(g2, (0, MP - mid)), jnp.pad(be2, (0, MP - mid))
    g3p, be3p = jnp.pad(g3, (0, OP - outC)), jnp.pad(be3, (0, OP - outC))

    row_par = pltpu.CompilerParams(dimension_semantics=("parallel",),
                                   vmem_limit_bytes=48 * 1024 * 1024)

    def rspec(C):          # row-tiled activation stream (whole (n,d) planes per tile)
        return pl.BlockSpec((TR, C), lambda i: (i, 0))

    def wspec1(shape):     # VMEM-resident weights / folded BN params, 1-D grid
        zeros = (0,) * len(shape)
        return pl.BlockSpec(shape, lambda i: zeros)

    def wspec2(shape):     # same, 2-D grid (pass B)
        zeros = (0,) * len(shape)
        return pl.BlockSpec(shape, lambda n, d: zeros)

    def sspec(C):          # per-tile partial moments
        return pl.BlockSpec((None, 8, C), lambda i: (i, 0, 0))

    # -- pass A: 1x1x1 stem GEMM (+ optional 1x1x1 shortcut GEMM) + partial moments --
    if conv_sc:
        wsm = jnp.pad(jnp.transpose(ws[:, :, 0, 0, 0]),
                      ((0, CinP - Cin), (0, OP - outC))).astype(bf16)
        gsp, besp = jnp.pad(gs, (0, OP - outC)), jnp.pad(bes, (0, OP - outC))
        y1, s1, ysc, ssc = pl.pallas_call(
            _stem_shortcut_kernel,
            grid=(nt,),
            in_specs=[rspec(CinP), wspec1((CinP, MP)), wspec1((CinP, OP))],
            out_specs=[rspec(MP), sspec(MP), rspec(OP), sspec(OP)],
            out_shape=[jax.ShapeDtypeStruct((R, MP), bf16),
                       jax.ShapeDtypeStruct((nt, 8, MP), f32),
                       jax.ShapeDtypeStruct((R, OP), bf16),
                       jax.ShapeDtypeStruct((nt, 8, OP), f32)],
            compiler_params=row_par,
            cost_estimate=pl.CostEstimate(flops=2 * R * CinP * (MP + OP),
                                          transcendentals=0,
                                          bytes_accessed=4 * R * CinP + 2 * R * (MP + OP)),
        )(x_rows, w1m, wsm)
    else:
        y1, s1 = pl.pallas_call(
            _stem_kernel,
            grid=(nt,),
            in_specs=[rspec(CinP), wspec1((CinP, MP))],
            out_specs=[rspec(MP), sspec(MP)],
            out_shape=[jax.ShapeDtypeStruct((R, MP), bf16),
                       jax.ShapeDtypeStruct((nt, 8, MP), f32)],
            compiler_params=row_par,
            cost_estimate=pl.CostEstimate(flops=2 * R * CinP * MP,
                                          transcendentals=0,
                                          bytes_accessed=4 * R * CinP + 2 * R * MP),
        )(x_rows, w1m)

    # -- BN1 finalize (tiny JAX); the normalize itself is fused into the conv kernel --
    sc1, sh1 = _bn_fold(s1, g1p, be1p, R)

    # -- glue: single bf16 zero-halo pad of y1 (BN/ReLU + halo masking are in-kernel,
    #    so there is no h1 intermediate or separate normalize pass any more) --
    Dp, Hp, Wp = D + 2 * dil, H + 2 * dil, W + 2 * dil
    y1p = jnp.pad(y1.reshape(N, D, H, W, MP),
                  ((0, 0), (dil, dil), (dil, dil), (dil, dil), (0, 0)))

    # -- pass B: fused BN1+ReLU + dilated 3x3x3 conv (9 GEMMs of K=3*MP) + moments --
    def plane_spec(kd):
        return pl.BlockSpec((None, None, Hp, Wp, MP),
                            lambda n, d, kd=kd: (n, d + kd * dil, 0, 0, 0))

    y2, s2 = pl.pallas_call(
        functools.partial(_dilated_conv_kernel, D=D, H=H, W=W, dil=dil, MP=MP),
        grid=(N, D),
        in_specs=[plane_spec(0), plane_spec(1), plane_spec(2),
                  wspec2((1, MP)), wspec2((1, MP)), wspec2((9, 3 * MP, MP))],
        out_specs=[pl.BlockSpec((HW, MP), lambda n, d: (n * D + d, 0)),
                   pl.BlockSpec((None, None, 8, MP), lambda n, d: (n, d, 0, 0))],
        out_shape=[jax.ShapeDtypeStruct((R, MP), bf16),
                   jax.ShapeDtypeStruct((N, D, 8, MP), f32)],
        scratch_shapes=[pltpu.VMEM((HW, MP), f32),           # conv f32 accumulator
                        pltpu.VMEM((Hp, W, 3 * MP), bf16)],   # kw-concat patch
        compiler_params=pltpu.CompilerParams(
            dimension_semantics=("parallel", "parallel"),
            vmem_limit_bytes=48 * 1024 * 1024),
        cost_estimate=pl.CostEstimate(flops=2 * R * 27 * MP * MP,
                                      transcendentals=0,
                                      bytes_accessed=6 * N * D * Hp * Wp * MP + 2 * R * MP),
    )(y1p, y1p, y1p, sc1, sh1, w2m)

    # -- pass C: BN2 + ReLU + 1x1x1 projection GEMM + partial moments --
    sc2, sh2 = _bn_fold(s2, g2p, be2p, R)
    y3, s3 = pl.pallas_call(
        _bn_relu_matmul_kernel,
        grid=(nt,),
        in_specs=[rspec(MP), wspec1((1, MP)), wspec1((1, MP)), wspec1((MP, OP))],
        out_specs=[rspec(OP), sspec(OP)],
        out_shape=[jax.ShapeDtypeStruct((R, OP), bf16),
                   jax.ShapeDtypeStruct((nt, 8, OP), f32)],
        compiler_params=row_par,
        cost_estimate=pl.CostEstimate(flops=2 * R * MP * OP,
                                      transcendentals=0,
                                      bytes_accessed=2 * R * (MP + OP)),
    )(y2, sc2, sh2, w3m)

    # -- pass D: BN3 + shortcut (+BN if conv shortcut) + add + ReLU --
    sc3, sh3 = _bn_fold(s3, g3p, be3p, R)
    if conv_sc:
        scs, shs = _bn_fold(ssc, gsp, besp, R)
        out_rows = pl.pallas_call(
            _residual_out_conv_kernel,
            grid=(nt,),
            in_specs=[rspec(OP), wspec1((1, OP)), wspec1((1, OP)),
                      rspec(OP), wspec1((1, OP)), wspec1((1, OP))],
            out_specs=rspec(OP),
            out_shape=jax.ShapeDtypeStruct((R, OP), f32),
            compiler_params=row_par,
        )(y3, sc3, sh3, ysc, scs, shs)
    else:
        out_rows = pl.pallas_call(
            _residual_out_id_kernel,
            grid=(nt,),
            in_specs=[rspec(OP), wspec1((1, OP)), wspec1((1, OP)), rspec(CinP)],
            out_specs=rspec(OP),
            out_shape=jax.ShapeDtypeStruct((R, OP), f32),
            compiler_params=row_par,
        )(y3, sc3, sh3, x_rows)

    out = out_rows[:, :outC].reshape(N, D, H, W, outC)
    return jnp.transpose(out, (0, 4, 1, 2, 3))   # back to NCDHW


# ---------------- deterministic parameter init (matches module shapes) ----------------

def init_params(key, inChan, outChan, reduction=2):
    mid = inChan // reduction
    ks = jax.random.split(key, 8)
    w1 = 0.3 * jax.random.normal(ks[0], (mid, inChan, 1, 1, 1), jnp.float32)
    b1 = 0.1 * jax.random.normal(ks[1], (mid,), jnp.float32)
    w2 = 0.3 * jax.random.normal(ks[2], (mid, mid, 3, 3, 3), jnp.float32)
    b2 = 0.1 * jax.random.normal(ks[3], (mid,), jnp.float32)
    w3 = 0.3 * jax.random.normal(ks[4], (outChan, mid, 1, 1, 1), jnp.float32)
    b3 = 0.1 * jax.random.normal(ks[5], (outChan,), jnp.float32)
    ws = 0.3 * jax.random.normal(ks[6], (outChan, inChan, 1, 1, 1), jnp.float32)
    bs = 0.1 * jax.random.normal(ks[7], (outChan,), jnp.float32)
    g1, be1 = jnp.ones((mid,), jnp.float32), jnp.zeros((mid,), jnp.float32)
    g2, be2 = jnp.ones((mid,), jnp.float32), jnp.zeros((mid,), jnp.float32)
    g3, be3 = jnp.ones((outChan,), jnp.float32), jnp.zeros((outChan,), jnp.float32)
    gs, bes = jnp.ones((outChan,), jnp.float32), jnp.zeros((outChan,), jnp.float32)
    return (w1, b1, g1, be1, w2, b2, g2, be2, w3, b3, g3, be3, ws, bs, gs, bes)


# ---------------- pure-JAX reference (mirrors the PyTorch forward) ----------------

def reference(x, params, dilation=2):
    (w1, b1, g1, be1, w2, b2, g2, be2, w3, b3, g3, be3, ws, bs, gs, bes) = params
    conv_shortcut = (x.shape[1] != w3.shape[0])

    def conv(y, w, b, dil=1, pad=0):
        o = jax.lax.conv_general_dilated(
            y, w, window_strides=(1, 1, 1), padding=[(pad, pad)] * 3,
            rhs_dilation=(dil, dil, dil),
            dimension_numbers=("NCDHW", "OIDHW", "NCDHW"))
        return o + b.reshape(1, -1, 1, 1, 1)

    def bn(y, g, be):
        mean = jnp.mean(y, axis=(0, 2, 3, 4), keepdims=True)
        var = jnp.mean((y - mean) ** 2, axis=(0, 2, 3, 4), keepdims=True)
        return (y - mean) / jnp.sqrt(var + EPS) * g.reshape(1, -1, 1, 1, 1) \
            + be.reshape(1, -1, 1, 1, 1)

    h = jax.nn.relu(bn(conv(x, w1, b1), g1, be1))
    h = jax.nn.relu(bn(conv(h, w2, b2, dil=dilation, pad=dilation), g2, be2))
    h = bn(conv(h, w3, b3), g3, be3)
    s = bn(conv(x, ws, bs), gs, bes) if conv_shortcut else x
    return jax.nn.relu(h + s)


if __name__ == "__main__":
    key = jax.random.PRNGKey(0)
    k1, k2, k3, k4 = jax.random.split(key, 4)

    fwd = jax.jit(dilated_residual_unit_3d, static_argnames=("dilation",))
    # tolerance sized for bf16 MXU GEMM operands + bf16-stored intermediates (f32 BN math)
    RTOL = ATOL = 4e-2

    # Case 1: conv shortcut (inChan != outChan): batch=2, 4 -> 8 channels, 8^3 volume
    N, Cin, D, H, W, outC = 2, 4, 8, 8, 8, 8
    x = jax.random.normal(k1, (N, Cin, D, H, W), jnp.float32)
    params = init_params(k2, Cin, outC, reduction=2)
    out = jax.block_until_ready(fwd(x, params, dilation=2))
    ref = reference(x, params, dilation=2)
    np.testing.assert_allclose(np.asarray(out), np.asarray(ref), rtol=RTOL, atol=ATOL)

    # Case 2: identity shortcut (inChan == outChan)
    Cin2 = 8
    x2 = jax.random.normal(k3, (N, Cin2, D, H, W), jnp.float32)
    params2 = init_params(k4, Cin2, outC, reduction=2)
    out2 = jax.block_until_ready(fwd(x2, params2, dilation=2))
    ref2 = reference(x2, params2, dilation=2)
    np.testing.assert_allclose(np.asarray(out2), np.asarray(ref2), rtol=RTOL, atol=ATOL)

    print("KERNEL_OK")
</pallas_src>

<mosaic_0001>
module attributes {stable_mosaic.version = 11 : i64} {
  func.func @_stem_shortcut_kernel(%arg0: i32, %arg1: memref<512x128xf32, #tpu.memory_space<vmem>>, %arg2: memref<128x128xbf16, #tpu.memory_space<vmem>>, %arg3: memref<128x128xbf16, #tpu.memory_space<vmem>>, %arg4: memref<512x128xbf16, #tpu.memory_space<vmem>>, %arg5: memref<1x8x128xf32, #tpu.memory_space<vmem>>, %arg6: memref<512x128xbf16, #tpu.memory_space<vmem>>, %arg7: memref<1x8x128xf32, #tpu.memory_space<vmem>>) attributes {dimension_semantics = [#tpu.dimension_semantics<parallel>], iteration_bounds = array<i64: 2>, scalar_prefetch = 0 : i64, scratch_operands = 0 : i64, tpu.core_type = #tpu.core_type<tc>, window_params = [{transform_indices = @transform_0, window_bounds = array<i64: 512, 128>}, {pipeline_mode = #tpu.pipeline_mode<synchronous>, transform_indices = @transform_1, window_bounds = array<i64: 128, 128>}, {pipeline_mode = #tpu.pipeline_mode<synchronous>, transform_indices = @transform_2, window_bounds = array<i64: 128, 128>}, {transform_indices = @transform_3, window_bounds = array<i64: 512, 128>}, {transform_indices = @transform_4, window_bounds = array<i64: 1, 8, 128>}, {transform_indices = @transform_5, window_bounds = array<i64: 512, 128>}, {transform_indices = @transform_6, window_bounds = array<i64: 1, 8, 128>}]} {
    %c0 = arith.constant 0 : index
    %c0_0 = arith.constant 0 : index
    %0 = vector.load %arg1[%c0, %c0_0] : memref<512x128xf32, #tpu.memory_space<vmem>>, vector<512x128xf32>
    %1 = arith.truncf %0 : vector<512x128xf32> to vector<512x128xbf16>
    %c0_1 = arith.constant 0 : index
    %c0_2 = arith.constant 0 : index
    %2 = vector.load %arg2[%c0_1, %c0_2] : memref<128x128xbf16, #tpu.memory_space<vmem>>, vector<128x128xbf16>
    %cst = arith.constant dense<0.000000e+00> : vector<512x128xf32>
    %3 = tpu.matmul %1, %2, %cst {dimension_numbers = #tpu.dot_dimension_numbers<[1], [0], [0], [1], [0, 0, 1, 1], [], []>} : vector<512x128xbf16>, vector<128x128xbf16>, vector<512x128xf32> -> vector<512x128xf32>
    %4 = tpu.iota {dimensions = array<i32: 0>} : vector<8x128xi32>
    %cst_3 = arith.constant dense<0.000000e+00> : vector<128xf32>
    %5 = vector.multi_reduction <add>, %3, %cst_3 [0] : vector<512x128xf32> to vector<128xf32>
    %6 = vector.shape_cast %5 : vector<128xf32> to vector<1x128xf32>
    %7 = vector.shape_cast %6 : vector<1x128xf32> to vector<1x128xf32>
    %8 = vector.broadcast %7 : vector<1x128xf32> to vector<8x128xf32>
    %9 = arith.mulf %3, %3 : vector<512x128xf32>
    %cst_4 = arith.constant dense<0.000000e+00> : vector<128xf32>
    %10 = vector.multi_reduction <add>, %9, %cst_4 [0] : vector<512x128xf32> to vector<128xf32>
    %11 = vector.shape_cast %10 : vector<128xf32> to vector<1x128xf32>
    %12 = vector.shape_cast %11 : vector<1x128xf32> to vector<1x128xf32>
    %13 = vector.broadcast %12 : vector<1x128xf32> to vector<8x128xf32>
    %c0_i32 = arith.constant 0 : i32
    %14 = vector.broadcast %c0_i32 : i32 to vector<8x128xi32>
    %15 = arith.cmpi eq, %4, %14 : vector<8x128xi32>
    %c1_i32 = arith.constant 1 : i32
    %16 = vector.broadcast %c1_i32 : i32 to vector<8x128xi32>
    %17 = arith.cmpi eq, %4, %16 : vector<8x128xi32>
    %cst_5 = arith.constant 0.000000e+00 : f32
    %18 = vector.broadcast %cst_5 : f32 to vector<8x128xf32>
    %19 = arith.select %17, %13, %18 : vector<8x128xi1>, vector<8x128xf32>
    %20 = arith.select %15, %8, %19 : vector<8x128xi1>, vector<8x128xf32>
    %c0_6 = arith.constant 0 : index
    %c0_7 = arith.constant 0 : index
    %c0_8 = arith.constant 0 : index
    %21 = vector.load %arg5[%c0_6, %c0_7, %c0_8] : memref<1x8x128xf32, #tpu.memory_space<vmem>>, vector<1x8x128xf32>
    %22 = vector.shape_cast %21 : vector<1x8x128xf32> to vector<8x128xf32>
    %23 = vector.shape_cast %20 : vector<8x128xf32> to vector<1x8x128xf32>
    tpu.vector_store %arg5[%c0_6, %c0_7, %c0_8], %23 {strides = array<i32>} : memref<1x8x128xf32, #tpu.memory_space<vmem>>, vector<1x8x128xf32>,
    %24 = arith.truncf %3 : vector<512x128xf32> to vector<512x128xbf16>
    %c0_9 = arith.constant 0 : index
    %c0_10 = arith.constant 0 : index
    %25 = vector.load %arg4[%c0_9, %c0_10] : memref<512x128xbf16, #tpu.memory_space<vmem>>, vector<512x128xbf16>
    tpu.vector_store %arg4[%c0_9, %c0_10], %24 {strides = array<i32>} : memref<512x128xbf16, #tpu.memory_space<vmem>>, vector<512x128xbf16>,
    %c0_11 = arith.constant 0 : index
    %c0_12 = arith.constant 0 : index
    %26 = vector.load %arg3[%c0_11, %c0_12] : memref<128x128xbf16, #tpu.memory_space<vmem>>, vector<128x128xbf16>
    %cst_13 = arith.constant dense<0.000000e+00> : vector<512x128xf32>
    %27 = tpu.matmul %1, %26, %cst_13 {dimension_numbers = #tpu.dot_dimension_numbers<[1], [0], [0], [1], [0, 0, 1, 1], [], []>} : vector<512x128xbf16>, vector<128x128xbf16>, vector<512x128xf32> -> vector<512x128xf32>
    %28 = tpu.iota {dimensions = array<i32: 0>} : vector<8x128xi32>
    %cst_14 = arith.constant dense<0.000000e+00> : vector<128xf32>
    %29 = vector.multi_reduction <add>, %27, %cst_14 [0] : vector<512x128xf32> to vector<128xf32>
    %30 = vector.shape_cast %29 : vector<128xf32> to vector<1x128xf32>
    %31 = vector.shape_cast %30 : vector<1x128xf32> to vector<1x128xf32>
    %32 = vector.broadcast %31 : vector<1x128xf32> to vector<8x128xf32>
    %33 = arith.mulf %27, %27 : vector<512x128xf32>
    %cst_15 = arith.constant dense<0.000000e+00> : vector<128xf32>
    %34 = vector.multi_reduction <add>, %33, %cst_15 [0] : vector<512x128xf32> to vector<128xf32>
    %35 = vector.shape_cast %34 : vector<128xf32> to vector<1x128xf32>
    %36 = vector.shape_cast %35 : vector<1x128xf32> to vector<1x128xf32>
    %37 = vector.broadcast %36 : vector<1x128xf32> to vector<8x128xf32>
    %c0_i32_16 = arith.constant 0 : i32
    %38 = vector.broadcast %c0_i32_16 : i32 to vector<8x128xi32>
    %39 = arith.cmpi eq, %28, %38 : vector<8x128xi32>
    %c1_i32_17 = arith.constant 1 : i32
    %40 = vector.broadcast %c1_i32_17 : i32 to vector<8x128xi32>
    %41 = arith.cmpi eq, %28, %40 : vector<8x128xi32>
    %cst_18 = arith.constant 0.000000e+00 : f32
    %42 = vector.broadcast %cst_18 : f32 to vector<8x128xf32>
    %43 = arith.select %41, %37, %42 : vector<8x128xi1>, vector<8x128xf32>
    %44 = arith.select %39, %32, %43 : vector<8x128xi1>, vector<8x128xf32>
    %c0_19 = arith.constant 0 : index
    %c0_20 = arith.constant 0 : index
    %c0_21 = arith.constant 0 : index
    %45 = vector.load %arg7[%c0_19, %c0_20, %c0_21] : memref<1x8x128xf32, #tpu.memory_space<vmem>>, vector<1x8x128xf32>
    %46 = vector.shape_cast %45 : vector<1x8x128xf32> to vector<8x128xf32>
    %47 = vector.shape_cast %44 : vector<8x128xf32> to vector<1x8x128xf32>
    tpu.vector_store %arg7[%c0_19, %c0_20, %c0_21], %47 {strides = array<i32>} : memref<1x8x128xf32, #tpu.memory_space<vmem>>, vector<1x8x128xf32>,
    %48 = arith.truncf %27 : vector<512x128xf32> to vector<512x128xbf16>
    %c0_22 = arith.constant 0 : index
    %c0_23 = arith.constant 0 : index
    %49 = vector.load %arg6[%c0_22, %c0_23] : memref<512x128xbf16, #tpu.memory_space<vmem>>, vector<512x128xbf16>
    tpu.vector_store %arg6[%c0_22, %c0_23], %48 {strides = array<i32>} : memref<512x128xbf16, #tpu.memory_space<vmem>>, vector<512x128xbf16>,
    return
  }
  func.func @transform_0(%arg0: i32) -> (i32, i32) {
    %c0_i32 = arith.constant 0 : i32
    %c0_i32_0 = arith.constant 0 : i32
    return %arg0, %c0_i32 : i32, i32
  }
  func.func @transform_1(%arg0: i32) -> (i32, i32) {
    %c0_i32 = arith.constant 0 : i32
    %c0_i32_0 = arith.constant 0 : i32
    %c0_i32_1 = arith.constant 0 : i32
    return %c0_i32, %c0_i32_0 : i32, i32
  }
  func.func @transform_2(%arg0: i32) -> (i32, i32) {
    %c0_i32 = arith.constant 0 : i32
    %c0_i32_0 = arith.constant 0 : i32
    %c0_i32_1 = arith.constant 0 : i32
    return %c0_i32, %c0_i32_0 : i32, i32
  }
  func.func @transform_3(%arg0: i32) -> (i32, i32) {
    %c0_i32 = arith.constant 0 : i32
    %c0_i32_0 = arith.constant 0 : i32
    return %arg0, %c0_i32 : i32, i32
  }
  func.func @transform_4(%arg0: i32) -> (i32, i32, i32) {
    %c0_i32 = arith.constant 0 : i32
    %c0_i32_0 = arith.constant 0 : i32
    %c0_i32_1 = arith.constant 0 : i32
    return %arg0, %c0_i32, %c0_i32_0 : i32, i32, i32
  }
  func.func @transform_5(%arg0: i32) -> (i32, i32) {
    %c0_i32 = arith.constant 0 : i32
    %c0_i32_0 = arith.constant 0 : i32
    return %arg0, %c0_i32 : i32, i32
  }
  func.func @transform_6(%arg0: i32) -> (i32, i32, i32) {
    %c0_i32 = arith.constant 0 : i32
    %c0_i32_0 = arith.constant 0 : i32
    %c0_i32_1 = arith.constant 0 : i32
    return %arg0, %c0_i32, %c0_i32_0 : i32, i32, i32
  }
}

module attributes {stable_mosaic.version = 11 : i64} {
  func.func @_dilated_conv_kernel(%arg0: i32, %arg1: i32, %arg2: memref<1x1x12x12x128xbf16, #tpu.memory_space<vmem>>, %arg3: memref<1x1x12x12x128xbf16, #tpu.memory_space<vmem>>, %arg4: memref<1x1x12x12x128xbf16, #tpu.memory_space<vmem>>, %arg5: memref<1x128xf32, #tpu.memory_space<vmem>>, %arg6: memref<1x128xf32, #tpu.memory_space<vmem>>, %arg7: memref<9x384x128xbf16, #tpu.memory_space<vmem>>, %arg8: memref<64x128xbf16, #tpu.memory_space<vmem>>, %arg9: memref<1x1x8x128xf32, #tpu.memory_space<vmem>>, %arg10: memref<64x128xf32, #tpu.memory_space<vmem>>, %arg11: memref<12x8x384xbf16, #tpu.memory_space<vmem>>) attributes {dimension_semantics = [#tpu.dimension_semantics<parallel>, #tpu.dimension_semantics<parallel>], iteration_bounds = array<i64: 2, 8>, scalar_prefetch = 0 : i64, scratch_operands = 2 : i64, tpu.core_type = #tpu.core_type<tc>, window_params = [{transform_indices = @transform_0, window_bounds = array<i64: 1, 1, 12, 12, 128>}, {transform_indices = @transform_1, window_bounds = array<i64: 1, 1, 12, 12, 128>}, {transform_indices = @transform_2, window_bounds = array<i64: 1, 1, 12, 12, 128>}, {pipeline_mode = #tpu.pipeline_mode<synchronous>, transform_indices = @transform_3, window_bounds = array<i64: 1, 128>}, {pipeline_mode = #tpu.pipeline_mode<synchronous>, transform_indices = @transform_4, window_bounds = array<i64: 1, 128>}, {pipeline_mode = #tpu.pipeline_mode<synchronous>, transform_indices = @transform_5, window_bounds = array<i64: 9, 384, 128>}, {transform_indices = @transform_6, window_bounds = array<i64: 64, 128>}, {transform_indices = @transform_7, window_bounds = array<i64: 1, 1, 8, 128>}]} {
    %cst = arith.constant 0.000000e+00 : f32
    %0 = vector.broadcast %cst : f32 to vector<64x128xf32>
    %c0 = arith.constant 0 : index
    %c0_0 = arith.constant 0 : index
    %1 = vector.load %arg10[%c0, %c0_0] : memref<64x128xf32, #tpu.memory_space<vmem>>, vector<64x128xf32>
    tpu.vector_store %arg10[%c0, %c0_0], %0 {strides = array<i32>} : memref<64x128xf32, #tpu.memory_space<vmem>>, vector<64x128xf32>,
    %c0_1 = arith.constant 0 : index
    %c0_2 = arith.constant 0 : index
    %2 = vector.load %arg5[%c0_1, %c0_2] : memref<1x128xf32, #tpu.memory_space<vmem>>, vector<1x128xf32>
    %3 = vector.shape_cast %2 : vector<1x128xf32> to vector<1x1x128xf32>
    %c0_3 = arith.constant 0 : index
    %c0_4 = arith.constant 0 : index
    %4 = vector.load %arg6[%c0_3, %c0_4] : memref<1x128xf32, #tpu.memory_space<vmem>>, vector<1x128xf32>
    %5 = vector.shape_cast %4 : vector<1x128xf32> to vector<1x1x128xf32>
    %6 = tpu.iota {dimensions = array<i32: 0>} : vector<12x8x1xi32>
    %7 = tpu.iota {dimensions = array<i32: 1>} : vector<12x8x1xi32>
    %c2_i32 = arith.constant 2 : i32
    %8 = vector.broadcast %c2_i32 : i32 to vector<12x8x1xi32>
    %9 = arith.cmpi sge, %6, %8 : vector<12x8x1xi32>
    %c10_i32 = arith.constant 10 : i32
    %10 = vector.broadcast %c10_i32 : i32 to vector<12x8x1xi32>
    %11 = arith.cmpi slt, %6, %10 : vector<12x8x1xi32>
    %12 = arith.andi %9, %11 : vector<12x8x1xi1>
    %c-2_i32 = arith.constant -2 : i32
    %13 = arith.addi %arg1, %c-2_i32 : i32
    %c0_i32 = arith.constant 0 : i32
    %14 = arith.cmpi sge, %13, %c0_i32 : i32
    %c8_i32 = arith.constant 8 : i32
    %15 = arith.cmpi slt, %13, %c8_i32 : i32
    %16 = arith.andi %14, %15 : i1
    %c0_5 = arith.constant 0 : index
    %c0_6 = arith.constant 0 : index
    %c0_7 = arith.constant 0 : index
    %c0_8 = arith.constant 0 : index
    %c0_9 = arith.constant 0 : index
    %17 = vector.load %arg2[%c0_5, %c0_6, %c0_7, %c0_8, %c0_9] : memref<1x1x12x12x128xbf16, #tpu.memory_space<vmem>>, vector<1x1x12x8x128xbf16>
    %18 = vector.shape_cast %17 : vector<1x1x12x8x128xbf16> to vector<12x8x128xbf16>
    %19 = arith.extf %18 : vector<12x8x128xbf16> to vector<12x8x128xf32>
    %c2_i32_10 = arith.constant 2 : i32
    %20 = vector.broadcast %c2_i32_10 : i32 to vector<12x8x1xi32>
    %21 = arith.cmpi sge, %7, %20 : vector<12x8x1xi32>
    %c8_i32_11 = arith.constant 8 : i32
    %22 = vector.broadcast %c8_i32_11 : i32 to vector<12x8x1xi32>
    %23 = arith.cmpi slt, %7, %22 : vector<12x8x1xi32>
    %24 = arith.andi %21, %23 : vector<12x8x1xi1>
    %25 = arith.andi %12, %24 : vector<12x8x1xi1>
    %26 = vector.broadcast %16 : i1 to vector<12x8x1xi1>
    %27 = arith.andi %25, %26 : vector<12x8x1xi1>
    %28 = vector.broadcast %3 : vector<1x1x128xf32> to vector<12x8x128xf32>
    %29 = arith.mulf %19, %28 : vector<12x8x128xf32>
    %30 = vector.broadcast %5 : vector<1x1x128xf32> to vector<12x8x128xf32>
    %31 = arith.addf %29, %30 : vector<12x8x128xf32>
    %cst_12 = arith.constant 0.000000e+00 : f32
    %32 = vector.broadcast %cst_12 : f32 to vector<12x8x128xf32>
    %33 = arith.maximumf %31, %32 : vector<12x8x128xf32>
    %cst_13 = arith.constant 0.000000e+00 : f32
    %34 = vector.shape_cast %27 : vector<12x8x1xi1> to vector<12x8x1xi1>
    %35 = vector.broadcast %34 : vector<12x8x1xi1> to vector<12x8x128xi1>
    %36 = vector.broadcast %cst_13 : f32 to vector<12x8x128xf32>
    %37 = arith.select %35, %33, %36 : vector<12x8x128xi1>, vector<12x8x128xf32>
    %38 = arith.truncf %37 : vector<12x8x128xf32> to vector<12x8x128xbf16>
    %c0_14 = arith.constant 0 : index
    %c0_15 = arith.constant 0 : index
    %c0_16 = arith.constant 0 : index
    %39 = vector.load %arg11[%c0_14, %c0_15, %c0_16] : memref<12x8x384xbf16, #tpu.memory_space<vmem>>, vector<12x8x128xbf16>
    tpu.vector_store %arg11[%c0_14, %c0_15, %c0_16], %38 {strides = array<i32>} : memref<12x8x384xbf16, #tpu.memory_space<vmem>>, vector<12x8x128xbf16>,
    %c0_17 = arith.constant 0 : index
    %c0_18 = arith.constant 0 : index
    %c0_19 = arith.constant 0 : index
    %c2 = arith.constant 2 : index
    %c0_20 = arith.constant 0 : index
    %40 = vector.load %arg2[%c0_17, %c0_18, %c0_19, %c2, %c0_20] : memref<1x1x12x12x128xbf16, #tpu.memory_space<vmem>>, vector<1x1x12x8x128xbf16>
    %41 = vector.shape_cast %40 : vector<1x1x12x8x128xbf16> to vector<12x8x128xbf16>
    %42 = arith.extf %41 : vector<12x8x128xbf16> to vector<12x8x128xf32>
    %c0_i32_21 = arith.constant 0 : i32
    %43 = vector.broadcast %c0_i32_21 : i32 to vector<12x8x1xi32>
    %44 = arith.cmpi sge, %7, %43 : vector<12x8x1xi32>
    %c8_i32_22 = arith.constant 8 : i32
    %45 = vector.broadcast %c8_i32_22 : i32 to vector<12x8x1xi32>
    %46 = arith.cmpi slt, %7, %45 : vector<12x8x1xi32>
    %47 = arith.andi %44, %46 : vector<12x8x1xi1>
    %48 = arith.andi %12, %47 : vector<12x8x1xi1>
    %49 = vector.broadcast %16 : i1 to vector<12x8x1xi1>
    %50 = arith.andi %48, %49 : vector<12x8x1xi1>
    %51 = vector.broadcast %3 : vector<1x1x128xf32> to vector<12x8x128xf32>
    %52 = arith.mulf %42, %51 : vector<12x8x128xf32>
    %53 = vector.broadcast %5 : vector<1x1x128xf32> to vector<12x8x128xf32>
    %54 = arith.addf %52, %53 : vector<12x8x128xf32>
    %cst_23 = arith.constant 0.000000e+00 : f32
    %55 = vector.broadcast %cst_23 : f32 to vector<12x8x128xf32>
    %56 = arith.maximumf %54, %55 : vector<12x8x128xf32>
    %cst_24 = arith.constant 0.000000e+00 : f32
    %57 = vector.shape_cast %50 : vector<12x8x1xi1> to vector<12x8x1xi1>
    %58 = vector.broadcast %57 : vector<12x8x1xi1> to vector<12x8x128xi1>
    %59 = vector.broadcast %cst_24 : f32 to vector<12x8x128xf32>
    %60 = arith.select %58, %56, %59 : vector<12x8x128xi1>, vector<12x8x128xf32>
    %61 = arith.truncf %60 : vector<12x8x128xf32> to vector<12x8x128xbf16>
    %c0_25 = arith.constant 0 : index
    %c0_26 = arith.constant 0 : index
    %c128 = arith.constant 128 : index
    %62 = vector.load %arg11[%c0_25, %c0_26, %c128] : memref<12x8x384xbf16, #tpu.memory_space<vmem>>, vector<12x8x128xbf16>
    tpu.vector_store %arg11[%c0_25, %c0_26, %c128], %61 {strides = array<i32>} : memref<12x8x384xbf16, #tpu.memory_space<vmem>>, vector<12x8x128xbf16>,
    %c0_27 = arith.constant 0 : index
    %c0_28 = arith.constant 0 : index
    %c0_29 = arith.constant 0 : index
    %c4 = arith.constant 4 : index
    %c0_30 = arith.constant 0 : index
    %63 = vector.load %arg2[%c0_27, %c0_28, %c0_29, %c4, %c0_30] : memref<1x1x12x12x128xbf16, #tpu.memory_space<vmem>>, vector<1x1x12x8x128xbf16>
    %64 = vector.shape_cast %63 : vector<1x1x12x8x128xbf16> to vector<12x8x128xbf16>
    %65 = arith.extf %64 : vector<12x8x128xbf16> to vector<12x8x128xf32>
    %c0_i32_31 = arith.constant 0 : i32
    %66 = vector.broadcast %c0_i32_31 : i32 to vector<12x8x1xi32>
    %67 = arith.cmpi sge, %7, %66 : vector<12x8x1xi32>
    %c6_i32 = arith.constant 6 : i32
    %68 = vector.broadcast %c6_i32 : i32 to vector<12x8x1xi32>
    %69 = arith.cmpi slt, %7, %68 : vector<12x8x1xi32>
    %70 = arith.andi %67, %69 : vector<12x8x1xi1>
    %71 = arith.andi %12, %70 : vector<12x8x1xi1>
    %72 = vector.broadcast %16 : i1 to vector<12x8x1xi1>
    %73 = arith.andi %71, %72 : vector<12x8x1xi1>
    %74 = vector.broadcast %3 : vector<1x1x128xf32> to vector<12x8x128xf32>
    %75 = arith.mulf %65, %74 : vector<12x8x128xf32>
    %76 = vector.broadcast %5 : vector<1x1x128xf32> to vector<12x8x128xf32>
    %77 = arith.addf %75, %76 : vector<12x8x128xf32>
    %cst_32 = arith.constant 0.000000e+00 : f32
    %78 = vector.broadcast %cst_32 : f32 to vector<12x8x128xf32>
    %79 = arith.maximumf %77, %78 : vector<12x8x128xf32>
    %cst_33 = arith.constant 0.000000e+00 : f32
    %80 = vector.shape_cast %73 : vector<12x8x1xi1> to vector<12x8x1xi1>
    %81 = vector.broadcast %80 : vector<12x8x1xi1> to vector<12x8x128xi1>
    %82 = vector.broadcast %cst_33 : f32 to vector<12x8x128xf32>
    %83 = arith.select %81, %79, %82 : vector<12x8x128xi1>, vector<12x8x128xf32>
    %84 = arith.truncf %83 : vector<12x8x128xf32> to vector<12x8x128xbf16>
    %c0_34 = arith.constant 0 : index
    %c0_35 = arith.constant 0 : index
    %c256 = arith.constant 256 : index
    %85 = vector.load %arg11[%c0_34, %c0_35, %c256] : memref<12x8x384xbf16, #tpu.memory_space<vmem>>, vector<12x8x128xbf16>
    tpu.vector_store %arg11[%c0_34, %c0_35, %c256], %84 {strides = array<i32>} : memref<12x8x384xbf16, #tpu.memory_space<vmem>>, vector<12x8x128xbf16>,
    %c0_36 = arith.constant 0 : index
    %c0_37 = arith.constant 0 : index
    %c0_38 = arith.constant 0 : index
    %86 = vector.load %arg11[%c0_36, %c0_37, %c0_38] : memref<12x8x384xbf16, #tpu.memory_space<vmem>>, vector<8x8x384xbf16>
    %87 = vector.shape_cast %86 : vector<8x8x384xbf16> to vector<64x384xbf16>
    %c0_39 = arith.constant 0 : index
    %c0_40 = arith.constant 0 : index
    %88 = vector.load %arg10[%c0_39, %c0_40] : memref<64x128xf32, #tpu.memory_space<vmem>>, vector<64x128xf32>
    %c0_41 = arith.constant 0 : index
    %c0_42 = arith.constant 0 : index
    %c0_43 = arith.constant 0 : index
    %89 = vector.load %arg7[%c0_41, %c0_42, %c0_43] : memref<9x384x128xbf16, #tpu.memory_space<vmem>>, vector<1x384x128xbf16>
    %90 = vector.shape_cast %89 : vector<1x384x128xbf16> to vector<384x128xbf16>
    %cst_44 = arith.constant dense<0.000000e+00> : vector<64x128xf32>
    %91 = tpu.matmul %87, %90, %cst_44 {dimension_numbers = #tpu.dot_dimension_numbers<[1], [0], [0], [1], [0, 0, 1, 1], [], []>} : vector<64x384xbf16>, vector<384x128xbf16>, vector<64x128xf32> -> vector<64x128xf32>
    %92 = arith.addf %88, %91 : vector<64x128xf32>
    %c0_45 = arith.constant 0 : index
    %c0_46 = arith.constant 0 : index
    %93 = vector.load %arg10[%c0_45, %c0_46] : memref<64x128xf32, #tpu.memory_space<vmem>>, vector<64x128xf32>
    tpu.vector_store %arg10[%c0_45, %c0_46], %92 {strides = array<i32>} : memref<64x128xf32, #tpu.memory_space<vmem>>, vector<64x128xf32>,
    %c2_47 = arith.constant 2 : index
    %c0_48 = arith.constant 0 : index
    %c0_49 = arith.constant 0 : index
    %94 = vector.load %arg11[%c2_47, %c0_48, %c0_49] : memref<12x8x384xbf16, #tpu.memory_space<vmem>>, vector<8x8x384xbf16>
    %95 = vector.shape_cast %94 : vector<8x8x384xbf16> to vector<64x384xbf16>
    %c0_50 = arith.constant 0 : index
    %c0_51 = arith.constant 0 : index
    %96 = vector.load %arg10[%c0_50, %c0_51] : memref<64x128xf32, #tpu.memory_space<vmem>>, vector<64x128xf32>
    %c1 = arith.constant 1 : index
    %c0_52 = arith.constant 0 : index
    %c0_53 = arith.constant 0 : index
    %97 = vector.load %arg7[%c1, %c0_52, %c0_53] : memref<9x384x128xbf16, #tpu.memory_space<vmem>>, vector<1x384x128xbf16>
    %98 = vector.shape_cast %97 : vector<1x384x128xbf16> to vector<384x128xbf16>
    %cst_54 = arith.constant dense<0.000000e+00> : vector<64x128xf32>
    %99 = tpu.matmul %95, %98, %cst_54 {dimension_numbers = #tpu.dot_dimension_numbers<[1], [0], [0], [1], [0, 0, 1, 1], [], []>} : vector<64x384xbf16>, vector<384x128xbf16>, vector<64x128xf32> -> vector<64x128xf32>
    %100 = arith.addf %96, %99 : vector<64x128xf32>
    %c0_55 = arith.constant 0 : index
    %c0_56 = arith.constant 0 : index
    %101 = vector.load %arg10[%c0_55, %c0_56] : memref<64x128xf32, #tpu.memory_space<vmem>>, vector<64x128xf32>
    tpu.vector_store %arg10[%c0_55, %c0_56], %100 {strides = array<i32>} : memref<64x128xf32, #tpu.memory_space<vmem>>, vector<64x128xf32>,
    %c4_57 = arith.constant 4 : index
    %c0_58 = arith.constant 0 : index
    %c0_59 = arith.constant 0 : index
    %102 = vector.load %arg11[%c4_57, %c0_58, %c0_59] : memref<12x8x384xbf16, #tpu.memory_space<vmem>>, vector<8x8x384xbf16>
    %103 = vector.shape_cast %102 : vector<8x8x384xbf16> to vector<64x384xbf16>
    %c0_60 = arith.constant 0 : index
    %c0_61 = arith.constant 0 : index
    %104 = vector.load %arg10[%c0_60, %c0_61] : memref<64x128xf32, #tpu.memory_space<vmem>>, vector<64x128xf32>
    %c2_62 = arith.constant 2 : index
    %c0_63 = arith.constant 0 : index
    %c0_64 = arith.constant 0 : index
    %105 = vector.load %arg7[%c2_62, %c0_63, %c0_64] : memref<9x384x128xbf16, #tpu.memory_space<vmem>>, vector<1x384x128xbf16>
    %106 = vector.shape_cast %105 : vector<1x384x128xbf16> to vector<384x128xbf16>
    %cst_65 = arith.constant dense<0.000000e+00> : vector<64x128xf32>
    %107 = tpu.matmul %103, %106, %cst_65 {dimension_numbers = #tpu.dot_dimension_numbers<[1], [0], [0], [1], [0, 0, 1, 1], [], []>} : vector<64x384xbf16>, vector<384x128xbf16>, vector<64x128xf32> -> vector<64x128xf32>
    %108 = arith.addf %104, %107 : vector<64x128xf32>
    %c0_66 = arith.constant 0 : index
    %c0_67 = arith.constant 0 : index
    %109 = vector.load %arg10[%c0_66, %c0_67] : memref<64x128xf32, #tpu.memory_space<vmem>>, vector<64x128xf32>
    tpu.vector_store %arg10[%c0_66, %c0_67], %108 {strides = array<i32>} : memref<64x128xf32, #tpu.memory_space<vmem>>, vector<64x128xf32>,
    %c0_i32_68 = arith.constant 0 : i32
    %110 = arith.addi %arg1, %c0_i32_68 : i32
    %c0_i32_69 = arith.constant 0 : i32
    %111 = arith.cmpi sge, %110, %c0_i32_69 : i32
    %c8_i32_70 = arith.constant 8 : i32
    %112 = arith.cmpi slt, %110, %c8_i32_70 : i32
    %113 = arith.andi %111, %112 : i1
    %c0_71 = arith.constant 0 : index
    %c0_72 = arith.constant 0 : index
    %c0_73 = arith.constant 0 : index
    %c0_74 = arith.constant 0 : index
    %c0_75 = arith.constant 0 : index
    %114 = vector.load %arg3[%c0_71, %c0_72, %c0_73, %c0_74, %c0_75] : memref<1x1x12x12x128xbf16, #tpu.memory_space<vmem>>, vector<1x1x12x8x128xbf16>
    %115 = vector.shape_cast %114 : vector<1x1x12x8x128xbf16> to vector<12x8x128xbf16>
    %116 = arith.extf %115 : vector<12x8x128xbf16> to vector<12x8x128xf32>
    %c2_i32_76 = arith.constant 2 : i32
    %117 = vector.broadcast %c2_i32_76 : i32 to vector<12x8x1xi32>
    %118 = arith.cmpi sge, %7, %117 : vector<12x8x1xi32>
    %c8_i32_77 = arith.constant 8 : i32
    %119 = vector.broadcast %c8_i32_77 : i32 to vector<12x8x1xi32>
    %120 = arith.cmpi slt, %7, %119 : vector<12x8x1xi32>
    %121 = arith.andi %118, %120 : vector<12x8x1xi1>
    %122 = arith.andi %12, %121 : vector<12x8x1xi1>
    %123 = vector.broadcast %113 : i1 to vector<12x8x1xi1>
    %124 = arith.andi %122, %123 : vector<12x8x1xi1>
    %125 = vector.broadcast %3 : vector<1x1x128xf32> to vector<12x8x128xf32>
    %126 = arith.mulf %116, %125 : vector<12x8x128xf32>
    %127 = vector.broadcast %5 : vector<1x1x128xf32> to vector<12x8x128xf32>
    %128 = arith.addf %126, %127 : vector<12x8x128xf32>
    %cst_78 = arith.constant 0.000000e+00 : f32
    %129 = vector.broadcast %cst_78 : f32 to vector<12x8x128xf32>
    %130 = arith.maximumf %128, %129 : vector<12x8x128xf32>
    %cst_79 = arith.constant 0.000000e+00 : f32
    %131 = vector.shape_cast %124 : vector<12x8x1xi1> to vector<12x8x1xi1>
    %132 = vector.broadcast %131 : vector<12x8x1xi1> to vector<12x8x128xi1>
    %133 = vector.broadcast %cst_79 : f32 to vector<12x8x128xf32>
    %134 = arith.select %132, %130, %133 : vector<12x8x128xi1>, vector<12x8x128xf32>
    %135 = arith.truncf %134 : vector<12x8x128xf32> to vector<12x8x128xbf16>
    %c0_80 = arith.constant 0 : index
    %c0_81 = arith.constant 0 : index
    %c0_82 = arith.constant 0 : index
    %136 = vector.load %arg11[%c0_80, %c0_81, %c0_82] : memref<12x8x384xbf16, #tpu.memory_space<vmem>>, vector<12x8x128xbf16>
    tpu.vector_store %arg11[%c0_80, %c0_81, %c0_82], %135 {strides = array<i32>} : memref<12x8x384xbf16, #tpu.memory_space<vmem>>, vector<12x8x128xbf16>,
    %c0_83 = arith.constant 0 : index
    %c0_84 = arith.constant 0 : index
    %c0_85 = arith.constant 0 : index
    %c2_86 = arith.constant 2 : index
    %c0_87 = arith.constant 0 : index
    %137 = vector.load %arg3[%c0_83, %c0_84, %c0_85, %c2_86, %c0_87] : memref<1x1x12x12x128xbf16, #tpu.memory_space<vmem>>, vector<1x1x12x8x128xbf16>
    %138 = vector.shape_cast %137 : vector<1x1x12x8x128xbf16> to vector<12x8x128xbf16>
    %139 = arith.extf %138 : vector<12x8x128xbf16> to vector<12x8x128xf32>
    %c0_i32_88 = arith.constant 0 : i32
    %140 = vector.broadcast %c0_i32_88 : i32 to vector<12x8x1xi32>
    %141 = arith.cmpi sge, %7, %140 : vector<12x8x1xi32>
    %c8_i32_89 = arith.constant 8 : i32
    %142 = vector.broadcast %c8_i32_89 : i32 to vector<12x8x1xi32>
    %143 = arith.cmpi slt, %7, %142 : vector<12x8x1xi32>
    %144 = arith.andi %141, %143 : vector<12x8x1xi1>
    %145 = arith.andi %12, %144 : vector<12x8x1xi1>
    %146 = vector.broadcast %113 : i1 to vector<12x8x1xi1>
    %147 = arith.andi %145, %146 : vector<12x8x1xi1>
    %148 = vector.broadcast %3 : vector<1x1x128xf32> to vector<12x8x128xf32>
    %149 = arith.mulf %139, %148 : vector<12x8x128xf32>
    %150 = vector.broadcast %5 : vector<1x1x128xf32> to vector<12x8x128xf32>
    %151 = arith.addf %149, %150 : vector<12x8x128xf32>
    %cst_90 = arith.constant 0.000000e+00 : f32
    %152 = vector.broadcast %cst_90 : f32 to vector<12x8x128xf32>
    %153 = arith.maximumf %151, %152 : vector<12x8x128xf32>
    %cst_91 = arith.constant 0.000000e+00 : f32
    %154 = vector.shape_cast %147 : vector<12x8x1xi1> to vector<12x8x1xi1>
    %155 = vector.broadcast %154 : vector<12x8x1xi1> to vector<12x8x128xi1>
    %156 = vector.broadcast %cst_91 : f32 to vector<12x8x128xf32>
    %157 = arith.select %155, %153, %156 : vector<12x8x128xi1>, vector<12x8x128xf32>
    %158 = arith.truncf %157 : vector<12x8x128xf32> to vector<12x8x128xbf16>
    %c0_92 = arith.constant 0 : index
    %c0_93 = arith.constant 0 : index
    %c128_94 = arith.constant 128 : index
    %159 = vector.load %arg11[%c0_92, %c0_93, %c128_94] : memref<12x8x384xbf16, #tpu.memory_space<vmem>>, vector<12x8x128xbf16>
    tpu.vector_store %arg11[%c0_92, %c0_93, %c128_94], %158 {strides = array<i32>} : memref<12x8x384xbf16, #tpu.memory_space<vmem>>, vector<12x8x128xbf16>,
    %c0_95 = arith.constant 0 : index
    %c0_96 = arith.constant 0 : index
    %c0_97 = arith.constant 0 : index
    %c4_98 = arith.constant 4 : index
    %c0_99 = arith.constant 0 : index
    %160 = vector.load %arg3[%c0_95, %c0_96, %c0_97, %c4_98, %c0_99] : memref<1x1x12x12x128xbf16, #tpu.memory_space<vmem>>, vector<1x1x12x8x128xbf16>
    %161 = vector.shape_cast %160 : vector<1x1x12x8x128xbf16> to vector<12x8x128xbf16>
    %162 = arith.extf %161 : vector<12x8x128xbf16> to vector<12x8x128xf32>
    %c0_i32_100 = arith.constant 0 : i32
    %163 = vector.broadcast %c0_i32_100 : i32 to vector<12x8x1xi32>
    %164 = arith.cmpi sge, %7, %163 : vector<12x8x1xi32>
    %c6_i32_101 = arith.constant 6 : i32
    %165 = vector.broadcast %c6_i32_101 : i32 to vector<12x8x1xi32>
    %166 = arith.cmpi slt, %7, %165 : vector<12x8x1xi32>
    %167 = arith.andi %164, %166 : vector<12x8x1xi1>
    %168 = arith.andi %12, %167 : vector<12x8x1xi1>
    %169 = vector.broadcast %113 : i1 to vector<12x8x1xi1>
    %170 = arith.andi %168, %169 : vector<12x8x1xi1>
    %171 = vector.broadcast %3 : vector<1x1x128xf32> to vector<12x8x128xf32>
    %172 = arith.mulf %162, %171 : vector<12x8x128xf32>
    %173 = vector.broadcast %5 : vector<1x1x128xf32> to vector<12x8x128xf32>
    %174 = arith.addf %172, %173 : vector<12x8x128xf32>
    %cst_102 = arith.constant 0.000000e+00 : f32
    %175 = vector.broadcast %cst_102 : f32 to vector<12x8x128xf32>
    %176 = arith.maximumf %174, %175 : vector<12x8x128xf32>
    %cst_103 = arith.constant 0.000000e+00 : f32
    %177 = vector.shape_cast %170 : vector<12x8x1xi1> to vector<12x8x1xi1>
    %178 = vector.broadcast %177 : vector<12x8x1xi1> to vector<12x8x128xi1>
    %179 = vector.broadcast %cst_103 : f32 to vector<12x8x128xf32>
    %180 = arith.select %178, %176, %179 : vector<12x8x128xi1>, vector<12x8x128xf32>
    %181 = arith.truncf %180 : vector<12x8x128xf32> to vector<12x8x128xbf16>
    %c0_104 = arith.constant 0 : index
    %c0_105 = arith.constant 0 : index
    %c256_106 = arith.constant 256 : index
    %182 = vector.load %arg11[%c0_104, %c0_105, %c256_106] : memref<12x8x384xbf16, #tpu.memory_space<vmem>>, vector<12x8x128xbf16>
    tpu.vector_store %arg11[%c0_104, %c0_105, %c256_106], %181 {strides = array<i32>} : memref<12x8x384xbf16, #tpu.memory_space<vmem>>, vector<12x8x128xbf16>,
    %c0_107 = arith.constant 0 : index
    %c0_108 = arith.constant 0 : index
    %c0_109 = arith.constant 0 : index
    %183 = vector.load %arg11[%c0_107, %c0_108, %c0_109] : memref<12x8x384xbf16, #tpu.memory_space<vmem>>, vector<8x8x384xbf16>
    %184 = vector.shape_cast %183 : vector<8x8x384xbf16> to vector<64x384xbf16>
    %c0_110 = arith.constant 0 : index
    %c0_111 = arith.constant 0 : index
    %185 = vector.load %arg10[%c0_110, %c0_111] : memref<64x128xf32, #tpu.memory_space<vmem>>, vector<64x128xf32>
    %c3 = arith.constant 3 : index
    %c0_112 = arith.constant 0 : index
    %c0_113 = arith.constant 0 : index
    %186 = vector.load %arg7[%c3, %c0_112, %c0_113] : memref<9x384x128xbf16, #tpu.memory_space<vmem>>, vector<1x384x128xbf16>
    %187 = vector.shape_cast %186 : vector<1x384x128xbf16> to vector<384x128xbf16>
    %cst_114 = arith.constant dense<0.000000e+00> : vector<64x128xf32>
    %188 = tpu.matmul %184, %187, %cst_114 {dimension_numbers = #tpu.dot_dimension_numbers<[1], [0], [0], [1], [0, 0, 1, 1], [], []>} : vector<64x384xbf16>, vector<384x128xbf16>, vector<64x128xf32> -> vector<64x128xf32>
    %189 = arith.addf %185, %188 : vector<64x128xf32>
    %c0_115 = arith.constant 0 : index
    %c0_116 = arith.constant 0 : index
    %190 = vector.load %arg10[%c0_115, %c0_116] : memref<64x128xf32, #tpu.memory_space<vmem>>, vector<64x128xf32>
    tpu.vector_store %arg10[%c0_115, %c0_116], %189 {strides = array<i32>} : memref<64x128xf32, #tpu.memory_space<vmem>>, vector<64x128xf32>,
    %c2_117 = arith.constant 2 : index
    %c0_118 = arith.constant 0 : index
    %c0_119 = arith.constant 0 : index
    %191 = vector.load %arg11[%c2_117, %c0_118, %c0_119] : memref<12x8x384xbf16, #tpu.memory_space<vmem>>, vector<8x8x384xbf16>
    %192 = vector.shape_cast %191 : vector<8x8x384xbf16> to vector<64x384xbf16>
    %c0_120 = arith.constant 0 : index
    %c0_121 = arith.constant 0 : index
    %193 = vector.load %arg10[%c0_120, %c0_121] : memref<64x128xf32, #tpu.memory_space<vmem>>, vector<64x128xf32>
    %c4_122 = arith.constant 4 : index
    %c0_123 = arith.constant 0 : index
    %c0_124 = arith.constant 0 : index
    %194 = vector.load %arg7[%c4_122, %c0_123, %c0_124] : memref<9x384x128xbf16, #tpu.memory_space<vmem>>, vector<1x384x128xbf16>
    %195 = vector.shape_cast %194 : vector<1x384x128xbf16> to vector<384x128xbf16>
    %cst_125 = arith.constant dense<0.000000e+00> : vector<64x128xf32>
    %196 = tpu.matmul %192, %195, %cst_125 {dimension_numbers = #tpu.dot_dimension_numbers<[1], [0], [0], [1], [0, 0, 1, 1], [], []>} : vector<64x384xbf16>, vector<384x128xbf16>, vector<64x128xf32> -> vector<64x128xf32>
    %197 = arith.addf %193, %196 : vector<64x128xf32>
    %c0_126 = arith.constant 0 : index
    %c0_127 = arith.constant 0 : index
    %198 = vector.load %arg10[%c0_126, %c0_127] : memref<64x128xf32, #tpu.memory_space<vmem>>, vector<64x128xf32>
    tpu.vector_store %arg10[%c0_126, %c0_127], %197 {strides = array<i32>} : memref<64x128xf32, #tpu.memory_space<vmem>>, vector<64x128xf32>,
    %c4_128 = arith.constant 4 : index
    %c0_129 = arith.constant 0 : index
    %c0_130 = arith.constant 0 : index
    %199 = vector.load %arg11[%c4_128, %c0_129, %c0_130] : memref<12x8x384xbf16, #tpu.memory_space<vmem>>, vector<8x8x384xbf16>
    %200 = vector.shape_cast %199 : vector<8x8x384xbf16> to vector<64x384xbf16>
    %c0_131 = arith.constant 0 : index
    %c0_132 = arith.constant 0 : index
    %201 = vector.load %arg10[%c0_131, %c0_132] : memref<64x128xf32, #tpu.memory_space<vmem>>, vector<64x128xf32>
    %c5 = arith.constant 5 : index
    %c0_133 = arith.constant 0 : index
    %c0_134 = arith.constant 0 : index
    %202 = vector.load %arg7[%c5, %c0_133, %c0_134] : memref<9x384x128xbf16, #tpu.memory_space<vmem>>, vector<1x384x128xbf16>
    %203 = vector.shape_cast %202 : vector<1x384x128xbf16> to vector<384x128xbf16>
    %cst_135 = arith.constant dense<0.000000e+00> : vector<64x128xf32>
    %204 = tpu.matmul %200, %203, %cst_135 {dimension_numbers = #tpu.dot_dimension_numbers<[1], [0], [0], [1], [0, 0, 1, 1], [], []>} : vector<64x384xbf16>, vector<384x128xbf16>, vector<64x128xf32> -> vector<64x128xf32>
    %205 = arith.addf %201, %204 : vector<64x128xf32>
    %c0_136 = arith.constant 0 : index
    %c0_137 = arith.constant 0 : index
    %206 = vector.load %arg10[%c0_136, %c0_137] : memref<64x128xf32, #tpu.memory_space<vmem>>, vector<64x128xf32>
    tpu.vector_store %arg10[%c0_136, %c0_137], %205 {strides = array<i32>} : memref<64x128xf32, #tpu.memory_space<vmem>>, vector<64x128xf32>,
    %c2_i32_138 = arith.constant 2 : i32
    %207 = arith.addi %arg1, %c2_i32_138 : i32
    %c0_i32_139 = arith.constant 0 : i32
    %208 = arith.cmpi sge, %207, %c0_i32_139 : i32
    %c8_i32_140 = arith.constant 8 : i32
    %209 = arith.cmpi slt, %207, %c8_i32_140 : i32
    %210 = arith.andi %208, %209 : i1
    %c0_141 = arith.constant 0 : index
    %c0_142 = arith.constant 0 : index
    %c0_143 = arith.constant 0 : index
    %c0_144 = arith.constant 0 : index
    %c0_145 = arith.constant 0 : index
    %211 = vector.load %arg4[%c0_141, %c0_142, %c0_143, %c0_144, %c0_145] : memref<1x1x12x12x128xbf16, #tpu.memory_space<vmem>>, vector<1x1x12x8x128xbf16>
    %212 = vector.shape_cast %211 : vector<1x1x12x8x128xbf16> to vector<12x8x128xbf16>
    %213 = arith.extf %212 : vector<12x8x128xbf16> to vector<12x8x128xf32>
    %c2_i32_146 = arith.constant 2 : i32
    %214 = vector.broadcast %c2_i32_146 : i32 to vector<12x8x1xi32>
    %215 = arith.cmpi sge, %7, %214 : vector<12x8x1xi32>
    %c8_i32_147 = arith.constant 8 : i32
    %216 = vector.broadcast %c8_i32_147 : i32 to vector<12x8x1xi32>
    %217 = arith.cmpi slt, %7, %216 : vector<12x8x1xi32>
    %218 = arith.andi %215, %217 : vector<12x8x1xi1>
    %219 = arith.andi %12, %218 : vector<12x8x1xi1>
    %220 = vector.broadcast %210 : i1 to vector<12x8x1xi1>
    %221 = arith.andi %219, %220 : vector<12x8x1xi1>
    %222 = vector.broadcast %3 : vector<1x1x128xf32> to vector<12x8x128xf32>
    %223 = arith.mulf %213, %222 : vector<12x8x128xf32>
    %224 = vector.broadcast %5 : vector<1x1x128xf32> to vector<12x8x128xf32>
    %225 = arith.addf %223, %224 : vector<12x8x128xf32>
    %cst_148 = arith.constant 0.000000e+00 : f32
    %226 = vector.broadcast %cst_148 : f32 to vector<12x8x128xf32>
    %227 = arith.maximumf %225, %226 : vector<12x8x128xf32>
    %cst_149 = arith.constant 0.000000e+00 : f32
    %228 = vector.shape_cast %221 : vector<12x8x1xi1> to vector<12x8x1xi1>
    %229 = vector.broadcast %228 : vector<12x8x1xi1> to vector<12x8x128xi1>
    %230 = vector.broadcast %cst_149 : f32 to vector<12x8x128xf32>
    %231 = arith.select %229, %227, %230 : vector<12x8x128xi1>, vector<12x8x128xf32>
    %232 = arith.truncf %231 : vector<12x8x128xf32> to vector<12x8x128xbf16>
    %c0_150 = arith.constant 0 : index
    %c0_151 = arith.constant 0 : index
    %c0_152 = arith.constant 0 : index
    %233 = vector.load %arg11[%c0_150, %c0_151, %c0_152] : memref<12x8x384xbf16, #tpu.memory_space<vmem>>, vector<12x8x128xbf16>
    tpu.vector_store %arg11[%c0_150, %c0_151, %c0_152], %232 {strides = array<i32>} : memref<12x8x384xbf16, #tpu.memory_space<vmem>>, vector<12x8x128xbf16>,
    %c0_153 = arith.constant 0 : index
    %c0_154 = arith.constant 0 : index
    %c0_155 = arith.constant 0 : index
    %c2_156 = arith.constant 2 : index
    %c0_157 = arith.constant 0 : index
    %234 = vector.load %arg4[%c0_153, %c0_154, %c0_155, %c2_156, %c0_157] : memref<1x1x12x12x128xbf16, #tpu.memory_space<vmem>>, vector<1x1x12x8x128xbf16>
    %235 = vector.shape_cast %234 : vector<1x1x12x8x128xbf16> to vector<12x8x128xbf16>
    %236 = arith.extf %235 : vector<12x8x128xbf16> to vector<12x8x128xf32>
    %c0_i32_158 = arith.constant 0 : i32
    %237 = vector.broadcast %c0_i32_158 : i32 to vector<12x8x1xi32>
    %238 = arith.cmpi sge, %7, %237 : vector<12x8x1xi32>
    %c8_i32_159 = arith.constant 8 : i32
    %239 = vector.broadcast %c8_i32_159 : i32 to vector<12x8x1xi32>
    %240 = arith.cmpi slt, %7, %239 : vector<12x8x1xi32>
    %241 = arith.andi %238, %240 : vector<12x8x1xi1>
    %242 = arith.andi %12, %241 : vector<12x8x1xi1>
    %243 = vector.broadcast %210 : i1 to vector<12x8x1xi1>
    %244 = arith.andi %242, %243 : vector<12x8x1xi1>
    %245 = vector.broadcast %3 : vector<1x1x128xf32> to vector<12x8x128xf32>
    %246 = arith.mulf %236, %245 : vector<12x8x128xf32>
    %247 = vector.broadcast %5 : vector<1x1x128xf32> to vector<12x8x128xf32>
    %248 = arith.addf %246, %247 : vector<12x8x128xf32>
    %cst_160 = arith.constant 0.000000e+00 : f32
    %249 = vector.broadcast %cst_160 : f32 to vector<12x8x128xf32>
    %250 = arith.maximumf %248, %249 : vector<12x8x128xf32>
    %cst_161 = arith.constant 0.000000e+00 : f32
    %251 = vector.shape_cast %244 : vector<12x8x1xi1> to vector<12x8x1xi1>
    %252 = vector.broadcast %251 : vector<12x8x1xi1> to vector<12x8x128xi1>
    %253 = vector.broadcast %cst_161 : f32 to vector<12x8x128xf32>
    %254 = arith.select %252, %250, %253 : vector<12x8x128xi1>, vector<12x8x128xf32>
    %255 = arith.truncf %254 : vector<12x8x128xf32> to vector<12x8x128xbf16>
    %c0_162 = arith.constant 0 : index
    %c0_163 = arith.constant 0 : index
    %c128_164 = arith.constant 128 : index
    %256 = vector.load %arg11[%c0_162, %c0_163, %c128_164] : memref<12x8x384xbf16, #tpu.memory_space<vmem>>, vector<12x8x128xbf16>
    tpu.vector_store %arg11[%c0_162, %c0_163, %c128_164], %255 {strides = array<i32>} : memref<12x8x384xbf16, #tpu.memory_space<vmem>>, vector<12x8x128xbf16>,
    %c0_165 = arith.constant 0 : index
    %c0_166 = arith.constant 0 : index
    %c0_167 = arith.constant 0 : index
    %c4_168 = arith.constant 4 : index
    %c0_169 = arith.constant 0 : index
    %257 = vector.load %arg4[%c0_165, %c0_166, %c0_167, %c4_168, %c0_169] : memref<1x1x12x12x128xbf16, #tpu.memory_space<vmem>>, vector<1x1x12x8x128xbf16>
    %258 = vector.shape_cast %257 : vector<1x1x12x8x128xbf16> to vector<12x8x128xbf16>
    %259 = arith.extf %258 : vector<12x8x128xbf16> to vector<12x8x128xf32>
    %c0_i32_170 = arith.constant 0 : i32
    %260 = vector.broadcast %c0_i32_170 : i32 to vector<12x8x1xi32>
    %261 = arith.cmpi sge, %7, %260 : vector<12x8x1xi32>
    %c6_i32_171 = arith.constant 6 : i32
    %262 = vector.broadcast %c6_i32_171 : i32 to vector<12x8x1xi32>
    %263 = arith.cmpi slt, %7, %262 : vector<12x8x1xi32>
    %264 = arith.andi %261, %263 : vector<12x8x1xi1>
    %265 = arith.andi %12, %264 : vector<12x8x1xi1>
    %266 = vector.broadcast %210 : i1 to vector<12x8x1xi1>
    %267 = arith.andi %265, %266 : vector<12x8x1xi1>
    %268 = vector.broadcast %3 : vector<1x1x128xf32> to vector<12x8x128xf32>
    %269 = arith.mulf %259, %268 : vector<12x8x128xf32>
    %270 = vector.broadcast %5 : vector<1x1x128xf32> to vector<12x8x128xf32>
    %271 = arith.addf %269, %270 : vector<12x8x128xf32>
    %cst_172 = arith.constant 0.000000e+00 : f32
    %272 = vector.broadcast %cst_172 : f32 to vector<12x8x128xf32>
    %273 = arith.maximumf %271, %272 : vector<12x8x128xf32>
    %cst_173 = arith.constant 0.000000e+00 : f32
    %274 = vector.shape_cast %267 : vector<12x8x1xi1> to vector<12x8x1xi1>
    %275 = vector.broadcast %274 : vector<12x8x1xi1> to vector<12x8x128xi1>
    %276 = vector.broadcast %cst_173 : f32 to vector<12x8x128xf32>
    %277 = arith.select %275, %273, %276 : vector<12x8x128xi1>, vector<12x8x128xf32>
    %278 = arith.truncf %277 : vector<12x8x128xf32> to vector<12x8x128xbf16>
    %c0_174 = arith.constant 0 : index
    %c0_175 = arith.constant 0 : index
    %c256_176 = arith.constant 256 : index
    %279 = vector.load %arg11[%c0_174, %c0_175, %c256_176] : memref<12x8x384xbf16, #tpu.memory_space<vmem>>, vector<12x8x128xbf16>
    tpu.vector_store %arg11[%c0_174, %c0_175, %c256_176], %278 {strides = array<i32>} : memref<12x8x384xbf16, #tpu.memory_space<vmem>>, vector<12x8x128xbf16>,
    %c0_177 = arith.constant 0 : index
    %c0_178 = arith.constant 0 : index
    %c0_179 = arith.constant 0 : index
    %280 = vector.load %arg11[%c0_177, %c0_178, %c0_179] : memref<12x8x384xbf16, #tpu.memory_space<vmem>>, vector<8x8x384xbf16>
    %281 = vector.shape_cast %280 : vector<8x8x384xbf16> to vector<64x384xbf16>
    %c0_180 = arith.constant 0 : index
    %c0_181 = arith.constant 0 : index
    %282 = vector.load %arg10[%c0_180, %c0_181] : memref<64x128xf32, #tpu.memory_space<vmem>>, vector<64x128xf32>
    %c6 = arith.constant 6 : index
    %c0_182 = arith.constant 0 : index
    %c0_183 = arith.constant 0 : index
    %283 = vector.load %arg7[%c6, %c0_182, %c0_183] : memref<9x384x128xbf16, #tpu.memory_space<vmem>>, vector<1x384x128xbf16>
    %284 = vector.shape_cast %283 : vector<1x384x128xbf16> to vector<384x128xbf16>
    %cst_184 = arith.constant dense<0.000000e+00> : vector<64x128xf32>
    %285 = tpu.matmul %281, %284, %cst_184 {dimension_numbers = #tpu.dot_dimension_numbers<[1], [0], [0], [1], [0, 0, 1, 1], [], []>} : vector<64x384xbf16>, vector<384x128xbf16>, vector<64x128xf32> -> vector<64x128xf32>
    %286 = arith.addf %282, %285 : vector<64x128xf32>
    %c0_185 = arith.constant 0 : index
    %c0_186 = arith.constant 0 : index
    %287 = vector.load %arg10[%c0_185, %c0_186] : memref<64x128xf32, #tpu.memory_space<vmem>>, vector<64x128xf32>
    tpu.vector_store %arg10[%c0_185, %c0_186], %286 {strides = array<i32>} : memref<64x128xf32, #tpu.memory_space<vmem>>, vector<64x128xf32>,
    %c2_187 = arith.constant 2 : index
    %c0_188 = arith.constant 0 : index
    %c0_189 = arith.constant 0 : index
    %288 = vector.load %arg11[%c2_187, %c0_188, %c0_189] : memref<12x8x384xbf16, #tpu.memory_space<vmem>>, vector<8x8x384xbf16>
    %289 = vector.shape_cast %288 : vector<8x8x384xbf16> to vector<64x384xbf16>
    %c0_190 = arith.constant 0 : index
    %c0_191 = arith.constant 0 : index
    %290 = vector.load %arg10[%c0_190, %c0_191] : memref<64x128xf32, #tpu.memory_space<vmem>>, vector<64x128xf32>
    %c7 = arith.constant 7 : index
    %c0_192 = arith.constant 0 : index
    %c0_193 = arith.constant 0 : index
    %291 = vector.load %arg7[%c7, %c0_192, %c0_193] : memref<9x384x128xbf16, #tpu.memory_space<vmem>>, vector<1x384x128xbf16>
    %292 = vector.shape_cast %291 : vector<1x384x128xbf16> to vector<384x128xbf16>
    %cst_194 = arith.constant dense<0.000000e+00> : vector<64x128xf32>
    %293 = tpu.matmul %289, %292, %cst_194 {dimension_numbers = #tpu.dot_dimension_numbers<[1], [0], [0], [1], [0, 0, 1, 1], [], []>} : vector<64x384xbf16>, vector<384x128xbf16>, vector<64x128xf32> -> vector<64x128xf32>
    %294 = arith.addf %290, %293 : vector<64x128xf32>
    %c0_195 = arith.constant 0 : index
    %c0_196 = arith.constant 0 : index
    %295 = vector.load %arg10[%c0_195, %c0_196] : memref<64x128xf32, #tpu.memory_space<vmem>>, vector<64x128xf32>
    tpu.vector_store %arg10[%c0_195, %c0_196], %294 {strides = array<i32>} : memref<64x128xf32, #tpu.memory_space<vmem>>, vector<64x128xf32>,
    %c4_197 = arith.constant 4 : index
    %c0_198 = arith.constant 0 : index
    %c0_199 = arith.constant 0 : index
    %296 = vector.load %arg11[%c4_197, %c0_198, %c0_199] : memref<12x8x384xbf16, #tpu.memory_space<vmem>>, vector<8x8x384xbf16>
    %297 = vector.shape_cast %296 : vector<8x8x384xbf16> to vector<64x384xbf16>
    %c0_200 = arith.constant 0 : index
    %c0_201 = arith.constant 0 : index
    %298 = vector.load %arg10[%c0_200, %c0_201] : memref<64x128xf32, #tpu.memory_space<vmem>>, vector<64x128xf32>
    %c8 = arith.constant 8 : index
    %c0_202 = arith.constant 0 : index
    %c0_203 = arith.constant 0 : index
    %299 = vector.load %arg7[%c8, %c0_202, %c0_203] : memref<9x384x128xbf16, #tpu.memory_space<vmem>>, vector<1x384x128xbf16>
    %300 = vector.shape_cast %299 : vector<1x384x128xbf16> to vector<384x128xbf16>
    %cst_204 = arith.constant dense<0.000000e+00> : vector<64x128xf32>
    %301 = tpu.matmul %297, %300, %cst_204 {dimension_numbers = #tpu.dot_dimension_numbers<[1], [0], [0], [1], [0, 0, 1, 1], [], []>} : vector<64x384xbf16>, vector<384x128xbf16>, vector<64x128xf32> -> vector<64x128xf32>
    %302 = arith.addf %298, %301 : vector<64x128xf32>
    %c0_205 = arith.constant 0 : index
    %c0_206 = arith.constant 0 : index
    %303 = vector.load %arg10[%c0_205, %c0_206] : memref<64x128xf32, #tpu.memory_space<vmem>>, vector<64x128xf32>
    tpu.vector_store %arg10[%c0_205, %c0_206], %302 {strides = array<i32>} : memref<64x128xf32, #tpu.memory_space<vmem>>, vector<64x128xf32>,
    %c0_207 = arith.constant 0 : index
    %c0_208 = arith.constant 0 : index
    %304 = vector.load %arg10[%c0_207, %c0_208] : memref<64x128xf32, #tpu.memory_space<vmem>>, vector<64x128xf32>
    %305 = tpu.iota {dimensions = array<i32: 0>} : vector<8x128xi32>
    %cst_209 = arith.constant dense<0.000000e+00> : vector<128xf32>
    %306 = vector.multi_reduction <add>, %304, %cst_209 [0] : vector<64x128xf32> to vector<128xf32>
    %307 = vector.shape_cast %306 : vector<128xf32> to vector<1x128xf32>
    %308 = vector.shape_cast %307 : vector<1x128xf32> to vector<1x128xf32>
    %309 = vector.broadcast %308 : vector<1x128xf32> to vector<8x128xf32>
    %310 = arith.mulf %304, %304 : vector<64x128xf32>
    %cst_210 = arith.constant dense<0.000000e+00> : vector<128xf32>
    %311 = vector.multi_reduction <add>, %310, %cst_210 [0] : vector<64x128xf32> to vector<128xf32>
    %312 = vector.shape_cast %311 : vector<128xf32> to vector<1x128xf32>
    %313 = vector.shape_cast %312 : vector<1x128xf32> to vector<1x128xf32>
    %314 = vector.broadcast %313 : vector<1x128xf32> to vector<8x128xf32>
    %c0_i32_211 = arith.constant 0 : i32
    %315 = vector.broadcast %c0_i32_211 : i32 to vector<8x128xi32>
    %316 = arith.cmpi eq, %305, %315 : vector<8x128xi32>
    %c1_i32 = arith.constant 1 : i32
    %317 = vector.broadcast %c1_i32 : i32 to vector<8x128xi32>
    %318 = arith.cmpi eq, %305, %317 : vector<8x128xi32>
    %cst_212 = arith.constant 0.000000e+00 : f32
    %319 = vector.broadcast %cst_212 : f32 to vector<8x128xf32>
    %320 = arith.select %318, %314, %319 : vector<8x128xi1>, vector<8x128xf32>
    %321 = arith.select %316, %309, %320 : vector<8x128xi1>, vector<8x128xf32>
    %c0_213 = arith.constant 0 : index
    %c0_214 = arith.constant 0 : index
    %c0_215 = arith.constant 0 : index
    %c0_216 = arith.constant 0 : index
    %322 = vector.load %arg9[%c0_213, %c0_214, %c0_215, %c0_216] : memref<1x1x8x128xf32, #tpu.memory_space<vmem>>, vector<1x1x8x128xf32>
    %323 = vector.shape_cast %322 : vector<1x1x8x128xf32> to vector<8x128xf32>
    %324 = vector.shape_cast %321 : vector<8x128xf32> to vector<1x1x8x128xf32>
    tpu.vector_store %arg9[%c0_213, %c0_214, %c0_215, %c0_216], %324 {strides = array<i32>} : memref<1x1x8x128xf32, #tpu.memory_space<vmem>>, vector<1x1x8x128xf32>,
    %325 = arith.truncf %304 : vector<64x128xf32> to vector<64x128xbf16>
    %c0_217 = arith.constant 0 : index
    %c0_218 = arith.constant 0 : index
    %326 = vector.load %arg8[%c0_217, %c0_218] : memref<64x128xbf16, #tpu.memory_space<vmem>>, vector<64x128xbf16>
    tpu.vector_store %arg8[%c0_217, %c0_218], %325 {strides = array<i32>} : memref<64x128xbf16, #tpu.memory_space<vmem>>, vector<64x128xbf16>,
    return
  }
  func.func @transform_0(%arg0: i32, %arg1: i32) -> (i32, i32, i32, i32, i32) {
    %c0_i32 = arith.constant 0 : i32
    %0 = arith.addi %arg1, %c0_i32 : i32
    %c0_i32_0 = arith.constant 0 : i32
    %c0_i32_1 = arith.constant 0 : i32
    %c0_i32_2 = arith.constant 0 : i32
    %c0_i32_3 = arith.constant 0 : i32
    return %arg0, %0, %c0_i32_0, %c0_i32_1, %c0_i32_2 : i32, i32, i32, i32, i32
  }
  func.func @transform_1(%arg0: i32, %arg1: i32) -> (i32, i32, i32, i32, i32) {
    %c2_i32 = arith.constant 2 : i32
    %0 = arith.addi %arg1, %c2_i32 : i32
    %c0_i32 = arith.constant 0 : i32
    %c0_i32_0 = arith.constant 0 : i32
    %c0_i32_1 = arith.constant 0 : i32
    %c0_i32_2 = arith.constant 0 : i32
    return %arg0, %0, %c0_i32, %c0_i32_0, %c0_i32_1 : i32, i32, i32, i32, i32
  }
  func.func @transform_2(%arg0: i32, %arg1: i32) -> (i32, i32, i32, i32, i32) {
    %c4_i32 = arith.constant 4 : i32
    %0 = arith.addi %arg1, %c4_i32 : i32
    %c0_i32 = arith.constant 0 : i32
    %c0_i32_0 = arith.constant 0 : i32
    %c0_i32_1 = arith.constant 0 : i32
    %c0_i32_2 = arith.constant 0 : i32
    return %arg0, %0, %c0_i32, %c0_i32_0, %c0_i32_1 : i32, i32, i32, i32, i32
  }
  func.func @transform_3(%arg0: i32, %arg1: i32) -> (i32, i32) {
    %c0_i32 = arith.constant 0 : i32
    %c0_i32_0 = arith.constant 0 : i32
    %c0_i32_1 = arith.constant 0 : i32
    return %c0_i32, %c0_i32_0 : i32, i32
  }
  func.func @transform_4(%arg0: i32, %arg1: i32) -> (i32, i32) {
    %c0_i32 = arith.constant 0 : i32
    %c0_i32_0 = arith.constant 0 : i32
    %c0_i32_1 = arith.constant 0 : i32
    return %c0_i32, %c0_i32_0 : i32, i32
  }
  func.func @transform_5(%arg0: i32, %arg1: i32) -> (i32, i32, i32) {
    %c0_i32 = arith.constant 0 : i32
    %c0_i32_0 = arith.constant 0 : i32
    %c0_i32_1 = arith.constant 0 : i32
    %c0_i32_2 = arith.constant 0 : i32
    return %c0_i32, %c0_i32_0, %c0_i32_1 : i32, i32, i32
  }
  func.func @transform_6(%arg0: i32, %arg1: i32) -> (i32, i32) {
    %c8_i32 = arith.constant 8 : i32
    %0 = arith.muli %arg0, %c8_i32 : i32
    %1 = arith.addi %0, %arg1 : i32
    %c0_i32 = arith.constant 0 : i32
    %c0_i32_0 = arith.constant 0 : i32
    return %1, %c0_i32 : i32, i32
  }
  func.func @transform_7(%arg0: i32, %arg1: i32) -> (i32, i32, i32, i32) {
    %c0_i32 = arith.constant 0 : i32
    %c0_i32_0 = arith.constant 0 : i32
    %c0_i32_1 = arith.constant 0 : i32
    return %arg0, %arg1, %c0_i32, %c0_i32_0 : i32, i32, i32, i32
  }
}

module attributes {stable_mosaic.version = 11 : i64} {
  func.func @_bn_relu_matmul_kernel(%arg0: i32, %arg1: memref<512x128xbf16, #tpu.memory_space<vmem>>, %arg2: memref<1x128xf32, #tpu.memory_space<vmem>>, %arg3: memref<1x128xf32, #tpu.memory_space<vmem>>, %arg4: memref<128x128xbf16, #tpu.memory_space<vmem>>, %arg5: memref<512x128xbf16, #tpu.memory_space<vmem>>, %arg6: memref<1x8x128xf32, #tpu.memory_space<vmem>>) attributes {dimension_semantics = [#tpu.dimension_semantics<parallel>], iteration_bounds = array<i64: 2>, scalar_prefetch = 0 : i64, scratch_operands = 0 : i64, tpu.core_type = #tpu.core_type<tc>, window_params = [{transform_indices = @transform_0, window_bounds = array<i64: 512, 128>}, {pipeline_mode = #tpu.pipeline_mode<synchronous>, transform_indices = @transform_1, window_bounds = array<i64: 1, 128>}, {pipeline_mode = #tpu.pipeline_mode<synchronous>, transform_indices = @transform_2, window_bounds = array<i64: 1, 128>}, {pipeline_mode = #tpu.pipeline_mode<synchronous>, transform_indices = @transform_3, window_bounds = array<i64: 128, 128>}, {transform_indices = @transform_4, window_bounds = array<i64: 512, 128>}, {transform_indices = @transform_5, window_bounds = array<i64: 1, 8, 128>}]} {
    %c0 = arith.constant 0 : index
    %c0_0 = arith.constant 0 : index
    %0 = vector.load %arg1[%c0, %c0_0] : memref<512x128xbf16, #tpu.memory_space<vmem>>, vector<512x128xbf16>
    %1 = arith.extf %0 : vector<512x128xbf16> to vector<512x128xf32>
    %c0_1 = arith.constant 0 : index
    %c0_2 = arith.constant 0 : index
    %2 = vector.load %arg2[%c0_1, %c0_2] : memref<1x128xf32, #tpu.memory_space<vmem>>, vector<1x128xf32>
    %3 = vector.broadcast %2 : vector<1x128xf32> to vector<512x128xf32>
    %4 = arith.mulf %1, %3 : vector<512x128xf32>
    %c0_3 = arith.constant 0 : index
    %c0_4 = arith.constant 0 : index
    %5 = vector.load %arg3[%c0_3, %c0_4] : memref<1x128xf32, #tpu.memory_space<vmem>>, vector<1x128xf32>
    %6 = vector.broadcast %5 : vector<1x128xf32> to vector<512x128xf32>
    %7 = arith.addf %4, %6 : vector<512x128xf32>
    %cst = arith.constant 0.000000e+00 : f32
    %8 = vector.broadcast %cst : f32 to vector<512x128xf32>
    %9 = arith.maximumf %7, %8 : vector<512x128xf32>
    %10 = arith.truncf %9 : vector<512x128xf32> to vector<512x128xbf16>
    %c0_5 = arith.constant 0 : index
    %c0_6 = arith.constant 0 : index
    %11 = vector.load %arg4[%c0_5, %c0_6] : memref<128x128xbf16, #tpu.memory_space<vmem>>, vector<128x128xbf16>
    %cst_7 = arith.constant dense<0.000000e+00> : vector<512x128xf32>
    %12 = tpu.matmul %10, %11, %cst_7 {dimension_numbers = #tpu.dot_dimension_numbers<[1], [0], [0], [1], [0, 0, 1, 1], [], []>} : vector<512x128xbf16>, vector<128x128xbf16>, vector<512x128xf32> -> vector<512x128xf32>
    %13 = tpu.iota {dimensions = array<i32: 0>} : vector<8x128xi32>
    %cst_8 = arith.constant dense<0.000000e+00> : vector<128xf32>
    %14 = vector.multi_reduction <add>, %12, %cst_8 [0] : vector<512x128xf32> to vector<128xf32>
    %15 = vector.shape_cast %14 : vector<128xf32> to vector<1x128xf32>
    %16 = vector.shape_cast %15 : vector<1x128xf32> to vector<1x128xf32>
    %17 = vector.broadcast %16 : vector<1x128xf32> to vector<8x128xf32>
    %18 = arith.mulf %12, %12 : vector<512x128xf32>
    %cst_9 = arith.constant dense<0.000000e+00> : vector<128xf32>
    %19 = vector.multi_reduction <add>, %18, %cst_9 [0] : vector<512x128xf32> to vector<128xf32>
    %20 = vector.shape_cast %19 : vector<128xf32> to vector<1x128xf32>
    %21 = vector.shape_cast %20 : vector<1x128xf32> to vector<1x128xf32>
    %22 = vector.broadcast %21 : vector<1x128xf32> to vector<8x128xf32>
    %c0_i32 = arith.constant 0 : i32
    %23 = vector.broadcast %c0_i32 : i32 to vector<8x128xi32>
    %24 = arith.cmpi eq, %13, %23 : vector<8x128xi32>
    %c1_i32 = arith.constant 1 : i32
    %25 = vector.broadcast %c1_i32 : i32 to vector<8x128xi32>
    %26 = arith.cmpi eq, %13, %25 : vector<8x128xi32>
    %cst_10 = arith.constant 0.000000e+00 : f32
    %27 = vector.broadcast %cst_10 : f32 to vector<8x128xf32>
    %28 = arith.select %26, %22, %27 : vector<8x128xi1>, vector<8x128xf32>
    %29 = arith.select %24, %17, %28 : vector<8x128xi1>, vector<8x128xf32>
    %c0_11 = arith.constant 0 : index
    %c0_12 = arith.constant 0 : index
    %c0_13 = arith.constant 0 : index
    %30 = vector.load %arg6[%c0_11, %c0_12, %c0_13] : memref<1x8x128xf32, #tpu.memory_space<vmem>>, vector<1x8x128xf32>
    %31 = vector.shape_cast %30 : vector<1x8x128xf32> to vector<8x128xf32>
    %32 = vector.shape_cast %29 : vector<8x128xf32> to vector<1x8x128xf32>
    tpu.vector_store %arg6[%c0_11, %c0_12, %c0_13], %32 {strides = array<i32>} : memref<1x8x128xf32, #tpu.memory_space<vmem>>, vector<1x8x128xf32>,
    %33 = arith.truncf %12 : vector<512x128xf32> to vector<512x128xbf16>
    %c0_14 = arith.constant 0 : index
    %c0_15 = arith.constant 0 : index
    %34 = vector.load %arg5[%c0_14, %c0_15] : memref<512x128xbf16, #tpu.memory_space<vmem>>, vector<512x128xbf16>
    tpu.vector_store %arg5[%c0_14, %c0_15], %33 {strides = array<i32>} : memref<512x128xbf16, #tpu.memory_space<vmem>>, vector<512x128xbf16>,
    return
  }
  func.func @transform_0(%arg0: i32) -> (i32, i32) {
    %c0_i32 = arith.constant 0 : i32
    %c0_i32_0 = arith.constant 0 : i32
    return %arg0, %c0_i32 : i32, i32
  }
  func.func @transform_1(%arg0: i32) -> (i32, i32) {
    %c0_i32 = arith.constant 0 : i32
    %c0_i32_0 = arith.constant 0 : i32
    %c0_i32_1 = arith.constant 0 : i32
    return %c0_i32, %c0_i32_0 : i32, i32
  }
  func.func @transform_2(%arg0: i32) -> (i32, i32) {
    %c0_i32 = arith.constant 0 : i32
    %c0_i32_0 = arith.constant 0 : i32
    %c0_i32_1 = arith.constant 0 : i32
    return %c0_i32, %c0_i32_0 : i32, i32
  }
  func.func @transform_3(%arg0: i32) -> (i32, i32) {
    %c0_i32 = arith.constant 0 : i32
    %c0_i32_0 = arith.constant 0 : i32
    %c0_i32_1 = arith.constant 0 : i32
    return %c0_i32, %c0_i32_0 : i32, i32
  }
  func.func @transform_4(%arg0: i32) -> (i32, i32) {
    %c0_i32 = arith.constant 0 : i32
    %c0_i32_0 = arith.constant 0 : i32
    return %arg0, %c0_i32 : i32, i32
  }
  func.func @transform_5(%arg0: i32) -> (i32, i32, i32) {
    %c0_i32 = arith.constant 0 : i32
    %c0_i32_0 = arith.constant 0 : i32
    %c0_i32_1 = arith.constant 0 : i32
    return %arg0, %c0_i32, %c0_i32_0 : i32, i32, i32
  }
}

module attributes {stable_mosaic.version = 11 : i64} {
  func.func @_residual_out_conv_kernel(%arg0: i32, %arg1: memref<512x128xbf16, #tpu.memory_space<vmem>>, %arg2: memref<1x128xf32, #tpu.memory_space<vmem>>, %arg3: memref<1x128xf32, #tpu.memory_space<vmem>>, %arg4: memref<512x128xbf16, #tpu.memory_space<vmem>>, %arg5: memref<1x128xf32, #tpu.memory_space<vmem>>, %arg6: memref<1x128xf32, #tpu.memory_space<vmem>>, %arg7: memref<512x128xf32, #tpu.memory_space<vmem>>) attributes {dimension_semantics = [#tpu.dimension_semantics<parallel>], iteration_bounds = array<i64: 2>, scalar_prefetch = 0 : i64, scratch_operands = 0 : i64, tpu.core_type = #tpu.core_type<tc>, window_params = [{transform_indices = @transform_0, window_bounds = array<i64: 512, 128>}, {pipeline_mode = #tpu.pipeline_mode<synchronous>, transform_indices = @transform_1, window_bounds = array<i64: 1, 128>}, {pipeline_mode = #tpu.pipeline_mode<synchronous>, transform_indices = @transform_2, window_bounds = array<i64: 1, 128>}, {transform_indices = @transform_3, window_bounds = array<i64: 512, 128>}, {pipeline_mode = #tpu.pipeline_mode<synchronous>, transform_indices = @transform_4, window_bounds = array<i64: 1, 128>}, {pipeline_mode = #tpu.pipeline_mode<synchronous>, transform_indices = @transform_5, window_bounds = array<i64: 1, 128>}, {transform_indices = @transform_6, window_bounds = array<i64: 512, 128>}]} {
    %c0 = arith.constant 0 : index
    %c0_0 = arith.constant 0 : index
    %0 = vector.load %arg1[%c0, %c0_0] : memref<512x128xbf16, #tpu.memory_space<vmem>>, vector<512x128xbf16>
    %1 = arith.extf %0 : vector<512x128xbf16> to vector<512x128xf32>
    %c0_1 = arith.constant 0 : index
    %c0_2 = arith.constant 0 : index
    %2 = vector.load %arg2[%c0_1, %c0_2] : memref<1x128xf32, #tpu.memory_space<vmem>>, vector<1x128xf32>
    %3 = vector.broadcast %2 : vector<1x128xf32> to vector<512x128xf32>
    %4 = arith.mulf %1, %3 : vector<512x128xf32>
    %c0_3 = arith.constant 0 : index
    %c0_4 = arith.constant 0 : index
    %5 = vector.load %arg3[%c0_3, %c0_4] : memref<1x128xf32, #tpu.memory_space<vmem>>, vector<1x128xf32>
    %6 = vector.broadcast %5 : vector<1x128xf32> to vector<512x128xf32>
    %7 = arith.addf %4, %6 : vector<512x128xf32>
    %c0_5 = arith.constant 0 : index
    %c0_6 = arith.constant 0 : index
    %8 = vector.load %arg4[%c0_5, %c0_6] : memref<512x128xbf16, #tpu.memory_space<vmem>>, vector<512x128xbf16>
    %9 = arith.extf %8 : vector<512x128xbf16> to vector<512x128xf32>
    %c0_7 = arith.constant 0 : index
    %c0_8 = arith.constant 0 : index
    %10 = vector.load %arg5[%c0_7, %c0_8] : memref<1x128xf32, #tpu.memory_space<vmem>>, vector<1x128xf32>
    %11 = vector.broadcast %10 : vector<1x128xf32> to vector<512x128xf32>
    %12 = arith.mulf %9, %11 : vector<512x128xf32>
    %c0_9 = arith.constant 0 : index
    %c0_10 = arith.constant 0 : index
    %13 = vector.load %arg6[%c0_9, %c0_10] : memref<1x128xf32, #tpu.memory_space<vmem>>, vector<1x128xf32>
    %14 = vector.broadcast %13 : vector<1x128xf32> to vector<512x128xf32>
    %15 = arith.addf %12, %14 : vector<512x128xf32>
    %16 = arith.addf %7, %15 : vector<512x128xf32>
    %cst = arith.constant 0.000000e+00 : f32
    %17 = vector.broadcast %cst : f32 to vector<512x128xf32>
    %18 = arith.maximumf %16, %17 : vector<512x128xf32>
    %c0_11 = arith.constant 0 : index
    %c0_12 = arith.constant 0 : index
    %19 = vector.load %arg7[%c0_11, %c0_12] : memref<512x128xf32, #tpu.memory_space<vmem>>, vector<512x128xf32>
    tpu.vector_store %arg7[%c0_11, %c0_12], %18 {strides = array<i32>} : memref<512x128xf32, #tpu.memory_space<vmem>>, vector<512x128xf32>,
    return
  }
  func.func @transform_0(%arg0: i32) -> (i32, i32) {
    %c0_i32 = arith.constant 0 : i32
    %c0_i32_0 = arith.constant 0 : i32
    return %arg0, %c0_i32 : i32, i32
  }
  func.func @transform_1(%arg0: i32) -> (i32, i32) {
    %c0_i32 = arith.constant 0 : i32
    %c0_i32_0 = arith.constant 0 : i32
    %c0_i32_1 = arith.constant 0 : i32
    return %c0_i32, %c0_i32_0 : i32, i32
  }
  func.func @transform_2(%arg0: i32) -> (i32, i32) {
    %c0_i32 = arith.constant 0 : i32
    %c0_i32_0 = arith.constant 0 : i32
    %c0_i32_1 = arith.constant 0 : i32
    return %c0_i32, %c0_i32_0 : i32, i32
  }
  func.func @transform_3(%arg0: i32) -> (i32, i32) {
    %c0_i32 = arith.constant 0 : i32
    %c0_i32_0 = arith.constant 0 : i32
    return %arg0, %c0_i32 : i32, i32
  }
  func.func @transform_4(%arg0: i32) -> (i32, i32) {
    %c0_i32 = arith.constant 0 : i32
    %c0_i32_0 = arith.constant 0 : i32
    %c0_i32_1 = arith.constant 0 : i32
    return %c0_i32, %c0_i32_0 : i32, i32
  }
  func.func @transform_5(%arg0: i32) -> (i32, i32) {
    %c0_i32 = arith.constant 0 : i32
    %c0_i32_0 = arith.constant 0 : i32
    %c0_i32_1 = arith.constant 0 : i32
    return %c0_i32, %c0_i32_0 : i32, i32
  }
  func.func @transform_6(%arg0: i32) -> (i32, i32) {
    %c0_i32 = arith.constant 0 : i32
    %c0_i32_0 = arith.constant 0 : i32
    return %arg0, %c0_i32 : i32, i32
  }
}

</mosaic_0001>

<llo_original>
// kernel: dilated_residual_unit_3d.4
$region0: #{dilated_residual_unit_3d.4}
  #allocation0 [shape = 'u32[]', space=smem, size = 0x4, offset = 0x4, fixed_abs, tag = 'smem constant byte address 0x4 - core index']
  #allocation1 [shape = 'u32[144,128]{1,0:T(1,128)}', space=vmem, size = 0x12000, scoped, tag = 'internal scratch']
  %s0 = inlined_call_operand.vmem [shape: f32[1024,128], index: 0, kind: input, shape index: {}]
  %s1 = inlined_call_operand.vmem [shape: bf16[128,128], index: 1, kind: input, shape index: {}]
  %s2 = inlined_call_operand.vmem [shape: bf16[128,128], index: 2, kind: input, shape index: {}]
  %s3 = inlined_call_operand.vmem [shape: bf16[1024,128], index: 3, kind: output, shape index: {0}]
  %s4 = inlined_call_operand.vmem [shape: f32[2,8,128], index: 4, kind: output, shape index: {1}]
  %s5 = inlined_call_operand.vmem [shape: bf16[1024,128], index: 5, kind: output, shape index: {2}]
  %s6 = inlined_call_operand.vmem [shape: f32[2,8,128], index: 6, kind: output, shape index: {3}]
  %7 = xla_tuple %s3, %s4, %s5, %s6
  %s8 = sld [smem:[#allocation0]]
  $region69: #{dilated_residual_unit_3d.4} parent=0
    _
  %s10 = ssub.s32 1, %s8
  %s11 = scalar_select 0, %s10, %s8
  loop: start=0, step=1, limit=4
  $region2: #{dilated_residual_unit_3d.4} parent=0 // loop_pre_header
    _
  $region3: #{dilated_residual_unit_3d.4} parent=0 // loop_header
    %s13 = sphi 0, %s17
    %p14 = scmp.ge.s32.totalorder %s13, 4
    %s23 = sphi 0, %s25
    %s26 = sphi 0, %s23
    %s27 = sphi 0, %s26
    %s43 = sphi 0, %s27
    %s47 = sphi 0, %s47
    %s49 = sphi 0, %s47
    %s50 = sphi 0, %s49
    %s64 = sphi 0, %s50
    %s68 = sphi 0, %s68
    %s70 = sphi 0, %s68
    %s71 = sphi 0, %s70
    %s85 = sphi 0, %s71
    %s91 = sphi 0, %s93
    %s94 = sphi 0, %s91
    %s95 = sphi 0, %s94
    %s111 = sphi 0, %s95
    %s117 = sphi 0, %s119
    %s120 = sphi 0, %s117
    %s121 = sphi 0, %s120
    %s137 = sphi 0, %s121
    %s143 = sphi 0, %s145
    %s146 = sphi 0, %s143
    %s147 = sphi 0, %s146
    %s163 = sphi 0, %s147
    %s169 = sphi 0, %s171
    %s172 = sphi 0, %s169
    %s173 = sphi 0, %s172
    %s189 = sphi 0, %s173
  $region4: #{dilated_residual_unit_3d.4} parent=0 // loop_header_branch
    %16 = sbr.rel (%p14) target = $region8
  $region5: #{dilated_residual_unit_3d.4} parent=0 // loop_body
    %s18 = ssub.s32 %s13, 1
    %s19 = ssub.s32 %s13, 2
    %s20 = sadd.s32 %s13, 1
    %s21 = ssub.s32 %s13, %s20
    %p22 = scmp.eq.s32.totalorder %s21, 0
    %s24 = sadd.s32 %s23, 1
    %s25 = scalar_select %p22, %s23, %s24
    %p28 = pneg %p22
    %p29 = scmp.eq.s32.totalorder %s13, 1
    %p30 = por %p28, %p29
    %p31 = scmp.ne.s32.totalorder %s23, %s26
    %p32 = scmp.eq.s32.totalorder %s13, 0
    %p33 = por %p31, %p32
    %p34 = scmp.ne.s32.totalorder %s23, %s26
    %p35 = scmp.eq.s32.totalorder %s18, 1
    %p36 = por %p34, %p35
    %p37 = scmp.ne.s32.totalorder %s26, %s27
    %p38 = scmp.eq.s32.totalorder %s18, 0
    %p39 = por %p37, %p38
    %p40 = scmp.ne.s32.totalorder %s26, %s27
    %p41 = scmp.eq.s32.totalorder %s19, 1
    %p42 = por %p40, %p41
    %p44 = scmp.ne.s32.totalorder %s27, %s43
    %p45 = scmp.eq.s32.totalorder %s19, 0
    %p46 = por %p44, %p45
    %s48 = sadd.s32 %s47, 1
    %p51 = scmp.eq.s32.totalorder %s13, 1
    %p52 = scmp.ne.s32.totalorder %s47, %s49
    %p53 = scmp.eq.s32.totalorder %s13, 0
    %p54 = por %p52, %p53
    %p55 = scmp.ne.s32.totalorder %s47, %s49
    %p56 = scmp.eq.s32.totalorder %s18, 1
    %p57 = por %p55, %p56
    %p58 = scmp.ne.s32.totalorder %s49, %s50
    %p59 = scmp.eq.s32.totalorder %s18, 0
    %p60 = por %p58, %p59
    %p61 = scmp.ne.s32.totalorder %s49, %s50
    %p62 = scmp.eq.s32.totalorder %s19, 1
    %p63 = por %p61, %p62
    %p65 = scmp.ne.s32.totalorder %s50, %s64
    %p66 = scmp.eq.s32.totalorder %s19, 0
    %p67 = por %p65, %p66
    %s69 = sadd.s32 %s68, 1
    %p72 = scmp.eq.s32.totalorder %s13, 1
    %p73 = scmp.ne.s32.totalorder %s68, %s70
    %p74 = scmp.eq.s32.totalorder %s13, 0
    %p75 = por %p73, %p74
    %p76 = scmp.ne.s32.totalorder %s68, %s70
    %p77 = scmp.eq.s32.totalorder %s18, 1
    %p78 = por %p76, %p77
    %p79 = scmp.ne.s32.totalorder %s70, %s71
    %p80 = scmp.eq.s32.totalorder %s18, 0
    %p81 = por %p79, %p80
    %p82 = scmp.ne.s32.totalorder %s70, %s71
    %p83 = scmp.eq.s32.totalorder %s19, 1
    %p84 = por %p82, %p83
    %p86 = scmp.ne.s32.totalorder %s71, %s85
    %p87 = scmp.eq.s32.totalorder %s19, 0
    %p88 = por %p86, %p87
    %s89 = ssub.s32 %s13, %s20
    %p90 = scmp.eq.s32.totalorder %s89, 0
    %s92 = sadd.s32 %s91, 1
    %s93 = scalar_select %p90, %s91, %s92
    %p96 = pneg %p90
    %p97 = scmp.eq.s32.totalorder %s13, 1
    %p98 = por %p96, %p97
    %p99 = scmp.ne.s32.totalorder %s91, %s94
    %p100 = scmp.eq.s32.totalorder %s13, 0
    %p101 = por %p99, %p100
    %p102 = scmp.ne.s32.totalorder %s91, %s94
    %p103 = scmp.eq.s32.totalorder %s18, 1
    %p104 = por %p102, %p103
    %p105 = scmp.ne.s32.totalorder %s94, %s95
    %p106 = scmp.eq.s32.totalorder %s18, 0
    %p107 = por %p105, %p106
    %p108 = scmp.ne.s32.totalorder %s94, %s95
    %p109 = scmp.eq.s32.totalorder %s19, 1
    %p110 = por %p108, %p109
    %p112 = scmp.ne.s32.totalorder %s95, %s111
    %p113 = scmp.eq.s32.totalorder %s19, 0
    %p114 = por %p112, %p113
    %s115 = ssub.s32 %s13, %s20
    %p116 = scmp.eq.s32.totalorder %s115, 0
    %s118 = sadd.s32 %s117, 1
    %s119 = scalar_select %p116, %s117, %s118
    %p122 = pneg %p116
    %p123 = scmp.eq.s32.totalorder %s13, 1
    %p124 = por %p122, %p123
    %p125 = scmp.ne.s32.totalorder %s117, %s120
    %p126 = scmp.eq.s32.totalorder %s13, 0
    %p127 = por %p125, %p126
    %p128 = scmp.ne.s32.totalorder %s117, %s120
    %p129 = scmp.eq.s32.totalorder %s18, 1
    %p130 = por %p128, %p129
    %p131 = scmp.ne.s32.totalorder %s120, %s121
    %p132 = scmp.eq.s32.totalorder %s18, 0
    %p133 = por %p131, %p132
    %p134 = scmp.ne.s32.totalorder %s120, %s121
    %p135 = scmp.eq.s32.totalorder %s19, 1
    %p136 = por %p134, %p135
    %p138 = scmp.ne.s32.totalorder %s121, %s137
    %p139 = scmp.eq.s32.totalorder %s19, 0
    %p140 = por %p138, %p139
    %s141 = ssub.s32 %s13, %s20
    %p142 = scmp.eq.s32.totalorder %s141, 0
    %s144 = sadd.s32 %s143, 1
    %s145 = scalar_select %p142, %s143, %s144
    %p148 = pneg %p142
    %p149 = scmp.eq.s32.totalorder %s13, 1
    %p150 = por %p148, %p149
    %p151 = scmp.ne.s32.totalorder %s143, %s146
    %p152 = scmp.eq.s32.totalorder %s13, 0
    %p153 = por %p151, %p152
    %p154 = scmp.ne.s32.totalorder %s143, %s146
    %p155 = scmp.eq.s32.totalorder %s18, 1
    %p156 = por %p154, %p155
    %p157 = scmp.ne.s32.totalorder %s146, %s147
    %p158 = scmp.eq.s32.totalorder %s18, 0
    %p159 = por %p157, %p158
    %p160 = scmp.ne.s32.totalorder %s146, %s147
    %p161 = scmp.eq.s32.totalorder %s19, 1
    %p162 = por %p160, %p161
    %p164 = scmp.ne.s32.totalorder %s147, %s163
    %p165 = scmp.eq.s32.totalorder %s19, 0
    %p166 = por %p164, %p165
    %s167 = ssub.s32 %s13, %s20
    %p168 = scmp.eq.s32.totalorder %s167, 0
    %s170 = sadd.s32 %s169, 1
    %s171 = scalar_select %p168, %s169, %s170
    %p174 = pneg %p168
    %p175 = scmp.eq.s32.totalorder %s13, 1
    %p176 = por %p174, %p175
    %p177 = scmp.ne.s32.totalorder %s169, %s172
    %p178 = scmp.eq.s32.totalorder %s13, 0
    %p179 = por %p177, %p178
    %p180 = scmp.ne.s32.totalorder %s169, %s172
    %p181 = scmp.eq.s32.totalorder %s18, 1
    %p182 = por %p180, %p181
    %p183 = scmp.ne.s32.totalorder %s172, %s173
    %p184 = scmp.eq.s32.totalorder %s18, 0
    %p185 = por %p183, %p184
    %p186 = scmp.ne.s32.totalorder %s172, %s173
    %p187 = scmp.eq.s32.totalorder %s19, 1
    %p188 = por %p186, %p187
    %p190 = scmp.ne.s32.totalorder %s173, %s189
    %p191 = scmp.eq.s32.totalorder %s19, 0
    %p192 = por %p190, %p191
    %p193 = scmp.le.s32.totalorder 1, %s13
    %p194 = scmp.lt.s32.totalorder %s13, 3
    %p195 = pnand %p193, %p194
    %p196 = pneg %p195
    // Predicated region
    $region9: #{dilated_residual_unit_3d.4} parent=5 // pred_check
      _
    $region10: #{dilated_residual_unit_3d.4} parent=5 // pred_check_branch
      %198 = sbr.rel (%p195) target = $region12
    $region11: #{dilated_residual_unit_3d.4} parent=5 // pred_region
      %s199 = ssub.s32 %s13, 1
      // Predicated region
      $region13: #{dilated_residual_unit_3d.4} parent=11 // pred_check
        %p200 = pneg %p60
      $region14: #{dilated_residual_unit_3d.4} parent=11 // pred_check_branch
        %202 = sbr.rel (%p200) target = $region16
      $region15: #{dilated_residual_unit_3d.4} parent=11 // pred_region
        _
      $region16: #{dilated_residual_unit_3d.4} parent=11 // pred_fallthru
        _
      // Predicated region
      $region17: #{dilated_residual_unit_3d.4} parent=11 // pred_check
        %p203 = pneg %p81
      $region18: #{dilated_residual_unit_3d.4} parent=11 // pred_check_branch
        %205 = sbr.rel (%p203) target = $region20
      $region19: #{dilated_residual_unit_3d.4} parent=11 // pred_region
        _
      $region20: #{dilated_residual_unit_3d.4} parent=11 // pred_fallthru
        _
    $region12: #{dilated_residual_unit_3d.4} parent=5 // pred_fallthru
      _
    %p206 = scmp.lt.s32.totalorder %s13, 2
    // Predicated region
    $region21: #{dilated_residual_unit_3d.4} parent=5 // pred_check
      %p207 = pneg %p206
    $region22: #{dilated_residual_unit_3d.4} parent=5 // pred_check_branch
      %209 = sbr.rel (%p207) target = $region24
    $region23: #{dilated_residual_unit_3d.4} parent=5 // pred_region
      // Predicated region
      $region25: #{dilated_residual_unit_3d.4} parent=23 // pred_check
        %p210 = pneg %p33
      $region26: #{dilated_residual_unit_3d.4} parent=23 // pred_check_branch
        %212 = sbr.rel (%p210) target = $region28
      $region27: #{dilated_residual_unit_3d.4} parent=23 // pred_region
        %s213 = smul.u32 64, %s13
        %p214 = scmp.lt.s32.totalorder %s213, 127
        %s215 = scalar_select %p214, %s213, 127
        %s216 = smul.addr %s215, 8
        %s217 = scalar_lea.vmem %s0, %s216
        %s218 = smul.u32 64, %s13
      $region28: #{dilated_residual_unit_3d.4} parent=23 // pred_fallthru
        _
    $region24: #{dilated_residual_unit_3d.4} parent=5 // pred_fallthru
      _
    %p219 = scmp.le.s32.totalorder 1, %s13
    %p220 = scmp.lt.s32.totalorder %s13, 3
    %p221 = pnand %p219, %p220
    %p222 = pneg %p221
    // Predicated region
    $region29: #{dilated_residual_unit_3d.4} parent=5 // pred_check
      _
    $region30: #{dilated_residual_unit_3d.4} parent=5 // pred_check_branch
      %224 = sbr.rel (%p221) target = $region32
    $region31: #{dilated_residual_unit_3d.4} parent=5 // pred_region
      %s225 = ssub.s32 %s13, 1
      %s226 = smul.u32 64, %s18
      %p227 = scmp.lt.s32.totalorder %s226, 127
      %s228 = scalar_select %p227, %s226, 127
      %s229 = smul.addr %s228, 8
      %s230 = scalar_lea.vmem %s0, %s229
      %p231 = pneg %p39
      %p232 = pneg %p36
      %p233 = pneg %p60
      %p234 = pneg %p57
      %p235 = pneg %p81
      %p236 = pneg %p78
      %p237 = pneg %p107
      %p238 = pneg %p104
      %s239 = smul.u32 64, %s18
      %p240 = scmp.lt.s32.totalorder %s239, 127
      %s241 = scalar_select %p240, %s239, 127
      %s242 = smul.addr %s241, 4
      %s243 = scalar_lea.vmem %s3, %s242
      %p244 = pneg %p133
      %p245 = pneg %p130
      %p246 = scmp.lt.s32.totalorder %s18, 1
      %s247 = scalar_select %p246, %s18, 1
      %s248 = smul.addr %s247, 8
      %s249 = scalar_lea.vmem %s4, %s248
      %p250 = pneg %p159
      %p251 = pneg %p156
      %s252 = smul.u32 64, %s18
      %p253 = scmp.lt.s32.totalorder %s252, 127
      %s254 = scalar_select %p253, %s252, 127
      %s255 = smul.addr %s254, 4
      %s256 = scalar_lea.vmem %s5, %s255
      %p257 = pneg %p185
      %p258 = pneg %p182
      %p259 = scmp.lt.s32.totalorder %s18, 1
      %s260 = scalar_select %p259, %s18, 1
      %s261 = smul.addr %s260, 8
      %s262 = scalar_lea.vmem %s6, %s261
      %s263 = smul.u32 64, %s18
      %p264 = scmp.lt.s32.totalorder %s263, 127
      %s265 = scalar_select %p264, %s263, 127
      %s266 = smul.addr %s265, 8
      %s267 = scalar_lea.vmem %s0, %s266
      %s268 = smul.u32 64, %s18
      %s269 = smul.u32 64, %s18
      %p270 = scmp.lt.s32.totalorder %s269, 127
      %s271 = scalar_select %p270, %s269, 127
      %s272 = smul.addr %s271, 4
      %s273 = scalar_lea.vmem %s3, %s272
      %s274 = smul.u32 64, %s18
      %p275 = scmp.lt.s32.totalorder %s18, 1
      %s276 = scalar_select %p275, %s18, 1
      %s277 = smul.addr %s276, 8
      %s278 = scalar_lea.vmem %s4, %s277
      %s279 = smul.u32 64, %s18
      %p280 = scmp.lt.s32.totalorder %s279, 127
      %s281 = scalar_select %p280, %s279, 127
      %s282 = smul.addr %s281, 4
      %s283 = scalar_lea.vmem %s5, %s282
      %s284 = smul.u32 64, %s18
      %p285 = scmp.lt.s32.totalorder %s18, 1
      %s286 = scalar_select %p285, %s18, 1
      %s287 = smul.addr %s286, 8
      %s288 = scalar_lea.vmem %s6, %s287
      %v290 = vld [vmem:[%s267] sm:$0xff]
      %v291 = vld [vmem:[%s267 + $0x8] sm:$0xff]
      %v292 = vld [vmem:[%s267 + $0x10] sm:$0xff]
      %v293 = vld [vmem:[%s267 + $0x18] sm:$0xff]
      %v294 = vld [vmem:[%s267 + $0x20] sm:$0xff]
      %v295 = vld [vmem:[%s267 + $0x28] sm:$0xff]
      %v296 = vld [vmem:[%s267 + $0x30] sm:$0xff]
      %v297 = vld [vmem:[%s267 + $0x38] sm:$0xff]
      %v298 = vld [vmem:[%s267 + $0x40] sm:$0xff]
      %v299 = vld [vmem:[%s267 + $0x48] sm:$0xff]
      %v300 = vld [vmem:[%s267 + $0x50] sm:$0xff]
      %v301 = vld [vmem:[%s267 + $0x58] sm:$0xff]
      %v302 = vld [vmem:[%s267 + $0x60] sm:$0xff]
      %v303 = vld [vmem:[%s267 + $0x68] sm:$0xff]
      %v304 = vld [vmem:[%s267 + $0x70] sm:$0xff]
      %v305 = vld [vmem:[%s267 + $0x78] sm:$0xff]
      %v306 = vld [vmem:[%s267 + $0x80] sm:$0xff]
      %v307 = vld [vmem:[%s267 + $0x88] sm:$0xff]
      %v308 = vld [vmem:[%s267 + $0x90] sm:$0xff]
      %v309 = vld [vmem:[%s267 + $0x98] sm:$0xff]
      %v310 = vld [vmem:[%s267 + $0xa0] sm:$0xff]
      %v311 = vld [vmem:[%s267 + $0xa8] sm:$0xff]
      %v312 = vld [vmem:[%s267 + $0xb0] sm:$0xff]
      %v313 = vld [vmem:[%s267 + $0xb8] sm:$0xff]
      %v314 = vld [vmem:[%s267 + $0xc0] sm:$0xff]
      %v315 = vld [vmem:[%s267 + $0xc8] sm:$0xff]
      %v316 = vld [vmem:[%s267 + $0xd0] sm:$0xff]
      %v317 = vld [vmem:[%s267 + $0xd8] sm:$0xff]
      %v318 = vld [vmem:[%s267 + $0xe0] sm:$0xff]
      %v319 = vld [vmem:[%s267 + $0xe8] sm:$0xff]
      %v320 = vld [vmem:[%s267 + $0xf0] sm:$0xff]
      %v321 = vld [vmem:[%s267 + $0xf8] sm:$0xff]
      %v322 = vld [vmem:[%s267 + $0x100] sm:$0xff]
      %v323 = vld [vmem:[%s267 + $0x108] sm:$0xff]
      %v324 = vld [vmem:[%s267 + $0x110] sm:$0xff]
      %v325 = vld [vmem:[%s267 + $0x118] sm:$0xff]
      %v326 = vld [vmem:[%s267 + $0x120] sm:$0xff]
      %v327 = vld [vmem:[%s267 + $0x128] sm:$0xff]
      %v328 = vld [vmem:[%s267 + $0x130] sm:$0xff]
      %v329 = vld [vmem:[%s267 + $0x138] sm:$0xff]
      %v330 = vld [vmem:[%s267 + $0x140] sm:$0xff]
      %v331 = vld [vmem:[%s267 + $0x148] sm:$0xff]
      %v332 = vld [vmem:[%s267 + $0x150] sm:$0xff]
      %v333 = vld [vmem:[%s267 + $0x158] sm:$0xff]
      %v334 = vld [vmem:[%s267 + $0x160] sm:$0xff]
      %v335 = vld [vmem:[%s267 + $0x168] sm:$0xff]
      %v336 = vld [vmem:[%s267 + $0x170] sm:$0xff]
      %v337 = vld [vmem:[%s267 + $0x178] sm:$0xff]
      %v338 = vld [vmem:[%s267 + $0x180] sm:$0xff]
      %v339 = vld [vmem:[%s267 + $0x188] sm:$0xff]
      %v340 = vld [vmem:[%s267 + $0x190] sm:$0xff]
      %v341 = vld [vmem:[%s267 + $0x198] sm:$0xff]
      %v342 = vld [vmem:[%s267 + $0x1a0] sm:$0xff]
      %v343 = vld [vmem:[%s267 + $0x1a8] sm:$0xff]
      %v344 = vld [vmem:[%s267 + $0x1b0] sm:$0xff]
      %v345 = vld [vmem:[%s267 + $0x1b8] sm:$0xff]
      %v346 = vld [vmem:[%s267 + $0x1c0] sm:$0xff]
      %v347 = vld [vmem:[%s267 + $0x1c8] sm:$0xff]
      %v348 = vld [vmem:[%s267 + $0x1d0] sm:$0xff]
      %v349 = vld [vmem:[%s267 + $0x1d8] sm:$0xff]
      %v350 = vld [vmem:[%s267 + $0x1e0] sm:$0xff]
      %v351 = vld [vmem:[%s267 + $0x1e8] sm:$0xff]
      %v352 = vld [vmem:[%s267 + $0x1f0] sm:$0xff]
      %v353 = vld [vmem:[%s267 + $0x1f8] sm:$0xff]
      %v354 = vpack.c.bf16 %v291, %v290
      %v355 = vpack.c.bf16 %v293, %v292
      %v356 = vpack.c.bf16 %v295, %v294
      %v357 = vpack.c.bf16 %v297, %v296
      %v358 = vpack.c.bf16 %v299, %v298
      %v359 = vpack.c.bf16 %v301, %v300
      %v360 = vpack.c.bf16 %v303, %v302
      %v361 = vpack.c.bf16 %v305, %v304
      %v362 = vpack.c.bf16 %v307, %v306
      %v363 = vpack.c.bf16 %v309, %v308
      %v364 = vpack.c.bf16 %v311, %v310
      %v365 = vpack.c.bf16 %v313, %v312
      %v366 = vpack.c.bf16 %v315, %v314
      %v367 = vpack.c.bf16 %v317, %v316
      %v368 = vpack.c.bf16 %v319, %v318
      %v369 = vpack.c.bf16 %v321, %v320
      %v370 = vpack.c.bf16 %v323, %v322
      %v371 = vpack.c.bf16 %v325, %v324
      %v372 = vpack.c.bf16 %v327, %v326
      %v373 = vpack.c.bf16 %v329, %v328
      %v374 = vpack.c.bf16 %v331, %v330
      %v375 = vpack.c.bf16 %v333, %v332
      %v376 = vpack.c.bf16 %v335, %v334
      %v377 = vpack.c.bf16 %v337, %v336
      %v378 = vpack.c.bf16 %v339, %v338
      %v379 = vpack.c.bf16 %v341, %v340
      %v380 = vpack.c.bf16 %v343, %v342
      %v381 = vpack.c.bf16 %v345, %v344
      %v382 = vpack.c.bf16 %v347, %v346
      %v383 = vpack.c.bf16 %v349, %v348
      %v384 = vpack.c.bf16 %v351, %v350
      %v385 = vpack.c.bf16 %v353, %v352
      %v386 = vld [vmem:[%s1] sm:$0xf]
      %v387 = vld [vmem:[%s1 + $0x4] sm:$0xf]
      %v388 = vld [vmem:[%s1 + $0x8] sm:$0xf]
      %v389 = vld [vmem:[%s1 + $0xc] sm:$0xf]
      %v390 = vld [vmem:[%s1 + $0x10] sm:$0xf]
      %v391 = vld [vmem:[%s1 + $0x14] sm:$0xf]
      %v392 = vld [vmem:[%s1 + $0x18] sm:$0xf]
      %v393 = vld [vmem:[%s1 + $0x1c] sm:$0xf]
      %v394 = vld [vmem:[%s1 + $0x20] sm:$0xf]
      %v395 = vld [vmem:[%s1 + $0x24] sm:$0xf]
      %v396 = vld [vmem:[%s1 + $0x28] sm:$0xf]
      %v397 = vld [vmem:[%s1 + $0x2c] sm:$0xf]
      %v398 = vld [vmem:[%s1 + $0x30] sm:$0xf]
      %v399 = vld [vmem:[%s1 + $0x34] sm:$0xf]
      %v400 = vld [vmem:[%s1 + $0x38] sm:$0xf]
      %v401 = vld [vmem:[%s1 + $0x3c] sm:$0xf]
      %v418 = vunpack.c.l.b16 %v386
      %v419 = vunpack.c.l.b16 %v387
      %v420 = vunpack.c.l.b16 %v388
      %v421 = vunpack.c.l.b16 %v389
      %v422 = vunpack.c.l.b16 %v390
      %v423 = vunpack.c.l.b16 %v391
      %v424 = vunpack.c.l.b16 %v392
      %v425 = vunpack.c.l.b16 %v393
      %v426 = vunpack.c.l.b16 %v394
      %v427 = vunpack.c.l.b16 %v395
      %v428 = vunpack.c.l.b16 %v396
      %v429 = vunpack.c.l.b16 %v397
      %v430 = vunpack.c.l.b16 %v398
      %v431 = vunpack.c.l.b16 %v399
      %v432 = vunpack.c.l.b16 %v400
      %v433 = vunpack.c.l.b16 %v401
      %v434 = vpack.c.b16 %v419, %v418
      %v435 = vpack.c.b16 %v421, %v420
      %v436 = vpack.c.b16 %v423, %v422
      %v437 = vpack.c.b16 %v425, %v424
      %v438 = vpack.c.b16 %v427, %v426
      %v439 = vpack.c.b16 %v429, %v428
      %v440 = vpack.c.b16 %v431, %v430
      %v441 = vpack.c.b16 %v433, %v432
      %450 = vmatprep.subr.bf16.mxu0 0
      %451 = vmatpush1.bf16.msra.mxu0 %v441
      %452 = vmatprep.subr.bf16.mxu0 0
      %453 = vmatpush1.bf16.msra.mxu0 %v440
      %454 = vmatprep.subr.bf16.mxu0 0
      %455 = vmatpush1.bf16.msra.mxu0 %v439
      %456 = vmatprep.subr.bf16.mxu0 0
      %457 = vmatpush1.bf16.msra.mxu0 %v438
      %458 = vmatprep.subr.bf16.mxu0 0
      %459 = vmatpush1.bf16.msra.mxu0 %v437
      %460 = vmatprep.subr.bf16.mxu0 0
      %461 = vmatpush1.bf16.msra.mxu0 %v436
      %462 = vmatprep.subr.bf16.mxu0 0
      %463 = vmatpush1.bf16.msra.mxu0 %v435
      %464 = vmatprep.subr.bf16.mxu0 0
      %465 = vmatpush1.bf16.msra.mxu0 %v434
      %466 = vmatprep.subr.bf16.mxu0 0
      %467 = vmatpush2.bf16.msra.mxu0 0
      %468 = vmatprep.subr.bf16.mxu0 0
      %469 = vmatpush2.bf16.msra.mxu0 0
      %470 = vmatprep.subr.bf16.mxu0 0
      %471 = vmatpush2.bf16.msra.mxu0 0
      %472 = vmatprep.subr.bf16.mxu0 0
      %473 = vmatpush2.bf16.msra.mxu0 0
      %474 = vmatprep.subr.bf16.mxu0 0
      %475 = vmatpush2.bf16.msra.mxu0 0
      %476 = vmatprep.subr.bf16.mxu0 0
      %477 = vmatpush2.bf16.msra.mxu0 0
      %478 = vmatprep.subr.bf16.mxu0 0
      %479 = vmatpush2.bf16.msra.mxu0 0
      %480 = vmatprep.subr.bf16.mxu0 0
      %481 = vmatpush2.bf16.msra.mxu0 0
      %482 = vmatprep.mubr.bf16.mxu0 0
      %483 = vmatmul.mubr.bf16.gmra.mxu0 %v354
      %v484 = vpop.f32.mrf.mxu0
      %v485 = vadd.f32 0.0, %v484
      %v486 = vpop.f32.mrf.mxu0
      %v487 = vpop.f32.mrf.mxu0
      %v488 = vadd.f32 0.0, %v487
      %v489 = vpop.f32.mrf.mxu0
      %490 = vmatprep.mubr.bf16.mxu0 0
      %491 = vmatmul.mubr.bf16.gmra.mxu0 %v355
      %v492 = vpop.f32.mrf.mxu0
      %v493 = vadd.f32 0.0, %v492
      %v494 = vpop.f32.mrf.mxu0
      %v495 = vpop.f32.mrf.mxu0
      %v496 = vadd.f32 0.0, %v495
      %v497 = vpop.f32.mrf.mxu0
      %498 = vmatprep.mubr.bf16.mxu0 0
      %499 = vmatmul.mubr.bf16.gmra.mxu0 %v356
      %v500 = vpop.f32.mrf.mxu0
      %v501 = vadd.f32 0.0, %v500
      %v502 = vpop.f32.mrf.mxu0
      %v503 = vpop.f32.mrf.mxu0
      %v504 = vadd.f32 0.0, %v503
      %v505 = vpop.f32.mrf.mxu0
      %506 = vmatprep.mubr.bf16.mxu0 0
      %507 = vmatmul.mubr.bf16.gmra.mxu0 %v357
      %v508 = vpop.f32.mrf.mxu0
      %v509 = vadd.f32 0.0, %v508
      %v510 = vpop.f32.mrf.mxu0
      %v511 = vpop.f32.mrf.mxu0
      %v512 = vadd.f32 0.0, %v511
      %v513 = vpop.f32.mrf.mxu0
      %514 = vmatprep.mubr.bf16.mxu0 0
      %515 = vmatmul.mubr.bf16.gmra.mxu0 %v358
      %v516 = vpop.f32.mrf.mxu0
      %v517 = vadd.f32 0.0, %v516
      %v518 = vpop.f32.mrf.mxu0
      %v519 = vpop.f32.mrf.mxu0
      %v520 = vadd.f32 0.0, %v519
      %v521 = vpop.f32.mrf.mxu0
      %522 = vmatprep.mubr.bf16.mxu0 0
      %523 = vmatmul.mubr.bf16.gmra.mxu0 %v359
      %v524 = vpop.f32.mrf.mxu0
      %v525 = vadd.f32 0.0, %v524
      %v526 = vpop.f32.mrf.mxu0
      %v527 = vpop.f32.mrf.mxu0
      %v528 = vadd.f32 0.0, %v527
      %v529 = vpop.f32.mrf.mxu0
      %530 = vmatprep.mubr.bf16.mxu0 0
      %531 = vmatmul.mubr.bf16.gmra.mxu0 %v360
      %v532 = vpop.f32.mrf.mxu0
      %v533 = vadd.f32 0.0, %v532
      %v534 = vpop.f32.mrf.mxu0
      %v535 = vpop.f32.mrf.mxu0
      %v536 = vadd.f32 0.0, %v535
      %v537 = vpop.f32.mrf.mxu0
      %538 = vmatprep.mubr.bf16.mxu0 0
      %539 = vmatmul.mubr.bf16.gmra.mxu0 %v361
      %v540 = vpop.f32.mrf.mxu0
      %v541 = vadd.f32 0.0, %v540
      %v542 = vpop.f32.mrf.mxu0
      %v543 = vpop.f32.mrf.mxu0
      %v544 = vadd.f32 0.0, %v543
      %v545 = vpop.f32.mrf.mxu0
      %546 = vmatprep.mubr.bf16.mxu0 0
      %547 = vmatmul.mubr.bf16.gmra.mxu0 %v362
      %v548 = vpop.f32.mrf.mxu0
      %v549 = vadd.f32 0.0, %v548
      %v550 = vpop.f32.mrf.mxu0
      %v551 = vpop.f32.mrf.mxu0
      %v552 = vadd.f32 0.0, %v551
      %v553 = vpop.f32.mrf.mxu0
      %554 = vmatprep.mubr.bf16.mxu0 0
      %555 = vmatmul.mubr.bf16.gmra.mxu0 %v363
      %v556 = vpop.f32.mrf.mxu0
      %v557 = vadd.f32 0.0, %v556
      %v558 = vpop.f32.mrf.mxu0
      %v559 = vpop.f32.mrf.mxu0
      %v560 = vadd.f32 0.0, %v559
      %v561 = vpop.f32.mrf.mxu0
      %562 = vmatprep.mubr.bf16.mxu0 0
      %563 = vmatmul.mubr.bf16.gmra.mxu0 %v364
      %v564 = vpop.f32.mrf.mxu0
      %v565 = vadd.f32 0.0, %v564
      %v566 = vpop.f32.mrf.mxu0
      %v567 = vpop.f32.mrf.mxu0
      %v568 = vadd.f32 0.0, %v567
      %v569 = vpop.f32.mrf.mxu0
      %570 = vmatprep.mubr.bf16.mxu0 0
      %571 = vmatmul.mubr.bf16.gmra.mxu0 %v365
      %v572 = vpop.f32.mrf.mxu0
      %v573 = vadd.f32 0.0, %v572
      %v574 = vpop.f32.mrf.mxu0
      %v575 = vpop.f32.mrf.mxu0
      %v576 = vadd.f32 0.0, %v575
      %v577 = vpop.f32.mrf.mxu0
      %578 = vmatprep.mubr.bf16.mxu0 0
      %579 = vmatmul.mubr.bf16.gmra.mxu0 %v366
      %v580 = vpop.f32.mrf.mxu0
      %v581 = vadd.f32 0.0, %v580
      %v582 = vpop.f32.mrf.mxu0
      %v583 = vpop.f32.mrf.mxu0
      %v584 = vadd.f32 0.0, %v583
      %v585 = vpop.f32.mrf.mxu0
      %586 = vmatprep.mubr.bf16.mxu0 0
      %587 = vmatmul.mubr.bf16.gmra.mxu0 %v367
      %v588 = vpop.f32.mrf.mxu0
      %v589 = vadd.f32 0.0, %v588
      %v590 = vpop.f32.mrf.mxu0
      %v591 = vpop.f32.mrf.mxu0
      %v592 = vadd.f32 0.0, %v591
      %v593 = vpop.f32.mrf.mxu0
      %594 = vmatprep.mubr.bf16.mxu0 0
      %595 = vmatmul.mubr.bf16.gmra.mxu0 %v368
      %v596 = vpop.f32.mrf.mxu0
      %v597 = vadd.f32 0.0, %v596
      %v598 = vpop.f32.mrf.mxu0
      %v599 = vpop.f32.mrf.mxu0
      %v600 = vadd.f32 0.0, %v599
      %v601 = vpop.f32.mrf.mxu0
      %602 = vmatprep.mubr.bf16.mxu0 0
      %603 = vmatmul.mubr.bf16.gmra.mxu0 %v369
      %v604 = vpop.f32.mrf.mxu0
      %v605 = vadd.f32 0.0, %v604
      %v606 = vpop.f32.mrf.mxu0
      %v607 = vpop.f32.mrf.mxu0
      %v608 = vadd.f32 0.0, %v607
      %v609 = vpop.f32.mrf.mxu0
      %610 = vmatprep.mubr.bf16.mxu0 0
      %611 = vmatmul.mubr.bf16.gmra.mxu0 %v370
      %v612 = vpop.f32.mrf.mxu0
      %v613 = vadd.f32 0.0, %v612
      %v614 = vpop.f32.mrf.mxu0
      %v615 = vpop.f32.mrf.mxu0
      %v616 = vadd.f32 0.0, %v615
      %v617 = vpop.f32.mrf.mxu0
      %618 = vmatprep.mubr.bf16.mxu0 0
      %619 = vmatmul.mubr.bf16.gmra.mxu0 %v371
      %v620 = vpop.f32.mrf.mxu0
      %v621 = vadd.f32 0.0, %v620
      %v622 = vpop.f32.mrf.mxu0
      %v623 = vpop.f32.mrf.mxu0
      %v624 = vadd.f32 0.0, %v623
      %v625 = vpop.f32.mrf.mxu0
      %626 = vmatprep.mubr.bf16.mxu0 0
      %627 = vmatmul.mubr.bf16.gmra.mxu0 %v372
      %v628 = vpop.f32.mrf.mxu0
      %v629 = vadd.f32 0.0, %v628
      %v630 = vpop.f32.mrf.mxu0
      %v631 = vpop.f32.mrf.mxu0
      %v632 = vadd.f32 0.0, %v631
      %v633 = vpop.f32.mrf.mxu0
      %634 = vmatprep.mubr.bf16.mxu0 0
      %635 = vmatmul.mubr.bf16.gmra.mxu0 %v373
      %v636 = vpop.f32.mrf.mxu0
      %v637 = vadd.f32 0.0, %v636
      %v638 = vpop.f32.mrf.mxu0
      %v639 = vpop.f32.mrf.mxu0
      %v640 = vadd.f32 0.0, %v639
      %v641 = vpop.f32.mrf.mxu0
      %642 = vmatprep.mubr.bf16.mxu0 0
      %643 = vmatmul.mubr.bf16.gmra.mxu0 %v374
      %v644 = vpop.f32.mrf.mxu0
      %v645 = vadd.f32 0.0, %v644
      %v646 = vpop.f32.mrf.mxu0
      %v647 = vpop.f32.mrf.mxu0
      %v648 = vadd.f32 0.0, %v647
      %v649 = vpop.f32.mrf.mxu0
      %650 = vmatprep.mubr.bf16.mxu0 0
      %651 = vmatmul.mubr.bf16.gmra.mxu0 %v375
      %v652 = vpop.f32.mrf.mxu0
      %v653 = vadd.f32 0.0, %v652
      %v654 = vpop.f32.mrf.mxu0
      %v655 = vpop.f32.mrf.mxu0
      %v656 = vadd.f32 0.0, %v655
      %v657 = vpop.f32.mrf.mxu0
      %658 = vmatprep.mubr.bf16.mxu0 0
      %659 = vmatmul.mubr.bf16.gmra.mxu0 %v376
      %v660 = vpop.f32.mrf.mxu0
      %v661 = vadd.f32 0.0, %v660
      %v662 = vpop.f32.mrf.mxu0
      %v663 = vpop.f32.mrf.mxu0
      %v664 = vadd.f32 0.0, %v663
      %v665 = vpop.f32.mrf.mxu0
      %666 = vmatprep.mubr.bf16.mxu0 0
      %667 = vmatmul.mubr.bf16.gmra.mxu0 %v377
      %v668 = vpop.f32.mrf.mxu0
      %v669 = vadd.f32 0.0, %v668
      %v670 = vpop.f32.mrf.mxu0
      %v671 = vpop.f32.mrf.mxu0
      %v672 = vadd.f32 0.0, %v671
      %v673 = vpop.f32.mrf.mxu0
      %674 = vmatprep.mubr.bf16.mxu0 0
      %675 = vmatmul.mubr.bf16.gmra.mxu0 %v378
      %v676 = vpop.f32.mrf.mxu0
      %v677 = vadd.f32 0.0, %v676
      %v678 = vpop.f32.mrf.mxu0
      %v679 = vpop.f32.mrf.mxu0
      %v680 = vadd.f32 0.0, %v679
      %v681 = vpop.f32.mrf.mxu0
      %682 = vmatprep.mubr.bf16.mxu0 0
      %683 = vmatmul.mubr.bf16.gmra.mxu0 %v379
      %v684 = vpop.f32.mrf.mxu0
      %v685 = vadd.f32 0.0, %v684
      %v686 = vpop.f32.mrf.mxu0
      %v687 = vpop.f32.mrf.mxu0
      %v688 = vadd.f32 0.0, %v687
      %v689 = vpop.f32.mrf.mxu0
      %690 = vmatprep.mubr.bf16.mxu0 0
      %691 = vmatmul.mubr.bf16.gmra.mxu0 %v380
      %v692 = vpop.f32.mrf.mxu0
      %v693 = vadd.f32 0.0, %v692
      %v694 = vpop.f32.mrf.mxu0
      %v695 = vpop.f32.mrf.mxu0
      %v696 = vadd.f32 0.0, %v695
      %v697 = vpop.f32.mrf.mxu0
      %698 = vmatprep.mubr.bf16.mxu0 0
      %699 = vmatmul.mubr.bf16.gmra.mxu0 %v381
      %v700 = vpop.f32.mrf.mxu0
      %v701 = vadd.f32 0.0, %v700
      %v702 = vpop.f32.mrf.mxu0
      %v703 = vpop.f32.mrf.mxu0
      %v704 = vadd.f32 0.0, %v703
      %v705 = vpop.f32.mrf.mxu0
      %706 = vmatprep.mubr.bf16.mxu0 0
      %707 = vmatmul.mubr.bf16.gmra.mxu0 %v382
      %v708 = vpop.f32.mrf.mxu0
      %v709 = vadd.f32 0.0, %v708
      %v710 = vpop.f32.mrf.mxu0
      %v711 = vpop.f32.mrf.mxu0
      %v712 = vadd.f32 0.0, %v711
      %v713 = vpop.f32.mrf.mxu0
      %714 = vmatprep.mubr.bf16.mxu0 0
      %715 = vmatmul.mubr.bf16.gmra.mxu0 %v383
      %v716 = vpop.f32.mrf.mxu0
      %v717 = vadd.f32 0.0, %v716
      %v718 = vpop.f32.mrf.mxu0
      %v719 = vpop.f32.mrf.mxu0
      %v720 = vadd.f32 0.0, %v719
      %v721 = vpop.f32.mrf.mxu0
      %722 = vmatprep.mubr.bf16.mxu0 0
      %723 = vmatmul.mubr.bf16.gmra.mxu0 %v384
      %v724 = vpop.f32.mrf.mxu0
      %v725 = vadd.f32 0.0, %v724
      %v726 = vpop.f32.mrf.mxu0
      %v727 = vpop.f32.mrf.mxu0
      %v728 = vadd.f32 0.0, %v727
      %v729 = vpop.f32.mrf.mxu0
      %730 = vmatprep.mubr.bf16.mxu0 0
      %731 = vmatmul.mubr.bf16.gmra.mxu0 %v385
      %v732 = vpop.f32.mrf.mxu0
      %v733 = vadd.f32 0.0, %v732
      %v734 = vpop.f32.mrf.mxu0
      %v735 = vpop.f32.mrf.mxu0
      %v736 = vadd.f32 0.0, %v735
      %v737 = vpop.f32.mrf.mxu0
      %738 = vdwg.mxu0
      %v739 = vlaneseq
      %v740 = vshrl.u32 %v739, 7
      %v741 = vadd.f32 %v485, %v488
      %v742 = vadd.f32 %v741, %v493
      %v743 = vadd.f32 %v742, %v496
      %v744 = vadd.f32 %v743, %v501
      %v745 = vadd.f32 %v744, %v504
      %v746 = vadd.f32 %v745, %v509
      %v747 = vadd.f32 %v746, %v512
      %v748 = vadd.f32 %v747, %v517
      %v749 = vadd.f32 %v748, %v520
      %v750 = vadd.f32 %v749, %v525
      %v751 = vadd.f32 %v750, %v528
      %v752 = vadd.f32 %v751, %v533
      %v753 = vadd.f32 %v752, %v536
      %v754 = vadd.f32 %v753, %v541
      %v755 = vadd.f32 %v754, %v544
      %v756 = vadd.f32 %v755, %v549
      %v757 = vadd.f32 %v756, %v552
      %v758 = vadd.f32 %v757, %v557
      %v759 = vadd.f32 %v758, %v560
      %v760 = vadd.f32 %v759, %v565
      %v761 = vadd.f32 %v760, %v568
      %v762 = vadd.f32 %v761, %v573
      %v763 = vadd.f32 %v762, %v576
      %v764 = vadd.f32 %v763, %v581
      %v765 = vadd.f32 %v764, %v584
      %v766 = vadd.f32 %v765, %v589
      %v767 = vadd.f32 %v766, %v592
      %v768 = vadd.f32 %v767, %v597
      %v769 = vadd.f32 %v768, %v600
      %v770 = vadd.f32 %v769, %v605
      %v771 = vadd.f32 %v770, %v608
      %v772 = vadd.f32 %v771, %v613
      %v773 = vadd.f32 %v772, %v616
      %v774 = vadd.f32 %v773, %v621
      %v775 = vadd.f32 %v774, %v624
      %v776 = vadd.f32 %v775, %v629
      %v777 = vadd.f32 %v776, %v632
      %v778 = vadd.f32 %v777, %v637
      %v779 = vadd.f32 %v778, %v640
      %v780 = vadd.f32 %v779, %v645
      %v781 = vadd.f32 %v780, %v648
      %v782 = vadd.f32 %v781, %v653
      %v783 = vadd.f32 %v782, %v656
      %v784 = vadd.f32 %v783, %v661
      %v785 = vadd.f32 %v784, %v664
      %v786 = vadd.f32 %v785, %v669
      %v787 = vadd.f32 %v786, %v672
      %v788 = vadd.f32 %v787, %v677
      %v789 = vadd.f32 %v788, %v680
      %v790 = vadd.f32 %v789, %v685
      %v791 = vadd.f32 %v790, %v688
      %v792 = vadd.f32 %v791, %v693
      %v793 = vadd.f32 %v792, %v696
      %v794 = vadd.f32 %v793, %v701
      %v795 = vadd.f32 %v794, %v704
      %v796 = vadd.f32 %v795, %v709
      %v797 = vadd.f32 %v796, %v712
      %v798 = vadd.f32 %v797, %v717
      %v799 = vadd.f32 %v798, %v720
      %v800 = vadd.f32 %v799, %v725
      %v801 = vadd.f32 %v800, %v728
      %v802 = vadd.f32 %v801, %v733
      %v803 = vadd.f32 %v802, %v736
      %v804 = vrot.slane %v803, 4
      %v805 = vadd.f32 %v803, %v804
      %v806 = vrot.slane %v805, 2
      %v807 = vadd.f32 %v805, %v806
      %v808 = vrot.slane %v807, 1
      %v809 = vadd.f32 %v807, %v808
      %v810 = vmul.f32 %v485, %v485
      %v811 = vmul.f32 %v488, %v488
      %v812 = vmul.f32 %v493, %v493
      %v813 = vmul.f32 %v496, %v496
      %v814 = vmul.f32 %v501, %v501
      %v815 = vmul.f32 %v504, %v504
      %v816 = vmul.f32 %v509, %v509
      %v817 = vmul.f32 %v512, %v512
      %v818 = vmul.f32 %v517, %v517
      %v819 = vmul.f32 %v520, %v520
      %v820 = vmul.f32 %v525, %v525
      %v821 = vmul.f32 %v528, %v528
      %v822 = vmul.f32 %v533, %v533
      %v823 = vmul.f32 %v536, %v536
      %v824 = vmul.f32 %v541, %v541
      %v825 = vmul.f32 %v544, %v544
      %v826 = vmul.f32 %v549, %v549
      %v827 = vmul.f32 %v552, %v552
      %v828 = vmul.f32 %v557, %v557
      %v829 = vmul.f32 %v560, %v560
      %v830 = vmul.f32 %v565, %v565
      %v831 = vmul.f32 %v568, %v568
      %v832 = vmul.f32 %v573, %v573
      %v833 = vmul.f32 %v576, %v576
      %v834 = vmul.f32 %v581, %v581
      %v835 = vmul.f32 %v584, %v584
      %v836 = vmul.f32 %v589, %v589
      %v837 = vmul.f32 %v592, %v592
      %v838 = vmul.f32 %v597, %v597
      %v839 = vmul.f32 %v600, %v600
      %v840 = vmul.f32 %v605, %v605
      %v841 = vmul.f32 %v608, %v608
      %v842 = vmul.f32 %v613, %v613
      %v843 = vmul.f32 %v616, %v616
      %v844 = vmul.f32 %v621, %v621
      %v845 = vmul.f32 %v624, %v624
      %v846 = vmul.f32 %v629, %v629
      %v847 = vmul.f32 %v632, %v632
      %v848 = vmul.f32 %v637, %v637
      %v849 = vmul.f32 %v640, %v640
      %v850 = vmul.f32 %v645, %v645
      %v851 = vmul.f32 %v648, %v648
      %v852 = vmul.f32 %v653, %v653
      %v853 = vmul.f32 %v656, %v656
      %v854 = vmul.f32 %v661, %v661
      %v855 = vmul.f32 %v664, %v664
      %v856 = vmul.f32 %v669, %v669
      %v857 = vmul.f32 %v672, %v672
      %v858 = vmul.f32 %v677, %v677
      %v859 = vmul.f32 %v680, %v680
      %v860 = vmul.f32 %v685, %v685
      %v861 = vmul.f32 %v688, %v688
      %v862 = vmul.f32 %v693, %v693
      %v863 = vmul.f32 %v696, %v696
      %v864 = vmul.f32 %v701, %v701
      %v865 = vmul.f32 %v704, %v704
      %v866 = vmul.f32 %v709, %v709
      %v867 = vmul.f32 %v712, %v712
      %v868 = vmul.f32 %v717, %v717
      %v869 = vmul.f32 %v720, %v720
      %v870 = vmul.f32 %v725, %v725
      %v871 = vmul.f32 %v728, %v728
      %v872 = vmul.f32 %v733, %v733
      %v873 = vmul.f32 %v736, %v736
      %v874 = vadd.f32 %v810, %v811
      %v875 = vadd.f32 %v874, %v812
      %v876 = vadd.f32 %v875, %v813
      %v877 = vadd.f32 %v876, %v814
      %v878 = vadd.f32 %v877, %v815
      %v879 = vadd.f32 %v878, %v816
      %v880 = vadd.f32 %v879, %v817
      %v881 = vadd.f32 %v880, %v818
      %v882 = vadd.f32 %v881, %v819
      %v883 = vadd.f32 %v882, %v820
      %v884 = vadd.f32 %v883, %v821
      %v885 = vadd.f32 %v884, %v822
      %v886 = vadd.f32 %v885, %v823
      %v887 = vadd.f32 %v886, %v824
      %v888 = vadd.f32 %v887, %v825
      %v889 = vadd.f32 %v888, %v826
      %v890 = vadd.f32 %v889, %v827
      %v891 = vadd.f32 %v890, %v828
      %v892 = vadd.f32 %v891, %v829
      %v893 = vadd.f32 %v892, %v830
      %v894 = vadd.f32 %v893, %v831
      %v895 = vadd.f32 %v894, %v832
      %v896 = vadd.f32 %v895, %v833
      %v897 = vadd.f32 %v896, %v834
      %v898 = vadd.f32 %v897, %v835
      %v899 = vadd.f32 %v898, %v836
      %v900 = vadd.f32 %v899, %v837
      %v901 = vadd.f32 %v900, %v838
      %v902 = vadd.f32 %v901, %v839
      %v903 = vadd.f32 %v902, %v840
      %v904 = vadd.f32 %v903, %v841
      %v905 = vadd.f32 %v904, %v842
      %v906 = vadd.f32 %v905, %v843
      %v907 = vadd.f32 %v906, %v844
      %v908 = vadd.f32 %v907, %v845
      %v909 = vadd.f32 %v908, %v846
      %v910 = vadd.f32 %v909, %v847
      %v911 = vadd.f32 %v910, %v848
      %v912 = vadd.f32 %v911, %v849
      %v913 = vadd.f32 %v912, %v850
      %v914 = vadd.f32 %v913, %v851
      %v915 = vadd.f32 %v914, %v852
      %v916 = vadd.f32 %v915, %v853
      %v917 = vadd.f32 %v916, %v854
      %v918 = vadd.f32 %v917, %v855
      %v919 = vadd.f32 %v918, %v856
      %v920 = vadd.f32 %v919, %v857
      %v921 = vadd.f32 %v920, %v858
      %v922 = vadd.f32 %v921, %v859
      %v923 = vadd.f32 %v922, %v860
      %v924 = vadd.f32 %v923, %v861
      %v925 = vadd.f32 %v924, %v862
      %v926 = vadd.f32 %v925, %v863
      %v927 = vadd.f32 %v926, %v864
      %v928 = vadd.f32 %v927, %v865
      %v929 = vadd.f32 %v928, %v866
      %v930 = vadd.f32 %v929, %v867
      %v931 = vadd.f32 %v930, %v868
      %v932 = vadd.f32 %v931, %v869
      %v933 = vadd.f32 %v932, %v870
      %v934 = vadd.f32 %v933, %v871
      %v935 = vadd.f32 %v934, %v872
      %v936 = vadd.f32 %v935, %v873
      %v937 = vrot.slane %v936, 4
      %v938 = vadd.f32 %v936, %v937
      %v939 = vrot.slane %v938, 2
      %v940 = vadd.f32 %v938, %v939
      %v941 = vrot.slane %v940, 1
      %v942 = vadd.f32 %v940, %v941
      %vm943 = vcmp.eq.s32.totalorder %v740, 0
      %vm944 = vcmp.eq.s32.totalorder %v740, 1
      %v945 = vsel %vm944, %v942, 0.0
      %v946 = vsel %vm943, %v809, %v945
      %947 = vst [vmem:[%s278] sm:$0xff] %v946
      %v948 = vpack.c.bf16 %v488, %v485
      %v949 = vpack.c.bf16 %v496, %v493
      %v950 = vpack.c.bf16 %v504, %v501
      %v951 = vpack.c.bf16 %v512, %v509
      %v952 = vpack.c.bf16 %v520, %v517
      %v953 = vpack.c.bf16 %v528, %v525
      %v954 = vpack.c.bf16 %v536, %v533
      %v955 = vpack.c.bf16 %v544, %v541
      %v956 = vpack.c.bf16 %v552, %v549
      %v957 = vpack.c.bf16 %v560, %v557
      %v958 = vpack.c.bf16 %v568, %v565
      %v959 = vpack.c.bf16 %v576, %v573
      %v960 = vpack.c.bf16 %v584, %v581
      %v961 = vpack.c.bf16 %v592, %v589
      %v962 = vpack.c.bf16 %v600, %v597
      %v963 = vpack.c.bf16 %v608, %v605
      %v964 = vpack.c.bf16 %v616, %v613
      %v965 = vpack.c.bf16 %v624, %v621
      %v966 = vpack.c.bf16 %v632, %v629
      %v967 = vpack.c.bf16 %v640, %v637
      %v968 = vpack.c.bf16 %v648, %v645
      %v969 = vpack.c.bf16 %v656, %v653
      %v970 = vpack.c.bf16 %v664, %v661
      %v971 = vpack.c.bf16 %v672, %v669
      %v972 = vpack.c.bf16 %v680, %v677
      %v973 = vpack.c.bf16 %v688, %v685
      %v974 = vpack.c.bf16 %v696, %v693
      %v975 = vpack.c.bf16 %v704, %v701
      %v976 = vpack.c.bf16 %v712, %v709
      %v977 = vpack.c.bf16 %v720, %v717
      %v978 = vpack.c.bf16 %v728, %v725
      %v979 = vpack.c.bf16 %v736, %v733
      %v1012 = vunpack.c.l.b16 %v948
      %v1013 = vunpack.c.h.b16 %v948
      %v1014 = vunpack.c.l.b16 %v949
      %v1015 = vunpack.c.h.b16 %v949
      %v1016 = vunpack.c.l.b16 %v950
      %v1017 = vunpack.c.h.b16 %v950
      %v1018 = vunpack.c.l.b16 %v951
      %v1019 = vunpack.c.h.b16 %v951
      %v1020 = vunpack.c.l.b16 %v952
      %v1021 = vunpack.c.h.b16 %v952
      %v1022 = vunpack.c.l.b16 %v953
      %v1023 = vunpack.c.h.b16 %v953
      %v1024 = vunpack.c.l.b16 %v954
      %v1025 = vunpack.c.h.b16 %v954
      %v1026 = vunpack.c.l.b16 %v955
      %v1027 = vunpack.c.h.b16 %v955
      %v1028 = vunpack.c.l.b16 %v956
      %v1029 = vunpack.c.h.b16 %v956
      %v1030 = vunpack.c.l.b16 %v957
      %v1031 = vunpack.c.h.b16 %v957
      %v1032 = vunpack.c.l.b16 %v958
      %v1033 = vunpack.c.h.b16 %v958
      %v1034 = vunpack.c.l.b16 %v959
      %v1035 = vunpack.c.h.b16 %v959
      %v1036 = vunpack.c.l.b16 %v960
      %v1037 = vunpack.c.h.b16 %v960
      %v1038 = vunpack.c.l.b16 %v961
      %v1039 = vunpack.c.h.b16 %v961
      %v1040 = vunpack.c.l.b16 %v962
      %v1041 = vunpack.c.h.b16 %v962
      %v1042 = vunpack.c.l.b16 %v963
      %v1043 = vunpack.c.h.b16 %v963
      %v1044 = vunpack.c.l.b16 %v964
      %v1045 = vunpack.c.h.b16 %v964
      %v1046 = vunpack.c.l.b16 %v965
      %v1047 = vunpack.c.h.b16 %v965
      %v1048 = vunpack.c.l.b16 %v966
      %v1049 = vunpack.c.h.b16 %v966
      %v1050 = vunpack.c.l.b16 %v967
      %v1051 = vunpack.c.h.b16 %v967
      %v1052 = vunpack.c.l.b16 %v968
      %v1053 = vunpack.c.h.b16 %v968
      %v1054 = vunpack.c.l.b16 %v969
      %v1055 = vunpack.c.h.b16 %v969
      %v1056 = vunpack.c.l.b16 %v970
      %v1057 = vunpack.c.h.b16 %v970
      %v1058 = vunpack.c.l.b16 %v971
      %v1059 = vunpack.c.h.b16 %v971
      %v1060 = vunpack.c.l.b16 %v972
      %v1061 = vunpack.c.h.b16 %v972
      %v1062 = vunpack.c.l.b16 %v973
      %v1063 = vunpack.c.h.b16 %v973
      %v1064 = vunpack.c.l.b16 %v974
      %v1065 = vunpack.c.h.b16 %v974
      %v1066 = vunpack.c.l.b16 %v975
      %v1067 = vunpack.c.h.b16 %v975
      %v1068 = vunpack.c.l.b16 %v976
      %v1069 = vunpack.c.h.b16 %v976
      %v1070 = vunpack.c.l.b16 %v977
      %v1071 = vunpack.c.h.b16 %v977
      %v1072 = vunpack.c.l.b16 %v978
      %v1073 = vunpack.c.h.b16 %v978
      %v1074 = vunpack.c.l.b16 %v979
      %v1075 = vunpack.c.h.b16 %v979
      %v1076 = vpack.c.b16 %v1012, %v1012
      %v1077 = vpack.c.b16 %v1013, %v1013
      %v1078 = vpack.c.b16 %v1014, %v1014
      %v1079 = vpack.c.b16 %v1015, %v1015
      %v1080 = vpack.c.b16 %v1016, %v1016
      %v1081 = vpack.c.b16 %v1017, %v1017
      %v1082 = vpack.c.b16 %v1018, %v1018
      %v1083 = vpack.c.b16 %v1019, %v1019
      %v1084 = vpack.c.b16 %v1020, %v1020
      %v1085 = vpack.c.b16 %v1021, %v1021
      %v1086 = vpack.c.b16 %v1022, %v1022
      %v1087 = vpack.c.b16 %v1023, %v1023
      %v1088 = vpack.c.b16 %v1024, %v1024
      %v1089 = vpack.c.b16 %v1025, %v1025
      %v1090 = vpack.c.b16 %v1026, %v1026
      %v1091 = vpack.c.b16 %v1027, %v1027
      %v1092 = vpack.c.b16 %v1028, %v1028
      %v1093 = vpack.c.b16 %v1029, %v1029
      %v1094 = vpack.c.b16 %v1030, %v1030
      %v1095 = vpack.c.b16 %v1031, %v1031
      %v1096 = vpack.c.b16 %v1032, %v1032
      %v1097 = vpack.c.b16 %v1033, %v1033
      %v1098 = vpack.c.b16 %v1034, %v1034
      %v1099 = vpack.c.b16 %v1035, %v1035
      %v1100 = vpack.c.b16 %v1036, %v1036
      %v1101 = vpack.c.b16 %v1037, %v1037
      %v1102 = vpack.c.b16 %v1038, %v1038
      %v1103 = vpack.c.b16 %v1039, %v1039
      %v1104 = vpack.c.b16 %v1040, %v1040
      %v1105 = vpack.c.b16 %v1041, %v1041
      %v1106 = vpack.c.b16 %v1042, %v1042
      %v1107 = vpack.c.b16 %v1043, %v1043
      %v1108 = vpack.c.b16 %v1044, %v1044
      %v1109 = vpack.c.b16 %v1045, %v1045
      %v1110 = vpack.c.b16 %v1046, %v1046
      %v1111 = vpack.c.b16 %v1047, %v1047
      %v1112 = vpack.c.b16 %v1048, %v1048
      %v1113 = vpack.c.b16 %v1049, %v1049
      %v1114 = vpack.c.b16 %v1050, %v1050
      %v1115 = vpack.c.b16 %v1051, %v1051
      %v1116 = vpack.c.b16 %v1052, %v1052
      %v1117 = vpack.c.b16 %v1053, %v1053
      %v1118 = vpack.c.b16 %v1054, %v1054
      %v1119 = vpack.c.b16 %v1055, %v1055
      %v1120 = vpack.c.b16 %v1056, %v1056
      %v1121 = vpack.c.b16 %v1057, %v1057
      %v1122 = vpack.c.b16 %v1058, %v1058
      %v1123 = vpack.c.b16 %v1059, %v1059
      %v1124 = vpack.c.b16 %v1060, %v1060
      %v1125 = vpack.c.b16 %v1061, %v1061
      %v1126 = vpack.c.b16 %v1062, %v1062
      %v1127 = vpack.c.b16 %v1063, %v1063
      %v1128 = vpack.c.b16 %v1064, %v1064
      %v1129 = vpack.c.b16 %v1065, %v1065
      %v1130 = vpack.c.b16 %v1066, %v1066
      %v1131 = vpack.c.b16 %v1067, %v1067
      %v1132 = vpack.c.b16 %v1068, %v1068
      %v1133 = vpack.c.b16 %v1069, %v1069
      %v1134 = vpack.c.b16 %v1070, %v1070
      %v1135 = vpack.c.b16 %v1071, %v1071
      %v1136 = vpack.c.b16 %v1072, %v1072
      %v1137 = vpack.c.b16 %v1073, %v1073
      %v1138 = vpack.c.b16 %v1074, %v1074
      %v1139 = vpack.c.b16 %v1075, %v1075
      %1204 = vst [vmem:[%s273] sm:$0xf] %v1076
      %1205 = vst [vmem:[%s273 + $0x4] sm:$0xf] %v1077
      %1206 = vst [vmem:[%s273 + $0x8] sm:$0xf] %v1078
      %1207 = vst [vmem:[%s273 + $0xc] sm:$0xf] %v1079
      %1208 = vst [vmem:[%s273 + $0x10] sm:$0xf] %v1080
      %1209 = vst [vmem:[%s273 + $0x14] sm:$0xf] %v1081
      %1210 = vst [vmem:[%s273 + $0x18] sm:$0xf] %v1082
      %1211 = vst [vmem:[%s273 + $0x1c] sm:$0xf] %v1083
      %1212 = vst [vmem:[%s273 + $0x20] sm:$0xf] %v1084
      %1213 = vst [vmem:[%s273 + $0x24] sm:$0xf] %v1085
      %1214 = vst [vmem:[%s273 + $0x28] sm:$0xf] %v1086
      %1215 = vst [vmem:[%s273 + $0x2c] sm:$0xf] %v1087
      %1216 = vst [vmem:[%s273 + $0x30] sm:$0xf] %v1088
      %1217 = vst [vmem:[%s273 + $0x34] sm:$0xf] %v1089
      %1218 = vst [vmem:[%s273 + $0x38] sm:$0xf] %v1090
      %1219 = vst [vmem:[%s273 + $0x3c] sm:$0xf] %v1091
      %1220 = vst [vmem:[%s273 + $0x40] sm:$0xf] %v1092
      %1221 = vst [vmem:[%s273 + $0x44] sm:$0xf] %v1093
      %1222 = vst [vmem:[%s273 + $0x48] sm:$0xf] %v1094
      %1223 = vst [vmem:[%s273 + $0x4c] sm:$0xf] %v1095
      %1224 = vst [vmem:[%s273 + $0x50] sm:$0xf] %v1096
      %1225 = vst [vmem:[%s273 + $0x54] sm:$0xf] %v1097
      %1226 = vst [vmem:[%s273 + $0x58] sm:$0xf] %v1098
      %1227 = vst [vmem:[%s273 + $0x5c] sm:$0xf] %v1099
      %1228 = vst [vmem:[%s273 + $0x60] sm:$0xf] %v1100
      %1229 = vst [vmem:[%s273 + $0x64] sm:$0xf] %v1101
      %1230 = vst [vmem:[%s273 + $0x68] sm:$0xf] %v1102
      %1231 = vst [vmem:[%s273 + $0x6c] sm:$0xf] %v1103
      %1232 = vst [vmem:[%s273 + $0x70] sm:$0xf] %v1104
      %1233 = vst [vmem:[%s273 + $0x74] sm:$0xf] %v1105
      %1234 = vst [vmem:[%s273 + $0x78] sm:$0xf] %v1106
      %1235 = vst [vmem:[%s273 + $0x7c] sm:$0xf] %v1107
      %1236 = vst [vmem:[%s273 + $0x80] sm:$0xf] %v1108
      %1237 = vst [vmem:[%s273 + $0x84] sm:$0xf] %v1109
      %1238 = vst [vmem:[%s273 + $0x88] sm:$0xf] %v1110
      %1239 = vst [vmem:[%s273 + $0x8c] sm:$0xf] %v1111
      %1240 = vst [vmem:[%s273 + $0x90] sm:$0xf] %v1112
      %1241 = vst [vmem:[%s273 + $0x94] sm:$0xf] %v1113
      %1242 = vst [vmem:[%s273 + $0x98] sm:$0xf] %v1114
      %1243 = vst [vmem:[%s273 + $0x9c] sm:$0xf] %v1115
      %1244 = vst [vmem:[%s273 + $0xa0] sm:$0xf] %v1116
      %1245 = vst [vmem:[%s273 + $0xa4] sm:$0xf] %v1117
      %1246 = vst [vmem:[%s273 + $0xa8] sm:$0xf] %v1118
      %1247 = vst [vmem:[%s273 + $0xac] sm:$0xf] %v1119
      %1248 = vst [vmem:[%s273 + $0xb0] sm:$0xf] %v1120
      %1249 = vst [vmem:[%s273 + $0xb4] sm:$0xf] %v1121
      %1250 = vst [vmem:[%s273 + $0xb8] sm:$0xf] %v1122
      %1251 = vst [vmem:[%s273 + $0xbc] sm:$0xf] %v1123
      %1252 = vst [vmem:[%s273 + $0xc0] sm:$0xf] %v1124
      %1253 = vst [vmem:[%s273 + $0xc4] sm:$0xf] %v1125
      %1254 = vst [vmem:[%s273 + $0xc8] sm:$0xf] %v1126
      %1255 = vst [vmem:[%s273 + $0xcc] sm:$0xf] %v1127
      %1256 = vst [vmem:[%s273 + $0xd0] sm:$0xf] %v1128
      %1257 = vst [vmem:[%s273 + $0xd4] sm:$0xf] %v1129
      %1258 = vst [vmem:[%s273 + $0xd8] sm:$0xf] %v1130
      %1259 = vst [vmem:[%s273 + $0xdc] sm:$0xf] %v1131
      %1260 = vst [vmem:[%s273 + $0xe0] sm:$0xf] %v1132
      %1261 = vst [vmem:[%s273 + $0xe4] sm:$0xf] %v1133
      %1262 = vst [vmem:[%s273 + $0xe8] sm:$0xf] %v1134
      %1263 = vst [vmem:[%s273 + $0xec] sm:$0xf] %v1135
      %1264 = vst [vmem:[%s273 + $0xf0] sm:$0xf] %v1136
      %1265 = vst [vmem:[%s273 + $0xf4] sm:$0xf] %v1137
      %1266 = vst [vmem:[%s273 + $0xf8] sm:$0xf] %v1138
      %1267 = vst [vmem:[%s273 + $0xfc] sm:$0xf] %v1139
      %v1268 = vld [vmem:[%s2] sm:$0xf]
      %v1269 = vld [vmem:[%s2 + $0x4] sm:$0xf]
      %v1270 = vld [vmem:[%s2 + $0x8] sm:$0xf]
      %v1271 = vld [vmem:[%s2 + $0xc] sm:$0xf]
      %v1272 = vld [vmem:[%s2 + $0x10] sm:$0xf]
      %v1273 = vld [vmem:[%s2 + $0x14] sm:$0xf]
      %v1274 = vld [vmem:[%s2 + $0x18] sm:$0xf]
      %v1275 = vld [vmem:[%s2 + $0x1c] sm:$0xf]
      %v1276 = vld [vmem:[%s2 + $0x20] sm:$0xf]
      %v1277 = vld [vmem:[%s2 + $0x24] sm:$0xf]
      %v1278 = vld [vmem:[%s2 + $0x28] sm:$0xf]
      %v1279 = vld [vmem:[%s2 + $0x2c] sm:$0xf]
      %v1280 = vld [vmem:[%s2 + $0x30] sm:$0xf]
      %v1281 = vld [vmem:[%s2 + $0x34] sm:$0xf]
      %v1282 = vld [vmem:[%s2 + $0x38] sm:$0xf]
      %v1283 = vld [vmem:[%s2 + $0x3c] sm:$0xf]
      %v1300 = vunpack.c.l.b16 %v1268
      %v1301 = vunpack.c.l.b16 %v1269
      %v1302 = vunpack.c.l.b16 %v1270
      %v1303 = vunpack.c.l.b16 %v1271
      %v1304 = vunpack.c.l.b16 %v1272
      %v1305 = vunpack.c.l.b16 %v1273
      %v1306 = vunpack.c.l.b16 %v1274
      %v1307 = vunpack.c.l.b16 %v1275
      %v1308 = vunpack.c.l.b16 %v1276
      %v1309 = vunpack.c.l.b16 %v1277
      %v1310 = vunpack.c.l.b16 %v1278
      %v1311 = vunpack.c.l.b16 %v1279
      %v1312 = vunpack.c.l.b16 %v1280
      %v1313 = vunpack.c.l.b16 %v1281
      %v1314 = vunpack.c.l.b16 %v1282
      %v1315 = vunpack.c.l.b16 %v1283
      %v1316 = vpack.c.b16 %v1301, %v1300
      %v1317 = vpack.c.b16 %v1303, %v1302
      %v1318 = vpack.c.b16 %v1305, %v1304
      %v1319 = vpack.c.b16 %v1307, %v1306
      %v1320 = vpack.c.b16 %v1309, %v1308
      %v1321 = vpack.c.b16 %v1311, %v1310
      %v1322 = vpack.c.b16 %v1313, %v1312
      %v1323 = vpack.c.b16 %v1315, %v1314
      %1332 = vmatprep.subr.bf16.mxu0 0
      %1333 = vmatpush1.bf16.msra.mxu0 %v1323
      %1334 = vmatprep.subr.bf16.mxu0 0
      %1335 = vmatpush1.bf16.msra.mxu0 %v1322
      %1336 = vmatprep.subr.bf16.mxu0 0
      %1337 = vmatpush1.bf16.msra.mxu0 %v1321
      %1338 = vmatprep.subr.bf16.mxu0 0
      %1339 = vmatpush1.bf16.msra.mxu0 %v1320
      %1340 = vmatprep.subr.bf16.mxu0 0
      %1341 = vmatpush1.bf16.msra.mxu0 %v1319
      %1342 = vmatprep.subr.bf16.mxu0 0
      %1343 = vmatpush1.bf16.msra.mxu0 %v1318
      %1344 = vmatprep.subr.bf16.mxu0 0
      %1345 = vmatpush1.bf16.msra.mxu0 %v1317
      %1346 = vmatprep.subr.bf16.mxu0 0
      %1347 = vmatpush1.bf16.msra.mxu0 %v1316
      %1348 = vmatprep.subr.bf16.mxu0 0
      %1349 = vmatpush2.bf16.msra.mxu0 0
      %1350 = vmatprep.subr.bf16.mxu0 0
      %1351 = vmatpush2.bf16.msra.mxu0 0
      %1352 = vmatprep.subr.bf16.mxu0 0
      %1353 = vmatpush2.bf16.msra.mxu0 0
      %1354 = vmatprep.subr.bf16.mxu0 0
      %1355 = vmatpush2.bf16.msra.mxu0 0
      %1356 = vmatprep.subr.bf16.mxu0 0
      %1357 = vmatpush2.bf16.msra.mxu0 0
      %1358 = vmatprep.subr.bf16.mxu0 0
      %1359 = vmatpush2.bf16.msra.mxu0 0
      %1360 = vmatprep.subr.bf16.mxu0 0
      %1361 = vmatpush2.bf16.msra.mxu0 0
      %1362 = vmatprep.subr.bf16.mxu0 0
      %1363 = vmatpush2.bf16.msra.mxu0 0
      %1364 = vmatprep.mubr.bf16.mxu0 0
      %1365 = vmatmul.mubr.bf16.gmra.mxu0 %v354
      %v1366 = vpop.f32.mrf.mxu0
      %v1367 = vadd.f32 0.0, %v1366
      %v1368 = vpop.f32.mrf.mxu0
      %v1369 = vpop.f32.mrf.mxu0
      %v1370 = vadd.f32 0.0, %v1369
      %v1371 = vpop.f32.mrf.mxu0
      %1372 = vmatprep.mubr.bf16.mxu0 0
      %1373 = vmatmul.mubr.bf16.gmra.mxu0 %v355
      %v1374 = vpop.f32.mrf.mxu0
      %v1375 = vadd.f32 0.0, %v1374
      %v1376 = vpop.f32.mrf.mxu0
      %v1377 = vpop.f32.mrf.mxu0
      %v1378 = vadd.f32 0.0, %v1377
      %v1379 = vpop.f32.mrf.mxu0
      %1380 = vmatprep.mubr.bf16.mxu0 0
      %1381 = vmatmul.mubr.bf16.gmra.mxu0 %v356
      %v1382 = vpop.f32.mrf.mxu0
      %v1383 = vadd.f32 0.0, %v1382
      %v1384 = vpop.f32.mrf.mxu0
      %v1385 = vpop.f32.mrf.mxu0
      %v1386 = vadd.f32 0.0, %v1385
      %v1387 = vpop.f32.mrf.mxu0
      %1388 = vmatprep.mubr.bf16.mxu0 0
      %1389 = vmatmul.mubr.bf16.gmra.mxu0 %v357
      %v1390 = vpop.f32.mrf.mxu0
      %v1391 = vadd.f32 0.0, %v1390
      %v1392 = vpop.f32.mrf.mxu0
      %v1393 = vpop.f32.mrf.mxu0
      %v1394 = vadd.f32 0.0, %v1393
      %v1395 = vpop.f32.mrf.mxu0
      %1396 = vmatprep.mubr.bf16.mxu0 0
      %1397 = vmatmul.mubr.bf16.gmra.mxu0 %v358
      %v1398 = vpop.f32.mrf.mxu0
      %v1399 = vadd.f32 0.0, %v1398
      %v1400 = vpop.f32.mrf.mxu0
      %v1401 = vpop.f32.mrf.mxu0
      %v1402 = vadd.f32 0.0, %v1401
      %v1403 = vpop.f32.mrf.mxu0
      %1404 = vmatprep.mubr.bf16.mxu0 0
      %1405 = vmatmul.mubr.bf16.gmra.mxu0 %v359
      %v1406 = vpop.f32.mrf.mxu0
      %v1407 = vadd.f32 0.0, %v1406
      %v1408 = vpop.f32.mrf.mxu0
      %v1409 = vpop.f32.mrf.mxu0
      %v1410 = vadd.f32 0.0, %v1409
      %v1411 = vpop.f32.mrf.mxu0
      %1412 = vmatprep.mubr.bf16.mxu0 0
      %1413 = vmatmul.mubr.bf16.gmra.mxu0 %v360
      %v1414 = vpop.f32.mrf.mxu0
      %v1415 = vadd.f32 0.0, %v1414
      %v1416 = vpop.f32.mrf.mxu0
      %v1417 = vpop.f32.mrf.mxu0
      %v1418 = vadd.f32 0.0, %v1417
      %v1419 = vpop.f32.mrf.mxu0
      %1420 = vmatprep.mubr.bf16.mxu0 0
      %1421 = vmatmul.mubr.bf16.gmra.mxu0 %v361
      %v1422 = vpop.f32.mrf.mxu0
      %v1423 = vadd.f32 0.0, %v1422
      %v1424 = vpop.f32.mrf.mxu0
      %v1425 = vpop.f32.mrf.mxu0
      %v1426 = vadd.f32 0.0, %v1425
      %v1427 = vpop.f32.mrf.mxu0
      %1428 = vmatprep.mubr.bf16.mxu0 0
      %1429 = vmatmul.mubr.bf16.gmra.mxu0 %v362
      %v1430 = vpop.f32.mrf.mxu0
      %v1431 = vadd.f32 0.0, %v1430
      %v1432 = vpop.f32.mrf.mxu0
      %v1433 = vpop.f32.mrf.mxu0
      %v1434 = vadd.f32 0.0, %v1433
      %v1435 = vpop.f32.mrf.mxu0
      %1436 = vmatprep.mubr.bf16.mxu0 0
      %1437 = vmatmul.mubr.bf16.gmra.mxu0 %v363
      %v1438 = vpop.f32.mrf.mxu0
      %v1439 = vadd.f32 0.0, %v1438
      %v1440 = vpop.f32.mrf.mxu0
      %v1441 = vpop.f32.mrf.mxu0
      %v1442 = vadd.f32 0.0, %v1441
      %v1443 = vpop.f32.mrf.mxu0
      %1444 = vmatprep.mubr.bf16.mxu0 0
      %1445 = vmatmul.mubr.bf16.gmra.mxu0 %v364
      %v1446 = vpop.f32.mrf.mxu0
      %v1447 = vadd.f32 0.0, %v1446
      %v1448 = vpop.f32.mrf.mxu0
      %v1449 = vpop.f32.mrf.mxu0
      %v1450 = vadd.f32 0.0, %v1449
      %v1451 = vpop.f32.mrf.mxu0
      %1452 = vmatprep.mubr.bf16.mxu0 0
      %1453 = vmatmul.mubr.bf16.gmra.mxu0 %v365
      %v1454 = vpop.f32.mrf.mxu0
      %v1455 = vadd.f32 0.0, %v1454
      %v1456 = vpop.f32.mrf.mxu0
      %v1457 = vpop.f32.mrf.mxu0
      %v1458 = vadd.f32 0.0, %v1457
      %v1459 = vpop.f32.mrf.mxu0
      %1460 = vmatprep.mubr.bf16.mxu0 0
      %1461 = vmatmul.mubr.bf16.gmra.mxu0 %v366
      %v1462 = vpop.f32.mrf.mxu0
      %v1463 = vadd.f32 0.0, %v1462
      %v1464 = vpop.f32.mrf.mxu0
      %v1465 = vpop.f32.mrf.mxu0
      %v1466 = vadd.f32 0.0, %v1465
      %v1467 = vpop.f32.mrf.mxu0
      %1468 = vmatprep.mubr.bf16.mxu0 0
      %1469 = vmatmul.mubr.bf16.gmra.mxu0 %v367
      %v1470 = vpop.f32.mrf.mxu0
      %v1471 = vadd.f32 0.0, %v1470
      %v1472 = vpop.f32.mrf.mxu0
      %v1473 = vpop.f32.mrf.mxu0
      %v1474 = vadd.f32 0.0, %v1473
      %v1475 = vpop.f32.mrf.mxu0
      %1476 = vmatprep.mubr.bf16.mxu0 0
      %1477 = vmatmul.mubr.bf16.gmra.mxu0 %v368
      %v1478 = vpop.f32.mrf.mxu0
      %v1479 = vadd.f32 0.0, %v1478
      %v1480 = vpop.f32.mrf.mxu0
      %v1481 = vpop.f32.mrf.mxu0
      %v1482 = vadd.f32 0.0, %v1481
      %v1483 = vpop.f32.mrf.mxu0
      %1484 = vmatprep.mubr.bf16.mxu0 0
      %1485 = vmatmul.mubr.bf16.gmra.mxu0 %v369
      %v1486 = vpop.f32.mrf.mxu0
      %v1487 = vadd.f32 0.0, %v1486
      %v1488 = vpop.f32.mrf.mxu0
      %v1489 = vpop.f32.mrf.mxu0
      %v1490 = vadd.f32 0.0, %v1489
      %v1491 = vpop.f32.mrf.mxu0
      %1492 = vmatprep.mubr.bf16.mxu0 0
      %1493 = vmatmul.mubr.bf16.gmra.mxu0 %v370
      %v1494 = vpop.f32.mrf.mxu0
      %v1495 = vadd.f32 0.0, %v1494
      %v1496 = vpop.f32.mrf.mxu0
      %v1497 = vpop.f32.mrf.mxu0
      %v1498 = vadd.f32 0.0, %v1497
      %v1499 = vpop.f32.mrf.mxu0
      %1500 = vmatprep.mubr.bf16.mxu0 0
      %1501 = vmatmul.mubr.bf16.gmra.mxu0 %v371
      %v1502 = vpop.f32.mrf.mxu0
      %v1503 = vadd.f32 0.0, %v1502
      %v1504 = vpop.f32.mrf.mxu0
      %v1505 = vpop.f32.mrf.mxu0
      %v1506 = vadd.f32 0.0, %v1505
      %v1507 = vpop.f32.mrf.mxu0
      %1508 = vmatprep.mubr.bf16.mxu0 0
      %1509 = vmatmul.mubr.bf16.gmra.mxu0 %v372
      %v1510 = vpop.f32.mrf.mxu0
      %v1511 = vadd.f32 0.0, %v1510
      %v1512 = vpop.f32.mrf.mxu0
      %v1513 = vpop.f32.mrf.mxu0
      %v1514 = vadd.f32 0.0, %v1513
      %v1515 = vpop.f32.mrf.mxu0
      %1516 = vmatprep.mubr.bf16.mxu0 0
      %1517 = vmatmul.mubr.bf16.gmra.mxu0 %v373
      %v1518 = vpop.f32.mrf.mxu0
      %v1519 = vadd.f32 0.0, %v1518
      %v1520 = vpop.f32.mrf.mxu0
      %v1521 = vpop.f32.mrf.mxu0
      %v1522 = vadd.f32 0.0, %v1521
      %v1523 = vpop.f32.mrf.mxu0
      %1524 = vmatprep.mubr.bf16.mxu0 0
      %1525 = vmatmul.mubr.bf16.gmra.mxu0 %v374
      %v1526 = vpop.f32.mrf.mxu0
      %v1527 = vadd.f32 0.0, %v1526
      %v1528 = vpop.f32.mrf.mxu0
      %v1529 = vpop.f32.mrf.mxu0
      %v1530 = vadd.f32 0.0, %v1529
      %v1531 = vpop.f32.mrf.mxu0
      %1532 = vmatprep.mubr.bf16.mxu0 0
      %1533 = vmatmul.mubr.bf16.gmra.mxu0 %v375
      %v1534 = vpop.f32.mrf.mxu0
      %v1535 = vadd.f32 0.0, %v1534
      %v1536 = vpop.f32.mrf.mxu0
      %v1537 = vpop.f32.mrf.mxu0
      %v1538 = vadd.f32 0.0, %v1537
      %v1539 = vpop.f32.mrf.mxu0
      %1540 = vmatprep.mubr.bf16.mxu0 0
      %1541 = vmatmul.mubr.bf16.gmra.mxu0 %v376
      %v1542 = vpop.f32.mrf.mxu0
      %v1543 = vadd.f32 0.0, %v1542
      %v1544 = vpop.f32.mrf.mxu0
      %v1545 = vpop.f32.mrf.mxu0
      %v1546 = vadd.f32 0.0, %v1545
      %v1547 = vpop.f32.mrf.mxu0
      %1548 = vmatprep.mubr.bf16.mxu0 0
      %1549 = vmatmul.mubr.bf16.gmra.mxu0 %v377
      %v1550 = vpop.f32.mrf.mxu0
      %v1551 = vadd.f32 0.0, %v1550
      %v1552 = vpop.f32.mrf.mxu0
      %v1553 = vpop.f32.mrf.mxu0
      %v1554 = vadd.f32 0.0, %v1553
      %v1555 = vpop.f32.mrf.mxu0
      %1556 = vmatprep.mubr.bf16.mxu0 0
      %1557 = vmatmul.mubr.bf16.gmra.mxu0 %v378
      %v1558 = vpop.f32.mrf.mxu0
      %v1559 = vadd.f32 0.0, %v1558
      %v1560 = vpop.f32.mrf.mxu0
      %v1561 = vpop.f32.mrf.mxu0
      %v1562 = vadd.f32 0.0, %v1561
      %v1563 = vpop.f32.mrf.mxu0
      %1564 = vmatprep.mubr.bf16.mxu0 0
      %1565 = vmatmul.mubr.bf16.gmra.mxu0 %v379
      %v1566 = vpop.f32.mrf.mxu0
      %v1567 = vadd.f32 0.0, %v1566
      %v1568 = vpop.f32.mrf.mxu0
      %v1569 = vpop.f32.mrf.mxu0
      %v1570 = vadd.f32 0.0, %v1569
      %v1571 = vpop.f32.mrf.mxu0
      %1572 = vmatprep.mubr.bf16.mxu0 0
      %1573 = vmatmul.mubr.bf16.gmra.mxu0 %v380
      %v1574 = vpop.f32.mrf.mxu0
      %v1575 = vadd.f32 0.0, %v1574
      %v1576 = vpop.f32.mrf.mxu0
      %v1577 = vpop.f32.mrf.mxu0
      %v1578 = vadd.f32 0.0, %v1577
      %v1579 = vpop.f32.mrf.mxu0
      %1580 = vmatprep.mubr.bf16.mxu0 0
      %1581 = vmatmul.mubr.bf16.gmra.mxu0 %v381
      %v1582 = vpop.f32.mrf.mxu0
      %v1583 = vadd.f32 0.0, %v1582
      %v1584 = vpop.f32.mrf.mxu0
      %v1585 = vpop.f32.mrf.mxu0
      %v1586 = vadd.f32 0.0, %v1585
      %v1587 = vpop.f32.mrf.mxu0
      %1588 = vmatprep.mubr.bf16.mxu0 0
      %1589 = vmatmul.mubr.bf16.gmra.mxu0 %v382
      %v1590 = vpop.f32.mrf.mxu0
      %v1591 = vadd.f32 0.0, %v1590
      %v1592 = vpop.f32.mrf.mxu0
      %v1593 = vpop.f32.mrf.mxu0
      %v1594 = vadd.f32 0.0, %v1593
      %v1595 = vpop.f32.mrf.mxu0
      %1596 = vmatprep.mubr.bf16.mxu0 0
      %1597 = vmatmul.mubr.bf16.gmra.mxu0 %v383
      %v1598 = vpop.f32.mrf.mxu0
      %v1599 = vadd.f32 0.0, %v1598
      %v1600 = vpop.f32.mrf.mxu0
      %v1601 = vpop.f32.mrf.mxu0
      %v1602 = vadd.f32 0.0, %v1601
      %v1603 = vpop.f32.mrf.mxu0
      %1604 = vmatprep.mubr.bf16.mxu0 0
      %1605 = vmatmul.mubr.bf16.gmra.mxu0 %v384
      %v1606 = vpop.f32.mrf.mxu0
      %v1607 = vadd.f32 0.0, %v1606
      %v1608 = vpop.f32.mrf.mxu0
      %v1609 = vpop.f32.mrf.mxu0
      %v1610 = vadd.f32 0.0, %v1609
      %v1611 = vpop.f32.mrf.mxu0
      %1612 = vmatprep.mubr.bf16.mxu0 0
      %1613 = vmatmul.mubr.bf16.gmra.mxu0 %v385
      %v1614 = vpop.f32.mrf.mxu0
      %v1615 = vadd.f32 0.0, %v1614
      %v1616 = vpop.f32.mrf.mxu0
      %v1617 = vpop.f32.mrf.mxu0
      %v1618 = vadd.f32 0.0, %v1617
      %v1619 = vpop.f32.mrf.mxu0
      %1620 = vdwg.mxu0
      %v1621 = vadd.f32 %v1367, %v1370
      %v1622 = vadd.f32 %v1621, %v1375
      %v1623 = vadd.f32 %v1622, %v1378
      %v1624 = vadd.f32 %v1623, %v1383
      %v1625 = vadd.f32 %v1624, %v1386
      %v1626 = vadd.f32 %v1625, %v1391
      %v1627 = vadd.f32 %v1626, %v1394
      %v1628 = vadd.f32 %v1627, %v1399
      %v1629 = vadd.f32 %v1628, %v1402
      %v1630 = vadd.f32 %v1629, %v1407
      %v1631 = vadd.f32 %v1630, %v1410
      %v1632 = vadd.f32 %v1631, %v1415
      %v1633 = vadd.f32 %v1632, %v1418
      %v1634 = vadd.f32 %v1633, %v1423
      %v1635 = vadd.f32 %v1634, %v1426
      %v1636 = vadd.f32 %v1635, %v1431
      %v1637 = vadd.f32 %v1636, %v1434
      %v1638 = vadd.f32 %v1637, %v1439
      %v1639 = vadd.f32 %v1638, %v1442
      %v1640 = vadd.f32 %v1639, %v1447
      %v1641 = vadd.f32 %v1640, %v1450
      %v1642 = vadd.f32 %v1641, %v1455
      %v1643 = vadd.f32 %v1642, %v1458
      %v1644 = vadd.f32 %v1643, %v1463
      %v1645 = vadd.f32 %v1644, %v1466
      %v1646 = vadd.f32 %v1645, %v1471
      %v1647 = vadd.f32 %v1646, %v1474
      %v1648 = vadd.f32 %v1647, %v1479
      %v1649 = vadd.f32 %v1648, %v1482
      %v1650 = vadd.f32 %v1649, %v1487
      %v1651 = vadd.f32 %v1650, %v1490
      %v1652 = vadd.f32 %v1651, %v1495
      %v1653 = vadd.f32 %v1652, %v1498
      %v1654 = vadd.f32 %v1653, %v1503
      %v1655 = vadd.f32 %v1654, %v1506
      %v1656 = vadd.f32 %v1655, %v1511
      %v1657 = vadd.f32 %v1656, %v1514
      %v1658 = vadd.f32 %v1657, %v1519
      %v1659 = vadd.f32 %v1658, %v1522
      %v1660 = vadd.f32 %v1659, %v1527
      %v1661 = vadd.f32 %v1660, %v1530
      %v1662 = vadd.f32 %v1661, %v1535
      %v1663 = vadd.f32 %v1662, %v1538
      %v1664 = vadd.f32 %v1663, %v1543
      %v1665 = vadd.f32 %v1664, %v1546
      %v1666 = vadd.f32 %v1665, %v1551
      %v1667 = vadd.f32 %v1666, %v1554
      %v1668 = vadd.f32 %v1667, %v1559
      %v1669 = vadd.f32 %v1668, %v1562
      %v1670 = vadd.f32 %v1669, %v1567
      %v1671 = vadd.f32 %v1670, %v1570
      %v1672 = vadd.f32 %v1671, %v1575
      %v1673 = vadd.f32 %v1672, %v1578
      %v1674 = vadd.f32 %v1673, %v1583
      %v1675 = vadd.f32 %v1674, %v1586
      %v1676 = vadd.f32 %v1675, %v1591
      %v1677 = vadd.f32 %v1676, %v1594
      %v1678 = vadd.f32 %v1677, %v1599
      %v1679 = vadd.f32 %v1678, %v1602
      %v1680 = vadd.f32 %v1679, %v1607
      %v1681 = vadd.f32 %v1680, %v1610
      %v1682 = vadd.f32 %v1681, %v1615
      %v1683 = vadd.f32 %v1682, %v1618
      %v1684 = vrot.slane %v1683, 4
      %v1685 = vadd.f32 %v1683, %v1684
      %v1686 = vrot.slane %v1685, 2
      %v1687 = vadd.f32 %v1685, %v1686
      %v1688 = vrot.slane %v1687, 1
      %v1689 = vadd.f32 %v1687, %v1688
      %v1690 = vmul.f32 %v1367, %v1367
      %v1691 = vmul.f32 %v1370, %v1370
      %v1692 = vmul.f32 %v1375, %v1375
      %v1693 = vmul.f32 %v1378, %v1378
      %v1694 = vmul.f32 %v1383, %v1383
      %v1695 = vmul.f32 %v1386, %v1386
      %v1696 = vmul.f32 %v1391, %v1391
      %v1697 = vmul.f32 %v1394, %v1394
      %v1698 = vmul.f32 %v1399, %v1399
      %v1699 = vmul.f32 %v1402, %v1402
      %v1700 = vmul.f32 %v1407, %v1407
      %v1701 = vmul.f32 %v1410, %v1410
      %v1702 = vmul.f32 %v1415, %v1415
      %v1703 = vmul.f32 %v1418, %v1418
      %v1704 = vmul.f32 %v1423, %v1423
      %v1705 = vmul.f32 %v1426, %v1426
      %v1706 = vmul.f32 %v1431, %v1431
      %v1707 = vmul.f32 %v1434, %v1434
      %v1708 = vmul.f32 %v1439, %v1439
      %v1709 = vmul.f32 %v1442, %v1442
      %v1710 = vmul.f32 %v1447, %v1447
      %v1711 = vmul.f32 %v1450, %v1450
      %v1712 = vmul.f32 %v1455, %v1455
      %v1713 = vmul.f32 %v1458, %v1458
      %v1714 = vmul.f32 %v1463, %v1463
      %v1715 = vmul.f32 %v1466, %v1466
      %v1716 = vmul.f32 %v1471, %v1471
      %v1717 = vmul.f32 %v1474, %v1474
      %v1718 = vmul.f32 %v1479, %v1479
      %v1719 = vmul.f32 %v1482, %v1482
      %v1720 = vmul.f32 %v1487, %v1487
      %v1721 = vmul.f32 %v1490, %v1490
      %v1722 = vmul.f32 %v1495, %v1495
      %v1723 = vmul.f32 %v1498, %v1498
      %v1724 = vmul.f32 %v1503, %v1503
      %v1725 = vmul.f32 %v1506, %v1506
      %v1726 = vmul.f32 %v1511, %v1511
      %v1727 = vmul.f32 %v1514, %v1514
      %v1728 = vmul.f32 %v1519, %v1519
      %v1729 = vmul.f32 %v1522, %v1522
      %v1730 = vmul.f32 %v1527, %v1527
      %v1731 = vmul.f32 %v1530, %v1530
      %v1732 = vmul.f32 %v1535, %v1535
      %v1733 = vmul.f32 %v1538, %v1538
      %v1734 = vmul.f32 %v1543, %v1543
      %v1735 = vmul.f32 %v1546, %v1546
      %v1736 = vmul.f32 %v1551, %v1551
      %v1737 = vmul.f32 %v1554, %v1554
      %v1738 = vmul.f32 %v1559, %v1559
      %v1739 = vmul.f32 %v1562, %v1562
      %v1740 = vmul.f32 %v1567, %v1567
      %v1741 = vmul.f32 %v1570, %v1570
      %v1742 = vmul.f32 %v1575, %v1575
      %v1743 = vmul.f32 %v1578, %v1578
      %v1744 = vmul.f32 %v1583, %v1583
      %v1745 = vmul.f32 %v1586, %v1586
      %v1746 = vmul.f32 %v1591, %v1591
      %v1747 = vmul.f32 %v1594, %v1594
      %v1748 = vmul.f32 %v1599, %v1599
      %v1749 = vmul.f32 %v1602, %v1602
      %v1750 = vmul.f32 %v1607, %v1607
      %v1751 = vmul.f32 %v1610, %v1610
      %v1752 = vmul.f32 %v1615, %v1615
      %v1753 = vmul.f32 %v1618, %v1618
      %v1754 = vadd.f32 %v1690, %v1691
      %v1755 = vadd.f32 %v1754, %v1692
      %v1756 = vadd.f32 %v1755, %v1693
      %v1757 = vadd.f32 %v1756, %v1694
      %v1758 = vadd.f32 %v1757, %v1695
      %v1759 = vadd.f32 %v1758, %v1696
      %v1760 = vadd.f32 %v1759, %v1697
      %v1761 = vadd.f32 %v1760, %v1698
      %v1762 = vadd.f32 %v1761, %v1699
      %v1763 = vadd.f32 %v1762, %v1700
      %v1764 = vadd.f32 %v1763, %v1701
      %v1765 = vadd.f32 %v1764, %v1702
      %v1766 = vadd.f32 %v1765, %v1703
      %v1767 = vadd.f32 %v1766, %v1704
      %v1768 = vadd.f32 %v1767, %v1705
      %v1769 = vadd.f32 %v1768, %v1706
      %v1770 = vadd.f32 %v1769, %v1707
      %v1771 = vadd.f32 %v1770, %v1708
      %v1772 = vadd.f32 %v1771, %v1709
      %v1773 = vadd.f32 %v1772, %v1710
      %v1774 = vadd.f32 %v1773, %v1711
      %v1775 = vadd.f32 %v1774, %v1712
      %v1776 = vadd.f32 %v1775, %v1713
      %v1777 = vadd.f32 %v1776, %v1714
      %v1778 = vadd.f32 %v1777, %v1715
      %v1779 = vadd.f32 %v1778, %v1716
      %v1780 = vadd.f32 %v1779, %v1717
      %v1781 = vadd.f32 %v1780, %v1718
      %v1782 = vadd.f32 %v1781, %v1719
      %v1783 = vadd.f32 %v1782, %v1720
      %v1784 = vadd.f32 %v1783, %v1721
      %v1785 = vadd.f32 %v1784, %v1722
      %v1786 = vadd.f32 %v1785, %v1723
      %v1787 = vadd.f32 %v1786, %v1724
      %v1788 = vadd.f32 %v1787, %v1725
      %v1789 = vadd.f32 %v1788, %v1726
      %v1790 = vadd.f32 %v1789, %v1727
      %v1791 = vadd.f32 %v1790, %v1728
      %v1792 = vadd.f32 %v1791, %v1729
      %v1793 = vadd.f32 %v1792, %v1730
      %v1794 = vadd.f32 %v1793, %v1731
      %v1795 = vadd.f32 %v1794, %v1732
      %v1796 = vadd.f32 %v1795, %v1733
      %v1797 = vadd.f32 %v1796, %v1734
      %v1798 = vadd.f32 %v1797, %v1735
      %v1799 = vadd.f32 %v1798, %v1736
      %v1800 = vadd.f32 %v1799, %v1737
      %v1801 = vadd.f32 %v1800, %v1738
      %v1802 = vadd.f32 %v1801, %v1739
      %v1803 = vadd.f32 %v1802, %v1740
      %v1804 = vadd.f32 %v1803, %v1741
      %v1805 = vadd.f32 %v1804, %v1742
      %v1806 = vadd.f32 %v1805, %v1743
      %v1807 = vadd.f32 %v1806, %v1744
      %v1808 = vadd.f32 %v1807, %v1745
      %v1809 = vadd.f32 %v1808, %v1746
      %v1810 = vadd.f32 %v1809, %v1747
      %v1811 = vadd.f32 %v1810, %v1748
      %v1812 = vadd.f32 %v1811, %v1749
      %v1813 = vadd.f32 %v1812, %v1750
      %v1814 = vadd.f32 %v1813, %v1751
      %v1815 = vadd.f32 %v1814, %v1752
      %v1816 = vadd.f32 %v1815, %v1753
      %v1817 = vrot.slane %v1816, 4
      %v1818 = vadd.f32 %v1816, %v1817
      %v1819 = vrot.slane %v1818, 2
      %v1820 = vadd.f32 %v1818, %v1819
      %v1821 = vrot.slane %v1820, 1
      %v1822 = vadd.f32 %v1820, %v1821
      %v1823 = vsel %vm944, %v1822, 0.0
      %v1824 = vsel %vm943, %v1689, %v1823
      %1825 = vst [vmem:[%s288] sm:$0xff] %v1824
      %v1826 = vpack.c.bf16 %v1370, %v1367
      %v1827 = vpack.c.bf16 %v1378, %v1375
      %v1828 = vpack.c.bf16 %v1386, %v1383
      %v1829 = vpack.c.bf16 %v1394, %v1391
      %v1830 = vpack.c.bf16 %v1402, %v1399
      %v1831 = vpack.c.bf16 %v1410, %v1407
      %v1832 = vpack.c.bf16 %v1418, %v1415
      %v1833 = vpack.c.bf16 %v1426, %v1423
      %v1834 = vpack.c.bf16 %v1434, %v1431
      %v1835 = vpack.c.bf16 %v1442, %v1439
      %v1836 = vpack.c.bf16 %v1450, %v1447
      %v1837 = vpack.c.bf16 %v1458, %v1455
      %v1838 = vpack.c.bf16 %v1466, %v1463
      %v1839 = vpack.c.bf16 %v1474, %v1471
      %v1840 = vpack.c.bf16 %v1482, %v1479
      %v1841 = vpack.c.bf16 %v1490, %v1487
      %v1842 = vpack.c.bf16 %v1498, %v1495
      %v1843 = vpack.c.bf16 %v1506, %v1503
      %v1844 = vpack.c.bf16 %v1514, %v1511
      %v1845 = vpack.c.bf16 %v1522, %v1519
      %v1846 = vpack.c.bf16 %v1530, %v1527
      %v1847 = vpack.c.bf16 %v1538, %v1535
      %v1848 = vpack.c.bf16 %v1546, %v1543
      %v1849 = vpack.c.bf16 %v1554, %v1551
      %v1850 = vpack.c.bf16 %v1562, %v1559
      %v1851 = vpack.c.bf16 %v1570, %v1567
      %v1852 = vpack.c.bf16 %v1578, %v1575
      %v1853 = vpack.c.bf16 %v1586, %v1583
      %v1854 = vpack.c.bf16 %v1594, %v1591
      %v1855 = vpack.c.bf16 %v1602, %v1599
      %v1856 = vpack.c.bf16 %v1610, %v1607
      %v1857 = vpack.c.bf16 %v1618, %v1615
      %v1890 = vunpack.c.l.b16 %v1826
      %v1891 = vunpack.c.h.b16 %v1826
      %v1892 = vunpack.c.l.b16 %v1827
      %v1893 = vunpack.c.h.b16 %v1827
      %v1894 = vunpack.c.l.b16 %v1828
      %v1895 = vunpack.c.h.b16 %v1828
      %v1896 = vunpack.c.l.b16 %v1829
      %v1897 = vunpack.c.h.b16 %v1829
      %v1898 = vunpack.c.l.b16 %v1830
      %v1899 = vunpack.c.h.b16 %v1830
      %v1900 = vunpack.c.l.b16 %v1831
      %v1901 = vunpack.c.h.b16 %v1831
      %v1902 = vunpack.c.l.b16 %v1832
      %v1903 = vunpack.c.h.b16 %v1832
      %v1904 = vunpack.c.l.b16 %v1833
      %v1905 = vunpack.c.h.b16 %v1833
      %v1906 = vunpack.c.l.b16 %v1834
      %v1907 = vunpack.c.h.b16 %v1834
      %v1908 = vunpack.c.l.b16 %v1835
      %v1909 = vunpack.c.h.b16 %v1835
      %v1910 = vunpack.c.l.b16 %v1836
      %v1911 = vunpack.c.h.b16 %v1836
      %v1912 = vunpack.c.l.b16 %v1837
      %v1913 = vunpack.c.h.b16 %v1837
      %v1914 = vunpack.c.l.b16 %v1838
      %v1915 = vunpack.c.h.b16 %v1838
      %v1916 = vunpack.c.l.b16 %v1839
      %v1917 = vunpack.c.h.b16 %v1839
      %v1918 = vunpack.c.l.b16 %v1840
      %v1919 = vunpack.c.h.b16 %v1840
      %v1920 = vunpack.c.l.b16 %v1841
      %v1921 = vunpack.c.h.b16 %v1841
      %v1922 = vunpack.c.l.b16 %v1842
      %v1923 = vunpack.c.h.b16 %v1842
      %v1924 = vunpack.c.l.b16 %v1843
      %v1925 = vunpack.c.h.b16 %v1843
      %v1926 = vunpack.c.l.b16 %v1844
      %v1927 = vunpack.c.h.b16 %v1844
      %v1928 = vunpack.c.l.b16 %v1845
      %v1929 = vunpack.c.h.b16 %v1845
      %v1930 = vunpack.c.l.b16 %v1846
      %v1931 = vunpack.c.h.b16 %v1846
      %v1932 = vunpack.c.l.b16 %v1847
      %v1933 = vunpack.c.h.b16 %v1847
      %v1934 = vunpack.c.l.b16 %v1848
      %v1935 = vunpack.c.h.b16 %v1848
      %v1936 = vunpack.c.l.b16 %v1849
      %v1937 = vunpack.c.h.b16 %v1849
      %v1938 = vunpack.c.l.b16 %v1850
      %v1939 = vunpack.c.h.b16 %v1850
      %v1940 = vunpack.c.l.b16 %v1851
      %v1941 = vunpack.c.h.b16 %v1851
      %v1942 = vunpack.c.l.b16 %v1852
      %v1943 = vunpack.c.h.b16 %v1852
      %v1944 = vunpack.c.l.b16 %v1853
      %v1945 = vunpack.c.h.b16 %v1853
      %v1946 = vunpack.c.l.b16 %v1854
      %v1947 = vunpack.c.h.b16 %v1854
      %v1948 = vunpack.c.l.b16 %v1855
      %v1949 = vunpack.c.h.b16 %v1855
      %v1950 = vunpack.c.l.b16 %v1856
      %v1951 = vunpack.c.h.b16 %v1856
      %v1952 = vunpack.c.l.b16 %v1857
      %v1953 = vunpack.c.h.b16 %v1857
      %v1954 = vpack.c.b16 %v1890, %v1890
      %v1955 = vpack.c.b16 %v1891, %v1891
      %v1956 = vpack.c.b16 %v1892, %v1892
      %v1957 = vpack.c.b16 %v1893, %v1893
      %v1958 = vpack.c.b16 %v1894, %v1894
      %v1959 = vpack.c.b16 %v1895, %v1895
      %v1960 = vpack.c.b16 %v1896, %v1896
      %v1961 = vpack.c.b16 %v1897, %v1897
      %v1962 = vpack.c.b16 %v1898, %v1898
      %v1963 = vpack.c.b16 %v1899, %v1899
      %v1964 = vpack.c.b16 %v1900, %v1900
      %v1965 = vpack.c.b16 %v1901, %v1901
      %v1966 = vpack.c.b16 %v1902, %v1902
      %v1967 = vpack.c.b16 %v1903, %v1903
      %v1968 = vpack.c.b16 %v1904, %v1904
      %v1969 = vpack.c.b16 %v1905, %v1905
      %v1970 = vpack.c.b16 %v1906, %v1906
      %v1971 = vpack.c.b16 %v1907, %v1907
      %v1972 = vpack.c.b16 %v1908, %v1908
      %v1973 = vpack.c.b16 %v1909, %v1909
      %v1974 = vpack.c.b16 %v1910, %v1910
      %v1975 = vpack.c.b16 %v1911, %v1911
      %v1976 = vpack.c.b16 %v1912, %v1912
      %v1977 = vpack.c.b16 %v1913, %v1913
      %v1978 = vpack.c.b16 %v1914, %v1914
      %v1979 = vpack.c.b16 %v1915, %v1915
      %v1980 = vpack.c.b16 %v1916, %v1916
      %v1981 = vpack.c.b16 %v1917, %v1917
      %v1982 = vpack.c.b16 %v1918, %v1918
      %v1983 = vpack.c.b16 %v1919, %v1919
      %v1984 = vpack.c.b16 %v1920, %v1920
      %v1985 = vpack.c.b16 %v1921, %v1921
      %v1986 = vpack.c.b16 %v1922, %v1922
      %v1987 = vpack.c.b16 %v1923, %v1923
      %v1988 = vpack.c.b16 %v1924, %v1924
      %v1989 = vpack.c.b16 %v1925, %v1925
      %v1990 = vpack.c.b16 %v1926, %v1926
      %v1991 = vpack.c.b16 %v1927, %v1927
      %v1992 = vpack.c.b16 %v1928, %v1928
      %v1993 = vpack.c.b16 %v1929, %v1929
      %v1994 = vpack.c.b16 %v1930, %v1930
      %v1995 = vpack.c.b16 %v1931, %v1931
      %v1996 = vpack.c.b16 %v1932, %v1932
      %v1997 = vpack.c.b16 %v1933, %v1933
      %v1998 = vpack.c.b16 %v1934, %v1934
      %v1999 = vpack.c.b16 %v1935, %v1935
      %v2000 = vpack.c.b16 %v1936, %v1936
      %v2001 = vpack.c.b16 %v1937, %v1937
      %v2002 = vpack.c.b16 %v1938, %v1938
      %v2003 = vpack.c.b16 %v1939, %v1939
      %v2004 = vpack.c.b16 %v1940, %v1940
      %v2005 = vpack.c.b16 %v1941, %v1941
      %v2006 = vpack.c.b16 %v1942, %v1942
      %v2007 = vpack.c.b16 %v1943, %v1943
      %v2008 = vpack.c.b16 %v1944, %v1944
      %v2009 = vpack.c.b16 %v1945, %v1945
      %v2010 = vpack.c.b16 %v1946, %v1946
      %v2011 = vpack.c.b16 %v1947, %v1947
      %v2012 = vpack.c.b16 %v1948, %v1948
      %v2013 = vpack.c.b16 %v1949, %v1949
      %v2014 = vpack.c.b16 %v1950, %v1950
      %v2015 = vpack.c.b16 %v1951, %v1951
      %v2016 = vpack.c.b16 %v1952, %v1952
      %v2017 = vpack.c.b16 %v1953, %v1953
      %2082 = vst [vmem:[%s283] sm:$0xf] %v1954
      %2083 = vst [vmem:[%s283 + $0x4] sm:$0xf] %v1955
      %2084 = vst [vmem:[%s283 + $0x8] sm:$0xf] %v1956
      %2085 = vst [vmem:[%s283 + $0xc] sm:$0xf] %v1957
      %2086 = vst [vmem:[%s283 + $0x10] sm:$0xf] %v1958
      %2087 = vst [vmem:[%s283 + $0x14] sm:$0xf] %v1959
      %2088 = vst [vmem:[%s283 + $0x18] sm:$0xf] %v1960
      %2089 = vst [vmem:[%s283 + $0x1c] sm:$0xf] %v1961
      %2090 = vst [vmem:[%s283 + $0x20] sm:$0xf] %v1962
      %2091 = vst [vmem:[%s283 + $0x24] sm:$0xf] %v1963
      %2092 = vst [vmem:[%s283 + $0x28] sm:$0xf] %v1964
      %2093 = vst [vmem:[%s283 + $0x2c] sm:$0xf] %v1965
      %2094 = vst [vmem:[%s283 + $0x30] sm:$0xf] %v1966
      %2095 = vst [vmem:[%s283 + $0x34] sm:$0xf] %v1967
      %2096 = vst [vmem:[%s283 + $0x38] sm:$0xf] %v1968
      %2097 = vst [vmem:[%s283 + $0x3c] sm:$0xf] %v1969
      %2098 = vst [vmem:[%s283 + $0x40] sm:$0xf] %v1970
      %2099 = vst [vmem:[%s283 + $0x44] sm:$0xf] %v1971
      %2100 = vst [vmem:[%s283 + $0x48] sm:$0xf] %v1972
      %2101 = vst [vmem:[%s283 + $0x4c] sm:$0xf] %v1973
      %2102 = vst [vmem:[%s283 + $0x50] sm:$0xf] %v1974
      %2103 = vst [vmem:[%s283 + $0x54] sm:$0xf] %v1975
      %2104 = vst [vmem:[%s283 + $0x58] sm:$0xf] %v1976
      %2105 = vst [vmem:[%s283 + $0x5c] sm:$0xf] %v1977
      %2106 = vst [vmem:[%s283 + $0x60] sm:$0xf] %v1978
      %2107 = vst [vmem:[%s283 + $0x64] sm:$0xf] %v1979
      %2108 = vst [vmem:[%s283 + $0x68] sm:$0xf] %v1980
      %2109 = vst [vmem:[%s283 + $0x6c] sm:$0xf] %v1981
      %2110 = vst [vmem:[%s283 + $0x70] sm:$0xf] %v1982
      %2111 = vst [vmem:[%s283 + $0x74] sm:$0xf] %v1983
      %2112 = vst [vmem:[%s283 + $0x78] sm:$0xf] %v1984
      %2113 = vst [vmem:[%s283 + $0x7c] sm:$0xf] %v1985
      %2114 = vst [vmem:[%s283 + $0x80] sm:$0xf] %v1986
      %2115 = vst [vmem:[%s283 + $0x84] sm:$0xf] %v1987
      %2116 = vst [vmem:[%s283 + $0x88] sm:$0xf] %v1988
      %2117 = vst [vmem:[%s283 + $0x8c] sm:$0xf] %v1989
      %2118 = vst [vmem:[%s283 + $0x90] sm:$0xf] %v1990
      %2119 = vst [vmem:[%s283 + $0x94] sm:$0xf] %v1991
      %2120 = vst [vmem:[%s283 + $0x98] sm:$0xf] %v1992
      %2121 = vst [vmem:[%s283 + $0x9c] sm:$0xf] %v1993
      %2122 = vst [vmem:[%s283 + $0xa0] sm:$0xf] %v1994
      %2123 = vst [vmem:[%s283 + $0xa4] sm:$0xf] %v1995
      %2124 = vst [vmem:[%s283 + $0xa8] sm:$0xf] %v1996
      %2125 = vst [vmem:[%s283 + $0xac] sm:$0xf] %v1997
      %2126 = vst [vmem:[%s283 + $0xb0] sm:$0xf] %v1998
      %2127 = vst [vmem:[%s283 + $0xb4] sm:$0xf] %v1999
      %2128 = vst [vmem:[%s283 + $0xb8] sm:$0xf] %v2000
      %2129 = vst [vmem:[%s283 + $0xbc] sm:$0xf] %v2001
      %2130 = vst [vmem:[%s283 + $0xc0] sm:$0xf] %v2002
      %2131 = vst [vmem:[%s283 + $0xc4] sm:$0xf] %v2003
      %2132 = vst [vmem:[%s283 + $0xc8] sm:$0xf] %v2004
      %2133 = vst [vmem:[%s283 + $0xcc] sm:$0xf] %v2005
      %2134 = vst [vmem:[%s283 + $0xd0] sm:$0xf] %v2006
      %2135 = vst [vmem:[%s283 + $0xd4] sm:$0xf] %v2007
      %2136 = vst [vmem:[%s283 + $0xd8] sm:$0xf] %v2008
      %2137 = vst [vmem:[%s283 + $0xdc] sm:$0xf] %v2009
      %2138 = vst [vmem:[%s283 + $0xe0] sm:$0xf] %v2010
      %2139 = vst [vmem:[%s283 + $0xe4] sm:$0xf] %v2011
      %2140 = vst [vmem:[%s283 + $0xe8] sm:$0xf] %v2012
      %2141 = vst [vmem:[%s283 + $0xec] sm:$0xf] %v2013
      %2142 = vst [vmem:[%s283 + $0xf0] sm:$0xf] %v2014
      %2143 = vst [vmem:[%s283 + $0xf4] sm:$0xf] %v2015
      %2144 = vst [vmem:[%s283 + $0xf8] sm:$0xf] %v2016
      %2145 = vst [vmem:[%s283 + $0xfc] sm:$0xf] %v2017
      %s2146 = smul.u32 64, %s18
      %p2147 = scmp.lt.s32.totalorder %s2146, 127
      %s2148 = scalar_select %p2147, %s2146, 127
      %s2149 = smul.addr %s2148, 4
      %s2150 = scalar_lea.vmem %s3, %s2149
      %p2151 = scmp.lt.s32.totalorder %s18, 1
      %s2152 = scalar_select %p2151, %s18, 1
      %s2153 = smul.addr %s2152, 8
      %s2154 = scalar_lea.vmem %s4, %s2153
      %s2155 = smul.u32 64, %s18
      %p2156 = scmp.lt.s32.totalorder %s2155, 127
      %s2157 = scalar_select %p2156, %s2155, 127
      %s2158 = smul.addr %s2157, 4
      %s2159 = scalar_lea.vmem %s5, %s2158
      %p2160 = scmp.lt.s32.totalorder %s18, 1
      %s2161 = scalar_select %p2160, %s18, 1
      %s2162 = smul.addr %s2161, 8
      %s2163 = scalar_lea.vmem %s6, %s2162
      // Predicated region
      $region33: #{dilated_residual_unit_3d.4} parent=31 // pred_check
        %p2164 = pneg %p104
      $region34: #{dilated_residual_unit_3d.4} parent=31 // pred_check_branch
        %2166 = sbr.rel (%p2164) target = $region36
      $region35: #{dilated_residual_unit_3d.4} parent=31 // pred_region
        %s2167 = smul.u32 64, %s18
      $region36: #{dilated_residual_unit_3d.4} parent=31 // pred_fallthru
        _
      // Predicated region
      $region37: #{dilated_residual_unit_3d.4} parent=31 // pred_check
        %p2168 = pneg %p130
      $region38: #{dilated_residual_unit_3d.4} parent=31 // pred_check_branch
        %2170 = sbr.rel (%p2168) target = $region40
      $region39: #{dilated_residual_unit_3d.4} parent=31 // pred_region
        _
      $region40: #{dilated_residual_unit_3d.4} parent=31 // pred_fallthru
        _
      // Predicated region
      $region41: #{dilated_residual_unit_3d.4} parent=31 // pred_check
        %p2171 = pneg %p156
      $region42: #{dilated_residual_unit_3d.4} parent=31 // pred_check_branch
        %2173 = sbr.rel (%p2171) target = $region44
      $region43: #{dilated_residual_unit_3d.4} parent=31 // pred_region
        %s2174 = smul.u32 64, %s18
      $region44: #{dilated_residual_unit_3d.4} parent=31 // pred_fallthru
        _
      // Predicated region
      $region45: #{dilated_residual_unit_3d.4} parent=31 // pred_check
        %p2175 = pneg %p182
      $region46: #{dilated_residual_unit_3d.4} parent=31 // pred_check_branch
        %2177 = sbr.rel (%p2175) target = $region48
      $region47: #{dilated_residual_unit_3d.4} parent=31 // pred_region
        _
      $region48: #{dilated_residual_unit_3d.4} parent=31 // pred_fallthru
        _
    $region32: #{dilated_residual_unit_3d.4} parent=5 // pred_fallthru
      _
    %p2178 = scmp.le.s32.totalorder 2, %s13
    // Predicated region
    $region49: #{dilated_residual_unit_3d.4} parent=5 // pred_check
      %p2179 = pneg %p2178
    $region50: #{dilated_residual_unit_3d.4} parent=5 // pred_check_branch
      %2181 = sbr.rel (%p2179) target = $region52
    $region51: #{dilated_residual_unit_3d.4} parent=5 // pred_region
      %s2182 = ssub.s32 %s13, 2
      // Predicated region
      $region53: #{dilated_residual_unit_3d.4} parent=51 // pred_check
        %p2183 = pneg %p110
      $region54: #{dilated_residual_unit_3d.4} parent=51 // pred_check_branch
        %2185 = sbr.rel (%p2183) target = $region56
      $region55: #{dilated_residual_unit_3d.4} parent=51 // pred_region
        %s2186 = smul.u32 64, %s19
        %p2187 = scmp.lt.s32.totalorder %s2186, 127
        %s2188 = scalar_select %p2187, %s2186, 127
        %s2189 = smul.addr %s2188, 4
        %s2190 = scalar_lea.vmem %s3, %s2189
      $region56: #{dilated_residual_unit_3d.4} parent=51 // pred_fallthru
        _
      // Predicated region
      $region57: #{dilated_residual_unit_3d.4} parent=51 // pred_check
        %p2191 = pneg %p136
      $region58: #{dilated_residual_unit_3d.4} parent=51 // pred_check_branch
        %2193 = sbr.rel (%p2191) target = $region60
      $region59: #{dilated_residual_unit_3d.4} parent=51 // pred_region
        %p2194 = scmp.lt.s32.totalorder %s19, 1
        %s2195 = scalar_select %p2194, %s19, 1
        %s2196 = smul.addr %s2195, 8
        %s2197 = scalar_lea.vmem %s4, %s2196
      $region60: #{dilated_residual_unit_3d.4} parent=51 // pred_fallthru
        _
      // Predicated region
      $region61: #{dilated_residual_unit_3d.4} parent=51 // pred_check
        %p2198 = pneg %p162
      $region62: #{dilated_residual_unit_3d.4} parent=51 // pred_check_branch
        %2200 = sbr.rel (%p2198) target = $region64
      $region63: #{dilated_residual_unit_3d.4} parent=51 // pred_region
        %s2201 = smul.u32 64, %s19
        %p2202 = scmp.lt.s32.totalorder %s2201, 127
        %s2203 = scalar_select %p2202, %s2201, 127
        %s2204 = smul.addr %s2203, 4
        %s2205 = scalar_lea.vmem %s5, %s2204
      $region64: #{dilated_residual_unit_3d.4} parent=51 // pred_fallthru
        _
      // Predicated region
      $region65: #{dilated_residual_unit_3d.4} parent=51 // pred_check
        %p2206 = pneg %p188
      $region66: #{dilated_residual_unit_3d.4} parent=51 // pred_check_branch
        %2208 = sbr.rel (%p2206) target = $region68
      $region67: #{dilated_residual_unit_3d.4} parent=51 // pred_region
        %p2209 = scmp.lt.s32.totalorder %s19, 1
        %s2210 = scalar_select %p2209, %s19, 1
        %s2211 = smul.addr %s2210, 8
        %s2212 = scalar_lea.vmem %s6, %s2211
      $region68: #{dilated_residual_unit_3d.4} parent=51 // pred_fallthru
        _
    $region52: #{dilated_residual_unit_3d.4} parent=5 // pred_fallthru
      _
  $region6: #{dilated_residual_unit_3d.4} parent=0 // loop_footer
    %s17 = sadd.s32 1, %s13
  $region7: #{dilated_residual_unit_3d.4} parent=0 // loop_footer_branch
    %12 = sbr.rel target = $region3
  $region8: #{dilated_residual_unit_3d.4} parent=0 // loop_exit
    _

// kernel: dilated_residual_unit_3d.7
$region0: #{dilated_residual_unit_3d.7}
  #allocation0 [shape = 'u32[]', space=smem, size = 0x4, offset = 0x4, fixed_abs, tag = 'smem constant byte address 0x4 - core index']
  #allocation1 [shape = 'u32[144,128]{1,0:T(1,128)}', space=vmem, size = 0x12000, scoped, tag = 'internal scratch']
  %s0 = inlined_call_operand.vmem [shape: bf16[1024,128], index: 0, kind: input, shape index: {}]
  %s1 = inlined_call_operand.vmem [shape: f32[1,128], index: 1, kind: input, shape index: {}]
  %s2 = inlined_call_operand.vmem [shape: f32[1,128], index: 2, kind: input, shape index: {}]
  %s3 = inlined_call_operand.vmem [shape: bf16[1024,128], index: 3, kind: input, shape index: {}]
  %s4 = inlined_call_operand.vmem [shape: f32[1,128], index: 4, kind: input, shape index: {}]
  %s5 = inlined_call_operand.vmem [shape: f32[1,128], index: 5, kind: input, shape index: {}]
  %s6 = inlined_call_operand.vmem [shape: f32[1024,128], index: 6, kind: output, shape index: {}]
  %s7 = sld [smem:[#allocation0]]
  $region57: #{dilated_residual_unit_3d.7} parent=0
    _
  %s9 = ssub.s32 1, %s7
  %s10 = scalar_select 0, %s9, %s7
  loop: start=0, step=1, limit=4
  $region2: #{dilated_residual_unit_3d.7} parent=0 // loop_pre_header
    _
  $region3: #{dilated_residual_unit_3d.7} parent=0 // loop_header
    %s12 = sphi 0, %s16
    %p13 = scmp.ge.s32.totalorder %s12, 4
    %s22 = sphi 0, %s24
    %s25 = sphi 0, %s22
    %s26 = sphi 0, %s25
    %s42 = sphi 0, %s26
    %s46 = sphi 0, %s46
    %s48 = sphi 0, %s46
    %s49 = sphi 0, %s48
    %s63 = sphi 0, %s49
    %s67 = sphi 0, %s67
    %s69 = sphi 0, %s67
    %s70 = sphi 0, %s69
    %s84 = sphi 0, %s70
    %s90 = sphi 0, %s92
    %s93 = sphi 0, %s90
    %s94 = sphi 0, %s93
    %s110 = sphi 0, %s94
    %s114 = sphi 0, %s114
    %s116 = sphi 0, %s114
    %s117 = sphi 0, %s116
    %s131 = sphi 0, %s117
    %s135 = sphi 0, %s135
    %s137 = sphi 0, %s135
    %s138 = sphi 0, %s137
    %s152 = sphi 0, %s138
    %s158 = sphi 0, %s160
    %s161 = sphi 0, %s158
    %s162 = sphi 0, %s161
    %s178 = sphi 0, %s162
  $region4: #{dilated_residual_unit_3d.7} parent=0 // loop_header_branch
    %15 = sbr.rel (%p13) target = $region8
  $region5: #{dilated_residual_unit_3d.7} parent=0 // loop_body
    %s17 = ssub.s32 %s12, 1
    %s18 = ssub.s32 %s12, 2
    %s19 = sadd.s32 %s12, 1
    %s20 = ssub.s32 %s12, %s19
    %p21 = scmp.eq.s32.totalorder %s20, 0
    %s23 = sadd.s32 %s22, 1
    %s24 = scalar_select %p21, %s22, %s23
    %p27 = pneg %p21
    %p28 = scmp.eq.s32.totalorder %s12, 1
    %p29 = por %p27, %p28
    %p30 = scmp.ne.s32.totalorder %s22, %s25
    %p31 = scmp.eq.s32.totalorder %s12, 0
    %p32 = por %p30, %p31
    %p33 = scmp.ne.s32.totalorder %s22, %s25
    %p34 = scmp.eq.s32.totalorder %s17, 1
    %p35 = por %p33, %p34
    %p36 = scmp.ne.s32.totalorder %s25, %s26
    %p37 = scmp.eq.s32.totalorder %s17, 0
    %p38 = por %p36, %p37
    %p39 = scmp.ne.s32.totalorder %s25, %s26
    %p40 = scmp.eq.s32.totalorder %s18, 1
    %p41 = por %p39, %p40
    %p43 = scmp.ne.s32.totalorder %s26, %s42
    %p44 = scmp.eq.s32.totalorder %s18, 0
    %p45 = por %p43, %p44
    %s47 = sadd.s32 %s46, 1
    %p50 = scmp.eq.s32.totalorder %s12, 1
    %p51 = scmp.ne.s32.totalorder %s46, %s48
    %p52 = scmp.eq.s32.totalorder %s12, 0
    %p53 = por %p51, %p52
    %p54 = scmp.ne.s32.totalorder %s46, %s48
    %p55 = scmp.eq.s32.totalorder %s17, 1
    %p56 = por %p54, %p55
    %p57 = scmp.ne.s32.totalorder %s48, %s49
    %p58 = scmp.eq.s32.totalorder %s17, 0
    %p59 = por %p57, %p58
    %p60 = scmp.ne.s32.totalorder %s48, %s49
    %p61 = scmp.eq.s32.totalorder %s18, 1
    %p62 = por %p60, %p61
    %p64 = scmp.ne.s32.totalorder %s49, %s63
    %p65 = scmp.eq.s32.totalorder %s18, 0
    %p66 = por %p64, %p65
    %s68 = sadd.s32 %s67, 1
    %p71 = scmp.eq.s32.totalorder %s12, 1
    %p72 = scmp.ne.s32.totalorder %s67, %s69
    %p73 = scmp.eq.s32.totalorder %s12, 0
    %p74 = por %p72, %p73
    %p75 = scmp.ne.s32.totalorder %s67, %s69
    %p76 = scmp.eq.s32.totalorder %s17, 1
    %p77 = por %p75, %p76
    %p78 = scmp.ne.s32.totalorder %s69, %s70
    %p79 = scmp.eq.s32.totalorder %s17, 0
    %p80 = por %p78, %p79
    %p81 = scmp.ne.s32.totalorder %s69, %s70
    %p82 = scmp.eq.s32.totalorder %s18, 1
    %p83 = por %p81, %p82
    %p85 = scmp.ne.s32.totalorder %s70, %s84
    %p86 = scmp.eq.s32.totalorder %s18, 0
    %p87 = por %p85, %p86
    %s88 = ssub.s32 %s12, %s19
    %p89 = scmp.eq.s32.totalorder %s88, 0
    %s91 = sadd.s32 %s90, 1
    %s92 = scalar_select %p89, %s90, %s91
    %p95 = pneg %p89
    %p96 = scmp.eq.s32.totalorder %s12, 1
    %p97 = por %p95, %p96
    %p98 = scmp.ne.s32.totalorder %s90, %s93
    %p99 = scmp.eq.s32.totalorder %s12, 0
    %p100 = por %p98, %p99
    %p101 = scmp.ne.s32.totalorder %s90, %s93
    %p102 = scmp.eq.s32.totalorder %s17, 1
    %p103 = por %p101, %p102
    %p104 = scmp.ne.s32.totalorder %s93, %s94
    %p105 = scmp.eq.s32.totalorder %s17, 0
    %p106 = por %p104, %p105
    %p107 = scmp.ne.s32.totalorder %s93, %s94
    %p108 = scmp.eq.s32.totalorder %s18, 1
    %p109 = por %p107, %p108
    %p111 = scmp.ne.s32.totalorder %s94, %s110
    %p112 = scmp.eq.s32.totalorder %s18, 0
    %p113 = por %p111, %p112
    %s115 = sadd.s32 %s114, 1
    %p118 = scmp.eq.s32.totalorder %s12, 1
    %p119 = scmp.ne.s32.totalorder %s114, %s116
    %p120 = scmp.eq.s32.totalorder %s12, 0
    %p121 = por %p119, %p120
    %p122 = scmp.ne.s32.totalorder %s114, %s116
    %p123 = scmp.eq.s32.totalorder %s17, 1
    %p124 = por %p122, %p123
    %p125 = scmp.ne.s32.totalorder %s116, %s117
    %p126 = scmp.eq.s32.totalorder %s17, 0
    %p127 = por %p125, %p126
    %p128 = scmp.ne.s32.totalorder %s116, %s117
    %p129 = scmp.eq.s32.totalorder %s18, 1
    %p130 = por %p128, %p129
    %p132 = scmp.ne.s32.totalorder %s117, %s131
    %p133 = scmp.eq.s32.totalorder %s18, 0
    %p134 = por %p132, %p133
    %s136 = sadd.s32 %s135, 1
    %p139 = scmp.eq.s32.totalorder %s12, 1
    %p140 = scmp.ne.s32.totalorder %s135, %s137
    %p141 = scmp.eq.s32.totalorder %s12, 0
    %p142 = por %p140, %p141
    %p143 = scmp.ne.s32.totalorder %s135, %s137
    %p144 = scmp.eq.s32.totalorder %s17, 1
    %p145 = por %p143, %p144
    %p146 = scmp.ne.s32.totalorder %s137, %s138
    %p147 = scmp.eq.s32.totalorder %s17, 0
    %p148 = por %p146, %p147
    %p149 = scmp.ne.s32.totalorder %s137, %s138
    %p150 = scmp.eq.s32.totalorder %s18, 1
    %p151 = por %p149, %p150
    %p153 = scmp.ne.s32.totalorder %s138, %s152
    %p154 = scmp.eq.s32.totalorder %s18, 0
    %p155 = por %p153, %p154
    %s156 = ssub.s32 %s12, %s19
    %p157 = scmp.eq.s32.totalorder %s156, 0
    %s159 = sadd.s32 %s158, 1
    %s160 = scalar_select %p157, %s158, %s159
    %p163 = pneg %p157
    %p164 = scmp.eq.s32.totalorder %s12, 1
    %p165 = por %p163, %p164
    %p166 = scmp.ne.s32.totalorder %s158, %s161
    %p167 = scmp.eq.s32.totalorder %s12, 0
    %p168 = por %p166, %p167
    %p169 = scmp.ne.s32.totalorder %s158, %s161
    %p170 = scmp.eq.s32.totalorder %s17, 1
    %p171 = por %p169, %p170
    %p172 = scmp.ne.s32.totalorder %s161, %s162
    %p173 = scmp.eq.s32.totalorder %s17, 0
    %p174 = por %p172, %p173
    %p175 = scmp.ne.s32.totalorder %s161, %s162
    %p176 = scmp.eq.s32.totalorder %s18, 1
    %p177 = por %p175, %p176
    %p179 = scmp.ne.s32.totalorder %s162, %s178
    %p180 = scmp.eq.s32.totalorder %s18, 0
    %p181 = por %p179, %p180
    %p182 = scmp.le.s32.totalorder 1, %s12
    %p183 = scmp.lt.s32.totalorder %s12, 3
    %p184 = pnand %p182, %p183
    %p185 = pneg %p184
    // Predicated region
    $region9: #{dilated_residual_unit_3d.7} parent=5 // pred_check
      _
    $region10: #{dilated_residual_unit_3d.7} parent=5 // pred_check_branch
      %187 = sbr.rel (%p184) target = $region12
    $region11: #{dilated_residual_unit_3d.7} parent=5 // pred_region
      %s188 = ssub.s32 %s12, 1
      // Predicated region
      $region13: #{dilated_residual_unit_3d.7} parent=11 // pred_check
        %p189 = pneg %p59
      $region14: #{dilated_residual_unit_3d.7} parent=11 // pred_check_branch
        %191 = sbr.rel (%p189) target = $region16
      $region15: #{dilated_residual_unit_3d.7} parent=11 // pred_region
        _
      $region16: #{dilated_residual_unit_3d.7} parent=11 // pred_fallthru
        _
      // Predicated region
      $region17: #{dilated_residual_unit_3d.7} parent=11 // pred_check
        %p192 = pneg %p80
      $region18: #{dilated_residual_unit_3d.7} parent=11 // pred_check_branch
        %194 = sbr.rel (%p192) target = $region20
      $region19: #{dilated_residual_unit_3d.7} parent=11 // pred_region
        _
      $region20: #{dilated_residual_unit_3d.7} parent=11 // pred_fallthru
        _
      // Predicated region
      $region21: #{dilated_residual_unit_3d.7} parent=11 // pred_check
        %p195 = pneg %p127
      $region22: #{dilated_residual_unit_3d.7} parent=11 // pred_check_branch
        %197 = sbr.rel (%p195) target = $region24
      $region23: #{dilated_residual_unit_3d.7} parent=11 // pred_region
        _
      $region24: #{dilated_residual_unit_3d.7} parent=11 // pred_fallthru
        _
      // Predicated region
      $region25: #{dilated_residual_unit_3d.7} parent=11 // pred_check
        %p198 = pneg %p148
      $region26: #{dilated_residual_unit_3d.7} parent=11 // pred_check_branch
        %200 = sbr.rel (%p198) target = $region28
      $region27: #{dilated_residual_unit_3d.7} parent=11 // pred_region
        _
      $region28: #{dilated_residual_unit_3d.7} parent=11 // pred_fallthru
        _
    $region12: #{dilated_residual_unit_3d.7} parent=5 // pred_fallthru
      _
    %p201 = scmp.lt.s32.totalorder %s12, 2
    // Predicated region
    $region29: #{dilated_residual_unit_3d.7} parent=5 // pred_check
      %p202 = pneg %p201
    $region30: #{dilated_residual_unit_3d.7} parent=5 // pred_check_branch
      %204 = sbr.rel (%p202) target = $region32
    $region31: #{dilated_residual_unit_3d.7} parent=5 // pred_region
      // Predicated region
      $region33: #{dilated_residual_unit_3d.7} parent=31 // pred_check
        %p205 = pneg %p32
      $region34: #{dilated_residual_unit_3d.7} parent=31 // pred_check_branch
        %207 = sbr.rel (%p205) target = $region36
      $region35: #{dilated_residual_unit_3d.7} parent=31 // pred_region
        %s208 = smul.u32 64, %s12
        %p209 = scmp.lt.s32.totalorder %s208, 127
        %s210 = scalar_select %p209, %s208, 127
        %s211 = smul.addr %s210, 4
        %s212 = scalar_lea.vmem %s0, %s211
        %s213 = smul.u32 64, %s12
      $region36: #{dilated_residual_unit_3d.7} parent=31 // pred_fallthru
        _
      // Predicated region
      $region37: #{dilated_residual_unit_3d.7} parent=31 // pred_check
        %p214 = pneg %p100
      $region38: #{dilated_residual_unit_3d.7} parent=31 // pred_check_branch
        %216 = sbr.rel (%p214) target = $region40
      $region39: #{dilated_residual_unit_3d.7} parent=31 // pred_region
        %s217 = smul.u32 64, %s12
        %p218 = scmp.lt.s32.totalorder %s217, 127
        %s219 = scalar_select %p218, %s217, 127
        %s220 = smul.addr %s219, 4
        %s221 = scalar_lea.vmem %s3, %s220
        %s222 = smul.u32 64, %s12
      $region40: #{dilated_residual_unit_3d.7} parent=31 // pred_fallthru
        _
    $region32: #{dilated_residual_unit_3d.7} parent=5 // pred_fallthru
      _
    %p223 = scmp.le.s32.totalorder 1, %s12
    %p224 = scmp.lt.s32.totalorder %s12, 3
    %p225 = pnand %p223, %p224
    %p226 = pneg %p225
    // Predicated region
    $region41: #{dilated_residual_unit_3d.7} parent=5 // pred_check
      _
    $region42: #{dilated_residual_unit_3d.7} parent=5 // pred_check_branch
      %228 = sbr.rel (%p225) target = $region44
    $region43: #{dilated_residual_unit_3d.7} parent=5 // pred_region
      %s229 = ssub.s32 %s12, 1
      %s230 = smul.u32 64, %s17
      %p231 = scmp.lt.s32.totalorder %s230, 127
      %s232 = scalar_select %p231, %s230, 127
      %s233 = smul.addr %s232, 4
      %s234 = scalar_lea.vmem %s0, %s233
      %p235 = pneg %p38
      %p236 = pneg %p35
      %p237 = pneg %p59
      %p238 = pneg %p56
      %p239 = pneg %p80
      %p240 = pneg %p77
      %s241 = smul.u32 64, %s17
      %p242 = scmp.lt.s32.totalorder %s241, 127
      %s243 = scalar_select %p242, %s241, 127
      %s244 = smul.addr %s243, 4
      %s245 = scalar_lea.vmem %s3, %s244
      %p246 = pneg %p106
      %p247 = pneg %p103
      %p248 = pneg %p127
      %p249 = pneg %p124
      %p250 = pneg %p148
      %p251 = pneg %p145
      %p252 = pneg %p174
      %p253 = pneg %p171
      %s254 = smul.u32 64, %s17
      %p255 = scmp.lt.s32.totalorder %s254, 127
      %s256 = scalar_select %p255, %s254, 127
      %s257 = smul.addr %s256, 8
      %s258 = scalar_lea.vmem %s6, %s257
      %s259 = smul.u32 64, %s17
      %p260 = scmp.lt.s32.totalorder %s259, 127
      %s261 = scalar_select %p260, %s259, 127
      %s262 = smul.addr %s261, 4
      %s263 = scalar_lea.vmem %s0, %s262
      %s264 = smul.u32 64, %s17
      %s265 = smul.u32 64, %s17
      %p266 = scmp.lt.s32.totalorder %s265, 127
      %s267 = scalar_select %p266, %s265, 127
      %s268 = smul.addr %s267, 4
      %s269 = scalar_lea.vmem %s3, %s268
      %s270 = smul.u32 64, %s17
      %s271 = smul.u32 64, %s17
      %p272 = scmp.lt.s32.totalorder %s271, 127
      %s273 = scalar_select %p272, %s271, 127
      %s274 = smul.addr %s273, 8
      %s275 = scalar_lea.vmem %s6, %s274
      %s276 = smul.u32 64, %s17
      %v277 = vld [vmem:[%s263] sm:$0xf]
      %v278 = vld [vmem:[%s263 + $0x4] sm:$0xf]
      %v279 = vld [vmem:[%s263 + $0x8] sm:$0xf]
      %v280 = vld [vmem:[%s263 + $0xc] sm:$0xf]
      %v281 = vld [vmem:[%s263 + $0x10] sm:$0xf]
      %v282 = vld [vmem:[%s263 + $0x14] sm:$0xf]
      %v283 = vld [vmem:[%s263 + $0x18] sm:$0xf]
      %v284 = vld [vmem:[%s263 + $0x1c] sm:$0xf]
      %v285 = vld [vmem:[%s263 + $0x20] sm:$0xf]
      %v286 = vld [vmem:[%s263 + $0x24] sm:$0xf]
      %v287 = vld [vmem:[%s263 + $0x28] sm:$0xf]
      %v288 = vld [vmem:[%s263 + $0x2c] sm:$0xf]
      %v289 = vld [vmem:[%s263 + $0x30] sm:$0xf]
      %v290 = vld [vmem:[%s263 + $0x34] sm:$0xf]
      %v291 = vld [vmem:[%s263 + $0x38] sm:$0xf]
      %v292 = vld [vmem:[%s263 + $0x3c] sm:$0xf]
      %v293 = vld [vmem:[%s263 + $0x40] sm:$0xf]
      %v294 = vld [vmem:[%s263 + $0x44] sm:$0xf]
      %v295 = vld [vmem:[%s263 + $0x48] sm:$0xf]
      %v296 = vld [vmem:[%s263 + $0x4c] sm:$0xf]
      %v297 = vld [vmem:[%s263 + $0x50] sm:$0xf]
      %v298 = vld [vmem:[%s263 + $0x54] sm:$0xf]
      %v299 = vld [vmem:[%s263 + $0x58] sm:$0xf]
      %v300 = vld [vmem:[%s263 + $0x5c] sm:$0xf]
      %v301 = vld [vmem:[%s263 + $0x60] sm:$0xf]
      %v302 = vld [vmem:[%s263 + $0x64] sm:$0xf]
      %v303 = vld [vmem:[%s263 + $0x68] sm:$0xf]
      %v304 = vld [vmem:[%s263 + $0x6c] sm:$0xf]
      %v305 = vld [vmem:[%s263 + $0x70] sm:$0xf]
      %v306 = vld [vmem:[%s263 + $0x74] sm:$0xf]
      %v307 = vld [vmem:[%s263 + $0x78] sm:$0xf]
      %v308 = vld [vmem:[%s263 + $0x7c] sm:$0xf]
      %v309 = vld [vmem:[%s263 + $0x80] sm:$0xf]
      %v310 = vld [vmem:[%s263 + $0x84] sm:$0xf]
      %v311 = vld [vmem:[%s263 + $0x88] sm:$0xf]
      %v312 = vld [vmem:[%s263 + $0x8c] sm:$0xf]
      %v313 = vld [vmem:[%s263 + $0x90] sm:$0xf]
      %v314 = vld [vmem:[%s263 + $0x94] sm:$0xf]
      %v315 = vld [vmem:[%s263 + $0x98] sm:$0xf]
      %v316 = vld [vmem:[%s263 + $0x9c] sm:$0xf]
      %v317 = vld [vmem:[%s263 + $0xa0] sm:$0xf]
      %v318 = vld [vmem:[%s263 + $0xa4] sm:$0xf]
      %v319 = vld [vmem:[%s263 + $0xa8] sm:$0xf]
      %v320 = vld [vmem:[%s263 + $0xac] sm:$0xf]
      %v321 = vld [vmem:[%s263 + $0xb0] sm:$0xf]
      %v322 = vld [vmem:[%s263 + $0xb4] sm:$0xf]
      %v323 = vld [vmem:[%s263 + $0xb8] sm:$0xf]
      %v324 = vld [vmem:[%s263 + $0xbc] sm:$0xf]
      %v325 = vld [vmem:[%s263 + $0xc0] sm:$0xf]
      %v326 = vld [vmem:[%s263 + $0xc4] sm:$0xf]
      %v327 = vld [vmem:[%s263 + $0xc8] sm:$0xf]
      %v328 = vld [vmem:[%s263 + $0xcc] sm:$0xf]
      %v329 = vld [vmem:[%s263 + $0xd0] sm:$0xf]
      %v330 = vld [vmem:[%s263 + $0xd4] sm:$0xf]
      %v331 = vld [vmem:[%s263 + $0xd8] sm:$0xf]
      %v332 = vld [vmem:[%s263 + $0xdc] sm:$0xf]
      %v333 = vld [vmem:[%s263 + $0xe0] sm:$0xf]
      %v334 = vld [vmem:[%s263 + $0xe4] sm:$0xf]
      %v335 = vld [vmem:[%s263 + $0xe8] sm:$0xf]
      %v336 = vld [vmem:[%s263 + $0xec] sm:$0xf]
      %v337 = vld [vmem:[%s263 + $0xf0] sm:$0xf]
      %v338 = vld [vmem:[%s263 + $0xf4] sm:$0xf]
      %v339 = vld [vmem:[%s263 + $0xf8] sm:$0xf]
      %v340 = vld [vmem:[%s263 + $0xfc] sm:$0xf]
      %v341 = vunpack.c.l.bf16 %v277
      %v342 = vunpack.c.l.bf16 %v278
      %v343 = vunpack.c.l.bf16 %v279
      %v344 = vunpack.c.l.bf16 %v280
      %v345 = vunpack.c.l.bf16 %v281
      %v346 = vunpack.c.l.bf16 %v282
      %v347 = vunpack.c.l.bf16 %v283
      %v348 = vunpack.c.l.bf16 %v284
      %v349 = vunpack.c.l.bf16 %v285
      %v350 = vunpack.c.l.bf16 %v286
      %v351 = vunpack.c.l.bf16 %v287
      %v352 = vunpack.c.l.bf16 %v288
      %v353 = vunpack.c.l.bf16 %v289
      %v354 = vunpack.c.l.bf16 %v290
      %v355 = vunpack.c.l.bf16 %v291
      %v356 = vunpack.c.l.bf16 %v292
      %v357 = vunpack.c.l.bf16 %v293
      %v358 = vunpack.c.l.bf16 %v294
      %v359 = vunpack.c.l.bf16 %v295
      %v360 = vunpack.c.l.bf16 %v296
      %v361 = vunpack.c.l.bf16 %v297
      %v362 = vunpack.c.l.bf16 %v298
      %v363 = vunpack.c.l.bf16 %v299
      %v364 = vunpack.c.l.bf16 %v300
      %v365 = vunpack.c.l.bf16 %v301
      %v366 = vunpack.c.l.bf16 %v302
      %v367 = vunpack.c.l.bf16 %v303
      %v368 = vunpack.c.l.bf16 %v304
      %v369 = vunpack.c.l.bf16 %v305
      %v370 = vunpack.c.l.bf16 %v306
      %v371 = vunpack.c.l.bf16 %v307
      %v372 = vunpack.c.l.bf16 %v308
      %v373 = vunpack.c.l.bf16 %v309
      %v374 = vunpack.c.l.bf16 %v310
      %v375 = vunpack.c.l.bf16 %v311
      %v376 = vunpack.c.l.bf16 %v312
      %v377 = vunpack.c.l.bf16 %v313
      %v378 = vunpack.c.l.bf16 %v314
      %v379 = vunpack.c.l.bf16 %v315
      %v380 = vunpack.c.l.bf16 %v316
      %v381 = vunpack.c.l.bf16 %v317
      %v382 = vunpack.c.l.bf16 %v318
      %v383 = vunpack.c.l.bf16 %v319
      %v384 = vunpack.c.l.bf16 %v320
      %v385 = vunpack.c.l.bf16 %v321
      %v386 = vunpack.c.l.bf16 %v322
      %v387 = vunpack.c.l.bf16 %v323
      %v388 = vunpack.c.l.bf16 %v324
      %v389 = vunpack.c.l.bf16 %v325
      %v390 = vunpack.c.l.bf16 %v326
      %v391 = vunpack.c.l.bf16 %v327
      %v392 = vunpack.c.l.bf16 %v328
      %v393 = vunpack.c.l.bf16 %v329
      %v394 = vunpack.c.l.bf16 %v330
      %v395 = vunpack.c.l.bf16 %v331
      %v396 = vunpack.c.l.bf16 %v332
      %v397 = vunpack.c.l.bf16 %v333
      %v398 = vunpack.c.l.bf16 %v334
      %v399 = vunpack.c.l.bf16 %v335
      %v400 = vunpack.c.l.bf16 %v336
      %v401 = vunpack.c.l.bf16 %v337
      %v402 = vunpack.c.l.bf16 %v338
      %v403 = vunpack.c.l.bf16 %v339
      %v404 = vunpack.c.l.bf16 %v340
      %v405 = vld [vmem:[%s1] sm:$0x1]
      %v407 = vlaneseq
      %v408 = vshrl.u32 %v407, 7
      %v409 = vsub.s32 0, %v408
      %v410 = vrot.slane %v405, %v409
      %v412 = vmul.f32 %v341, %v410
      %v413 = vmul.f32 %v342, %v410
      %v414 = vmul.f32 %v343, %v410
      %v415 = vmul.f32 %v344, %v410
      %v416 = vmul.f32 %v345, %v410
      %v417 = vmul.f32 %v346, %v410
      %v418 = vmul.f32 %v347, %v410
      %v419 = vmul.f32 %v348, %v410
      %v420 = vmul.f32 %v349, %v410
      %v421 = vmul.f32 %v350, %v410
      %v422 = vmul.f32 %v351, %v410
      %v423 = vmul.f32 %v352, %v410
      %v424 = vmul.f32 %v353, %v410
      %v425 = vmul.f32 %v354, %v410
      %v426 = vmul.f32 %v355, %v410
      %v427 = vmul.f32 %v356, %v410
      %v428 = vmul.f32 %v357, %v410
      %v429 = vmul.f32 %v358, %v410
      %v430 = vmul.f32 %v359, %v410
      %v431 = vmul.f32 %v360, %v410
      %v432 = vmul.f32 %v361, %v410
      %v433 = vmul.f32 %v362, %v410
      %v434 = vmul.f32 %v363, %v410
      %v435 = vmul.f32 %v364, %v410
      %v436 = vmul.f32 %v365, %v410
      %v437 = vmul.f32 %v366, %v410
      %v438 = vmul.f32 %v367, %v410
      %v439 = vmul.f32 %v368, %v410
      %v440 = vmul.f32 %v369, %v410
      %v441 = vmul.f32 %v370, %v410
      %v442 = vmul.f32 %v371, %v410
      %v443 = vmul.f32 %v372, %v410
      %v444 = vmul.f32 %v373, %v410
      %v445 = vmul.f32 %v374, %v410
      %v446 = vmul.f32 %v375, %v410
      %v447 = vmul.f32 %v376, %v410
      %v448 = vmul.f32 %v377, %v410
      %v449 = vmul.f32 %v378, %v410
      %v450 = vmul.f32 %v379, %v410
      %v451 = vmul.f32 %v380, %v410
      %v452 = vmul.f32 %v381, %v410
      %v453 = vmul.f32 %v382, %v410
      %v454 = vmul.f32 %v383, %v410
      %v455 = vmul.f32 %v384, %v410
      %v456 = vmul.f32 %v385, %v410
      %v457 = vmul.f32 %v386, %v410
      %v458 = vmul.f32 %v387, %v410
      %v459 = vmul.f32 %v388, %v410
      %v460 = vmul.f32 %v389, %v410
      %v461 = vmul.f32 %v390, %v410
      %v462 = vmul.f32 %v391, %v410
      %v463 = vmul.f32 %v392, %v410
      %v464 = vmul.f32 %v393, %v410
      %v465 = vmul.f32 %v394, %v410
      %v466 = vmul.f32 %v395, %v410
      %v467 = vmul.f32 %v396, %v410
      %v468 = vmul.f32 %v397, %v410
      %v469 = vmul.f32 %v398, %v410
      %v470 = vmul.f32 %v399, %v410
      %v471 = vmul.f32 %v400, %v410
      %v472 = vmul.f32 %v401, %v410
      %v473 = vmul.f32 %v402, %v410
      %v474 = vmul.f32 %v403, %v410
      %v475 = vmul.f32 %v404, %v410
      %v476 = vld [vmem:[%s2] sm:$0x1]
      %v478 = vlaneseq
      %v479 = vshrl.u32 %v478, 7
      %v480 = vsub.s32 0, %v479
      %v481 = vrot.slane %v476, %v480
      %v483 = vadd.f32 %v412, %v481
      %v484 = vadd.f32 %v413, %v481
      %v485 = vadd.f32 %v414, %v481
      %v486 = vadd.f32 %v415, %v481
      %v487 = vadd.f32 %v416, %v481
      %v488 = vadd.f32 %v417, %v481
      %v489 = vadd.f32 %v418, %v481
      %v490 = vadd.f32 %v419, %v481
      %v491 = vadd.f32 %v420, %v481
      %v492 = vadd.f32 %v421, %v481
      %v493 = vadd.f32 %v422, %v481
      %v494 = vadd.f32 %v423, %v481
      %v495 = vadd.f32 %v424, %v481
      %v496 = vadd.f32 %v425, %v481
      %v497 = vadd.f32 %v426, %v481
      %v498 = vadd.f32 %v427, %v481
      %v499 = vadd.f32 %v428, %v481
      %v500 = vadd.f32 %v429, %v481
      %v501 = vadd.f32 %v430, %v481
      %v502 = vadd.f32 %v431, %v481
      %v503 = vadd.f32 %v432, %v481
      %v504 = vadd.f32 %v433, %v481
      %v505 = vadd.f32 %v434, %v481
      %v506 = vadd.f32 %v435, %v481
      %v507 = vadd.f32 %v436, %v481
      %v508 = vadd.f32 %v437, %v481
      %v509 = vadd.f32 %v438, %v481
      %v510 = vadd.f32 %v439, %v481
      %v511 = vadd.f32 %v440, %v481
      %v512 = vadd.f32 %v441, %v481
      %v513 = vadd.f32 %v442, %v481
      %v514 = vadd.f32 %v443, %v481
      %v515 = vadd.f32 %v444, %v481
      %v516 = vadd.f32 %v445, %v481
      %v517 = vadd.f32 %v446, %v481
      %v518 = vadd.f32 %v447, %v481
      %v519 = vadd.f32 %v448, %v481
      %v520 = vadd.f32 %v449, %v481
      %v521 = vadd.f32 %v450, %v481
      %v522 = vadd.f32 %v451, %v481
      %v523 = vadd.f32 %v452, %v481
      %v524 = vadd.f32 %v453, %v481
      %v525 = vadd.f32 %v454, %v481
      %v526 = vadd.f32 %v455, %v481
      %v527 = vadd.f32 %v456, %v481
      %v528 = vadd.f32 %v457, %v481
      %v529 = vadd.f32 %v458, %v481
      %v530 = vadd.f32 %v459, %v481
      %v531 = vadd.f32 %v460, %v481
      %v532 = vadd.f32 %v461, %v481
      %v533 = vadd.f32 %v462, %v481
      %v534 = vadd.f32 %v463, %v481
      %v535 = vadd.f32 %v464, %v481
      %v536 = vadd.f32 %v465, %v481
      %v537 = vadd.f32 %v466, %v481
      %v538 = vadd.f32 %v467, %v481
      %v539 = vadd.f32 %v468, %v481
      %v540 = vadd.f32 %v469, %v481
      %v541 = vadd.f32 %v470, %v481
      %v542 = vadd.f32 %v471, %v481
      %v543 = vadd.f32 %v472, %v481
      %v544 = vadd.f32 %v473, %v481
      %v545 = vadd.f32 %v474, %v481
      %v546 = vadd.f32 %v475, %v481
      %v547 = vld [vmem:[%s269] sm:$0xf]
      %v548 = vld [vmem:[%s269 + $0x4] sm:$0xf]
      %v549 = vld [vmem:[%s269 + $0x8] sm:$0xf]
      %v550 = vld [vmem:[%s269 + $0xc] sm:$0xf]
      %v551 = vld [vmem:[%s269 + $0x10] sm:$0xf]
      %v552 = vld [vmem:[%s269 + $0x14] sm:$0xf]
      %v553 = vld [vmem:[%s269 + $0x18] sm:$0xf]
      %v554 = vld [vmem:[%s269 + $0x1c] sm:$0xf]
      %v555 = vld [vmem:[%s269 + $0x20] sm:$0xf]
      %v556 = vld [vmem:[%s269 + $0x24] sm:$0xf]
      %v557 = vld [vmem:[%s269 + $0x28] sm:$0xf]
      %v558 = vld [vmem:[%s269 + $0x2c] sm:$0xf]
      %v559 = vld [vmem:[%s269 + $0x30] sm:$0xf]
      %v560 = vld [vmem:[%s269 + $0x34] sm:$0xf]
      %v561 = vld [vmem:[%s269 + $0x38] sm:$0xf]
      %v562 = vld [vmem:[%s269 + $0x3c] sm:$0xf]
      %v563 = vld [vmem:[%s269 + $0x40] sm:$0xf]
      %v564 = vld [vmem:[%s269 + $0x44] sm:$0xf]
      %v565 = vld [vmem:[%s269 + $0x48] sm:$0xf]
      %v566 = vld [vmem:[%s269 + $0x4c] sm:$0xf]
      %v567 = vld [vmem:[%s269 + $0x50] sm:$0xf]
      %v568 = vld [vmem:[%s269 + $0x54] sm:$0xf]
      %v569 = vld [vmem:[%s269 + $0x58] sm:$0xf]
      %v570 = vld [vmem:[%s269 + $0x5c] sm:$0xf]
      %v571 = vld [vmem:[%s269 + $0x60] sm:$0xf]
      %v572 = vld [vmem:[%s269 + $0x64] sm:$0xf]
      %v573 = vld [vmem:[%s269 + $0x68] sm:$0xf]
      %v574 = vld [vmem:[%s269 + $0x6c] sm:$0xf]
      %v575 = vld [vmem:[%s269 + $0x70] sm:$0xf]
      %v576 = vld [vmem:[%s269 + $0x74] sm:$0xf]
      %v577 = vld [vmem:[%s269 + $0x78] sm:$0xf]
      %v578 = vld [vmem:[%s269 + $0x7c] sm:$0xf]
      %v579 = vld [vmem:[%s269 + $0x80] sm:$0xf]
      %v580 = vld [vmem:[%s269 + $0x84] sm:$0xf]
      %v581 = vld [vmem:[%s269 + $0x88] sm:$0xf]
      %v582 = vld [vmem:[%s269 + $0x8c] sm:$0xf]
      %v583 = vld [vmem:[%s269 + $0x90] sm:$0xf]
      %v584 = vld [vmem:[%s269 + $0x94] sm:$0xf]
      %v585 = vld [vmem:[%s269 + $0x98] sm:$0xf]
      %v586 = vld [vmem:[%s269 + $0x9c] sm:$0xf]
      %v587 = vld [vmem:[%s269 + $0xa0] sm:$0xf]
      %v588 = vld [vmem:[%s269 + $0xa4] sm:$0xf]
      %v589 = vld [vmem:[%s269 + $0xa8] sm:$0xf]
      %v590 = vld [vmem:[%s269 + $0xac] sm:$0xf]
      %v591 = vld [vmem:[%s269 + $0xb0] sm:$0xf]
      %v592 = vld [vmem:[%s269 + $0xb4] sm:$0xf]
      %v593 = vld [vmem:[%s269 + $0xb8] sm:$0xf]
      %v594 = vld [vmem:[%s269 + $0xbc] sm:$0xf]
      %v595 = vld [vmem:[%s269 + $0xc0] sm:$0xf]
      %v596 = vld [vmem:[%s269 + $0xc4] sm:$0xf]
      %v597 = vld [vmem:[%s269 + $0xc8] sm:$0xf]
      %v598 = vld [vmem:[%s269 + $0xcc] sm:$0xf]
      %v599 = vld [vmem:[%s269 + $0xd0] sm:$0xf]
      %v600 = vld [vmem:[%s269 + $0xd4] sm:$0xf]
      %v601 = vld [vmem:[%s269 + $0xd8] sm:$0xf]
      %v602 = vld [vmem:[%s269 + $0xdc] sm:$0xf]
      %v603 = vld [vmem:[%s269 + $0xe0] sm:$0xf]
      %v604 = vld [vmem:[%s269 + $0xe4] sm:$0xf]
      %v605 = vld [vmem:[%s269 + $0xe8] sm:$0xf]
      %v606 = vld [vmem:[%s269 + $0xec] sm:$0xf]
      %v607 = vld [vmem:[%s269 + $0xf0] sm:$0xf]
      %v608 = vld [vmem:[%s269 + $0xf4] sm:$0xf]
      %v609 = vld [vmem:[%s269 + $0xf8] sm:$0xf]
      %v610 = vld [vmem:[%s269 + $0xfc] sm:$0xf]
      %v611 = vunpack.c.l.bf16 %v547
      %v612 = vunpack.c.l.bf16 %v548
      %v613 = vunpack.c.l.bf16 %v549
      %v614 = vunpack.c.l.bf16 %v550
      %v615 = vunpack.c.l.bf16 %v551
      %v616 = vunpack.c.l.bf16 %v552
      %v617 = vunpack.c.l.bf16 %v553
      %v618 = vunpack.c.l.bf16 %v554
      %v619 = vunpack.c.l.bf16 %v555
      %v620 = vunpack.c.l.bf16 %v556
      %v621 = vunpack.c.l.bf16 %v557
      %v622 = vunpack.c.l.bf16 %v558
      %v623 = vunpack.c.l.bf16 %v559
      %v624 = vunpack.c.l.bf16 %v560
      %v625 = vunpack.c.l.bf16 %v561
      %v626 = vunpack.c.l.bf16 %v562
      %v627 = vunpack.c.l.bf16 %v563
      %v628 = vunpack.c.l.bf16 %v564
      %v629 = vunpack.c.l.bf16 %v565
      %v630 = vunpack.c.l.bf16 %v566
      %v631 = vunpack.c.l.bf16 %v567
      %v632 = vunpack.c.l.bf16 %v568
      %v633 = vunpack.c.l.bf16 %v569
      %v634 = vunpack.c.l.bf16 %v570
      %v635 = vunpack.c.l.bf16 %v571
      %v636 = vunpack.c.l.bf16 %v572
      %v637 = vunpack.c.l.bf16 %v573
      %v638 = vunpack.c.l.bf16 %v574
      %v639 = vunpack.c.l.bf16 %v575
      %v640 = vunpack.c.l.bf16 %v576
      %v641 = vunpack.c.l.bf16 %v577
      %v642 = vunpack.c.l.bf16 %v578
      %v643 = vunpack.c.l.bf16 %v579
      %v644 = vunpack.c.l.bf16 %v580
      %v645 = vunpack.c.l.bf16 %v581
      %v646 = vunpack.c.l.bf16 %v582
      %v647 = vunpack.c.l.bf16 %v583
      %v648 = vunpack.c.l.bf16 %v584
      %v649 = vunpack.c.l.bf16 %v585
      %v650 = vunpack.c.l.bf16 %v586
      %v651 = vunpack.c.l.bf16 %v587
      %v652 = vunpack.c.l.bf16 %v588
      %v653 = vunpack.c.l.bf16 %v589
      %v654 = vunpack.c.l.bf16 %v590
      %v655 = vunpack.c.l.bf16 %v591
      %v656 = vunpack.c.l.bf16 %v592
      %v657 = vunpack.c.l.bf16 %v593
      %v658 = vunpack.c.l.bf16 %v594
      %v659 = vunpack.c.l.bf16 %v595
      %v660 = vunpack.c.l.bf16 %v596
      %v661 = vunpack.c.l.bf16 %v597
      %v662 = vunpack.c.l.bf16 %v598
      %v663 = vunpack.c.l.bf16 %v599
      %v664 = vunpack.c.l.bf16 %v600
      %v665 = vunpack.c.l.bf16 %v601
      %v666 = vunpack.c.l.bf16 %v602
      %v667 = vunpack.c.l.bf16 %v603
      %v668 = vunpack.c.l.bf16 %v604
      %v669 = vunpack.c.l.bf16 %v605
      %v670 = vunpack.c.l.bf16 %v606
      %v671 = vunpack.c.l.bf16 %v607
      %v672 = vunpack.c.l.bf16 %v608
      %v673 = vunpack.c.l.bf16 %v609
      %v674 = vunpack.c.l.bf16 %v610
      %v675 = vld [vmem:[%s4] sm:$0x1]
      %v677 = vlaneseq
      %v678 = vshrl.u32 %v677, 7
      %v679 = vsub.s32 0, %v678
      %v680 = vrot.slane %v675, %v679
      %v682 = vmul.f32 %v611, %v680
      %v683 = vmul.f32 %v612, %v680
      %v684 = vmul.f32 %v613, %v680
      %v685 = vmul.f32 %v614, %v680
      %v686 = vmul.f32 %v615, %v680
      %v687 = vmul.f32 %v616, %v680
      %v688 = vmul.f32 %v617, %v680
      %v689 = vmul.f32 %v618, %v680
      %v690 = vmul.f32 %v619, %v680
      %v691 = vmul.f32 %v620, %v680
      %v692 = vmul.f32 %v621, %v680
      %v693 = vmul.f32 %v622, %v680
      %v694 = vmul.f32 %v623, %v680
      %v695 = vmul.f32 %v624, %v680
      %v696 = vmul.f32 %v625, %v680
      %v697 = vmul.f32 %v626, %v680
      %v698 = vmul.f32 %v627, %v680
      %v699 = vmul.f32 %v628, %v680
      %v700 = vmul.f32 %v629, %v680
      %v701 = vmul.f32 %v630, %v680
      %v702 = vmul.f32 %v631, %v680
      %v703 = vmul.f32 %v632, %v680
      %v704 = vmul.f32 %v633, %v680
      %v705 = vmul.f32 %v634, %v680
      %v706 = vmul.f32 %v635, %v680
      %v707 = vmul.f32 %v636, %v680
      %v708 = vmul.f32 %v637, %v680
      %v709 = vmul.f32 %v638, %v680
      %v710 = vmul.f32 %v639, %v680
      %v711 = vmul.f32 %v640, %v680
      %v712 = vmul.f32 %v641, %v680
      %v713 = vmul.f32 %v642, %v680
      %v714 = vmul.f32 %v643, %v680
      %v715 = vmul.f32 %v644, %v680
      %v716 = vmul.f32 %v645, %v680
      %v717 = vmul.f32 %v646, %v680
      %v718 = vmul.f32 %v647, %v680
      %v719 = vmul.f32 %v648, %v680
      %v720 = vmul.f32 %v649, %v680
      %v721 = vmul.f32 %v650, %v680
      %v722 = vmul.f32 %v651, %v680
      %v723 = vmul.f32 %v652, %v680
      %v724 = vmul.f32 %v653, %v680
      %v725 = vmul.f32 %v654, %v680
      %v726 = vmul.f32 %v655, %v680
      %v727 = vmul.f32 %v656, %v680
      %v728 = vmul.f32 %v657, %v680
      %v729 = vmul.f32 %v658, %v680
      %v730 = vmul.f32 %v659, %v680
      %v731 = vmul.f32 %v660, %v680
      %v732 = vmul.f32 %v661, %v680
      %v733 = vmul.f32 %v662, %v680
      %v734 = vmul.f32 %v663, %v680
      %v735 = vmul.f32 %v664, %v680
      %v736 = vmul.f32 %v665, %v680
      %v737 = vmul.f32 %v666, %v680
      %v738 = vmul.f32 %v667, %v680
      %v739 = vmul.f32 %v668, %v680
      %v740 = vmul.f32 %v669, %v680
      %v741 = vmul.f32 %v670, %v680
      %v742 = vmul.f32 %v671, %v680
      %v743 = vmul.f32 %v672, %v680
      %v744 = vmul.f32 %v673, %v680
      %v745 = vmul.f32 %v674, %v680
      %v746 = vld [vmem:[%s5] sm:$0x1]
      %v748 = vlaneseq
      %v749 = vshrl.u32 %v748, 7
      %v750 = vsub.s32 0, %v749
      %v751 = vrot.slane %v746, %v750
      %v753 = vadd.f32 %v682, %v751
      %v754 = vadd.f32 %v683, %v751
      %v755 = vadd.f32 %v684, %v751
      %v756 = vadd.f32 %v685, %v751
      %v757 = vadd.f32 %v686, %v751
      %v758 = vadd.f32 %v687, %v751
      %v759 = vadd.f32 %v688, %v751
      %v760 = vadd.f32 %v689, %v751
      %v761 = vadd.f32 %v690, %v751
      %v762 = vadd.f32 %v691, %v751
      %v763 = vadd.f32 %v692, %v751
      %v764 = vadd.f32 %v693, %v751
      %v765 = vadd.f32 %v694, %v751
      %v766 = vadd.f32 %v695, %v751
      %v767 = vadd.f32 %v696, %v751
      %v768 = vadd.f32 %v697, %v751
      %v769 = vadd.f32 %v698, %v751
      %v770 = vadd.f32 %v699, %v751
      %v771 = vadd.f32 %v700, %v751
      %v772 = vadd.f32 %v701, %v751
      %v773 = vadd.f32 %v702, %v751
      %v774 = vadd.f32 %v703, %v751
      %v775 = vadd.f32 %v704, %v751
      %v776 = vadd.f32 %v705, %v751
      %v777 = vadd.f32 %v706, %v751
      %v778 = vadd.f32 %v707, %v751
      %v779 = vadd.f32 %v708, %v751
      %v780 = vadd.f32 %v709, %v751
      %v781 = vadd.f32 %v710, %v751
      %v782 = vadd.f32 %v711, %v751
      %v783 = vadd.f32 %v712, %v751
      %v784 = vadd.f32 %v713, %v751
      %v785 = vadd.f32 %v714, %v751
      %v786 = vadd.f32 %v715, %v751
      %v787 = vadd.f32 %v716, %v751
      %v788 = vadd.f32 %v717, %v751
      %v789 = vadd.f32 %v718, %v751
      %v790 = vadd.f32 %v719, %v751
      %v791 = vadd.f32 %v720, %v751
      %v792 = vadd.f32 %v721, %v751
      %v793 = vadd.f32 %v722, %v751
      %v794 = vadd.f32 %v723, %v751
      %v795 = vadd.f32 %v724, %v751
      %v796 = vadd.f32 %v725, %v751
      %v797 = vadd.f32 %v726, %v751
      %v798 = vadd.f32 %v727, %v751
      %v799 = vadd.f32 %v728, %v751
      %v800 = vadd.f32 %v729, %v751
      %v801 = vadd.f32 %v730, %v751
      %v802 = vadd.f32 %v731, %v751
      %v803 = vadd.f32 %v732, %v751
      %v804 = vadd.f32 %v733, %v751
      %v805 = vadd.f32 %v734, %v751
      %v806 = vadd.f32 %v735, %v751
      %v807 = vadd.f32 %v736, %v751
      %v808 = vadd.f32 %v737, %v751
      %v809 = vadd.f32 %v738, %v751
      %v810 = vadd.f32 %v739, %v751
      %v811 = vadd.f32 %v740, %v751
      %v812 = vadd.f32 %v741, %v751
      %v813 = vadd.f32 %v742, %v751
      %v814 = vadd.f32 %v743, %v751
      %v815 = vadd.f32 %v744, %v751
      %v816 = vadd.f32 %v745, %v751
      %v817 = vadd.f32 %v483, %v753
      %v818 = vadd.f32 %v484, %v754
      %v819 = vadd.f32 %v485, %v755
      %v820 = vadd.f32 %v486, %v756
      %v821 = vadd.f32 %v487, %v757
      %v822 = vadd.f32 %v488, %v758
      %v823 = vadd.f32 %v489, %v759
      %v824 = vadd.f32 %v490, %v760
      %v825 = vadd.f32 %v491, %v761
      %v826 = vadd.f32 %v492, %v762
      %v827 = vadd.f32 %v493, %v763
      %v828 = vadd.f32 %v494, %v764
      %v829 = vadd.f32 %v495, %v765
      %v830 = vadd.f32 %v496, %v766
      %v831 = vadd.f32 %v497, %v767
      %v832 = vadd.f32 %v498, %v768
      %v833 = vadd.f32 %v499, %v769
      %v834 = vadd.f32 %v500, %v770
      %v835 = vadd.f32 %v501, %v771
      %v836 = vadd.f32 %v502, %v772
      %v837 = vadd.f32 %v503, %v773
      %v838 = vadd.f32 %v504, %v774
      %v839 = vadd.f32 %v505, %v775
      %v840 = vadd.f32 %v506, %v776
      %v841 = vadd.f32 %v507, %v777
      %v842 = vadd.f32 %v508, %v778
      %v843 = vadd.f32 %v509, %v779
      %v844 = vadd.f32 %v510, %v780
      %v845 = vadd.f32 %v511, %v781
      %v846 = vadd.f32 %v512, %v782
      %v847 = vadd.f32 %v513, %v783
      %v848 = vadd.f32 %v514, %v784
      %v849 = vadd.f32 %v515, %v785
      %v850 = vadd.f32 %v516, %v786
      %v851 = vadd.f32 %v517, %v787
      %v852 = vadd.f32 %v518, %v788
      %v853 = vadd.f32 %v519, %v789
      %v854 = vadd.f32 %v520, %v790
      %v855 = vadd.f32 %v521, %v791
      %v856 = vadd.f32 %v522, %v792
      %v857 = vadd.f32 %v523, %v793
      %v858 = vadd.f32 %v524, %v794
      %v859 = vadd.f32 %v525, %v795
      %v860 = vadd.f32 %v526, %v796
      %v861 = vadd.f32 %v527, %v797
      %v862 = vadd.f32 %v528, %v798
      %v863 = vadd.f32 %v529, %v799
      %v864 = vadd.f32 %v530, %v800
      %v865 = vadd.f32 %v531, %v801
      %v866 = vadd.f32 %v532, %v802
      %v867 = vadd.f32 %v533, %v803
      %v868 = vadd.f32 %v534, %v804
      %v869 = vadd.f32 %v535, %v805
      %v870 = vadd.f32 %v536, %v806
      %v871 = vadd.f32 %v537, %v807
      %v872 = vadd.f32 %v538, %v808
      %v873 = vadd.f32 %v539, %v809
      %v874 = vadd.f32 %v540, %v810
      %v875 = vadd.f32 %v541, %v811
      %v876 = vadd.f32 %v542, %v812
      %v877 = vadd.f32 %v543, %v813
      %v878 = vadd.f32 %v544, %v814
      %v879 = vadd.f32 %v545, %v815
      %v880 = vadd.f32 %v546, %v816
      %v881 = vmax.f32 %v817, 0.0
      %v882 = vmax.f32 %v818, 0.0
      %v883 = vmax.f32 %v819, 0.0
      %v884 = vmax.f32 %v820, 0.0
      %v885 = vmax.f32 %v821, 0.0
      %v886 = vmax.f32 %v822, 0.0
      %v887 = vmax.f32 %v823, 0.0
      %v888 = vmax.f32 %v824, 0.0
      %v889 = vmax.f32 %v825, 0.0
      %v890 = vmax.f32 %v826, 0.0
      %v891 = vmax.f32 %v827, 0.0
      %v892 = vmax.f32 %v828, 0.0
      %v893 = vmax.f32 %v829, 0.0
      %v894 = vmax.f32 %v830, 0.0
      %v895 = vmax.f32 %v831, 0.0
      %v896 = vmax.f32 %v832, 0.0
      %v897 = vmax.f32 %v833, 0.0
      %v898 = vmax.f32 %v834, 0.0
      %v899 = vmax.f32 %v835, 0.0
      %v900 = vmax.f32 %v836, 0.0
      %v901 = vmax.f32 %v837, 0.0
      %v902 = vmax.f32 %v838, 0.0
      %v903 = vmax.f32 %v839, 0.0
      %v904 = vmax.f32 %v840, 0.0
      %v905 = vmax.f32 %v841, 0.0
      %v906 = vmax.f32 %v842, 0.0
      %v907 = vmax.f32 %v843, 0.0
      %v908 = vmax.f32 %v844, 0.0
      %v909 = vmax.f32 %v845, 0.0
      %v910 = vmax.f32 %v846, 0.0
      %v911 = vmax.f32 %v847, 0.0
      %v912 = vmax.f32 %v848, 0.0
      %v913 = vmax.f32 %v849, 0.0
      %v914 = vmax.f32 %v850, 0.0
      %v915 = vmax.f32 %v851, 0.0
      %v916 = vmax.f32 %v852, 0.0
      %v917 = vmax.f32 %v853, 0.0
      %v918 = vmax.f32 %v854, 0.0
      %v919 = vmax.f32 %v855, 0.0
      %v920 = vmax.f32 %v856, 0.0
      %v921 = vmax.f32 %v857, 0.0
      %v922 = vmax.f32 %v858, 0.0
      %v923 = vmax.f32 %v859, 0.0
      %v924 = vmax.f32 %v860, 0.0
      %v925 = vmax.f32 %v861, 0.0
      %v926 = vmax.f32 %v862, 0.0
      %v927 = vmax.f32 %v863, 0.0
      %v928 = vmax.f32 %v864, 0.0
      %v929 = vmax.f32 %v865, 0.0
      %v930 = vmax.f32 %v866, 0.0
      %v931 = vmax.f32 %v867, 0.0
      %v932 = vmax.f32 %v868, 0.0
      %v933 = vmax.f32 %v869, 0.0
      %v934 = vmax.f32 %v870, 0.0
      %v935 = vmax.f32 %v871, 0.0
      %v936 = vmax.f32 %v872, 0.0
      %v937 = vmax.f32 %v873, 0.0
      %v938 = vmax.f32 %v874, 0.0
      %v939 = vmax.f32 %v875, 0.0
      %v940 = vmax.f32 %v876, 0.0
      %v941 = vmax.f32 %v877, 0.0
      %v942 = vmax.f32 %v878, 0.0
      %v943 = vmax.f32 %v879, 0.0
      %v944 = vmax.f32 %v880, 0.0
      %945 = vst [vmem:[%s275] sm:$0xff] %v881
      %946 = vst [vmem:[%s275 + $0x8] sm:$0xff] %v882
      %947 = vst [vmem:[%s275 + $0x10] sm:$0xff] %v883
      %948 = vst [vmem:[%s275 + $0x18] sm:$0xff] %v884
      %949 = vst [vmem:[%s275 + $0x20] sm:$0xff] %v885
      %950 = vst [vmem:[%s275 + $0x28] sm:$0xff] %v886
      %951 = vst [vmem:[%s275 + $0x30] sm:$0xff] %v887
      %952 = vst [vmem:[%s275 + $0x38] sm:$0xff] %v888
      %953 = vst [vmem:[%s275 + $0x40] sm:$0xff] %v889
      %954 = vst [vmem:[%s275 + $0x48] sm:$0xff] %v890
      %955 = vst [vmem:[%s275 + $0x50] sm:$0xff] %v891
      %956 = vst [vmem:[%s275 + $0x58] sm:$0xff] %v892
      %957 = vst [vmem:[%s275 + $0x60] sm:$0xff] %v893
      %958 = vst [vmem:[%s275 + $0x68] sm:$0xff] %v894
      %959 = vst [vmem:[%s275 + $0x70] sm:$0xff] %v895
      %960 = vst [vmem:[%s275 + $0x78] sm:$0xff] %v896
      %961 = vst [vmem:[%s275 + $0x80] sm:$0xff] %v897
      %962 = vst [vmem:[%s275 + $0x88] sm:$0xff] %v898
      %963 = vst [vmem:[%s275 + $0x90] sm:$0xff] %v899
      %964 = vst [vmem:[%s275 + $0x98] sm:$0xff] %v900
      %965 = vst [vmem:[%s275 + $0xa0] sm:$0xff] %v901
      %966 = vst [vmem:[%s275 + $0xa8] sm:$0xff] %v902
      %967 = vst [vmem:[%s275 + $0xb0] sm:$0xff] %v903
      %968 = vst [vmem:[%s275 + $0xb8] sm:$0xff] %v904
      %969 = vst [vmem:[%s275 + $0xc0] sm:$0xff] %v905
      %970 = vst [vmem:[%s275 + $0xc8] sm:$0xff] %v906
      %971 = vst [vmem:[%s275 + $0xd0] sm:$0xff] %v907
      %972 = vst [vmem:[%s275 + $0xd8] sm:$0xff] %v908
      %973 = vst [vmem:[%s275 + $0xe0] sm:$0xff] %v909
      %974 = vst [vmem:[%s275 + $0xe8] sm:$0xff] %v910
      %975 = vst [vmem:[%s275 + $0xf0] sm:$0xff] %v911
      %976 = vst [vmem:[%s275 + $0xf8] sm:$0xff] %v912
      %977 = vst [vmem:[%s275 + $0x100] sm:$0xff] %v913
      %978 = vst [vmem:[%s275 + $0x108] sm:$0xff] %v914
      %979 = vst [vmem:[%s275 + $0x110] sm:$0xff] %v915
      %980 = vst [vmem:[%s275 + $0x118] sm:$0xff] %v916
      %981 = vst [vmem:[%s275 + $0x120] sm:$0xff] %v917
      %982 = vst [vmem:[%s275 + $0x128] sm:$0xff] %v918
      %983 = vst [vmem:[%s275 + $0x130] sm:$0xff] %v919
      %984 = vst [vmem:[%s275 + $0x138] sm:$0xff] %v920
      %985 = vst [vmem:[%s275 + $0x140] sm:$0xff] %v921
      %986 = vst [vmem:[%s275 + $0x148] sm:$0xff] %v922
      %987 = vst [vmem:[%s275 + $0x150] sm:$0xff] %v923
      %988 = vst [vmem:[%s275 + $0x158] sm:$0xff] %v924
      %989 = vst [vmem:[%s275 + $0x160] sm:$0xff] %v925
      %990 = vst [vmem:[%s275 + $0x168] sm:$0xff] %v926
      %991 = vst [vmem:[%s275 + $0x170] sm:$0xff] %v927
      %992 = vst [vmem:[%s275 + $0x178] sm:$0xff] %v928
      %993 = vst [vmem:[%s275 + $0x180] sm:$0xff] %v929
      %994 = vst [vmem:[%s275 + $0x188] sm:$0xff] %v930
      %995 = vst [vmem:[%s275 + $0x190] sm:$0xff] %v931
      %996 = vst [vmem:[%s275 + $0x198] sm:$0xff] %v932
      %997 = vst [vmem:[%s275 + $0x1a0] sm:$0xff] %v933
      %998 = vst [vmem:[%s275 + $0x1a8] sm:$0xff] %v934
      %999 = vst [vmem:[%s275 + $0x1b0] sm:$0xff] %v935
      %1000 = vst [vmem:[%s275 + $0x1b8] sm:$0xff] %v936
      %1001 = vst [vmem:[%s275 + $0x1c0] sm:$0xff] %v937
      %1002 = vst [vmem:[%s275 + $0x1c8] sm:$0xff] %v938
      %1003 = vst [vmem:[%s275 + $0x1d0] sm:$0xff] %v939
      %1004 = vst [vmem:[%s275 + $0x1d8] sm:$0xff] %v940
      %1005 = vst [vmem:[%s275 + $0x1e0] sm:$0xff] %v941
      %1006 = vst [vmem:[%s275 + $0x1e8] sm:$0xff] %v942
      %1007 = vst [vmem:[%s275 + $0x1f0] sm:$0xff] %v943
      %1008 = vst [vmem:[%s275 + $0x1f8] sm:$0xff] %v944
      %s1009 = smul.u32 64, %s17
      %p1010 = scmp.lt.s32.totalorder %s1009, 127
      %s1011 = scalar_select %p1010, %s1009, 127
      %s1012 = smul.addr %s1011, 8
      %s1013 = scalar_lea.vmem %s6, %s1012
      // Predicated region
      $region45: #{dilated_residual_unit_3d.7} parent=43 // pred_check
        %p1014 = pneg %p171
      $region46: #{dilated_residual_unit_3d.7} parent=43 // pred_check_branch
        %1016 = sbr.rel (%p1014) target = $region48
      $region47: #{dilated_residual_unit_3d.7} parent=43 // pred_region
        %s1017 = smul.u32 64, %s17
      $region48: #{dilated_residual_unit_3d.7} parent=43 // pred_fallthru
        _
    $region44: #{dilated_residual_unit_3d.7} parent=5 // pred_fallthru
      _
    %p1018 = scmp.le.s32.totalorder 2, %s12
    // Predicated region
    $region49: #{dilated_residual_unit_3d.7} parent=5 // pred_check
      %p1019 = pneg %p1018
    $region50: #{dilated_residual_unit_3d.7} parent=5 // pred_check_branch
      %1021 = sbr.rel (%p1019) target = $region52
    $region51: #{dilated_residual_unit_3d.7} parent=5 // pred_region
      %s1022 = ssub.s32 %s12, 2
      // Predicated region
      $region53: #{dilated_residual_unit_3d.7} parent=51 // pred_check
        %p1023 = pneg %p177
      $region54: #{dilated_residual_unit_3d.7} parent=51 // pred_check_branch
        %1025 = sbr.rel (%p1023) target = $region56
      $region55: #{dilated_residual_unit_3d.7} parent=51 // pred_region
        %s1026 = smul.u32 64, %s18
        %p1027 = scmp.lt.s32.totalorder %s1026, 127
        %s1028 = scalar_select %p1027, %s1026, 127
        %s1029 = smul.addr %s1028, 8
        %s1030 = scalar_lea.vmem %s6, %s1029
      $region56: #{dilated_residual_unit_3d.7} parent=51 // pred_fallthru
        _
    $region52: #{dilated_residual_unit_3d.7} parent=5 // pred_fallthru
      _
  $region6: #{dilated_residual_unit_3d.7} parent=0 // loop_footer
    %s16 = sadd.s32 1, %s12
  $region7: #{dilated_residual_unit_3d.7} parent=0 // loop_footer_branch
    %11 = sbr.rel target = $region3
  $region8: #{dilated_residual_unit_3d.7} parent=0 // loop_exit
    _

// kernel: dilated_residual_unit_3d.6
$region0: #{dilated_residual_unit_3d.6}
  #allocation0 [shape = 'u32[]', space=smem, size = 0x4, offset = 0x4, fixed_abs, tag = 'smem constant byte address 0x4 - core index']
  #allocation1 [shape = 'u32[144,128]{1,0:T(1,128)}', space=vmem, size = 0x12000, scoped, tag = 'internal scratch']
  %s0 = inlined_call_operand.vmem [shape: bf16[1024,128], index: 0, kind: input, shape index: {}]
  %s1 = inlined_call_operand.vmem [shape: f32[1,128], index: 1, kind: input, shape index: {}]
  %s2 = inlined_call_operand.vmem [shape: f32[1,128], index: 2, kind: input, shape index: {}]
  %s3 = inlined_call_operand.vmem [shape: bf16[128,128], index: 3, kind: input, shape index: {}]
  %s4 = inlined_call_operand.vmem [shape: bf16[1024,128], index: 4, kind: output, shape index: {0}]
  %s5 = inlined_call_operand.vmem [shape: f32[2,8,128], index: 5, kind: output, shape index: {1}]
  %6 = xla_tuple %s4, %s5
  %s7 = sld [smem:[#allocation0]]
  $region57: #{dilated_residual_unit_3d.6} parent=0
    _
  %s9 = ssub.s32 1, %s7
  %s10 = scalar_select 0, %s9, %s7
  loop: start=0, step=1, limit=4
  $region2: #{dilated_residual_unit_3d.6} parent=0 // loop_pre_header
    _
  $region3: #{dilated_residual_unit_3d.6} parent=0 // loop_header
    %s12 = sphi 0, %s16
    %p13 = scmp.ge.s32.totalorder %s12, 4
    %s22 = sphi 0, %s24
    %s25 = sphi 0, %s22
    %s26 = sphi 0, %s25
    %s42 = sphi 0, %s26
    %s46 = sphi 0, %s46
    %s48 = sphi 0, %s46
    %s49 = sphi 0, %s48
    %s63 = sphi 0, %s49
    %s67 = sphi 0, %s67
    %s69 = sphi 0, %s67
    %s70 = sphi 0, %s69
    %s84 = sphi 0, %s70
    %s88 = sphi 0, %s88
    %s90 = sphi 0, %s88
    %s91 = sphi 0, %s90
    %s105 = sphi 0, %s91
    %s111 = sphi 0, %s113
    %s114 = sphi 0, %s111
    %s115 = sphi 0, %s114
    %s131 = sphi 0, %s115
    %s137 = sphi 0, %s139
    %s140 = sphi 0, %s137
    %s141 = sphi 0, %s140
    %s157 = sphi 0, %s141
  $region4: #{dilated_residual_unit_3d.6} parent=0 // loop_header_branch
    %15 = sbr.rel (%p13) target = $region8
  $region5: #{dilated_residual_unit_3d.6} parent=0 // loop_body
    %s17 = ssub.s32 %s12, 1
    %s18 = ssub.s32 %s12, 2
    %s19 = sadd.s32 %s12, 1
    %s20 = ssub.s32 %s12, %s19
    %p21 = scmp.eq.s32.totalorder %s20, 0
    %s23 = sadd.s32 %s22, 1
    %s24 = scalar_select %p21, %s22, %s23
    %p27 = pneg %p21
    %p28 = scmp.eq.s32.totalorder %s12, 1
    %p29 = por %p27, %p28
    %p30 = scmp.ne.s32.totalorder %s22, %s25
    %p31 = scmp.eq.s32.totalorder %s12, 0
    %p32 = por %p30, %p31
    %p33 = scmp.ne.s32.totalorder %s22, %s25
    %p34 = scmp.eq.s32.totalorder %s17, 1
    %p35 = por %p33, %p34
    %p36 = scmp.ne.s32.totalorder %s25, %s26
    %p37 = scmp.eq.s32.totalorder %s17, 0
    %p38 = por %p36, %p37
    %p39 = scmp.ne.s32.totalorder %s25, %s26
    %p40 = scmp.eq.s32.totalorder %s18, 1
    %p41 = por %p39, %p40
    %p43 = scmp.ne.s32.totalorder %s26, %s42
    %p44 = scmp.eq.s32.totalorder %s18, 0
    %p45 = por %p43, %p44
    %s47 = sadd.s32 %s46, 1
    %p50 = scmp.eq.s32.totalorder %s12, 1
    %p51 = scmp.ne.s32.totalorder %s46, %s48
    %p52 = scmp.eq.s32.totalorder %s12, 0
    %p53 = por %p51, %p52
    %p54 = scmp.ne.s32.totalorder %s46, %s48
    %p55 = scmp.eq.s32.totalorder %s17, 1
    %p56 = por %p54, %p55
    %p57 = scmp.ne.s32.totalorder %s48, %s49
    %p58 = scmp.eq.s32.totalorder %s17, 0
    %p59 = por %p57, %p58
    %p60 = scmp.ne.s32.totalorder %s48, %s49
    %p61 = scmp.eq.s32.totalorder %s18, 1
    %p62 = por %p60, %p61
    %p64 = scmp.ne.s32.totalorder %s49, %s63
    %p65 = scmp.eq.s32.totalorder %s18, 0
    %p66 = por %p64, %p65
    %s68 = sadd.s32 %s67, 1
    %p71 = scmp.eq.s32.totalorder %s12, 1
    %p72 = scmp.ne.s32.totalorder %s67, %s69
    %p73 = scmp.eq.s32.totalorder %s12, 0
    %p74 = por %p72, %p73
    %p75 = scmp.ne.s32.totalorder %s67, %s69
    %p76 = scmp.eq.s32.totalorder %s17, 1
    %p77 = por %p75, %p76
    %p78 = scmp.ne.s32.totalorder %s69, %s70
    %p79 = scmp.eq.s32.totalorder %s17, 0
    %p80 = por %p78, %p79
    %p81 = scmp.ne.s32.totalorder %s69, %s70
    %p82 = scmp.eq.s32.totalorder %s18, 1
    %p83 = por %p81, %p82
    %p85 = scmp.ne.s32.totalorder %s70, %s84
    %p86 = scmp.eq.s32.totalorder %s18, 0
    %p87 = por %p85, %p86
    %s89 = sadd.s32 %s88, 1
    %p92 = scmp.eq.s32.totalorder %s12, 1
    %p93 = scmp.ne.s32.totalorder %s88, %s90
    %p94 = scmp.eq.s32.totalorder %s12, 0
    %p95 = por %p93, %p94
    %p96 = scmp.ne.s32.totalorder %s88, %s90
    %p97 = scmp.eq.s32.totalorder %s17, 1
    %p98 = por %p96, %p97
    %p99 = scmp.ne.s32.totalorder %s90, %s91
    %p100 = scmp.eq.s32.totalorder %s17, 0
    %p101 = por %p99, %p100
    %p102 = scmp.ne.s32.totalorder %s90, %s91
    %p103 = scmp.eq.s32.totalorder %s18, 1
    %p104 = por %p102, %p103
    %p106 = scmp.ne.s32.totalorder %s91, %s105
    %p107 = scmp.eq.s32.totalorder %s18, 0
    %p108 = por %p106, %p107
    %s109 = ssub.s32 %s12, %s19
    %p110 = scmp.eq.s32.totalorder %s109, 0
    %s112 = sadd.s32 %s111, 1
    %s113 = scalar_select %p110, %s111, %s112
    %p116 = pneg %p110
    %p117 = scmp.eq.s32.totalorder %s12, 1
    %p118 = por %p116, %p117
    %p119 = scmp.ne.s32.totalorder %s111, %s114
    %p120 = scmp.eq.s32.totalorder %s12, 0
    %p121 = por %p119, %p120
    %p122 = scmp.ne.s32.totalorder %s111, %s114
    %p123 = scmp.eq.s32.totalorder %s17, 1
    %p124 = por %p122, %p123
    %p125 = scmp.ne.s32.totalorder %s114, %s115
    %p126 = scmp.eq.s32.totalorder %s17, 0
    %p127 = por %p125, %p126
    %p128 = scmp.ne.s32.totalorder %s114, %s115
    %p129 = scmp.eq.s32.totalorder %s18, 1
    %p130 = por %p128, %p129
    %p132 = scmp.ne.s32.totalorder %s115, %s131
    %p133 = scmp.eq.s32.totalorder %s18, 0
    %p134 = por %p132, %p133
    %s135 = ssub.s32 %s12, %s19
    %p136 = scmp.eq.s32.totalorder %s135, 0
    %s138 = sadd.s32 %s137, 1
    %s139 = scalar_select %p136, %s137, %s138
    %p142 = pneg %p136
    %p143 = scmp.eq.s32.totalorder %s12, 1
    %p144 = por %p142, %p143
    %p145 = scmp.ne.s32.totalorder %s137, %s140
    %p146 = scmp.eq.s32.totalorder %s12, 0
    %p147 = por %p145, %p146
    %p148 = scmp.ne.s32.totalorder %s137, %s140
    %p149 = scmp.eq.s32.totalorder %s17, 1
    %p150 = por %p148, %p149
    %p151 = scmp.ne.s32.totalorder %s140, %s141
    %p152 = scmp.eq.s32.totalorder %s17, 0
    %p153 = por %p151, %p152
    %p154 = scmp.ne.s32.totalorder %s140, %s141
    %p155 = scmp.eq.s32.totalorder %s18, 1
    %p156 = por %p154, %p155
    %p158 = scmp.ne.s32.totalorder %s141, %s157
    %p159 = scmp.eq.s32.totalorder %s18, 0
    %p160 = por %p158, %p159
    %p161 = scmp.le.s32.totalorder 1, %s12
    %p162 = scmp.lt.s32.totalorder %s12, 3
    %p163 = pnand %p161, %p162
    %p164 = pneg %p163
    // Predicated region
    $region9: #{dilated_residual_unit_3d.6} parent=5 // pred_check
      _
    $region10: #{dilated_residual_unit_3d.6} parent=5 // pred_check_branch
      %166 = sbr.rel (%p163) target = $region12
    $region11: #{dilated_residual_unit_3d.6} parent=5 // pred_region
      %s167 = ssub.s32 %s12, 1
      // Predicated region
      $region13: #{dilated_residual_unit_3d.6} parent=11 // pred_check
        %p168 = pneg %p59
      $region14: #{dilated_residual_unit_3d.6} parent=11 // pred_check_branch
        %170 = sbr.rel (%p168) target = $region16
      $region15: #{dilated_residual_unit_3d.6} parent=11 // pred_region
        _
      $region16: #{dilated_residual_unit_3d.6} parent=11 // pred_fallthru
        _
      // Predicated region
      $region17: #{dilated_residual_unit_3d.6} parent=11 // pred_check
        %p171 = pneg %p80
      $region18: #{dilated_residual_unit_3d.6} parent=11 // pred_check_branch
        %173 = sbr.rel (%p171) target = $region20
      $region19: #{dilated_residual_unit_3d.6} parent=11 // pred_region
        _
      $region20: #{dilated_residual_unit_3d.6} parent=11 // pred_fallthru
        _
      // Predicated region
      $region21: #{dilated_residual_unit_3d.6} parent=11 // pred_check
        %p174 = pneg %p101
      $region22: #{dilated_residual_unit_3d.6} parent=11 // pred_check_branch
        %176 = sbr.rel (%p174) target = $region24
      $region23: #{dilated_residual_unit_3d.6} parent=11 // pred_region
        _
      $region24: #{dilated_residual_unit_3d.6} parent=11 // pred_fallthru
        _
    $region12: #{dilated_residual_unit_3d.6} parent=5 // pred_fallthru
      _
    %p177 = scmp.lt.s32.totalorder %s12, 2
    // Predicated region
    $region25: #{dilated_residual_unit_3d.6} parent=5 // pred_check
      %p178 = pneg %p177
    $region26: #{dilated_residual_unit_3d.6} parent=5 // pred_check_branch
      %180 = sbr.rel (%p178) target = $region28
    $region27: #{dilated_residual_unit_3d.6} parent=5 // pred_region
      // Predicated region
      $region29: #{dilated_residual_unit_3d.6} parent=27 // pred_check
        %p181 = pneg %p32
      $region30: #{dilated_residual_unit_3d.6} parent=27 // pred_check_branch
        %183 = sbr.rel (%p181) target = $region32
      $region31: #{dilated_residual_unit_3d.6} parent=27 // pred_region
        %s184 = smul.u32 64, %s12
        %p185 = scmp.lt.s32.totalorder %s184, 127
        %s186 = scalar_select %p185, %s184, 127
        %s187 = smul.addr %s186, 4
        %s188 = scalar_lea.vmem %s0, %s187
        %s189 = smul.u32 64, %s12
      $region32: #{dilated_residual_unit_3d.6} parent=27 // pred_fallthru
        _
    $region28: #{dilated_residual_unit_3d.6} parent=5 // pred_fallthru
      _
    %p190 = scmp.le.s32.totalorder 1, %s12
    %p191 = scmp.lt.s32.totalorder %s12, 3
    %p192 = pnand %p190, %p191
    %p193 = pneg %p192
    // Predicated region
    $region33: #{dilated_residual_unit_3d.6} parent=5 // pred_check
      _
    $region34: #{dilated_residual_unit_3d.6} parent=5 // pred_check_branch
      %195 = sbr.rel (%p192) target = $region36
    $region35: #{dilated_residual_unit_3d.6} parent=5 // pred_region
      %s196 = ssub.s32 %s12, 1
      %s197 = smul.u32 64, %s17
      %p198 = scmp.lt.s32.totalorder %s197, 127
      %s199 = scalar_select %p198, %s197, 127
      %s200 = smul.addr %s199, 4
      %s201 = scalar_lea.vmem %s0, %s200
      %p202 = pneg %p38
      %p203 = pneg %p35
      %p204 = pneg %p59
      %p205 = pneg %p56
      %p206 = pneg %p80
      %p207 = pneg %p77
      %p208 = pneg %p101
      %p209 = pneg %p98
      %p210 = pneg %p127
      %p211 = pneg %p124
      %s212 = smul.u32 64, %s17
      %p213 = scmp.lt.s32.totalorder %s212, 127
      %s214 = scalar_select %p213, %s212, 127
      %s215 = smul.addr %s214, 4
      %s216 = scalar_lea.vmem %s4, %s215
      %p217 = pneg %p153
      %p218 = pneg %p150
      %p219 = scmp.lt.s32.totalorder %s17, 1
      %s220 = scalar_select %p219, %s17, 1
      %s221 = smul.addr %s220, 8
      %s222 = scalar_lea.vmem %s5, %s221
      %s223 = smul.u32 64, %s17
      %p224 = scmp.lt.s32.totalorder %s223, 127
      %s225 = scalar_select %p224, %s223, 127
      %s226 = smul.addr %s225, 4
      %s227 = scalar_lea.vmem %s0, %s226
      %s228 = smul.u32 64, %s17
      %s229 = smul.u32 64, %s17
      %p230 = scmp.lt.s32.totalorder %s229, 127
      %s231 = scalar_select %p230, %s229, 127
      %s232 = smul.addr %s231, 4
      %s233 = scalar_lea.vmem %s4, %s232
      %s234 = smul.u32 64, %s17
      %p235 = scmp.lt.s32.totalorder %s17, 1
      %s236 = scalar_select %p235, %s17, 1
      %s237 = smul.addr %s236, 8
      %s238 = scalar_lea.vmem %s5, %s237
      %v240 = vld [vmem:[%s227] sm:$0xf]
      %v241 = vld [vmem:[%s227 + $0x4] sm:$0xf]
      %v242 = vld [vmem:[%s227 + $0x8] sm:$0xf]
      %v243 = vld [vmem:[%s227 + $0xc] sm:$0xf]
      %v244 = vld [vmem:[%s227 + $0x10] sm:$0xf]
      %v245 = vld [vmem:[%s227 + $0x14] sm:$0xf]
      %v246 = vld [vmem:[%s227 + $0x18] sm:$0xf]
      %v247 = vld [vmem:[%s227 + $0x1c] sm:$0xf]
      %v248 = vld [vmem:[%s227 + $0x20] sm:$0xf]
      %v249 = vld [vmem:[%s227 + $0x24] sm:$0xf]
      %v250 = vld [vmem:[%s227 + $0x28] sm:$0xf]
      %v251 = vld [vmem:[%s227 + $0x2c] sm:$0xf]
      %v252 = vld [vmem:[%s227 + $0x30] sm:$0xf]
      %v253 = vld [vmem:[%s227 + $0x34] sm:$0xf]
      %v254 = vld [vmem:[%s227 + $0x38] sm:$0xf]
      %v255 = vld [vmem:[%s227 + $0x3c] sm:$0xf]
      %v256 = vld [vmem:[%s227 + $0x40] sm:$0xf]
      %v257 = vld [vmem:[%s227 + $0x44] sm:$0xf]
      %v258 = vld [vmem:[%s227 + $0x48] sm:$0xf]
      %v259 = vld [vmem:[%s227 + $0x4c] sm:$0xf]
      %v260 = vld [vmem:[%s227 + $0x50] sm:$0xf]
      %v261 = vld [vmem:[%s227 + $0x54] sm:$0xf]
      %v262 = vld [vmem:[%s227 + $0x58] sm:$0xf]
      %v263 = vld [vmem:[%s227 + $0x5c] sm:$0xf]
      %v264 = vld [vmem:[%s227 + $0x60] sm:$0xf]
      %v265 = vld [vmem:[%s227 + $0x64] sm:$0xf]
      %v266 = vld [vmem:[%s227 + $0x68] sm:$0xf]
      %v267 = vld [vmem:[%s227 + $0x6c] sm:$0xf]
      %v268 = vld [vmem:[%s227 + $0x70] sm:$0xf]
      %v269 = vld [vmem:[%s227 + $0x74] sm:$0xf]
      %v270 = vld [vmem:[%s227 + $0x78] sm:$0xf]
      %v271 = vld [vmem:[%s227 + $0x7c] sm:$0xf]
      %v272 = vld [vmem:[%s227 + $0x80] sm:$0xf]
      %v273 = vld [vmem:[%s227 + $0x84] sm:$0xf]
      %v274 = vld [vmem:[%s227 + $0x88] sm:$0xf]
      %v275 = vld [vmem:[%s227 + $0x8c] sm:$0xf]
      %v276 = vld [vmem:[%s227 + $0x90] sm:$0xf]
      %v277 = vld [vmem:[%s227 + $0x94] sm:$0xf]
      %v278 = vld [vmem:[%s227 + $0x98] sm:$0xf]
      %v279 = vld [vmem:[%s227 + $0x9c] sm:$0xf]
      %v280 = vld [vmem:[%s227 + $0xa0] sm:$0xf]
      %v281 = vld [vmem:[%s227 + $0xa4] sm:$0xf]
      %v282 = vld [vmem:[%s227 + $0xa8] sm:$0xf]
      %v283 = vld [vmem:[%s227 + $0xac] sm:$0xf]
      %v284 = vld [vmem:[%s227 + $0xb0] sm:$0xf]
      %v285 = vld [vmem:[%s227 + $0xb4] sm:$0xf]
      %v286 = vld [vmem:[%s227 + $0xb8] sm:$0xf]
      %v287 = vld [vmem:[%s227 + $0xbc] sm:$0xf]
      %v288 = vld [vmem:[%s227 + $0xc0] sm:$0xf]
      %v289 = vld [vmem:[%s227 + $0xc4] sm:$0xf]
      %v290 = vld [vmem:[%s227 + $0xc8] sm:$0xf]
      %v291 = vld [vmem:[%s227 + $0xcc] sm:$0xf]
      %v292 = vld [vmem:[%s227 + $0xd0] sm:$0xf]
      %v293 = vld [vmem:[%s227 + $0xd4] sm:$0xf]
      %v294 = vld [vmem:[%s227 + $0xd8] sm:$0xf]
      %v295 = vld [vmem:[%s227 + $0xdc] sm:$0xf]
      %v296 = vld [vmem:[%s227 + $0xe0] sm:$0xf]
      %v297 = vld [vmem:[%s227 + $0xe4] sm:$0xf]
      %v298 = vld [vmem:[%s227 + $0xe8] sm:$0xf]
      %v299 = vld [vmem:[%s227 + $0xec] sm:$0xf]
      %v300 = vld [vmem:[%s227 + $0xf0] sm:$0xf]
      %v301 = vld [vmem:[%s227 + $0xf4] sm:$0xf]
      %v302 = vld [vmem:[%s227 + $0xf8] sm:$0xf]
      %v303 = vld [vmem:[%s227 + $0xfc] sm:$0xf]
      %v304 = vunpack.c.l.bf16 %v240
      %v305 = vunpack.c.l.bf16 %v241
      %v306 = vunpack.c.l.bf16 %v242
      %v307 = vunpack.c.l.bf16 %v243
      %v308 = vunpack.c.l.bf16 %v244
      %v309 = vunpack.c.l.bf16 %v245
      %v310 = vunpack.c.l.bf16 %v246
      %v311 = vunpack.c.l.bf16 %v247
      %v312 = vunpack.c.l.bf16 %v248
      %v313 = vunpack.c.l.bf16 %v249
      %v314 = vunpack.c.l.bf16 %v250
      %v315 = vunpack.c.l.bf16 %v251
      %v316 = vunpack.c.l.bf16 %v252
      %v317 = vunpack.c.l.bf16 %v253
      %v318 = vunpack.c.l.bf16 %v254
      %v319 = vunpack.c.l.bf16 %v255
      %v320 = vunpack.c.l.bf16 %v256
      %v321 = vunpack.c.l.bf16 %v257
      %v322 = vunpack.c.l.bf16 %v258
      %v323 = vunpack.c.l.bf16 %v259
      %v324 = vunpack.c.l.bf16 %v260
      %v325 = vunpack.c.l.bf16 %v261
      %v326 = vunpack.c.l.bf16 %v262
      %v327 = vunpack.c.l.bf16 %v263
      %v328 = vunpack.c.l.bf16 %v264
      %v329 = vunpack.c.l.bf16 %v265
      %v330 = vunpack.c.l.bf16 %v266
      %v331 = vunpack.c.l.bf16 %v267
      %v332 = vunpack.c.l.bf16 %v268
      %v333 = vunpack.c.l.bf16 %v269
      %v334 = vunpack.c.l.bf16 %v270
      %v335 = vunpack.c.l.bf16 %v271
      %v336 = vunpack.c.l.bf16 %v272
      %v337 = vunpack.c.l.bf16 %v273
      %v338 = vunpack.c.l.bf16 %v274
      %v339 = vunpack.c.l.bf16 %v275
      %v340 = vunpack.c.l.bf16 %v276
      %v341 = vunpack.c.l.bf16 %v277
      %v342 = vunpack.c.l.bf16 %v278
      %v343 = vunpack.c.l.bf16 %v279
      %v344 = vunpack.c.l.bf16 %v280
      %v345 = vunpack.c.l.bf16 %v281
      %v346 = vunpack.c.l.bf16 %v282
      %v347 = vunpack.c.l.bf16 %v283
      %v348 = vunpack.c.l.bf16 %v284
      %v349 = vunpack.c.l.bf16 %v285
      %v350 = vunpack.c.l.bf16 %v286
      %v351 = vunpack.c.l.bf16 %v287
      %v352 = vunpack.c.l.bf16 %v288
      %v353 = vunpack.c.l.bf16 %v289
      %v354 = vunpack.c.l.bf16 %v290
      %v355 = vunpack.c.l.bf16 %v291
      %v356 = vunpack.c.l.bf16 %v292
      %v357 = vunpack.c.l.bf16 %v293
      %v358 = vunpack.c.l.bf16 %v294
      %v359 = vunpack.c.l.bf16 %v295
      %v360 = vunpack.c.l.bf16 %v296
      %v361 = vunpack.c.l.bf16 %v297
      %v362 = vunpack.c.l.bf16 %v298
      %v363 = vunpack.c.l.bf16 %v299
      %v364 = vunpack.c.l.bf16 %v300
      %v365 = vunpack.c.l.bf16 %v301
      %v366 = vunpack.c.l.bf16 %v302
      %v367 = vunpack.c.l.bf16 %v303
      %v368 = vld [vmem:[%s1] sm:$0x1]
      %v370 = vlaneseq
      %v371 = vshrl.u32 %v370, 7
      %v372 = vsub.s32 0, %v371
      %v373 = vrot.slane %v368, %v372
      %v375 = vmul.f32 %v304, %v373
      %v376 = vmul.f32 %v305, %v373
      %v377 = vmul.f32 %v306, %v373
      %v378 = vmul.f32 %v307, %v373
      %v379 = vmul.f32 %v308, %v373
      %v380 = vmul.f32 %v309, %v373
      %v381 = vmul.f32 %v310, %v373
      %v382 = vmul.f32 %v311, %v373
      %v383 = vmul.f32 %v312, %v373
      %v384 = vmul.f32 %v313, %v373
      %v385 = vmul.f32 %v314, %v373
      %v386 = vmul.f32 %v315, %v373
      %v387 = vmul.f32 %v316, %v373
      %v388 = vmul.f32 %v317, %v373
      %v389 = vmul.f32 %v318, %v373
      %v390 = vmul.f32 %v319, %v373
      %v391 = vmul.f32 %v320, %v373
      %v392 = vmul.f32 %v321, %v373
      %v393 = vmul.f32 %v322, %v373
      %v394 = vmul.f32 %v323, %v373
      %v395 = vmul.f32 %v324, %v373
      %v396 = vmul.f32 %v325, %v373
      %v397 = vmul.f32 %v326, %v373
      %v398 = vmul.f32 %v327, %v373
      %v399 = vmul.f32 %v328, %v373
      %v400 = vmul.f32 %v329, %v373
      %v401 = vmul.f32 %v330, %v373
      %v402 = vmul.f32 %v331, %v373
      %v403 = vmul.f32 %v332, %v373
      %v404 = vmul.f32 %v333, %v373
      %v405 = vmul.f32 %v334, %v373
      %v406 = vmul.f32 %v335, %v373
      %v407 = vmul.f32 %v336, %v373
      %v408 = vmul.f32 %v337, %v373
      %v409 = vmul.f32 %v338, %v373
      %v410 = vmul.f32 %v339, %v373
      %v411 = vmul.f32 %v340, %v373
      %v412 = vmul.f32 %v341, %v373
      %v413 = vmul.f32 %v342, %v373
      %v414 = vmul.f32 %v343, %v373
      %v415 = vmul.f32 %v344, %v373
      %v416 = vmul.f32 %v345, %v373
      %v417 = vmul.f32 %v346, %v373
      %v418 = vmul.f32 %v347, %v373
      %v419 = vmul.f32 %v348, %v373
      %v420 = vmul.f32 %v349, %v373
      %v421 = vmul.f32 %v350, %v373
      %v422 = vmul.f32 %v351, %v373
      %v423 = vmul.f32 %v352, %v373
      %v424 = vmul.f32 %v353, %v373
      %v425 = vmul.f32 %v354, %v373
      %v426 = vmul.f32 %v355, %v373
      %v427 = vmul.f32 %v356, %v373
      %v428 = vmul.f32 %v357, %v373
      %v429 = vmul.f32 %v358, %v373
      %v430 = vmul.f32 %v359, %v373
      %v431 = vmul.f32 %v360, %v373
      %v432 = vmul.f32 %v361, %v373
      %v433 = vmul.f32 %v362, %v373
      %v434 = vmul.f32 %v363, %v373
      %v435 = vmul.f32 %v364, %v373
      %v436 = vmul.f32 %v365, %v373
      %v437 = vmul.f32 %v366, %v373
      %v438 = vmul.f32 %v367, %v373
      %v439 = vld [vmem:[%s2] sm:$0x1]
      %v441 = vlaneseq
      %v442 = vshrl.u32 %v441, 7
      %v443 = vsub.s32 0, %v442
      %v444 = vrot.slane %v439, %v443
      %v446 = vadd.f32 %v375, %v444
      %v447 = vadd.f32 %v376, %v444
      %v448 = vadd.f32 %v377, %v444
      %v449 = vadd.f32 %v378, %v444
      %v450 = vadd.f32 %v379, %v444
      %v451 = vadd.f32 %v380, %v444
      %v452 = vadd.f32 %v381, %v444
      %v453 = vadd.f32 %v382, %v444
      %v454 = vadd.f32 %v383, %v444
      %v455 = vadd.f32 %v384, %v444
      %v456 = vadd.f32 %v385, %v444
      %v457 = vadd.f32 %v386, %v444
      %v458 = vadd.f32 %v387, %v444
      %v459 = vadd.f32 %v388, %v444
      %v460 = vadd.f32 %v389, %v444
      %v461 = vadd.f32 %v390, %v444
      %v462 = vadd.f32 %v391, %v444
      %v463 = vadd.f32 %v392, %v444
      %v464 = vadd.f32 %v393, %v444
      %v465 = vadd.f32 %v394, %v444
      %v466 = vadd.f32 %v395, %v444
      %v467 = vadd.f32 %v396, %v444
      %v468 = vadd.f32 %v397, %v444
      %v469 = vadd.f32 %v398, %v444
      %v470 = vadd.f32 %v399, %v444
      %v471 = vadd.f32 %v400, %v444
      %v472 = vadd.f32 %v401, %v444
      %v473 = vadd.f32 %v402, %v444
      %v474 = vadd.f32 %v403, %v444
      %v475 = vadd.f32 %v404, %v444
      %v476 = vadd.f32 %v405, %v444
      %v477 = vadd.f32 %v406, %v444
      %v478 = vadd.f32 %v407, %v444
      %v479 = vadd.f32 %v408, %v444
      %v480 = vadd.f32 %v409, %v444
      %v481 = vadd.f32 %v410, %v444
      %v482 = vadd.f32 %v411, %v444
      %v483 = vadd.f32 %v412, %v444
      %v484 = vadd.f32 %v413, %v444
      %v485 = vadd.f32 %v414, %v444
      %v486 = vadd.f32 %v415, %v444
      %v487 = vadd.f32 %v416, %v444
      %v488 = vadd.f32 %v417, %v444
      %v489 = vadd.f32 %v418, %v444
      %v490 = vadd.f32 %v419, %v444
      %v491 = vadd.f32 %v420, %v444
      %v492 = vadd.f32 %v421, %v444
      %v493 = vadd.f32 %v422, %v444
      %v494 = vadd.f32 %v423, %v444
      %v495 = vadd.f32 %v424, %v444
      %v496 = vadd.f32 %v425, %v444
      %v497 = vadd.f32 %v426, %v444
      %v498 = vadd.f32 %v427, %v444
      %v499 = vadd.f32 %v428, %v444
      %v500 = vadd.f32 %v429, %v444
      %v501 = vadd.f32 %v430, %v444
      %v502 = vadd.f32 %v431, %v444
      %v503 = vadd.f32 %v432, %v444
      %v504 = vadd.f32 %v433, %v444
      %v505 = vadd.f32 %v434, %v444
      %v506 = vadd.f32 %v435, %v444
      %v507 = vadd.f32 %v436, %v444
      %v508 = vadd.f32 %v437, %v444
      %v509 = vadd.f32 %v438, %v444
      %v510 = vmax.f32 %v446, 0.0
      %v511 = vmax.f32 %v447, 0.0
      %v512 = vmax.f32 %v448, 0.0
      %v513 = vmax.f32 %v449, 0.0
      %v514 = vmax.f32 %v450, 0.0
      %v515 = vmax.f32 %v451, 0.0
      %v516 = vmax.f32 %v452, 0.0
      %v517 = vmax.f32 %v453, 0.0
      %v518 = vmax.f32 %v454, 0.0
      %v519 = vmax.f32 %v455, 0.0
      %v520 = vmax.f32 %v456, 0.0
      %v521 = vmax.f32 %v457, 0.0
      %v522 = vmax.f32 %v458, 0.0
      %v523 = vmax.f32 %v459, 0.0
      %v524 = vmax.f32 %v460, 0.0
      %v525 = vmax.f32 %v461, 0.0
      %v526 = vmax.f32 %v462, 0.0
      %v527 = vmax.f32 %v463, 0.0
      %v528 = vmax.f32 %v464, 0.0
      %v529 = vmax.f32 %v465, 0.0
      %v530 = vmax.f32 %v466, 0.0
      %v531 = vmax.f32 %v467, 0.0
      %v532 = vmax.f32 %v468, 0.0
      %v533 = vmax.f32 %v469, 0.0
      %v534 = vmax.f32 %v470, 0.0
      %v535 = vmax.f32 %v471, 0.0
      %v536 = vmax.f32 %v472, 0.0
      %v537 = vmax.f32 %v473, 0.0
      %v538 = vmax.f32 %v474, 0.0
      %v539 = vmax.f32 %v475, 0.0
      %v540 = vmax.f32 %v476, 0.0
      %v541 = vmax.f32 %v477, 0.0
      %v542 = vmax.f32 %v478, 0.0
      %v543 = vmax.f32 %v479, 0.0
      %v544 = vmax.f32 %v480, 0.0
      %v545 = vmax.f32 %v481, 0.0
      %v546 = vmax.f32 %v482, 0.0
      %v547 = vmax.f32 %v483, 0.0
      %v548 = vmax.f32 %v484, 0.0
      %v549 = vmax.f32 %v485, 0.0
      %v550 = vmax.f32 %v486, 0.0
      %v551 = vmax.f32 %v487, 0.0
      %v552 = vmax.f32 %v488, 0.0
      %v553 = vmax.f32 %v489, 0.0
      %v554 = vmax.f32 %v490, 0.0
      %v555 = vmax.f32 %v491, 0.0
      %v556 = vmax.f32 %v492, 0.0
      %v557 = vmax.f32 %v493, 0.0
      %v558 = vmax.f32 %v494, 0.0
      %v559 = vmax.f32 %v495, 0.0
      %v560 = vmax.f32 %v496, 0.0
      %v561 = vmax.f32 %v497, 0.0
      %v562 = vmax.f32 %v498, 0.0
      %v563 = vmax.f32 %v499, 0.0
      %v564 = vmax.f32 %v500, 0.0
      %v565 = vmax.f32 %v501, 0.0
      %v566 = vmax.f32 %v502, 0.0
      %v567 = vmax.f32 %v503, 0.0
      %v568 = vmax.f32 %v504, 0.0
      %v569 = vmax.f32 %v505, 0.0
      %v570 = vmax.f32 %v506, 0.0
      %v571 = vmax.f32 %v507, 0.0
      %v572 = vmax.f32 %v508, 0.0
      %v573 = vmax.f32 %v509, 0.0
      %v574 = vpack.c.bf16 %v511, %v510
      %v575 = vpack.c.bf16 %v513, %v512
      %v576 = vpack.c.bf16 %v515, %v514
      %v577 = vpack.c.bf16 %v517, %v516
      %v578 = vpack.c.bf16 %v519, %v518
      %v579 = vpack.c.bf16 %v521, %v520
      %v580 = vpack.c.bf16 %v523, %v522
      %v581 = vpack.c.bf16 %v525, %v524
      %v582 = vpack.c.bf16 %v527, %v526
      %v583 = vpack.c.bf16 %v529, %v528
      %v584 = vpack.c.bf16 %v531, %v530
      %v585 = vpack.c.bf16 %v533, %v532
      %v586 = vpack.c.bf16 %v535, %v534
      %v587 = vpack.c.bf16 %v537, %v536
      %v588 = vpack.c.bf16 %v539, %v538
      %v589 = vpack.c.bf16 %v541, %v540
      %v590 = vpack.c.bf16 %v543, %v542
      %v591 = vpack.c.bf16 %v545, %v544
      %v592 = vpack.c.bf16 %v547, %v546
      %v593 = vpack.c.bf16 %v549, %v548
      %v594 = vpack.c.bf16 %v551, %v550
      %v595 = vpack.c.bf16 %v553, %v552
      %v596 = vpack.c.bf16 %v555, %v554
      %v597 = vpack.c.bf16 %v557, %v556
      %v598 = vpack.c.bf16 %v559, %v558
      %v599 = vpack.c.bf16 %v561, %v560
      %v600 = vpack.c.bf16 %v563, %v562
      %v601 = vpack.c.bf16 %v565, %v564
      %v602 = vpack.c.bf16 %v567, %v566
      %v603 = vpack.c.bf16 %v569, %v568
      %v604 = vpack.c.bf16 %v571, %v570
      %v605 = vpack.c.bf16 %v573, %v572
      %v606 = vld [vmem:[%s3] sm:$0xf]
      %v607 = vld [vmem:[%s3 + $0x4] sm:$0xf]
      %v608 = vld [vmem:[%s3 + $0x8] sm:$0xf]
      %v609 = vld [vmem:[%s3 + $0xc] sm:$0xf]
      %v610 = vld [vmem:[%s3 + $0x10] sm:$0xf]
      %v611 = vld [vmem:[%s3 + $0x14] sm:$0xf]
      %v612 = vld [vmem:[%s3 + $0x18] sm:$0xf]
      %v613 = vld [vmem:[%s3 + $0x1c] sm:$0xf]
      %v614 = vld [vmem:[%s3 + $0x20] sm:$0xf]
      %v615 = vld [vmem:[%s3 + $0x24] sm:$0xf]
      %v616 = vld [vmem:[%s3 + $0x28] sm:$0xf]
      %v617 = vld [vmem:[%s3 + $0x2c] sm:$0xf]
      %v618 = vld [vmem:[%s3 + $0x30] sm:$0xf]
      %v619 = vld [vmem:[%s3 + $0x34] sm:$0xf]
      %v620 = vld [vmem:[%s3 + $0x38] sm:$0xf]
      %v621 = vld [vmem:[%s3 + $0x3c] sm:$0xf]
      %v638 = vunpack.c.l.b16 %v606
      %v639 = vunpack.c.l.b16 %v607
      %v640 = vunpack.c.l.b16 %v608
      %v641 = vunpack.c.l.b16 %v609
      %v642 = vunpack.c.l.b16 %v610
      %v643 = vunpack.c.l.b16 %v611
      %v644 = vunpack.c.l.b16 %v612
      %v645 = vunpack.c.l.b16 %v613
      %v646 = vunpack.c.l.b16 %v614
      %v647 = vunpack.c.l.b16 %v615
      %v648 = vunpack.c.l.b16 %v616
      %v649 = vunpack.c.l.b16 %v617
      %v650 = vunpack.c.l.b16 %v618
      %v651 = vunpack.c.l.b16 %v619
      %v652 = vunpack.c.l.b16 %v620
      %v653 = vunpack.c.l.b16 %v621
      %v654 = vpack.c.b16 %v639, %v638
      %v655 = vpack.c.b16 %v641, %v640
      %v656 = vpack.c.b16 %v643, %v642
      %v657 = vpack.c.b16 %v645, %v644
      %v658 = vpack.c.b16 %v647, %v646
      %v659 = vpack.c.b16 %v649, %v648
      %v660 = vpack.c.b16 %v651, %v650
      %v661 = vpack.c.b16 %v653, %v652
      %670 = vmatprep.subr.bf16.mxu0 0
      %671 = vmatpush1.bf16.msra.mxu0 %v661
      %672 = vmatprep.subr.bf16.mxu0 0
      %673 = vmatpush1.bf16.msra.mxu0 %v660
      %674 = vmatprep.subr.bf16.mxu0 0
      %675 = vmatpush1.bf16.msra.mxu0 %v659
      %676 = vmatprep.subr.bf16.mxu0 0
      %677 = vmatpush1.bf16.msra.mxu0 %v658
      %678 = vmatprep.subr.bf16.mxu0 0
      %679 = vmatpush1.bf16.msra.mxu0 %v657
      %680 = vmatprep.subr.bf16.mxu0 0
      %681 = vmatpush1.bf16.msra.mxu0 %v656
      %682 = vmatprep.subr.bf16.mxu0 0
      %683 = vmatpush1.bf16.msra.mxu0 %v655
      %684 = vmatprep.subr.bf16.mxu0 0
      %685 = vmatpush1.bf16.msra.mxu0 %v654
      %686 = vmatprep.subr.bf16.mxu0 0
      %687 = vmatpush2.bf16.msra.mxu0 0
      %688 = vmatprep.subr.bf16.mxu0 0
      %689 = vmatpush2.bf16.msra.mxu0 0
      %690 = vmatprep.subr.bf16.mxu0 0
      %691 = vmatpush2.bf16.msra.mxu0 0
      %692 = vmatprep.subr.bf16.mxu0 0
      %693 = vmatpush2.bf16.msra.mxu0 0
      %694 = vmatprep.subr.bf16.mxu0 0
      %695 = vmatpush2.bf16.msra.mxu0 0
      %696 = vmatprep.subr.bf16.mxu0 0
      %697 = vmatpush2.bf16.msra.mxu0 0
      %698 = vmatprep.subr.bf16.mxu0 0
      %699 = vmatpush2.bf16.msra.mxu0 0
      %700 = vmatprep.subr.bf16.mxu0 0
      %701 = vmatpush2.bf16.msra.mxu0 0
      %702 = vmatprep.mubr.bf16.mxu0 0
      %703 = vmatmul.mubr.bf16.gmra.mxu0 %v574
      %v704 = vpop.f32.mrf.mxu0
      %v705 = vadd.f32 0.0, %v704
      %v706 = vpop.f32.mrf.mxu0
      %v707 = vpop.f32.mrf.mxu0
      %v708 = vadd.f32 0.0, %v707
      %v709 = vpop.f32.mrf.mxu0
      %710 = vmatprep.mubr.bf16.mxu0 0
      %711 = vmatmul.mubr.bf16.gmra.mxu0 %v575
      %v712 = vpop.f32.mrf.mxu0
      %v713 = vadd.f32 0.0, %v712
      %v714 = vpop.f32.mrf.mxu0
      %v715 = vpop.f32.mrf.mxu0
      %v716 = vadd.f32 0.0, %v715
      %v717 = vpop.f32.mrf.mxu0
      %718 = vmatprep.mubr.bf16.mxu0 0
      %719 = vmatmul.mubr.bf16.gmra.mxu0 %v576
      %v720 = vpop.f32.mrf.mxu0
      %v721 = vadd.f32 0.0, %v720
      %v722 = vpop.f32.mrf.mxu0
      %v723 = vpop.f32.mrf.mxu0
      %v724 = vadd.f32 0.0, %v723
      %v725 = vpop.f32.mrf.mxu0
      %726 = vmatprep.mubr.bf16.mxu0 0
      %727 = vmatmul.mubr.bf16.gmra.mxu0 %v577
      %v728 = vpop.f32.mrf.mxu0
      %v729 = vadd.f32 0.0, %v728
      %v730 = vpop.f32.mrf.mxu0
      %v731 = vpop.f32.mrf.mxu0
      %v732 = vadd.f32 0.0, %v731
      %v733 = vpop.f32.mrf.mxu0
      %734 = vmatprep.mubr.bf16.mxu0 0
      %735 = vmatmul.mubr.bf16.gmra.mxu0 %v578
      %v736 = vpop.f32.mrf.mxu0
      %v737 = vadd.f32 0.0, %v736
      %v738 = vpop.f32.mrf.mxu0
      %v739 = vpop.f32.mrf.mxu0
      %v740 = vadd.f32 0.0, %v739
      %v741 = vpop.f32.mrf.mxu0
      %742 = vmatprep.mubr.bf16.mxu0 0
      %743 = vmatmul.mubr.bf16.gmra.mxu0 %v579
      %v744 = vpop.f32.mrf.mxu0
      %v745 = vadd.f32 0.0, %v744
      %v746 = vpop.f32.mrf.mxu0
      %v747 = vpop.f32.mrf.mxu0
      %v748 = vadd.f32 0.0, %v747
      %v749 = vpop.f32.mrf.mxu0
      %750 = vmatprep.mubr.bf16.mxu0 0
      %751 = vmatmul.mubr.bf16.gmra.mxu0 %v580
      %v752 = vpop.f32.mrf.mxu0
      %v753 = vadd.f32 0.0, %v752
      %v754 = vpop.f32.mrf.mxu0
      %v755 = vpop.f32.mrf.mxu0
      %v756 = vadd.f32 0.0, %v755
      %v757 = vpop.f32.mrf.mxu0
      %758 = vmatprep.mubr.bf16.mxu0 0
      %759 = vmatmul.mubr.bf16.gmra.mxu0 %v581
      %v760 = vpop.f32.mrf.mxu0
      %v761 = vadd.f32 0.0, %v760
      %v762 = vpop.f32.mrf.mxu0
      %v763 = vpop.f32.mrf.mxu0
      %v764 = vadd.f32 0.0, %v763
      %v765 = vpop.f32.mrf.mxu0
      %766 = vmatprep.mubr.bf16.mxu0 0
      %767 = vmatmul.mubr.bf16.gmra.mxu0 %v582
      %v768 = vpop.f32.mrf.mxu0
      %v769 = vadd.f32 0.0, %v768
      %v770 = vpop.f32.mrf.mxu0
      %v771 = vpop.f32.mrf.mxu0
      %v772 = vadd.f32 0.0, %v771
      %v773 = vpop.f32.mrf.mxu0
      %774 = vmatprep.mubr.bf16.mxu0 0
      %775 = vmatmul.mubr.bf16.gmra.mxu0 %v583
      %v776 = vpop.f32.mrf.mxu0
      %v777 = vadd.f32 0.0, %v776
      %v778 = vpop.f32.mrf.mxu0
      %v779 = vpop.f32.mrf.mxu0
      %v780 = vadd.f32 0.0, %v779
      %v781 = vpop.f32.mrf.mxu0
      %782 = vmatprep.mubr.bf16.mxu0 0
      %783 = vmatmul.mubr.bf16.gmra.mxu0 %v584
      %v784 = vpop.f32.mrf.mxu0
      %v785 = vadd.f32 0.0, %v784
      %v786 = vpop.f32.mrf.mxu0
      %v787 = vpop.f32.mrf.mxu0
      %v788 = vadd.f32 0.0, %v787
      %v789 = vpop.f32.mrf.mxu0
      %790 = vmatprep.mubr.bf16.mxu0 0
      %791 = vmatmul.mubr.bf16.gmra.mxu0 %v585
      %v792 = vpop.f32.mrf.mxu0
      %v793 = vadd.f32 0.0, %v792
      %v794 = vpop.f32.mrf.mxu0
      %v795 = vpop.f32.mrf.mxu0
      %v796 = vadd.f32 0.0, %v795
      %v797 = vpop.f32.mrf.mxu0
      %798 = vmatprep.mubr.bf16.mxu0 0
      %799 = vmatmul.mubr.bf16.gmra.mxu0 %v586
      %v800 = vpop.f32.mrf.mxu0
      %v801 = vadd.f32 0.0, %v800
      %v802 = vpop.f32.mrf.mxu0
      %v803 = vpop.f32.mrf.mxu0
      %v804 = vadd.f32 0.0, %v803
      %v805 = vpop.f32.mrf.mxu0
      %806 = vmatprep.mubr.bf16.mxu0 0
      %807 = vmatmul.mubr.bf16.gmra.mxu0 %v587
      %v808 = vpop.f32.mrf.mxu0
      %v809 = vadd.f32 0.0, %v808
      %v810 = vpop.f32.mrf.mxu0
      %v811 = vpop.f32.mrf.mxu0
      %v812 = vadd.f32 0.0, %v811
      %v813 = vpop.f32.mrf.mxu0
      %814 = vmatprep.mubr.bf16.mxu0 0
      %815 = vmatmul.mubr.bf16.gmra.mxu0 %v588
      %v816 = vpop.f32.mrf.mxu0
      %v817 = vadd.f32 0.0, %v816
      %v818 = vpop.f32.mrf.mxu0
      %v819 = vpop.f32.mrf.mxu0
      %v820 = vadd.f32 0.0, %v819
      %v821 = vpop.f32.mrf.mxu0
      %822 = vmatprep.mubr.bf16.mxu0 0
      %823 = vmatmul.mubr.bf16.gmra.mxu0 %v589
      %v824 = vpop.f32.mrf.mxu0
      %v825 = vadd.f32 0.0, %v824
      %v826 = vpop.f32.mrf.mxu0
      %v827 = vpop.f32.mrf.mxu0
      %v828 = vadd.f32 0.0, %v827
      %v829 = vpop.f32.mrf.mxu0
      %830 = vmatprep.mubr.bf16.mxu0 0
      %831 = vmatmul.mubr.bf16.gmra.mxu0 %v590
      %v832 = vpop.f32.mrf.mxu0
      %v833 = vadd.f32 0.0, %v832
      %v834 = vpop.f32.mrf.mxu0
      %v835 = vpop.f32.mrf.mxu0
      %v836 = vadd.f32 0.0, %v835
      %v837 = vpop.f32.mrf.mxu0
      %838 = vmatprep.mubr.bf16.mxu0 0
      %839 = vmatmul.mubr.bf16.gmra.mxu0 %v591
      %v840 = vpop.f32.mrf.mxu0
      %v841 = vadd.f32 0.0, %v840
      %v842 = vpop.f32.mrf.mxu0
      %v843 = vpop.f32.mrf.mxu0
      %v844 = vadd.f32 0.0, %v843
      %v845 = vpop.f32.mrf.mxu0
      %846 = vmatprep.mubr.bf16.mxu0 0
      %847 = vmatmul.mubr.bf16.gmra.mxu0 %v592
      %v848 = vpop.f32.mrf.mxu0
      %v849 = vadd.f32 0.0, %v848
      %v850 = vpop.f32.mrf.mxu0
      %v851 = vpop.f32.mrf.mxu0
      %v852 = vadd.f32 0.0, %v851
      %v853 = vpop.f32.mrf.mxu0
      %854 = vmatprep.mubr.bf16.mxu0 0
      %855 = vmatmul.mubr.bf16.gmra.mxu0 %v593
      %v856 = vpop.f32.mrf.mxu0
      %v857 = vadd.f32 0.0, %v856
      %v858 = vpop.f32.mrf.mxu0
      %v859 = vpop.f32.mrf.mxu0
      %v860 = vadd.f32 0.0, %v859
      %v861 = vpop.f32.mrf.mxu0
      %862 = vmatprep.mubr.bf16.mxu0 0
      %863 = vmatmul.mubr.bf16.gmra.mxu0 %v594
      %v864 = vpop.f32.mrf.mxu0
      %v865 = vadd.f32 0.0, %v864
      %v866 = vpop.f32.mrf.mxu0
      %v867 = vpop.f32.mrf.mxu0
      %v868 = vadd.f32 0.0, %v867
      %v869 = vpop.f32.mrf.mxu0
      %870 = vmatprep.mubr.bf16.mxu0 0
      %871 = vmatmul.mubr.bf16.gmra.mxu0 %v595
      %v872 = vpop.f32.mrf.mxu0
      %v873 = vadd.f32 0.0, %v872
      %v874 = vpop.f32.mrf.mxu0
      %v875 = vpop.f32.mrf.mxu0
      %v876 = vadd.f32 0.0, %v875
      %v877 = vpop.f32.mrf.mxu0
      %878 = vmatprep.mubr.bf16.mxu0 0
      %879 = vmatmul.mubr.bf16.gmra.mxu0 %v596
      %v880 = vpop.f32.mrf.mxu0
      %v881 = vadd.f32 0.0, %v880
      %v882 = vpop.f32.mrf.mxu0
      %v883 = vpop.f32.mrf.mxu0
      %v884 = vadd.f32 0.0, %v883
      %v885 = vpop.f32.mrf.mxu0
      %886 = vmatprep.mubr.bf16.mxu0 0
      %887 = vmatmul.mubr.bf16.gmra.mxu0 %v597
      %v888 = vpop.f32.mrf.mxu0
      %v889 = vadd.f32 0.0, %v888
      %v890 = vpop.f32.mrf.mxu0
      %v891 = vpop.f32.mrf.mxu0
      %v892 = vadd.f32 0.0, %v891
      %v893 = vpop.f32.mrf.mxu0
      %894 = vmatprep.mubr.bf16.mxu0 0
      %895 = vmatmul.mubr.bf16.gmra.mxu0 %v598
      %v896 = vpop.f32.mrf.mxu0
      %v897 = vadd.f32 0.0, %v896
      %v898 = vpop.f32.mrf.mxu0
      %v899 = vpop.f32.mrf.mxu0
      %v900 = vadd.f32 0.0, %v899
      %v901 = vpop.f32.mrf.mxu0
      %902 = vmatprep.mubr.bf16.mxu0 0
      %903 = vmatmul.mubr.bf16.gmra.mxu0 %v599
      %v904 = vpop.f32.mrf.mxu0
      %v905 = vadd.f32 0.0, %v904
      %v906 = vpop.f32.mrf.mxu0
      %v907 = vpop.f32.mrf.mxu0
      %v908 = vadd.f32 0.0, %v907
      %v909 = vpop.f32.mrf.mxu0
      %910 = vmatprep.mubr.bf16.mxu0 0
      %911 = vmatmul.mubr.bf16.gmra.mxu0 %v600
      %v912 = vpop.f32.mrf.mxu0
      %v913 = vadd.f32 0.0, %v912
      %v914 = vpop.f32.mrf.mxu0
      %v915 = vpop.f32.mrf.mxu0
      %v916 = vadd.f32 0.0, %v915
      %v917 = vpop.f32.mrf.mxu0
      %918 = vmatprep.mubr.bf16.mxu0 0
      %919 = vmatmul.mubr.bf16.gmra.mxu0 %v601
      %v920 = vpop.f32.mrf.mxu0
      %v921 = vadd.f32 0.0, %v920
      %v922 = vpop.f32.mrf.mxu0
      %v923 = vpop.f32.mrf.mxu0
      %v924 = vadd.f32 0.0, %v923
      %v925 = vpop.f32.mrf.mxu0
      %926 = vmatprep.mubr.bf16.mxu0 0
      %927 = vmatmul.mubr.bf16.gmra.mxu0 %v602
      %v928 = vpop.f32.mrf.mxu0
      %v929 = vadd.f32 0.0, %v928
      %v930 = vpop.f32.mrf.mxu0
      %v931 = vpop.f32.mrf.mxu0
      %v932 = vadd.f32 0.0, %v931
      %v933 = vpop.f32.mrf.mxu0
      %934 = vmatprep.mubr.bf16.mxu0 0
      %935 = vmatmul.mubr.bf16.gmra.mxu0 %v603
      %v936 = vpop.f32.mrf.mxu0
      %v937 = vadd.f32 0.0, %v936
      %v938 = vpop.f32.mrf.mxu0
      %v939 = vpop.f32.mrf.mxu0
      %v940 = vadd.f32 0.0, %v939
      %v941 = vpop.f32.mrf.mxu0
      %942 = vmatprep.mubr.bf16.mxu0 0
      %943 = vmatmul.mubr.bf16.gmra.mxu0 %v604
      %v944 = vpop.f32.mrf.mxu0
      %v945 = vadd.f32 0.0, %v944
      %v946 = vpop.f32.mrf.mxu0
      %v947 = vpop.f32.mrf.mxu0
      %v948 = vadd.f32 0.0, %v947
      %v949 = vpop.f32.mrf.mxu0
      %950 = vmatprep.mubr.bf16.mxu0 0
      %951 = vmatmul.mubr.bf16.gmra.mxu0 %v605
      %v952 = vpop.f32.mrf.mxu0
      %v953 = vadd.f32 0.0, %v952
      %v954 = vpop.f32.mrf.mxu0
      %v955 = vpop.f32.mrf.mxu0
      %v956 = vadd.f32 0.0, %v955
      %v957 = vpop.f32.mrf.mxu0
      %958 = vdwg.mxu0
      %v959 = vlaneseq
      %v960 = vshrl.u32 %v959, 7
      %v961 = vadd.f32 %v705, %v708
      %v962 = vadd.f32 %v961, %v713
      %v963 = vadd.f32 %v962, %v716
      %v964 = vadd.f32 %v963, %v721
      %v965 = vadd.f32 %v964, %v724
      %v966 = vadd.f32 %v965, %v729
      %v967 = vadd.f32 %v966, %v732
      %v968 = vadd.f32 %v967, %v737
      %v969 = vadd.f32 %v968, %v740
      %v970 = vadd.f32 %v969, %v745
      %v971 = vadd.f32 %v970, %v748
      %v972 = vadd.f32 %v971, %v753
      %v973 = vadd.f32 %v972, %v756
      %v974 = vadd.f32 %v973, %v761
      %v975 = vadd.f32 %v974, %v764
      %v976 = vadd.f32 %v975, %v769
      %v977 = vadd.f32 %v976, %v772
      %v978 = vadd.f32 %v977, %v777
      %v979 = vadd.f32 %v978, %v780
      %v980 = vadd.f32 %v979, %v785
      %v981 = vadd.f32 %v980, %v788
      %v982 = vadd.f32 %v981, %v793
      %v983 = vadd.f32 %v982, %v796
      %v984 = vadd.f32 %v983, %v801
      %v985 = vadd.f32 %v984, %v804
      %v986 = vadd.f32 %v985, %v809
      %v987 = vadd.f32 %v986, %v812
      %v988 = vadd.f32 %v987, %v817
      %v989 = vadd.f32 %v988, %v820
      %v990 = vadd.f32 %v989, %v825
      %v991 = vadd.f32 %v990, %v828
      %v992 = vadd.f32 %v991, %v833
      %v993 = vadd.f32 %v992, %v836
      %v994 = vadd.f32 %v993, %v841
      %v995 = vadd.f32 %v994, %v844
      %v996 = vadd.f32 %v995, %v849
      %v997 = vadd.f32 %v996, %v852
      %v998 = vadd.f32 %v997, %v857
      %v999 = vadd.f32 %v998, %v860
      %v1000 = vadd.f32 %v999, %v865
      %v1001 = vadd.f32 %v1000, %v868
      %v1002 = vadd.f32 %v1001, %v873
      %v1003 = vadd.f32 %v1002, %v876
      %v1004 = vadd.f32 %v1003, %v881
      %v1005 = vadd.f32 %v1004, %v884
      %v1006 = vadd.f32 %v1005, %v889
      %v1007 = vadd.f32 %v1006, %v892
      %v1008 = vadd.f32 %v1007, %v897
      %v1009 = vadd.f32 %v1008, %v900
      %v1010 = vadd.f32 %v1009, %v905
      %v1011 = vadd.f32 %v1010, %v908
      %v1012 = vadd.f32 %v1011, %v913
      %v1013 = vadd.f32 %v1012, %v916
      %v1014 = vadd.f32 %v1013, %v921
      %v1015 = vadd.f32 %v1014, %v924
      %v1016 = vadd.f32 %v1015, %v929
      %v1017 = vadd.f32 %v1016, %v932
      %v1018 = vadd.f32 %v1017, %v937
      %v1019 = vadd.f32 %v1018, %v940
      %v1020 = vadd.f32 %v1019, %v945
      %v1021 = vadd.f32 %v1020, %v948
      %v1022 = vadd.f32 %v1021, %v953
      %v1023 = vadd.f32 %v1022, %v956
      %v1024 = vrot.slane %v1023, 4
      %v1025 = vadd.f32 %v1023, %v1024
      %v1026 = vrot.slane %v1025, 2
      %v1027 = vadd.f32 %v1025, %v1026
      %v1028 = vrot.slane %v1027, 1
      %v1029 = vadd.f32 %v1027, %v1028
      %v1030 = vmul.f32 %v705, %v705
      %v1031 = vmul.f32 %v708, %v708
      %v1032 = vmul.f32 %v713, %v713
      %v1033 = vmul.f32 %v716, %v716
      %v1034 = vmul.f32 %v721, %v721
      %v1035 = vmul.f32 %v724, %v724
      %v1036 = vmul.f32 %v729, %v729
      %v1037 = vmul.f32 %v732, %v732
      %v1038 = vmul.f32 %v737, %v737
      %v1039 = vmul.f32 %v740, %v740
      %v1040 = vmul.f32 %v745, %v745
      %v1041 = vmul.f32 %v748, %v748
      %v1042 = vmul.f32 %v753, %v753
      %v1043 = vmul.f32 %v756, %v756
      %v1044 = vmul.f32 %v761, %v761
      %v1045 = vmul.f32 %v764, %v764
      %v1046 = vmul.f32 %v769, %v769
      %v1047 = vmul.f32 %v772, %v772
      %v1048 = vmul.f32 %v777, %v777
      %v1049 = vmul.f32 %v780, %v780
      %v1050 = vmul.f32 %v785, %v785
      %v1051 = vmul.f32 %v788, %v788
      %v1052 = vmul.f32 %v793, %v793
      %v1053 = vmul.f32 %v796, %v796
      %v1054 = vmul.f32 %v801, %v801
      %v1055 = vmul.f32 %v804, %v804
      %v1056 = vmul.f32 %v809, %v809
      %v1057 = vmul.f32 %v812, %v812
      %v1058 = vmul.f32 %v817, %v817
      %v1059 = vmul.f32 %v820, %v820
      %v1060 = vmul.f32 %v825, %v825
      %v1061 = vmul.f32 %v828, %v828
      %v1062 = vmul.f32 %v833, %v833
      %v1063 = vmul.f32 %v836, %v836
      %v1064 = vmul.f32 %v841, %v841
      %v1065 = vmul.f32 %v844, %v844
      %v1066 = vmul.f32 %v849, %v849
      %v1067 = vmul.f32 %v852, %v852
      %v1068 = vmul.f32 %v857, %v857
      %v1069 = vmul.f32 %v860, %v860
      %v1070 = vmul.f32 %v865, %v865
      %v1071 = vmul.f32 %v868, %v868
      %v1072 = vmul.f32 %v873, %v873
      %v1073 = vmul.f32 %v876, %v876
      %v1074 = vmul.f32 %v881, %v881
      %v1075 = vmul.f32 %v884, %v884
      %v1076 = vmul.f32 %v889, %v889
      %v1077 = vmul.f32 %v892, %v892
      %v1078 = vmul.f32 %v897, %v897
      %v1079 = vmul.f32 %v900, %v900
      %v1080 = vmul.f32 %v905, %v905
      %v1081 = vmul.f32 %v908, %v908
      %v1082 = vmul.f32 %v913, %v913
      %v1083 = vmul.f32 %v916, %v916
      %v1084 = vmul.f32 %v921, %v921
      %v1085 = vmul.f32 %v924, %v924
      %v1086 = vmul.f32 %v929, %v929
      %v1087 = vmul.f32 %v932, %v932
      %v1088 = vmul.f32 %v937, %v937
      %v1089 = vmul.f32 %v940, %v940
      %v1090 = vmul.f32 %v945, %v945
      %v1091 = vmul.f32 %v948, %v948
      %v1092 = vmul.f32 %v953, %v953
      %v1093 = vmul.f32 %v956, %v956
      %v1094 = vadd.f32 %v1030, %v1031
      %v1095 = vadd.f32 %v1094, %v1032
      %v1096 = vadd.f32 %v1095, %v1033
      %v1097 = vadd.f32 %v1096, %v1034
      %v1098 = vadd.f32 %v1097, %v1035
      %v1099 = vadd.f32 %v1098, %v1036
      %v1100 = vadd.f32 %v1099, %v1037
      %v1101 = vadd.f32 %v1100, %v1038
      %v1102 = vadd.f32 %v1101, %v1039
      %v1103 = vadd.f32 %v1102, %v1040
      %v1104 = vadd.f32 %v1103, %v1041
      %v1105 = vadd.f32 %v1104, %v1042
      %v1106 = vadd.f32 %v1105, %v1043
      %v1107 = vadd.f32 %v1106, %v1044
      %v1108 = vadd.f32 %v1107, %v1045
      %v1109 = vadd.f32 %v1108, %v1046
      %v1110 = vadd.f32 %v1109, %v1047
      %v1111 = vadd.f32 %v1110, %v1048
      %v1112 = vadd.f32 %v1111, %v1049
      %v1113 = vadd.f32 %v1112, %v1050
      %v1114 = vadd.f32 %v1113, %v1051
      %v1115 = vadd.f32 %v1114, %v1052
      %v1116 = vadd.f32 %v1115, %v1053
      %v1117 = vadd.f32 %v1116, %v1054
      %v1118 = vadd.f32 %v1117, %v1055
      %v1119 = vadd.f32 %v1118, %v1056
      %v1120 = vadd.f32 %v1119, %v1057
      %v1121 = vadd.f32 %v1120, %v1058
      %v1122 = vadd.f32 %v1121, %v1059
      %v1123 = vadd.f32 %v1122, %v1060
      %v1124 = vadd.f32 %v1123, %v1061
      %v1125 = vadd.f32 %v1124, %v1062
      %v1126 = vadd.f32 %v1125, %v1063
      %v1127 = vadd.f32 %v1126, %v1064
      %v1128 = vadd.f32 %v1127, %v1065
      %v1129 = vadd.f32 %v1128, %v1066
      %v1130 = vadd.f32 %v1129, %v1067
      %v1131 = vadd.f32 %v1130, %v1068
      %v1132 = vadd.f32 %v1131, %v1069
      %v1133 = vadd.f32 %v1132, %v1070
      %v1134 = vadd.f32 %v1133, %v1071
      %v1135 = vadd.f32 %v1134, %v1072
      %v1136 = vadd.f32 %v1135, %v1073
      %v1137 = vadd.f32 %v1136, %v1074
      %v1138 = vadd.f32 %v1137, %v1075
      %v1139 = vadd.f32 %v1138, %v1076
      %v1140 = vadd.f32 %v1139, %v1077
      %v1141 = vadd.f32 %v1140, %v1078
      %v1142 = vadd.f32 %v1141, %v1079
      %v1143 = vadd.f32 %v1142, %v1080
      %v1144 = vadd.f32 %v1143, %v1081
      %v1145 = vadd.f32 %v1144, %v1082
      %v1146 = vadd.f32 %v1145, %v1083
      %v1147 = vadd.f32 %v1146, %v1084
      %v1148 = vadd.f32 %v1147, %v1085
      %v1149 = vadd.f32 %v1148, %v1086
      %v1150 = vadd.f32 %v1149, %v1087
      %v1151 = vadd.f32 %v1150, %v1088
      %v1152 = vadd.f32 %v1151, %v1089
      %v1153 = vadd.f32 %v1152, %v1090
      %v1154 = vadd.f32 %v1153, %v1091
      %v1155 = vadd.f32 %v1154, %v1092
      %v1156 = vadd.f32 %v1155, %v1093
      %v1157 = vrot.slane %v1156, 4
      %v1158 = vadd.f32 %v1156, %v1157
      %v1159 = vrot.slane %v1158, 2
      %v1160 = vadd.f32 %v1158, %v1159
      %v1161 = vrot.slane %v1160, 1
      %v1162 = vadd.f32 %v1160, %v1161
      %vm1163 = vcmp.eq.s32.totalorder %v960, 0
      %vm1164 = vcmp.eq.s32.totalorder %v960, 1
      %v1165 = vsel %vm1164, %v1162, 0.0
      %v1166 = vsel %vm1163, %v1029, %v1165
      %1167 = vst [vmem:[%s238] sm:$0xff] %v1166
      %v1168 = vpack.c.bf16 %v708, %v705
      %v1169 = vpack.c.bf16 %v716, %v713
      %v1170 = vpack.c.bf16 %v724, %v721
      %v1171 = vpack.c.bf16 %v732, %v729
      %v1172 = vpack.c.bf16 %v740, %v737
      %v1173 = vpack.c.bf16 %v748, %v745
      %v1174 = vpack.c.bf16 %v756, %v753
      %v1175 = vpack.c.bf16 %v764, %v761
      %v1176 = vpack.c.bf16 %v772, %v769
      %v1177 = vpack.c.bf16 %v780, %v777
      %v1178 = vpack.c.bf16 %v788, %v785
      %v1179 = vpack.c.bf16 %v796, %v793
      %v1180 = vpack.c.bf16 %v804, %v801
      %v1181 = vpack.c.bf16 %v812, %v809
      %v1182 = vpack.c.bf16 %v820, %v817
      %v1183 = vpack.c.bf16 %v828, %v825
      %v1184 = vpack.c.bf16 %v836, %v833
      %v1185 = vpack.c.bf16 %v844, %v841
      %v1186 = vpack.c.bf16 %v852, %v849
      %v1187 = vpack.c.bf16 %v860, %v857
      %v1188 = vpack.c.bf16 %v868, %v865
      %v1189 = vpack.c.bf16 %v876, %v873
      %v1190 = vpack.c.bf16 %v884, %v881
      %v1191 = vpack.c.bf16 %v892, %v889
      %v1192 = vpack.c.bf16 %v900, %v897
      %v1193 = vpack.c.bf16 %v908, %v905
      %v1194 = vpack.c.bf16 %v916, %v913
      %v1195 = vpack.c.bf16 %v924, %v921
      %v1196 = vpack.c.bf16 %v932, %v929
      %v1197 = vpack.c.bf16 %v940, %v937
      %v1198 = vpack.c.bf16 %v948, %v945
      %v1199 = vpack.c.bf16 %v956, %v953
      %v1232 = vunpack.c.l.b16 %v1168
      %v1233 = vunpack.c.h.b16 %v1168
      %v1234 = vunpack.c.l.b16 %v1169
      %v1235 = vunpack.c.h.b16 %v1169
      %v1236 = vunpack.c.l.b16 %v1170
      %v1237 = vunpack.c.h.b16 %v1170
      %v1238 = vunpack.c.l.b16 %v1171
      %v1239 = vunpack.c.h.b16 %v1171
      %v1240 = vunpack.c.l.b16 %v1172
      %v1241 = vunpack.c.h.b16 %v1172
      %v1242 = vunpack.c.l.b16 %v1173
      %v1243 = vunpack.c.h.b16 %v1173
      %v1244 = vunpack.c.l.b16 %v1174
      %v1245 = vunpack.c.h.b16 %v1174
      %v1246 = vunpack.c.l.b16 %v1175
      %v1247 = vunpack.c.h.b16 %v1175
      %v1248 = vunpack.c.l.b16 %v1176
      %v1249 = vunpack.c.h.b16 %v1176
      %v1250 = vunpack.c.l.b16 %v1177
      %v1251 = vunpack.c.h.b16 %v1177
      %v1252 = vunpack.c.l.b16 %v1178
      %v1253 = vunpack.c.h.b16 %v1178
      %v1254 = vunpack.c.l.b16 %v1179
      %v1255 = vunpack.c.h.b16 %v1179
      %v1256 = vunpack.c.l.b16 %v1180
      %v1257 = vunpack.c.h.b16 %v1180
      %v1258 = vunpack.c.l.b16 %v1181
      %v1259 = vunpack.c.h.b16 %v1181
      %v1260 = vunpack.c.l.b16 %v1182
      %v1261 = vunpack.c.h.b16 %v1182
      %v1262 = vunpack.c.l.b16 %v1183
      %v1263 = vunpack.c.h.b16 %v1183
      %v1264 = vunpack.c.l.b16 %v1184
      %v1265 = vunpack.c.h.b16 %v1184
      %v1266 = vunpack.c.l.b16 %v1185
      %v1267 = vunpack.c.h.b16 %v1185
      %v1268 = vunpack.c.l.b16 %v1186
      %v1269 = vunpack.c.h.b16 %v1186
      %v1270 = vunpack.c.l.b16 %v1187
      %v1271 = vunpack.c.h.b16 %v1187
      %v1272 = vunpack.c.l.b16 %v1188
      %v1273 = vunpack.c.h.b16 %v1188
      %v1274 = vunpack.c.l.b16 %v1189
      %v1275 = vunpack.c.h.b16 %v1189
      %v1276 = vunpack.c.l.b16 %v1190
      %v1277 = vunpack.c.h.b16 %v1190
      %v1278 = vunpack.c.l.b16 %v1191
      %v1279 = vunpack.c.h.b16 %v1191
      %v1280 = vunpack.c.l.b16 %v1192
      %v1281 = vunpack.c.h.b16 %v1192
      %v1282 = vunpack.c.l.b16 %v1193
      %v1283 = vunpack.c.h.b16 %v1193
      %v1284 = vunpack.c.l.b16 %v1194
      %v1285 = vunpack.c.h.b16 %v1194
      %v1286 = vunpack.c.l.b16 %v1195
      %v1287 = vunpack.c.h.b16 %v1195
      %v1288 = vunpack.c.l.b16 %v1196
      %v1289 = vunpack.c.h.b16 %v1196
      %v1290 = vunpack.c.l.b16 %v1197
      %v1291 = vunpack.c.h.b16 %v1197
      %v1292 = vunpack.c.l.b16 %v1198
      %v1293 = vunpack.c.h.b16 %v1198
      %v1294 = vunpack.c.l.b16 %v1199
      %v1295 = vunpack.c.h.b16 %v1199
      %v1296 = vpack.c.b16 %v1232, %v1232
      %v1297 = vpack.c.b16 %v1233, %v1233
      %v1298 = vpack.c.b16 %v1234, %v1234
      %v1299 = vpack.c.b16 %v1235, %v1235
      %v1300 = vpack.c.b16 %v1236, %v1236
      %v1301 = vpack.c.b16 %v1237, %v1237
      %v1302 = vpack.c.b16 %v1238, %v1238
      %v1303 = vpack.c.b16 %v1239, %v1239
      %v1304 = vpack.c.b16 %v1240, %v1240
      %v1305 = vpack.c.b16 %v1241, %v1241
      %v1306 = vpack.c.b16 %v1242, %v1242
      %v1307 = vpack.c.b16 %v1243, %v1243
      %v1308 = vpack.c.b16 %v1244, %v1244
      %v1309 = vpack.c.b16 %v1245, %v1245
      %v1310 = vpack.c.b16 %v1246, %v1246
      %v1311 = vpack.c.b16 %v1247, %v1247
      %v1312 = vpack.c.b16 %v1248, %v1248
      %v1313 = vpack.c.b16 %v1249, %v1249
      %v1314 = vpack.c.b16 %v1250, %v1250
      %v1315 = vpack.c.b16 %v1251, %v1251
      %v1316 = vpack.c.b16 %v1252, %v1252
      %v1317 = vpack.c.b16 %v1253, %v1253
      %v1318 = vpack.c.b16 %v1254, %v1254
      %v1319 = vpack.c.b16 %v1255, %v1255
      %v1320 = vpack.c.b16 %v1256, %v1256
      %v1321 = vpack.c.b16 %v1257, %v1257
      %v1322 = vpack.c.b16 %v1258, %v1258
      %v1323 = vpack.c.b16 %v1259, %v1259
      %v1324 = vpack.c.b16 %v1260, %v1260
      %v1325 = vpack.c.b16 %v1261, %v1261
      %v1326 = vpack.c.b16 %v1262, %v1262
      %v1327 = vpack.c.b16 %v1263, %v1263
      %v1328 = vpack.c.b16 %v1264, %v1264
      %v1329 = vpack.c.b16 %v1265, %v1265
      %v1330 = vpack.c.b16 %v1266, %v1266
      %v1331 = vpack.c.b16 %v1267, %v1267
      %v1332 = vpack.c.b16 %v1268, %v1268
      %v1333 = vpack.c.b16 %v1269, %v1269
      %v1334 = vpack.c.b16 %v1270, %v1270
      %v1335 = vpack.c.b16 %v1271, %v1271
      %v1336 = vpack.c.b16 %v1272, %v1272
      %v1337 = vpack.c.b16 %v1273, %v1273
      %v1338 = vpack.c.b16 %v1274, %v1274
      %v1339 = vpack.c.b16 %v1275, %v1275
      %v1340 = vpack.c.b16 %v1276, %v1276
      %v1341 = vpack.c.b16 %v1277, %v1277
      %v1342 = vpack.c.b16 %v1278, %v1278
      %v1343 = vpack.c.b16 %v1279, %v1279
      %v1344 = vpack.c.b16 %v1280, %v1280
      %v1345 = vpack.c.b16 %v1281, %v1281
      %v1346 = vpack.c.b16 %v1282, %v1282
      %v1347 = vpack.c.b16 %v1283, %v1283
      %v1348 = vpack.c.b16 %v1284, %v1284
      %v1349 = vpack.c.b16 %v1285, %v1285
      %v1350 = vpack.c.b16 %v1286, %v1286
      %v1351 = vpack.c.b16 %v1287, %v1287
      %v1352 = vpack.c.b16 %v1288, %v1288
      %v1353 = vpack.c.b16 %v1289, %v1289
      %v1354 = vpack.c.b16 %v1290, %v1290
      %v1355 = vpack.c.b16 %v1291, %v1291
      %v1356 = vpack.c.b16 %v1292, %v1292
      %v1357 = vpack.c.b16 %v1293, %v1293
      %v1358 = vpack.c.b16 %v1294, %v1294
      %v1359 = vpack.c.b16 %v1295, %v1295
      %1424 = vst [vmem:[%s233] sm:$0xf] %v1296
      %1425 = vst [vmem:[%s233 + $0x4] sm:$0xf] %v1297
      %1426 = vst [vmem:[%s233 + $0x8] sm:$0xf] %v1298
      %1427 = vst [vmem:[%s233 + $0xc] sm:$0xf] %v1299
      %1428 = vst [vmem:[%s233 + $0x10] sm:$0xf] %v1300
      %1429 = vst [vmem:[%s233 + $0x14] sm:$0xf] %v1301
      %1430 = vst [vmem:[%s233 + $0x18] sm:$0xf] %v1302
      %1431 = vst [vmem:[%s233 + $0x1c] sm:$0xf] %v1303
      %1432 = vst [vmem:[%s233 + $0x20] sm:$0xf] %v1304
      %1433 = vst [vmem:[%s233 + $0x24] sm:$0xf] %v1305
      %1434 = vst [vmem:[%s233 + $0x28] sm:$0xf] %v1306
      %1435 = vst [vmem:[%s233 + $0x2c] sm:$0xf] %v1307
      %1436 = vst [vmem:[%s233 + $0x30] sm:$0xf] %v1308
      %1437 = vst [vmem:[%s233 + $0x34] sm:$0xf] %v1309
      %1438 = vst [vmem:[%s233 + $0x38] sm:$0xf] %v1310
      %1439 = vst [vmem:[%s233 + $0x3c] sm:$0xf] %v1311
      %1440 = vst [vmem:[%s233 + $0x40] sm:$0xf] %v1312
      %1441 = vst [vmem:[%s233 + $0x44] sm:$0xf] %v1313
      %1442 = vst [vmem:[%s233 + $0x48] sm:$0xf] %v1314
      %1443 = vst [vmem:[%s233 + $0x4c] sm:$0xf] %v1315
      %1444 = vst [vmem:[%s233 + $0x50] sm:$0xf] %v1316
      %1445 = vst [vmem:[%s233 + $0x54] sm:$0xf] %v1317
      %1446 = vst [vmem:[%s233 + $0x58] sm:$0xf] %v1318
      %1447 = vst [vmem:[%s233 + $0x5c] sm:$0xf] %v1319
      %1448 = vst [vmem:[%s233 + $0x60] sm:$0xf] %v1320
      %1449 = vst [vmem:[%s233 + $0x64] sm:$0xf] %v1321
      %1450 = vst [vmem:[%s233 + $0x68] sm:$0xf] %v1322
      %1451 = vst [vmem:[%s233 + $0x6c] sm:$0xf] %v1323
      %1452 = vst [vmem:[%s233 + $0x70] sm:$0xf] %v1324
      %1453 = vst [vmem:[%s233 + $0x74] sm:$0xf] %v1325
      %1454 = vst [vmem:[%s233 + $0x78] sm:$0xf] %v1326
      %1455 = vst [vmem:[%s233 + $0x7c] sm:$0xf] %v1327
      %1456 = vst [vmem:[%s233 + $0x80] sm:$0xf] %v1328
      %1457 = vst [vmem:[%s233 + $0x84] sm:$0xf] %v1329
      %1458 = vst [vmem:[%s233 + $0x88] sm:$0xf] %v1330
      %1459 = vst [vmem:[%s233 + $0x8c] sm:$0xf] %v1331
      %1460 = vst [vmem:[%s233 + $0x90] sm:$0xf] %v1332
      %1461 = vst [vmem:[%s233 + $0x94] sm:$0xf] %v1333
      %1462 = vst [vmem:[%s233 + $0x98] sm:$0xf] %v1334
      %1463 = vst [vmem:[%s233 + $0x9c] sm:$0xf] %v1335
      %1464 = vst [vmem:[%s233 + $0xa0] sm:$0xf] %v1336
      %1465 = vst [vmem:[%s233 + $0xa4] sm:$0xf] %v1337
      %1466 = vst [vmem:[%s233 + $0xa8] sm:$0xf] %v1338
      %1467 = vst [vmem:[%s233 + $0xac] sm:$0xf] %v1339
      %1468 = vst [vmem:[%s233 + $0xb0] sm:$0xf] %v1340
      %1469 = vst [vmem:[%s233 + $0xb4] sm:$0xf] %v1341
      %1470 = vst [vmem:[%s233 + $0xb8] sm:$0xf] %v1342
      %1471 = vst [vmem:[%s233 + $0xbc] sm:$0xf] %v1343
      %1472 = vst [vmem:[%s233 + $0xc0] sm:$0xf] %v1344
      %1473 = vst [vmem:[%s233 + $0xc4] sm:$0xf] %v1345
      %1474 = vst [vmem:[%s233 + $0xc8] sm:$0xf] %v1346
      %1475 = vst [vmem:[%s233 + $0xcc] sm:$0xf] %v1347
      %1476 = vst [vmem:[%s233 + $0xd0] sm:$0xf] %v1348
      %1477 = vst [vmem:[%s233 + $0xd4] sm:$0xf] %v1349
      %1478 = vst [vmem:[%s233 + $0xd8] sm:$0xf] %v1350
      %1479 = vst [vmem:[%s233 + $0xdc] sm:$0xf] %v1351
      %1480 = vst [vmem:[%s233 + $0xe0] sm:$0xf] %v1352
      %1481 = vst [vmem:[%s233 + $0xe4] sm:$0xf] %v1353
      %1482 = vst [vmem:[%s233 + $0xe8] sm:$0xf] %v1354
      %1483 = vst [vmem:[%s233 + $0xec] sm:$0xf] %v1355
      %1484 = vst [vmem:[%s233 + $0xf0] sm:$0xf] %v1356
      %1485 = vst [vmem:[%s233 + $0xf4] sm:$0xf] %v1357
      %1486 = vst [vmem:[%s233 + $0xf8] sm:$0xf] %v1358
      %1487 = vst [vmem:[%s233 + $0xfc] sm:$0xf] %v1359
      %s1488 = smul.u32 64, %s17
      %p1489 = scmp.lt.s32.totalorder %s1488, 127
      %s1490 = scalar_select %p1489, %s1488, 127
      %s1491 = smul.addr %s1490, 4
      %s1492 = scalar_lea.vmem %s4, %s1491
      %p1493 = scmp.lt.s32.totalorder %s17, 1
      %s1494 = scalar_select %p1493, %s17, 1
      %s1495 = smul.addr %s1494, 8
      %s1496 = scalar_lea.vmem %s5, %s1495
      // Predicated region
      $region37: #{dilated_residual_unit_3d.6} parent=35 // pred_check
        %p1497 = pneg %p124
      $region38: #{dilated_residual_unit_3d.6} parent=35 // pred_check_branch
        %1499 = sbr.rel (%p1497) target = $region40
      $region39: #{dilated_residual_unit_3d.6} parent=35 // pred_region
        %s1500 = smul.u32 64, %s17
      $region40: #{dilated_residual_unit_3d.6} parent=35 // pred_fallthru
        _
      // Predicated region
      $region41: #{dilated_residual_unit_3d.6} parent=35 // pred_check
        %p1501 = pneg %p150
      $region42: #{dilated_residual_unit_3d.6} parent=35 // pred_check_branch
        %1503 = sbr.rel (%p1501) target = $region44
      $region43: #{dilated_residual_unit_3d.6} parent=35 // pred_region
        _
      $region44: #{dilated_residual_unit_3d.6} parent=35 // pred_fallthru
        _
    $region36: #{dilated_residual_unit_3d.6} parent=5 // pred_fallthru
      _
    %p1504 = scmp.le.s32.totalorder 2, %s12
    // Predicated region
    $region45: #{dilated_residual_unit_3d.6} parent=5 // pred_check
      %p1505 = pneg %p1504
    $region46: #{dilated_residual_unit_3d.6} parent=5 // pred_check_branch
      %1507 = sbr.rel (%p1505) target = $region48
    $region47: #{dilated_residual_unit_3d.6} parent=5 // pred_region
      %s1508 = ssub.s32 %s12, 2
      // Predicated region
      $region49: #{dilated_residual_unit_3d.6} parent=47 // pred_check
        %p1509 = pneg %p130
      $region50: #{dilated_residual_unit_3d.6} parent=47 // pred_check_branch
        %1511 = sbr.rel (%p1509) target = $region52
      $region51: #{dilated_residual_unit_3d.6} parent=47 // pred_region
        %s1512 = smul.u32 64, %s18
        %p1513 = scmp.lt.s32.totalorder %s1512, 127
        %s1514 = scalar_select %p1513, %s1512, 127
        %s1515 = smul.addr %s1514, 4
        %s1516 = scalar_lea.vmem %s4, %s1515
      $region52: #{dilated_residual_unit_3d.6} parent=47 // pred_fallthru
        _
      // Predicated region
      $region53: #{dilated_residual_unit_3d.6} parent=47 // pred_check
        %p1517 = pneg %p156
      $region54: #{dilated_residual_unit_3d.6} parent=47 // pred_check_branch
        %1519 = sbr.rel (%p1517) target = $region56
      $region55: #{dilated_residual_unit_3d.6} parent=47 // pred_region
        %p1520 = scmp.lt.s32.totalorder %s18, 1
        %s1521 = scalar_select %p1520, %s18, 1
        %s1522 = smul.addr %s1521, 8
        %s1523 = scalar_lea.vmem %s5, %s1522
      $region56: #{dilated_residual_unit_3d.6} parent=47 // pred_fallthru
        _
    $region48: #{dilated_residual_unit_3d.6} parent=5 // pred_fallthru
      _
  $region6: #{dilated_residual_unit_3d.6} parent=0 // loop_footer
    %s16 = sadd.s32 1, %s12
  $region7: #{dilated_residual_unit_3d.6} parent=0 // loop_footer_branch
    %11 = sbr.rel target = $region3
  $region8: #{dilated_residual_unit_3d.6} parent=0 // loop_exit
    _

// kernel: dilated_residual_unit_3d.5
$region0: #{dilated_residual_unit_3d.5}
  #allocation0 [shape = 'u32[]', space=smem, size = 0x4, offset = 0x4, fixed_abs, tag = 'smem constant byte address 0x4 - core index']
  #allocation1 [shape = 'u32[144,128]{1,0:T(1,128)}', space=vmem, size = 0x12000, scoped, tag = 'internal scratch']
  #allocation2 [shape = 'f32[64,128]{1,0:T(8,128)}', space=vmem, size = 0x8000, scoped, tag = 'scratch operand']
  #allocation3 [shape = 'bf16[12,8,384]{2,1,0:T(8,128)(2,1)}', space=vmem, size = 0x12000, scoped, tag = 'scratch operand']
  %s0 = inlined_call_operand.vmem [shape: bf16[2,12,12,12,128], index: 0, kind: input, shape index: {}, may-alias: {0,1,2}]
  %s1 = inlined_call_operand.vmem [shape: bf16[2,12,12,12,128], index: 1, kind: input, shape index: {}, may-alias: {0,1,2}]
  %s2 = inlined_call_operand.vmem [shape: bf16[2,12,12,12,128], index: 2, kind: input, shape index: {}, may-alias: {0,1,2}]
  %s3 = inlined_call_operand.vmem [shape: f32[1,128], index: 3, kind: input, shape index: {}]
  %s4 = inlined_call_operand.vmem [shape: f32[1,128], index: 4, kind: input, shape index: {}]
  %s5 = inlined_call_operand.vmem [shape: bf16[9,384,128], index: 5, kind: input, shape index: {}]
  %s6 = inlined_call_operand.vmem [shape: bf16[1024,128], index: 6, kind: output, shape index: {0}]
  %s7 = inlined_call_operand.vmem [shape: f32[2,8,8,128], index: 7, kind: output, shape index: {1}]
  %8 = xla_tuple %s6, %s7
  %s9 = sld [smem:[#allocation0]]
  $region65: #{dilated_residual_unit_3d.5} parent=0
    _
  %s11 = ssub.s32 1, %s9
  %s12 = scalar_select 0, %s11, %s9
  loop: start=0, step=1, limit=18
  $region2: #{dilated_residual_unit_3d.5} parent=0 // loop_pre_header
    _
  $region3: #{dilated_residual_unit_3d.5} parent=0 // loop_header
    %s14 = sphi 0, %s18
    %p15 = scmp.ge.s32.totalorder %s14, 18
    %s21 = sphi 0, %s33
    %s22 = sphi 0, %s29
    %s23 = sphi 0, %s21
    %s24 = sphi 0, %s22
    %s25 = sphi 0, %s23
    %s26 = sphi 0, %s24
    %s38 = sphi 0, %s40
    %s41 = sphi 0, %s38
    %s42 = sphi 0, %s41
    %s58 = sphi 0, %s42
    %s68 = sphi 0, %s70
    %s71 = sphi 0, %s68
    %s72 = sphi 0, %s71
    %s88 = sphi 0, %s72
    %s98 = sphi 0, %s100
    %s101 = sphi 0, %s98
    %s102 = sphi 0, %s101
    %s118 = sphi 0, %s102
    %s122 = sphi 0, %s122
    %s124 = sphi 0, %s122
    %s125 = sphi 0, %s124
    %s139 = sphi 0, %s125
    %s143 = sphi 0, %s143
    %s145 = sphi 0, %s143
    %s146 = sphi 0, %s145
    %s160 = sphi 0, %s146
    %s164 = sphi 0, %s164
    %s166 = sphi 0, %s164
    %s167 = sphi 0, %s166
    %s181 = sphi 0, %s167
    %s191 = sphi 0, %s193
    %s194 = sphi 0, %s191
    %s195 = sphi 0, %s194
    %s211 = sphi 0, %s195
    %s219 = sphi 0, %s221
    %s222 = sphi 0, %s219
    %s223 = sphi 0, %s222
    %s239 = sphi 0, %s223
  $region4: #{dilated_residual_unit_3d.5} parent=0 // loop_header_branch
    %17 = sbr.rel (%p15) target = $region8
  $region5: #{dilated_residual_unit_3d.5} parent=0 // loop_body
    %s19 = ssub.s32 %s14, 1
    %s20 = ssub.s32 %s14, 2
    %s27 = sadd.s32 1, %s22
    %p28 = scmp.ge.s32.totalorder %s27, 8
    %s29 = scalar_select %p28, 0, %s27
    %s30 = sadd.s32 1, %s21
    %s31 = scalar_select %p28, %s30, %s21
    %p32 = scmp.ge.s32.totalorder %s31, 2
    %s33 = scalar_select %p32, 0, %s31
    %s34 = ssub.s32 %s21, %s33
    %s35 = ssub.s32 %s22, %s29
    %s36 = sor.u32 %s34, %s35
    %p37 = scmp.eq.s32.totalorder %s36, 0
    %s39 = sadd.s32 %s38, 1
    %s40 = scalar_select %p37, %s38, %s39
    %p43 = pneg %p37
    %p44 = scmp.eq.s32.totalorder %s14, 15
    %p45 = por %p43, %p44
    %p46 = scmp.ne.s32.totalorder %s38, %s41
    %p47 = scmp.eq.s32.totalorder %s14, 0
    %p48 = por %p46, %p47
    %p49 = scmp.ne.s32.totalorder %s38, %s41
    %p50 = scmp.eq.s32.totalorder %s19, 15
    %p51 = por %p49, %p50
    %p52 = scmp.ne.s32.totalorder %s41, %s42
    %p53 = scmp.eq.s32.totalorder %s19, 0
    %p54 = por %p52, %p53
    %p55 = scmp.ne.s32.totalorder %s41, %s42
    %p56 = scmp.eq.s32.totalorder %s20, 15
    %p57 = por %p55, %p56
    %p59 = scmp.ne.s32.totalorder %s42, %s58
    %p60 = scmp.eq.s32.totalorder %s20, 0
    %p61 = por %p59, %p60
    %s62 = sadd.s32 %s22, 2
    %s63 = sadd.s32 %s29, 2
    %s64 = ssub.s32 %s21, %s33
    %s65 = ssub.s32 %s62, %s63
    %s66 = sor.u32 %s64, %s65
    %p67 = scmp.eq.s32.totalorder %s66, 0
    %s69 = sadd.s32 %s68, 1
    %s70 = scalar_select %p67, %s68, %s69
    %p73 = pneg %p67
    %p74 = scmp.eq.s32.totalorder %s14, 15
    %p75 = por %p73, %p74
    %p76 = scmp.ne.s32.totalorder %s68, %s71
    %p77 = scmp.eq.s32.totalorder %s14, 0
    %p78 = por %p76, %p77
    %p79 = scmp.ne.s32.totalorder %s68, %s71
    %p80 = scmp.eq.s32.totalorder %s19, 15
    %p81 = por %p79, %p80
    %p82 = scmp.ne.s32.totalorder %s71, %s72
    %p83 = scmp.eq.s32.totalorder %s19, 0
    %p84 = por %p82, %p83
    %p85 = scmp.ne.s32.totalorder %s71, %s72
    %p86 = scmp.eq.s32.totalorder %s20, 15
    %p87 = por %p85, %p86
    %p89 = scmp.ne.s32.totalorder %s72, %s88
    %p90 = scmp.eq.s32.totalorder %s20, 0
    %p91 = por %p89, %p90
    %s92 = sadd.s32 %s22, 4
    %s93 = sadd.s32 %s29, 4
    %s94 = ssub.s32 %s21, %s33
    %s95 = ssub.s32 %s92, %s93
    %s96 = sor.u32 %s94, %s95
    %p97 = scmp.eq.s32.totalorder %s96, 0
    %s99 = sadd.s32 %s98, 1
    %s100 = scalar_select %p97, %s98, %s99
    %p103 = pneg %p97
    %p104 = scmp.eq.s32.totalorder %s14, 15
    %p105 = por %p103, %p104
    %p106 = scmp.ne.s32.totalorder %s98, %s101
    %p107 = scmp.eq.s32.totalorder %s14, 0
    %p108 = por %p106, %p107
    %p109 = scmp.ne.s32.totalorder %s98, %s101
    %p110 = scmp.eq.s32.totalorder %s19, 15
    %p111 = por %p109, %p110
    %p112 = scmp.ne.s32.totalorder %s101, %s102
    %p113 = scmp.eq.s32.totalorder %s19, 0
    %p114 = por %p112, %p113
    %p115 = scmp.ne.s32.totalorder %s101, %s102
    %p116 = scmp.eq.s32.totalorder %s20, 15
    %p117 = por %p115, %p116
    %p119 = scmp.ne.s32.totalorder %s102, %s118
    %p120 = scmp.eq.s32.totalorder %s20, 0
    %p121 = por %p119, %p120
    %s123 = sadd.s32 %s122, 1
    %p126 = scmp.eq.s32.totalorder %s14, 15
    %p127 = scmp.ne.s32.totalorder %s122, %s124
    %p128 = scmp.eq.s32.totalorder %s14, 0
    %p129 = por %p127, %p128
    %p130 = scmp.ne.s32.totalorder %s122, %s124
    %p131 = scmp.eq.s32.totalorder %s19, 15
    %p132 = por %p130, %p131
    %p133 = scmp.ne.s32.totalorder %s124, %s125
    %p134 = scmp.eq.s32.totalorder %s19, 0
    %p135 = por %p133, %p134
    %p136 = scmp.ne.s32.totalorder %s124, %s125
    %p137 = scmp.eq.s32.totalorder %s20, 15
    %p138 = por %p136, %p137
    %p140 = scmp.ne.s32.totalorder %s125, %s139
    %p141 = scmp.eq.s32.totalorder %s20, 0
    %p142 = por %p140, %p141
    %s144 = sadd.s32 %s143, 1
    %p147 = scmp.eq.s32.totalorder %s14, 15
    %p148 = scmp.ne.s32.totalorder %s143, %s145
    %p149 = scmp.eq.s32.totalorder %s14, 0
    %p150 = por %p148, %p149
    %p151 = scmp.ne.s32.totalorder %s143, %s145
    %p152 = scmp.eq.s32.totalorder %s19, 15
    %p153 = por %p151, %p152
    %p154 = scmp.ne.s32.totalorder %s145, %s146
    %p155 = scmp.eq.s32.totalorder %s19, 0
    %p156 = por %p154, %p155
    %p157 = scmp.ne.s32.totalorder %s145, %s146
    %p158 = scmp.eq.s32.totalorder %s20, 15
    %p159 = por %p157, %p158
    %p161 = scmp.ne.s32.totalorder %s146, %s160
    %p162 = scmp.eq.s32.totalorder %s20, 0
    %p163 = por %p161, %p162
    %s165 = sadd.s32 %s164, 1
    %p168 = scmp.eq.s32.totalorder %s14, 15
    %p169 = scmp.ne.s32.totalorder %s164, %s166
    %p170 = scmp.eq.s32.totalorder %s14, 0
    %p171 = por %p169, %p170
    %p172 = scmp.ne.s32.totalorder %s164, %s166
    %p173 = scmp.eq.s32.totalorder %s19, 15
    %p174 = por %p172, %p173
    %p175 = scmp.ne.s32.totalorder %s166, %s167
    %p176 = scmp.eq.s32.totalorder %s19, 0
    %p177 = por %p175, %p176
    %p178 = scmp.ne.s32.totalorder %s166, %s167
    %p179 = scmp.eq.s32.totalorder %s20, 15
    %p180 = por %p178, %p179
    %p182 = scmp.ne.s32.totalorder %s167, %s181
    %p183 = scmp.eq.s32.totalorder %s20, 0
    %p184 = por %p182, %p183
    %s185 = smul.u32 %s21, 8
    %s186 = sadd.s32 %s185, %s22
    %s187 = smul.u32 %s33, 8
    %s188 = sadd.s32 %s187, %s29
    %s189 = ssub.s32 %s186, %s188
    %p190 = scmp.eq.s32.totalorder %s189, 0
    %s192 = sadd.s32 %s191, 1
    %s193 = scalar_select %p190, %s191, %s192
    %p196 = pneg %p190
    %p197 = scmp.eq.s32.totalorder %s14, 15
    %p198 = por %p196, %p197
    %p199 = scmp.ne.s32.totalorder %s191, %s194
    %p200 = scmp.eq.s32.totalorder %s14, 0
    %p201 = por %p199, %p200
    %p202 = scmp.ne.s32.totalorder %s191, %s194
    %p203 = scmp.eq.s32.totalorder %s19, 15
    %p204 = por %p202, %p203
    %p205 = scmp.ne.s32.totalorder %s194, %s195
    %p206 = scmp.eq.s32.totalorder %s19, 0
    %p207 = por %p205, %p206
    %p208 = scmp.ne.s32.totalorder %s194, %s195
    %p209 = scmp.eq.s32.totalorder %s20, 15
    %p210 = por %p208, %p209
    %p212 = scmp.ne.s32.totalorder %s195, %s211
    %p213 = scmp.eq.s32.totalorder %s20, 0
    %p214 = por %p212, %p213
    %s215 = ssub.s32 %s21, %s33
    %s216 = ssub.s32 %s22, %s29
    %s217 = sor.u32 %s215, %s216
    %p218 = scmp.eq.s32.totalorder %s217, 0
    %s220 = sadd.s32 %s219, 1
    %s221 = scalar_select %p218, %s219, %s220
    %p224 = pneg %p218
    %p225 = scmp.eq.s32.totalorder %s14, 15
    %p226 = por %p224, %p225
    %p227 = scmp.ne.s32.totalorder %s219, %s222
    %p228 = scmp.eq.s32.totalorder %s14, 0
    %p229 = por %p227, %p228
    %p230 = scmp.ne.s32.totalorder %s219, %s222
    %p231 = scmp.eq.s32.totalorder %s19, 15
    %p232 = por %p230, %p231
    %p233 = scmp.ne.s32.totalorder %s222, %s223
    %p234 = scmp.eq.s32.totalorder %s19, 0
    %p235 = por %p233, %p234
    %p236 = scmp.ne.s32.totalorder %s222, %s223
    %p237 = scmp.eq.s32.totalorder %s20, 15
    %p238 = por %p236, %p237
    %p240 = scmp.ne.s32.totalorder %s223, %s239
    %p241 = scmp.eq.s32.totalorder %s20, 0
    %p242 = por %p240, %p241
    %p243 = scmp.le.s32.totalorder 1, %s14
    %p244 = scmp.lt.s32.totalorder %s14, 17
    %p245 = pnand %p243, %p244
    %p246 = pneg %p245
    // Predicated region
    $region9: #{dilated_residual_unit_3d.5} parent=5 // pred_check
      _
    $region10: #{dilated_residual_unit_3d.5} parent=5 // pred_check_branch
      %248 = sbr.rel (%p245) target = $region12
    $region11: #{dilated_residual_unit_3d.5} parent=5 // pred_region
      %s249 = ssub.s32 %s14, 1
      // Predicated region
      $region13: #{dilated_residual_unit_3d.5} parent=11 // pred_check
        %p250 = pneg %p135
      $region14: #{dilated_residual_unit_3d.5} parent=11 // pred_check_branch
        %252 = sbr.rel (%p250) target = $region16
      $region15: #{dilated_residual_unit_3d.5} parent=11 // pred_region
        _
      $region16: #{dilated_residual_unit_3d.5} parent=11 // pred_fallthru
        _
      // Predicated region
      $region17: #{dilated_residual_unit_3d.5} parent=11 // pred_check
        %p253 = pneg %p156
      $region18: #{dilated_residual_unit_3d.5} parent=11 // pred_check_branch
        %255 = sbr.rel (%p253) target = $region20
      $region19: #{dilated_residual_unit_3d.5} parent=11 // pred_region
        _
      $region20: #{dilated_residual_unit_3d.5} parent=11 // pred_fallthru
        _
      // Predicated region
      $region21: #{dilated_residual_unit_3d.5} parent=11 // pred_check
        %p256 = pneg %p177
      $region22: #{dilated_residual_unit_3d.5} parent=11 // pred_check_branch
        %258 = sbr.rel (%p256) target = $region24
      $region23: #{dilated_residual_unit_3d.5} parent=11 // pred_region
        _
      $region24: #{dilated_residual_unit_3d.5} parent=11 // pred_fallthru
        _
    $region12: #{dilated_residual_unit_3d.5} parent=5 // pred_fallthru
      _
    %p259 = scmp.lt.s32.totalorder %s14, 16
    // Predicated region
    $region25: #{dilated_residual_unit_3d.5} parent=5 // pred_check
      %p260 = pneg %p259
    $region26: #{dilated_residual_unit_3d.5} parent=5 // pred_check_branch
      %262 = sbr.rel (%p260) target = $region28
    $region27: #{dilated_residual_unit_3d.5} parent=5 // pred_region
      // Predicated region
      $region29: #{dilated_residual_unit_3d.5} parent=27 // pred_check
        %p263 = pneg %p48
      $region30: #{dilated_residual_unit_3d.5} parent=27 // pred_check_branch
        %265 = sbr.rel (%p263) target = $region32
      $region31: #{dilated_residual_unit_3d.5} parent=27 // pred_region
        %p266 = scmp.lt.s32.totalorder %s21, 1
        %s267 = scalar_select %p266, %s21, 1
        %p268 = scmp.lt.s32.totalorder %s22, 11
        %s269 = scalar_select %p268, %s22, 11
        %s270 = smul.addr %s269, 24
        %s271 = smul.addr %s267, 288
        %s272 = sadd.s32 %s270, %s271
        %s273 = smul.addr %s272, 4
        %s274 = scalar_lea.vmem %s0, %s273
      $region32: #{dilated_residual_unit_3d.5} parent=27 // pred_fallthru
        _
      // Predicated region
      $region33: #{dilated_residual_unit_3d.5} parent=27 // pred_check
        %p275 = pneg %p78
      $region34: #{dilated_residual_unit_3d.5} parent=27 // pred_check_branch
        %277 = sbr.rel (%p275) target = $region36
      $region35: #{dilated_residual_unit_3d.5} parent=27 // pred_region
        %s278 = sadd.s32 %s22, 2
        %p279 = scmp.lt.s32.totalorder %s21, 1
        %s280 = scalar_select %p279, %s21, 1
        %p281 = scmp.lt.s32.totalorder %s278, 11
        %s282 = scalar_select %p281, %s278, 11
        %s283 = smul.addr %s282, 24
        %s284 = smul.addr %s280, 288
        %s285 = sadd.s32 %s283, %s284
        %s286 = smul.addr %s285, 4
        %s287 = scalar_lea.vmem %s1, %s286
        %s288 = sadd.s32 %s22, 2
      $region36: #{dilated_residual_unit_3d.5} parent=27 // pred_fallthru
        _
      // Predicated region
      $region37: #{dilated_residual_unit_3d.5} parent=27 // pred_check
        %p289 = pneg %p108
      $region38: #{dilated_residual_unit_3d.5} parent=27 // pred_check_branch
        %291 = sbr.rel (%p289) target = $region40
      $region39: #{dilated_residual_unit_3d.5} parent=27 // pred_region
        %s292 = sadd.s32 %s22, 4
        %p293 = scmp.lt.s32.totalorder %s21, 1
        %s294 = scalar_select %p293, %s21, 1
        %p295 = scmp.lt.s32.totalorder %s292, 11
        %s296 = scalar_select %p295, %s292, 11
        %s297 = smul.addr %s296, 24
        %s298 = smul.addr %s294, 288
        %s299 = sadd.s32 %s297, %s298
        %s300 = smul.addr %s299, 4
        %s301 = scalar_lea.vmem %s2, %s300
        %s302 = sadd.s32 %s22, 4
      $region40: #{dilated_residual_unit_3d.5} parent=27 // pred_fallthru
        _
    $region28: #{dilated_residual_unit_3d.5} parent=5 // pred_fallthru
      _
    %p303 = scmp.le.s32.totalorder 1, %s14
    %p304 = scmp.lt.s32.totalorder %s14, 17
    %p305 = pnand %p303, %p304
    %p306 = pneg %p305
    // Predicated region
    $region41: #{dilated_residual_unit_3d.5} parent=5 // pred_check
      _
    $region42: #{dilated_residual_unit_3d.5} parent=5 // pred_check_branch
      %308 = sbr.rel (%p305) target = $region44
    $region43: #{dilated_residual_unit_3d.5} parent=5 // pred_region
      %s309 = ssub.s32 %s14, 1
      %p310 = scmp.lt.s32.totalorder %s23, 1
      %s311 = scalar_select %p310, %s23, 1
      %p312 = scmp.lt.s32.totalorder %s24, 11
      %s313 = scalar_select %p312, %s24, 11
      %s314 = smul.addr %s313, 24
      %s315 = smul.addr %s311, 288
      %s316 = sadd.s32 %s314, %s315
      %s317 = smul.addr %s316, 4
      %s318 = scalar_lea.vmem %s0, %s317
      %p319 = pneg %p54
      %p320 = pneg %p51
      %s321 = sadd.s32 %s24, 2
      %p322 = scmp.lt.s32.totalorder %s23, 1
      %s323 = scalar_select %p322, %s23, 1
      %p324 = scmp.lt.s32.totalorder %s321, 11
      %s325 = scalar_select %p324, %s321, 11
      %s326 = smul.addr %s325, 24
      %s327 = smul.addr %s323, 288
      %s328 = sadd.s32 %s326, %s327
      %s329 = smul.addr %s328, 4
      %s330 = scalar_lea.vmem %s1, %s329
      %p331 = pneg %p84
      %p332 = pneg %p81
      %s333 = sadd.s32 %s24, 4
      %p334 = scmp.lt.s32.totalorder %s23, 1
      %s335 = scalar_select %p334, %s23, 1
      %p336 = scmp.lt.s32.totalorder %s333, 11
      %s337 = scalar_select %p336, %s333, 11
      %s338 = smul.addr %s337, 24
      %s339 = smul.addr %s335, 288
      %s340 = sadd.s32 %s338, %s339
      %s341 = smul.addr %s340, 4
      %s342 = scalar_lea.vmem %s2, %s341
      %p343 = pneg %p114
      %p344 = pneg %p111
      %p345 = pneg %p135
      %p346 = pneg %p132
      %p347 = pneg %p156
      %p348 = pneg %p153
      %p349 = pneg %p177
      %p350 = pneg %p174
      %p351 = pneg %p207
      %p352 = pneg %p204
      %s353 = smul.u32 %s23, 8
      %s354 = sadd.s32 %s353, %s24
      %s355 = smul.u32 8, %s354
      %p356 = scmp.lt.s32.totalorder %s355, 127
      %s357 = scalar_select %p356, %s355, 127
      %s358 = smul.addr %s357, 4
      %s359 = scalar_lea.vmem %s6, %s358
      %p360 = pneg %p235
      %p361 = pneg %p232
      %p362 = scmp.lt.s32.totalorder %s23, 1
      %s363 = scalar_select %p362, %s23, 1
      %p364 = scmp.lt.s32.totalorder %s24, 7
      %s365 = scalar_select %p364, %s24, 7
      %s366 = smul.addr %s363, 8
      %s367 = sadd.s32 %s365, %s366
      %s368 = smul.addr %s367, 8
      %s369 = scalar_lea.vmem %s7, %s368
      %p370 = scmp.lt.s32.totalorder %s23, 1
      %s371 = scalar_select %p370, %s23, 1
      %p372 = scmp.lt.s32.totalorder %s24, 11
      %s373 = scalar_select %p372, %s24, 11
      %s374 = smul.addr %s373, 24
      %s375 = smul.addr %s371, 288
      %s376 = sadd.s32 %s374, %s375
      %s377 = smul.addr %s376, 4
      %s378 = scalar_lea.vmem %s0, %s377
      %s379 = sadd.s32 %s24, 2
      %p380 = scmp.lt.s32.totalorder %s23, 1
      %s381 = scalar_select %p380, %s23, 1
      %p382 = scmp.lt.s32.totalorder %s379, 11
      %s383 = scalar_select %p382, %s379, 11
      %s384 = smul.addr %s383, 24
      %s385 = smul.addr %s381, 288
      %s386 = sadd.s32 %s384, %s385
      %s387 = smul.addr %s386, 4
      %s388 = scalar_lea.vmem %s1, %s387
      %s389 = sadd.s32 %s24, 2
      %s390 = sadd.s32 %s24, 4
      %p391 = scmp.lt.s32.totalorder %s23, 1
      %s392 = scalar_select %p391, %s23, 1
      %p393 = scmp.lt.s32.totalorder %s390, 11
      %s394 = scalar_select %p393, %s390, 11
      %s395 = smul.addr %s394, 24
      %s396 = smul.addr %s392, 288
      %s397 = sadd.s32 %s395, %s396
      %s398 = smul.addr %s397, 4
      %s399 = scalar_lea.vmem %s2, %s398
      %s400 = sadd.s32 %s24, 4
      %s401 = smul.u32 %s23, 8
      %s402 = sadd.s32 %s401, %s24
      %s403 = smul.u32 8, %s402
      %p404 = scmp.lt.s32.totalorder %s403, 127
      %s405 = scalar_select %p404, %s403, 127
      %s406 = smul.addr %s405, 4
      %s407 = scalar_lea.vmem %s6, %s406
      %s408 = smul.u32 %s23, 8
      %s409 = sadd.s32 %s408, %s24
      %s410 = smul.u32 8, %s409
      %p411 = scmp.lt.s32.totalorder %s23, 1
      %s412 = scalar_select %p411, %s23, 1
      %p413 = scmp.lt.s32.totalorder %s24, 7
      %s414 = scalar_select %p413, %s24, 7
      %s415 = smul.addr %s412, 8
      %s416 = sadd.s32 %s414, %s415
      %s417 = smul.addr %s416, 8
      %s418 = scalar_lea.vmem %s7, %s417
      %420 = vst [vmem:[#allocation2] sm:$0xff] 0.0
      %421 = vst [vmem:[#allocation2 + $0x8] sm:$0xff] 0.0
      %422 = vst [vmem:[#allocation2 + $0x10] sm:$0xff] 0.0
      %423 = vst [vmem:[#allocation2 + $0x18] sm:$0xff] 0.0
      %424 = vst [vmem:[#allocation2 + $0x20] sm:$0xff] 0.0
      %425 = vst [vmem:[#allocation2 + $0x28] sm:$0xff] 0.0
      %426 = vst [vmem:[#allocation2 + $0x30] sm:$0xff] 0.0
      %427 = vst [vmem:[#allocation2 + $0x38] sm:$0xff] 0.0
      %v428 = vld [vmem:[%s3] sm:$0x1]
      %v429 = vld [vmem:[%s4] sm:$0x1]
      %v430 = vlaneseq
      %v431 = vshrl.u32 %v430, 7
      %s432 = sadd.s32 %s24, 4294967294
      %p433 = scmp.ge.s32.totalorder %s432, 0
      %p434 = scmp.lt.s32.totalorder %s432, 8
      %p435 = pnand %p433, %p434
      %p436 = pneg %p435
      %v437 = vld [vmem:[%s378] sm:$0xf]
      %v438 = vld [vmem:[%s378 + $0x8] sm:$0xf]
      %v439 = vld [vmem:[%s378 + $0x10] sm:$0xf]
      %v440 = vld [vmem:[%s378 + $0x18] sm:$0xf]
      %v441 = vld [vmem:[%s378 + $0x20] sm:$0xf]
      %v442 = vld [vmem:[%s378 + $0x28] sm:$0xf]
      %v443 = vld [vmem:[%s378 + $0x30] sm:$0xf]
      %v444 = vld [vmem:[%s378 + $0x38] sm:$0xf]
      %v445 = vld [vmem:[%s378 + $0x40] sm:$0xf]
      %v446 = vld [vmem:[%s378 + $0x48] sm:$0xf]
      %v447 = vld [vmem:[%s378 + $0x50] sm:$0xf]
      %v448 = vld [vmem:[%s378 + $0x58] sm:$0xf]
      %v449 = vunpack.c.l.bf16 %v437
      %v450 = vunpack.c.l.bf16 %v438
      %v451 = vunpack.c.l.bf16 %v439
      %v452 = vunpack.c.l.bf16 %v440
      %v453 = vunpack.c.l.bf16 %v441
      %v454 = vunpack.c.l.bf16 %v442
      %v455 = vunpack.c.l.bf16 %v443
      %v456 = vunpack.c.l.bf16 %v444
      %v457 = vunpack.c.l.bf16 %v445
      %v458 = vunpack.c.l.bf16 %v446
      %v459 = vunpack.c.l.bf16 %v447
      %v460 = vunpack.c.l.bf16 %v448
      %vm461 = vcmp.ge.s32.totalorder %v431, 2
      %vm462 = vcmp.lt.s32.totalorder %v431, 8
      %vm463 = vmand %vm461, %vm462
      %vm464 = vmand 0, %vm463
      %vm465 = vmand 1, %vm463
      %s466 = scalar_select %p436, 1, 0
      %v467 = vstv %s466
      %vm468 = vcmp.eq.s32.totalorder %v467, 1
      %vm469 = vmand %vm464, %vm468
      %vm470 = vmand %vm465, %vm468
      %v472 = vlaneseq
      %v473 = vshrl.u32 %v472, 7
      %v474 = vsub.s32 0, %v473
      %v475 = vrot.slane %v428, %v474
      %v477 = vmul.f32 %v449, %v475
      %v478 = vmul.f32 %v450, %v475
      %v479 = vmul.f32 %v451, %v475
      %v480 = vmul.f32 %v452, %v475
      %v481 = vmul.f32 %v453, %v475
      %v482 = vmul.f32 %v454, %v475
      %v483 = vmul.f32 %v455, %v475
      %v484 = vmul.f32 %v456, %v475
      %v485 = vmul.f32 %v457, %v475
      %v486 = vmul.f32 %v458, %v475
      %v487 = vmul.f32 %v459, %v475
      %v488 = vmul.f32 %v460, %v475
      %v490 = vlaneseq
      %v491 = vshrl.u32 %v490, 7
      %v492 = vsub.s32 0, %v491
      %v493 = vrot.slane %v429, %v492
      %v495 = vadd.f32 %v477, %v493
      %v496 = vadd.f32 %v478, %v493
      %v497 = vadd.f32 %v479, %v493
      %v498 = vadd.f32 %v480, %v493
      %v499 = vadd.f32 %v481, %v493
      %v500 = vadd.f32 %v482, %v493
      %v501 = vadd.f32 %v483, %v493
      %v502 = vadd.f32 %v484, %v493
      %v503 = vadd.f32 %v485, %v493
      %v504 = vadd.f32 %v486, %v493
      %v505 = vadd.f32 %v487, %v493
      %v506 = vadd.f32 %v488, %v493
      %v507 = vmax.f32 %v495, 0.0
      %v508 = vmax.f32 %v496, 0.0
      %v509 = vmax.f32 %v497, 0.0
      %v510 = vmax.f32 %v498, 0.0
      %v511 = vmax.f32 %v499, 0.0
      %v512 = vmax.f32 %v500, 0.0
      %v513 = vmax.f32 %v501, 0.0
      %v514 = vmax.f32 %v502, 0.0
      %v515 = vmax.f32 %v503, 0.0
      %v516 = vmax.f32 %v504, 0.0
      %v517 = vmax.f32 %v505, 0.0
      %v518 = vmax.f32 %v506, 0.0
      %v519 = vsel %vm469, 1, 0
      %v520 = vsel %vm470, 1, 0
      %vm521 = vcmp.eq.s32.totalorder %v519, 1
      %vm522 = vcmp.eq.s32.totalorder %v520, 1
      %v523 = vsel %vm521, %v507, 0.0
      %v524 = vsel %vm521, %v508, 0.0
      %v525 = vsel %vm522, %v509, 0.0
      %v526 = vsel %vm522, %v510, 0.0
      %v527 = vsel %vm522, %v511, 0.0
      %v528 = vsel %vm522, %v512, 0.0
      %v529 = vsel %vm522, %v513, 0.0
      %v530 = vsel %vm522, %v514, 0.0
      %v531 = vsel %vm522, %v515, 0.0
      %v532 = vsel %vm522, %v516, 0.0
      %v533 = vsel %vm521, %v517, 0.0
      %v534 = vsel %vm521, %v518, 0.0
      %v535 = vpack.c.bf16 %v523, %v523
      %v536 = vpack.c.bf16 %v524, %v524
      %v537 = vpack.c.bf16 %v525, %v525
      %v538 = vpack.c.bf16 %v526, %v526
      %v539 = vpack.c.bf16 %v527, %v527
      %v540 = vpack.c.bf16 %v528, %v528
      %v541 = vpack.c.bf16 %v529, %v529
      %v542 = vpack.c.bf16 %v530, %v530
      %v543 = vpack.c.bf16 %v531, %v531
      %v544 = vpack.c.bf16 %v532, %v532
      %v545 = vpack.c.bf16 %v533, %v533
      %v546 = vpack.c.bf16 %v534, %v534
      %547 = vst [vmem:[#allocation3] sm:$0xf] %v535
      %548 = vst [vmem:[#allocation3 + $0xc] sm:$0xf] %v536
      %549 = vst [vmem:[#allocation3 + $0x18] sm:$0xf] %v537
      %550 = vst [vmem:[#allocation3 + $0x24] sm:$0xf] %v538
      %551 = vst [vmem:[#allocation3 + $0x30] sm:$0xf] %v539
      %552 = vst [vmem:[#allocation3 + $0x3c] sm:$0xf] %v540
      %553 = vst [vmem:[#allocation3 + $0x48] sm:$0xf] %v541
      %554 = vst [vmem:[#allocation3 + $0x54] sm:$0xf] %v542
      %555 = vst [vmem:[#allocation3 + $0x60] sm:$0xf] %v543
      %556 = vst [vmem:[#allocation3 + $0x6c] sm:$0xf] %v544
      %557 = vst [vmem:[#allocation3 + $0x78] sm:$0xf] %v545
      %558 = vst [vmem:[#allocation3 + $0x84] sm:$0xf] %v546
      %v559 = vld [vmem:[%s378] sm:$0xe]
      %v560 = vld [vmem:[%s378 + $0x4] sm:$0x1]
      %v561 = vld [vmem:[%s378 + $0x8] sm:$0xe]
      %v562 = vld [vmem:[%s378 + $0xc] sm:$0x1]
      %v563 = vld [vmem:[%s378 + $0x10] sm:$0xe]
      %v564 = vld [vmem:[%s378 + $0x14] sm:$0x1]
      %v565 = vld [vmem:[%s378 + $0x18] sm:$0xe]
      %v566 = vld [vmem:[%s378 + $0x1c] sm:$0x1]
      %v567 = vld [vmem:[%s378 + $0x20] sm:$0xe]
      %v568 = vld [vmem:[%s378 + $0x24] sm:$0x1]
      %v569 = vld [vmem:[%s378 + $0x28] sm:$0xe]
      %v570 = vld [vmem:[%s378 + $0x2c] sm:$0x1]
      %v571 = vld [vmem:[%s378 + $0x30] sm:$0xe]
      %v572 = vld [vmem:[%s378 + $0x34] sm:$0x1]
      %v573 = vld [vmem:[%s378 + $0x38] sm:$0xe]
      %v574 = vld [vmem:[%s378 + $0x3c] sm:$0x1]
      %v575 = vld [vmem:[%s378 + $0x40] sm:$0xe]
      %v576 = vld [vmem:[%s378 + $0x44] sm:$0x1]
      %v577 = vld [vmem:[%s378 + $0x48] sm:$0xe]
      %v578 = vld [vmem:[%s378 + $0x4c] sm:$0x1]
      %v579 = vld [vmem:[%s378 + $0x50] sm:$0xe]
      %v580 = vld [vmem:[%s378 + $0x54] sm:$0x1]
      %v581 = vld [vmem:[%s378 + $0x58] sm:$0xe]
      %v582 = vld [vmem:[%s378 + $0x5c] sm:$0x1]
      %v583 = vunpack.c.l.bf16 %v559
      %v584 = vunpack.c.l.bf16 %v560
      %v585 = vunpack.c.l.bf16 %v561
      %v586 = vunpack.c.l.bf16 %v562
      %v587 = vunpack.c.l.bf16 %v563
      %v588 = vunpack.c.l.bf16 %v564
      %v589 = vunpack.c.l.bf16 %v565
      %v590 = vunpack.c.l.bf16 %v566
      %v591 = vunpack.c.l.bf16 %v567
      %v592 = vunpack.c.l.bf16 %v568
      %v593 = vunpack.c.l.bf16 %v569
      %v594 = vunpack.c.l.bf16 %v570
      %v595 = vunpack.c.l.bf16 %v571
      %v596 = vunpack.c.l.bf16 %v572
      %v597 = vunpack.c.l.bf16 %v573
      %v598 = vunpack.c.l.bf16 %v574
      %v599 = vunpack.c.l.bf16 %v575
      %v600 = vunpack.c.l.bf16 %v576
      %v601 = vunpack.c.l.bf16 %v577
      %v602 = vunpack.c.l.bf16 %v578
      %v603 = vunpack.c.l.bf16 %v579
      %v604 = vunpack.c.l.bf16 %v580
      %v605 = vunpack.c.l.bf16 %v581
      %v606 = vunpack.c.l.bf16 %v582
      %vm607 = vcmp.ge.s32.totalorder %v431, 0
      %vm608 = vmand %vm607, %vm462
      %vm609 = vmand 0, %vm608
      %vm610 = vmand 1, %vm608
      %vm611 = vmand %vm609, %vm468
      %vm612 = vmand %vm610, %vm468
      %v613 = vmul.f32 %v583, %v475
      %v614 = vmul.f32 %v584, %v475
      %v615 = vmul.f32 %v585, %v475
      %v616 = vmul.f32 %v586, %v475
      %v617 = vmul.f32 %v587, %v475
      %v618 = vmul.f32 %v588, %v475
      %v619 = vmul.f32 %v589, %v475
      %v620 = vmul.f32 %v590, %v475
      %v621 = vmul.f32 %v591, %v475
      %v622 = vmul.f32 %v592, %v475
      %v623 = vmul.f32 %v593, %v475
      %v624 = vmul.f32 %v594, %v475
      %v625 = vmul.f32 %v595, %v475
      %v626 = vmul.f32 %v596, %v475
      %v627 = vmul.f32 %v597, %v475
      %v628 = vmul.f32 %v598, %v475
      %v629 = vmul.f32 %v599, %v475
      %v630 = vmul.f32 %v600, %v475
      %v631 = vmul.f32 %v601, %v475
      %v632 = vmul.f32 %v602, %v475
      %v633 = vmul.f32 %v603, %v475
      %v634 = vmul.f32 %v604, %v475
      %v635 = vmul.f32 %v605, %v475
      %v636 = vmul.f32 %v606, %v475
      %v637 = vadd.f32 %v613, %v493
      %v638 = vadd.f32 %v614, %v493
      %v639 = vadd.f32 %v615, %v493
      %v640 = vadd.f32 %v616, %v493
      %v641 = vadd.f32 %v617, %v493
      %v642 = vadd.f32 %v618, %v493
      %v643 = vadd.f32 %v619, %v493
      %v644 = vadd.f32 %v620, %v493
      %v645 = vadd.f32 %v621, %v493
      %v646 = vadd.f32 %v622, %v493
      %v647 = vadd.f32 %v623, %v493
      %v648 = vadd.f32 %v624, %v493
      %v649 = vadd.f32 %v625, %v493
      %v650 = vadd.f32 %v626, %v493
      %v651 = vadd.f32 %v627, %v493
      %v652 = vadd.f32 %v628, %v493
      %v653 = vadd.f32 %v629, %v493
      %v654 = vadd.f32 %v630, %v493
      %v655 = vadd.f32 %v631, %v493
      %v656 = vadd.f32 %v632, %v493
      %v657 = vadd.f32 %v633, %v493
      %v658 = vadd.f32 %v634, %v493
      %v659 = vadd.f32 %v635, %v493
      %v660 = vadd.f32 %v636, %v493
      %v661 = vmax.f32 %v637, 0.0
      %v662 = vmax.f32 %v638, 0.0
      %v663 = vmax.f32 %v639, 0.0
      %v664 = vmax.f32 %v640, 0.0
      %v665 = vmax.f32 %v641, 0.0
      %v666 = vmax.f32 %v642, 0.0
      %v667 = vmax.f32 %v643, 0.0
      %v668 = vmax.f32 %v644, 0.0
      %v669 = vmax.f32 %v645, 0.0
      %v670 = vmax.f32 %v646, 0.0
      %v671 = vmax.f32 %v647, 0.0
      %v672 = vmax.f32 %v648, 0.0
      %v673 = vmax.f32 %v649, 0.0
      %v674 = vmax.f32 %v650, 0.0
      %v675 = vmax.f32 %v651, 0.0
      %v676 = vmax.f32 %v652, 0.0
      %v677 = vmax.f32 %v653, 0.0
      %v678 = vmax.f32 %v654, 0.0
      %v679 = vmax.f32 %v655, 0.0
      %v680 = vmax.f32 %v656, 0.0
      %v681 = vmax.f32 %v657, 0.0
      %v682 = vmax.f32 %v658, 0.0
      %v683 = vmax.f32 %v659, 0.0
      %v684 = vmax.f32 %v660, 0.0
      %v685 = vsel %vm611, 1, 0
      %v686 = vsel %vm612, 1, 0
      %vm687 = vcmp.eq.s32.totalorder %v685, 1
      %vm688 = vcmp.eq.s32.totalorder %v686, 1
      %vm713 = vcmask 1045504
      %v714 = vrot.slane %v661, 2
      %v715 = vrot.slane %v662, 2
      %v716 = vsel %vm713, %v714, %v715
      %v717 = vrot.slane %v663, 2
      %v718 = vrot.slane %v664, 2
      %v719 = vsel %vm713, %v717, %v718
      %v720 = vrot.slane %v665, 2
      %v721 = vrot.slane %v666, 2
      %v722 = vsel %vm713, %v720, %v721
      %v723 = vrot.slane %v667, 2
      %v724 = vrot.slane %v668, 2
      %v725 = vsel %vm713, %v723, %v724
      %v726 = vrot.slane %v669, 2
      %v727 = vrot.slane %v670, 2
      %v728 = vsel %vm713, %v726, %v727
      %v729 = vrot.slane %v671, 2
      %v730 = vrot.slane %v672, 2
      %v731 = vsel %vm713, %v729, %v730
      %v732 = vrot.slane %v673, 2
      %v733 = vrot.slane %v674, 2
      %v734 = vsel %vm713, %v732, %v733
      %v735 = vrot.slane %v675, 2
      %v736 = vrot.slane %v676, 2
      %v737 = vsel %vm713, %v735, %v736
      %v738 = vrot.slane %v677, 2
      %v739 = vrot.slane %v678, 2
      %v740 = vsel %vm713, %v738, %v739
      %v741 = vrot.slane %v679, 2
      %v742 = vrot.slane %v680, 2
      %v743 = vsel %vm713, %v741, %v742
      %v744 = vrot.slane %v681, 2
      %v745 = vrot.slane %v682, 2
      %v746 = vsel %vm713, %v744, %v745
      %v747 = vrot.slane %v683, 2
      %v748 = vrot.slane %v684, 2
      %v749 = vsel %vm713, %v747, %v748
      %v762 = vsel %vm687, %v716, 0.0
      %v763 = vsel %vm687, %v719, 0.0
      %v764 = vsel %vm688, %v722, 0.0
      %v765 = vsel %vm688, %v725, 0.0
      %v766 = vsel %vm688, %v728, 0.0
      %v767 = vsel %vm688, %v731, 0.0
      %v768 = vsel %vm688, %v734, 0.0
      %v769 = vsel %vm688, %v737, 0.0
      %v770 = vsel %vm688, %v740, 0.0
      %v771 = vsel %vm688, %v743, 0.0
      %v772 = vsel %vm687, %v746, 0.0
      %v773 = vsel %vm687, %v749, 0.0
      %v774 = vpack.c.bf16 %v762, %v762
      %v775 = vpack.c.bf16 %v763, %v763
      %v776 = vpack.c.bf16 %v764, %v764
      %v777 = vpack.c.bf16 %v765, %v765
      %v778 = vpack.c.bf16 %v766, %v766
      %v779 = vpack.c.bf16 %v767, %v767
      %v780 = vpack.c.bf16 %v768, %v768
      %v781 = vpack.c.bf16 %v769, %v769
      %v782 = vpack.c.bf16 %v770, %v770
      %v783 = vpack.c.bf16 %v771, %v771
      %v784 = vpack.c.bf16 %v772, %v772
      %v785 = vpack.c.bf16 %v773, %v773
      %786 = vst [vmem:[#allocation3 + $0x4] sm:$0xf] %v774
      %787 = vst [vmem:[#allocation3 + $0x10] sm:$0xf] %v775
      %788 = vst [vmem:[#allocation3 + $0x1c] sm:$0xf] %v776
      %789 = vst [vmem:[#allocation3 + $0x28] sm:$0xf] %v777
      %790 = vst [vmem:[#allocation3 + $0x34] sm:$0xf] %v778
      %791 = vst [vmem:[#allocation3 + $0x40] sm:$0xf] %v779
      %792 = vst [vmem:[#allocation3 + $0x4c] sm:$0xf] %v780
      %793 = vst [vmem:[#allocation3 + $0x58] sm:$0xf] %v781
      %794 = vst [vmem:[#allocation3 + $0x64] sm:$0xf] %v782
      %795 = vst [vmem:[#allocation3 + $0x70] sm:$0xf] %v783
      %796 = vst [vmem:[#allocation3 + $0x7c] sm:$0xf] %v784
      %797 = vst [vmem:[#allocation3 + $0x88] sm:$0xf] %v785
      %v798 = vld [vmem:[%s378] sm:$0xc]
      %v799 = vld [vmem:[%s378 + $0x4] sm:$0x3]
      %v800 = vld [vmem:[%s378 + $0x8] sm:$0xc]
      %v801 = vld [vmem:[%s378 + $0xc] sm:$0x3]
      %v802 = vld [vmem:[%s378 + $0x10] sm:$0xc]
      %v803 = vld [vmem:[%s378 + $0x14] sm:$0x3]
      %v804 = vld [vmem:[%s378 + $0x18] sm:$0xc]
      %v805 = vld [vmem:[%s378 + $0x1c] sm:$0x3]
      %v806 = vld [vmem:[%s378 + $0x20] sm:$0xc]
      %v807 = vld [vmem:[%s378 + $0x24] sm:$0x3]
      %v808 = vld [vmem:[%s378 + $0x28] sm:$0xc]
      %v809 = vld [vmem:[%s378 + $0x2c] sm:$0x3]
      %v810 = vld [vmem:[%s378 + $0x30] sm:$0xc]
      %v811 = vld [vmem:[%s378 + $0x34] sm:$0x3]
      %v812 = vld [vmem:[%s378 + $0x38] sm:$0xc]
      %v813 = vld [vmem:[%s378 + $0x3c] sm:$0x3]
      %v814 = vld [vmem:[%s378 + $0x40] sm:$0xc]
      %v815 = vld [vmem:[%s378 + $0x44] sm:$0x3]
      %v816 = vld [vmem:[%s378 + $0x48] sm:$0xc]
      %v817 = vld [vmem:[%s378 + $0x4c] sm:$0x3]
      %v818 = vld [vmem:[%s378 + $0x50] sm:$0xc]
      %v819 = vld [vmem:[%s378 + $0x54] sm:$0x3]
      %v820 = vld [vmem:[%s378 + $0x58] sm:$0xc]
      %v821 = vld [vmem:[%s378 + $0x5c] sm:$0x3]
      %v822 = vunpack.c.l.bf16 %v798
      %v823 = vunpack.c.l.bf16 %v799
      %v824 = vunpack.c.l.bf16 %v800
      %v825 = vunpack.c.l.bf16 %v801
      %v826 = vunpack.c.l.bf16 %v802
      %v827 = vunpack.c.l.bf16 %v803
      %v828 = vunpack.c.l.bf16 %v804
      %v829 = vunpack.c.l.bf16 %v805
      %v830 = vunpack.c.l.bf16 %v806
      %v831 = vunpack.c.l.bf16 %v807
      %v832 = vunpack.c.l.bf16 %v808
      %v833 = vunpack.c.l.bf16 %v809
      %v834 = vunpack.c.l.bf16 %v810
      %v835 = vunpack.c.l.bf16 %v811
      %v836 = vunpack.c.l.bf16 %v812
      %v837 = vunpack.c.l.bf16 %v813
      %v838 = vunpack.c.l.bf16 %v814
      %v839 = vunpack.c.l.bf16 %v815
      %v840 = vunpack.c.l.bf16 %v816
      %v841 = vunpack.c.l.bf16 %v817
      %v842 = vunpack.c.l.bf16 %v818
      %v843 = vunpack.c.l.bf16 %v819
      %v844 = vunpack.c.l.bf16 %v820
      %v845 = vunpack.c.l.bf16 %v821
      %vm846 = vcmp.lt.s32.totalorder %v431, 6
      %vm847 = vmand %vm607, %vm846
      %vm848 = vmand 0, %vm847
      %vm849 = vmand 1, %vm847
      %vm850 = vmand %vm848, %vm468
      %vm851 = vmand %vm849, %vm468
      %v852 = vmul.f32 %v822, %v475
      %v853 = vmul.f32 %v823, %v475
      %v854 = vmul.f32 %v824, %v475
      %v855 = vmul.f32 %v825, %v475
      %v856 = vmul.f32 %v826, %v475
      %v857 = vmul.f32 %v827, %v475
      %v858 = vmul.f32 %v828, %v475
      %v859 = vmul.f32 %v829, %v475
      %v860 = vmul.f32 %v830, %v475
      %v861 = vmul.f32 %v831, %v475
      %v862 = vmul.f32 %v832, %v475
      %v863 = vmul.f32 %v833, %v475
      %v864 = vmul.f32 %v834, %v475
      %v865 = vmul.f32 %v835, %v475
      %v866 = vmul.f32 %v836, %v475
      %v867 = vmul.f32 %v837, %v475
      %v868 = vmul.f32 %v838, %v475
      %v869 = vmul.f32 %v839, %v475
      %v870 = vmul.f32 %v840, %v475
      %v871 = vmul.f32 %v841, %v475
      %v872 = vmul.f32 %v842, %v475
      %v873 = vmul.f32 %v843, %v475
      %v874 = vmul.f32 %v844, %v475
      %v875 = vmul.f32 %v845, %v475
      %v876 = vadd.f32 %v852, %v493
      %v877 = vadd.f32 %v853, %v493
      %v878 = vadd.f32 %v854, %v493
      %v879 = vadd.f32 %v855, %v493
      %v880 = vadd.f32 %v856, %v493
      %v881 = vadd.f32 %v857, %v493
      %v882 = vadd.f32 %v858, %v493
      %v883 = vadd.f32 %v859, %v493
      %v884 = vadd.f32 %v860, %v493
      %v885 = vadd.f32 %v861, %v493
      %v886 = vadd.f32 %v862, %v493
      %v887 = vadd.f32 %v863, %v493
      %v888 = vadd.f32 %v864, %v493
      %v889 = vadd.f32 %v865, %v493
      %v890 = vadd.f32 %v866, %v493
      %v891 = vadd.f32 %v867, %v493
      %v892 = vadd.f32 %v868, %v493
      %v893 = vadd.f32 %v869, %v493
      %v894 = vadd.f32 %v870, %v493
      %v895 = vadd.f32 %v871, %v493
      %v896 = vadd.f32 %v872, %v493
      %v897 = vadd.f32 %v873, %v493
      %v898 = vadd.f32 %v874, %v493
      %v899 = vadd.f32 %v875, %v493
      %v900 = vmax.f32 %v876, 0.0
      %v901 = vmax.f32 %v877, 0.0
      %v902 = vmax.f32 %v878, 0.0
      %v903 = vmax.f32 %v879, 0.0
      %v904 = vmax.f32 %v880, 0.0
      %v905 = vmax.f32 %v881, 0.0
      %v906 = vmax.f32 %v882, 0.0
      %v907 = vmax.f32 %v883, 0.0
      %v908 = vmax.f32 %v884, 0.0
      %v909 = vmax.f32 %v885, 0.0
      %v910 = vmax.f32 %v886, 0.0
      %v911 = vmax.f32 %v887, 0.0
      %v912 = vmax.f32 %v888, 0.0
      %v913 = vmax.f32 %v889, 0.0
      %v914 = vmax.f32 %v890, 0.0
      %v915 = vmax.f32 %v891, 0.0
      %v916 = vmax.f32 %v892, 0.0
      %v917 = vmax.f32 %v893, 0.0
      %v918 = vmax.f32 %v894, 0.0
      %v919 = vmax.f32 %v895, 0.0
      %v920 = vmax.f32 %v896, 0.0
      %v921 = vmax.f32 %v897, 0.0
      %v922 = vmax.f32 %v898, 0.0
      %v923 = vmax.f32 %v899, 0.0
      %v924 = vsel %vm850, 1, 0
      %v925 = vsel %vm851, 1, 0
      %vm926 = vcmp.eq.s32.totalorder %v924, 1
      %vm927 = vcmp.eq.s32.totalorder %v925, 1
      %vm952 = vcmask 1043456
      %v953 = vrot.slane %v900, 4
      %v954 = vrot.slane %v901, 4
      %v955 = vsel %vm952, %v953, %v954
      %v956 = vrot.slane %v902, 4
      %v957 = vrot.slane %v903, 4
      %v958 = vsel %vm952, %v956, %v957
      %v959 = vrot.slane %v904, 4
      %v960 = vrot.slane %v905, 4
      %v961 = vsel %vm952, %v959, %v960
      %v962 = vrot.slane %v906, 4
      %v963 = vrot.slane %v907, 4
      %v964 = vsel %vm952, %v962, %v963
      %v965 = vrot.slane %v908, 4
      %v966 = vrot.slane %v909, 4
      %v967 = vsel %vm952, %v965, %v966
      %v968 = vrot.slane %v910, 4
      %v969 = vrot.slane %v911, 4
      %v970 = vsel %vm952, %v968, %v969
      %v971 = vrot.slane %v912, 4
      %v972 = vrot.slane %v913, 4
      %v973 = vsel %vm952, %v971, %v972
      %v974 = vrot.slane %v914, 4
      %v975 = vrot.slane %v915, 4
      %v976 = vsel %vm952, %v974, %v975
      %v977 = vrot.slane %v916, 4
      %v978 = vrot.slane %v917, 4
      %v979 = vsel %vm952, %v977, %v978
      %v980 = vrot.slane %v918, 4
      %v981 = vrot.slane %v919, 4
      %v982 = vsel %vm952, %v980, %v981
      %v983 = vrot.slane %v920, 4
      %v984 = vrot.slane %v921, 4
      %v985 = vsel %vm952, %v983, %v984
      %v986 = vrot.slane %v922, 4
      %v987 = vrot.slane %v923, 4
      %v988 = vsel %vm952, %v986, %v987
      %v1001 = vsel %vm926, %v955, 0.0
      %v1002 = vsel %vm926, %v958, 0.0
      %v1003 = vsel %vm927, %v961, 0.0
      %v1004 = vsel %vm927, %v964, 0.0
      %v1005 = vsel %vm927, %v967, 0.0
      %v1006 = vsel %vm927, %v970, 0.0
      %v1007 = vsel %vm927, %v973, 0.0
      %v1008 = vsel %vm927, %v976, 0.0
      %v1009 = vsel %vm927, %v979, 0.0
      %v1010 = vsel %vm927, %v982, 0.0
      %v1011 = vsel %vm926, %v985, 0.0
      %v1012 = vsel %vm926, %v988, 0.0
      %v1013 = vpack.c.bf16 %v1001, %v1001
      %v1014 = vpack.c.bf16 %v1002, %v1002
      %v1015 = vpack.c.bf16 %v1003, %v1003
      %v1016 = vpack.c.bf16 %v1004, %v1004
      %v1017 = vpack.c.bf16 %v1005, %v1005
      %v1018 = vpack.c.bf16 %v1006, %v1006
      %v1019 = vpack.c.bf16 %v1007, %v1007
      %v1020 = vpack.c.bf16 %v1008, %v1008
      %v1021 = vpack.c.bf16 %v1009, %v1009
      %v1022 = vpack.c.bf16 %v1010, %v1010
      %v1023 = vpack.c.bf16 %v1011, %v1011
      %v1024 = vpack.c.bf16 %v1012, %v1012
      %1025 = vst [vmem:[#allocation3 + $0x8] sm:$0xf] %v1013
      %1026 = vst [vmem:[#allocation3 + $0x14] sm:$0xf] %v1014
      %1027 = vst [vmem:[#allocation3 + $0x20] sm:$0xf] %v1015
      %1028 = vst [vmem:[#allocation3 + $0x2c] sm:$0xf] %v1016
      %1029 = vst [vmem:[#allocation3 + $0x38] sm:$0xf] %v1017
      %1030 = vst [vmem:[#allocation3 + $0x44] sm:$0xf] %v1018
      %1031 = vst [vmem:[#allocation3 + $0x50] sm:$0xf] %v1019
      %1032 = vst [vmem:[#allocation3 + $0x5c] sm:$0xf] %v1020
      %1033 = vst [vmem:[#allocation3 + $0x68] sm:$0xf] %v1021
      %1034 = vst [vmem:[#allocation3 + $0x74] sm:$0xf] %v1022
      %1035 = vst [vmem:[#allocation3 + $0x80] sm:$0xf] %v1023
      %1036 = vst [vmem:[#allocation3 + $0x8c] sm:$0xf] %v1024
      %v1037 = vld [vmem:[#allocation3] sm:$0xff]
      %v1038 = vld [vmem:[#allocation3 + $0x8] sm:$0xf]
      %v1039 = vld [vmem:[#allocation3 + $0xc] sm:$0xff]
      %v1040 = vld [vmem:[#allocation3 + $0x14] sm:$0xf]
      %v1041 = vld [vmem:[#allocation3 + $0x18] sm:$0xff]
      %v1042 = vld [vmem:[#allocation3 + $0x20] sm:$0xf]
      %v1043 = vld [vmem:[#allocation3 + $0x24] sm:$0xff]
      %v1044 = vld [vmem:[#allocation3 + $0x2c] sm:$0xf]
      %v1045 = vld [vmem:[#allocation3 + $0x30] sm:$0xff]
      %v1046 = vld [vmem:[#allocation3 + $0x38] sm:$0xf]
      %v1047 = vld [vmem:[#allocation3 + $0x3c] sm:$0xff]
      %v1048 = vld [vmem:[#allocation3 + $0x44] sm:$0xf]
      %v1049 = vld [vmem:[#allocation3 + $0x48] sm:$0xff]
      %v1050 = vld [vmem:[#allocation3 + $0x50] sm:$0xf]
      %v1051 = vld [vmem:[#allocation3 + $0x54] sm:$0xff]
      %v1052 = vld [vmem:[#allocation3 + $0x5c] sm:$0xf]
      %v1053 = vld [vmem:[#allocation2] sm:$0xff]
      %v1054 = vld [vmem:[#allocation2 + $0x8] sm:$0xff]
      %v1055 = vld [vmem:[#allocation2 + $0x10] sm:$0xff]
      %v1056 = vld [vmem:[#allocation2 + $0x18] sm:$0xff]
      %v1057 = vld [vmem:[#allocation2 + $0x20] sm:$0xff]
      %v1058 = vld [vmem:[#allocation2 + $0x28] sm:$0xff]
      %v1059 = vld [vmem:[#allocation2 + $0x30] sm:$0xff]
      %v1060 = vld [vmem:[#allocation2 + $0x38] sm:$0xff]
      %v1061 = vld [vmem:[%s5] sm:$0xf]
      %v1062 = vld [vmem:[%s5 + $0x4] sm:$0xf]
      %v1063 = vld [vmem:[%s5 + $0x8] sm:$0xf]
      %v1064 = vld [vmem:[%s5 + $0xc] sm:$0xf]
      %v1065 = vld [vmem:[%s5 + $0x10] sm:$0xf]
      %v1066 = vld [vmem:[%s5 + $0x14] sm:$0xf]
      %v1067 = vld [vmem:[%s5 + $0x18] sm:$0xf]
      %v1068 = vld [vmem:[%s5 + $0x1c] sm:$0xf]
      %v1069 = vld [vmem:[%s5 + $0x20] sm:$0xf]
      %v1070 = vld [vmem:[%s5 + $0x24] sm:$0xf]
      %v1071 = vld [vmem:[%s5 + $0x28] sm:$0xf]
      %v1072 = vld [vmem:[%s5 + $0x2c] sm:$0xf]
      %v1073 = vld [vmem:[%s5 + $0x30] sm:$0xf]
      %v1074 = vld [vmem:[%s5 + $0x34] sm:$0xf]
      %v1075 = vld [vmem:[%s5 + $0x38] sm:$0xf]
      %v1076 = vld [vmem:[%s5 + $0x3c] sm:$0xf]
      %v1077 = vld [vmem:[%s5 + $0x40] sm:$0xf]
      %v1078 = vld [vmem:[%s5 + $0x44] sm:$0xf]
      %v1079 = vld [vmem:[%s5 + $0x48] sm:$0xf]
      %v1080 = vld [vmem:[%s5 + $0x4c] sm:$0xf]
      %v1081 = vld [vmem:[%s5 + $0x50] sm:$0xf]
      %v1082 = vld [vmem:[%s5 + $0x54] sm:$0xf]
      %v1083 = vld [vmem:[%s5 + $0x58] sm:$0xf]
      %v1084 = vld [vmem:[%s5 + $0x5c] sm:$0xf]
      %v1085 = vld [vmem:[%s5 + $0x60] sm:$0xf]
      %v1086 = vld [vmem:[%s5 + $0x64] sm:$0xf]
      %v1087 = vld [vmem:[%s5 + $0x68] sm:$0xf]
      %v1088 = vld [vmem:[%s5 + $0x6c] sm:$0xf]
      %v1089 = vld [vmem:[%s5 + $0x70] sm:$0xf]
      %v1090 = vld [vmem:[%s5 + $0x74] sm:$0xf]
      %v1091 = vld [vmem:[%s5 + $0x78] sm:$0xf]
      %v1092 = vld [vmem:[%s5 + $0x7c] sm:$0xf]
      %v1093 = vld [vmem:[%s5 + $0x80] sm:$0xf]
      %v1094 = vld [vmem:[%s5 + $0x84] sm:$0xf]
      %v1095 = vld [vmem:[%s5 + $0x88] sm:$0xf]
      %v1096 = vld [vmem:[%s5 + $0x8c] sm:$0xf]
      %v1097 = vld [vmem:[%s5 + $0x90] sm:$0xf]
      %v1098 = vld [vmem:[%s5 + $0x94] sm:$0xf]
      %v1099 = vld [vmem:[%s5 + $0x98] sm:$0xf]
      %v1100 = vld [vmem:[%s5 + $0x9c] sm:$0xf]
      %v1101 = vld [vmem:[%s5 + $0xa0] sm:$0xf]
      %v1102 = vld [vmem:[%s5 + $0xa4] sm:$0xf]
      %v1103 = vld [vmem:[%s5 + $0xa8] sm:$0xf]
      %v1104 = vld [vmem:[%s5 + $0xac] sm:$0xf]
      %v1105 = vld [vmem:[%s5 + $0xb0] sm:$0xf]
      %v1106 = vld [vmem:[%s5 + $0xb4] sm:$0xf]
      %v1107 = vld [vmem:[%s5 + $0xb8] sm:$0xf]
      %v1108 = vld [vmem:[%s5 + $0xbc] sm:$0xf]
      %v1125 = vunpack.c.l.b16 %v1037
      %v1126 = vunpack.c.h.b16 %v1037
      %v1127 = vunpack.c.l.b16 %v1038
      %v1128 = vunpack.c.l.b16 %v1039
      %v1129 = vunpack.c.h.b16 %v1039
      %v1130 = vunpack.c.l.b16 %v1040
      %v1131 = vunpack.c.l.b16 %v1041
      %v1132 = vunpack.c.h.b16 %v1041
      %v1133 = vunpack.c.l.b16 %v1042
      %v1134 = vunpack.c.l.b16 %v1043
      %v1135 = vunpack.c.h.b16 %v1043
      %v1136 = vunpack.c.l.b16 %v1044
      %v1137 = vunpack.c.l.b16 %v1045
      %v1138 = vunpack.c.h.b16 %v1045
      %v1139 = vunpack.c.l.b16 %v1046
      %v1140 = vunpack.c.l.b16 %v1047
      %v1141 = vunpack.c.h.b16 %v1047
      %v1142 = vunpack.c.l.b16 %v1048
      %v1143 = vunpack.c.l.b16 %v1049
      %v1144 = vunpack.c.h.b16 %v1049
      %v1145 = vunpack.c.l.b16 %v1050
      %v1146 = vunpack.c.l.b16 %v1051
      %v1147 = vunpack.c.h.b16 %v1051
      %v1148 = vunpack.c.l.b16 %v1052
      %v1149 = vpack.c.b16 %v1128, %v1125
      %v1150 = vpack.c.b16 %v1129, %v1126
      %v1151 = vpack.c.b16 %v1130, %v1127
      %v1152 = vpack.c.b16 %v1134, %v1131
      %v1153 = vpack.c.b16 %v1135, %v1132
      %v1154 = vpack.c.b16 %v1136, %v1133
      %v1155 = vpack.c.b16 %v1140, %v1137
      %v1156 = vpack.c.b16 %v1141, %v1138
      %v1157 = vpack.c.b16 %v1142, %v1139
      %v1158 = vpack.c.b16 %v1146, %v1143
      %v1159 = vpack.c.b16 %v1147, %v1144
      %v1160 = vpack.c.b16 %v1148, %v1145
      %v1221 = vunpack.c.l.b16 %v1061
      %v1222 = vunpack.c.l.b16 %v1062
      %v1223 = vunpack.c.l.b16 %v1063
      %v1224 = vunpack.c.l.b16 %v1064
      %v1225 = vunpack.c.l.b16 %v1065
      %v1226 = vunpack.c.l.b16 %v1066
      %v1227 = vunpack.c.l.b16 %v1067
      %v1228 = vunpack.c.l.b16 %v1068
      %v1229 = vunpack.c.l.b16 %v1069
      %v1230 = vunpack.c.l.b16 %v1070
      %v1231 = vunpack.c.l.b16 %v1071
      %v1232 = vunpack.c.l.b16 %v1072
      %v1233 = vunpack.c.l.b16 %v1073
      %v1234 = vunpack.c.l.b16 %v1074
      %v1235 = vunpack.c.l.b16 %v1075
      %v1236 = vunpack.c.l.b16 %v1076
      %v1237 = vunpack.c.l.b16 %v1077
      %v1238 = vunpack.c.l.b16 %v1078
      %v1239 = vunpack.c.l.b16 %v1079
      %v1240 = vunpack.c.l.b16 %v1080
      %v1241 = vunpack.c.l.b16 %v1081
      %v1242 = vunpack.c.l.b16 %v1082
      %v1243 = vunpack.c.l.b16 %v1083
      %v1244 = vunpack.c.l.b16 %v1084
      %v1245 = vunpack.c.l.b16 %v1085
      %v1246 = vunpack.c.l.b16 %v1086
      %v1247 = vunpack.c.l.b16 %v1087
      %v1248 = vunpack.c.l.b16 %v1088
      %v1249 = vunpack.c.l.b16 %v1089
      %v1250 = vunpack.c.l.b16 %v1090
      %v1251 = vunpack.c.l.b16 %v1091
      %v1252 = vunpack.c.l.b16 %v1092
      %v1253 = vunpack.c.l.b16 %v1093
      %v1254 = vunpack.c.l.b16 %v1094
      %v1255 = vunpack.c.l.b16 %v1095
      %v1256 = vunpack.c.l.b16 %v1096
      %v1257 = vunpack.c.l.b16 %v1097
      %v1258 = vunpack.c.l.b16 %v1098
      %v1259 = vunpack.c.l.b16 %v1099
      %v1260 = vunpack.c.l.b16 %v1100
      %v1261 = vunpack.c.l.b16 %v1101
      %v1262 = vunpack.c.l.b16 %v1102
      %v1263 = vunpack.c.l.b16 %v1103
      %v1264 = vunpack.c.l.b16 %v1104
      %v1265 = vunpack.c.l.b16 %v1105
      %v1266 = vunpack.c.l.b16 %v1106
      %v1267 = vunpack.c.l.b16 %v1107
      %v1268 = vunpack.c.l.b16 %v1108
      %v1269 = vpack.c.b16 %v1222, %v1221
      %v1270 = vpack.c.b16 %v1224, %v1223
      %v1271 = vpack.c.b16 %v1226, %v1225
      %v1272 = vpack.c.b16 %v1228, %v1227
      %v1273 = vpack.c.b16 %v1230, %v1229
      %v1274 = vpack.c.b16 %v1232, %v1231
      %v1275 = vpack.c.b16 %v1234, %v1233
      %v1276 = vpack.c.b16 %v1236, %v1235
      %v1277 = vpack.c.b16 %v1238, %v1237
      %v1278 = vpack.c.b16 %v1240, %v1239
      %v1279 = vpack.c.b16 %v1242, %v1241
      %v1280 = vpack.c.b16 %v1244, %v1243
      %v1281 = vpack.c.b16 %v1246, %v1245
      %v1282 = vpack.c.b16 %v1248, %v1247
      %v1283 = vpack.c.b16 %v1250, %v1249
      %v1284 = vpack.c.b16 %v1252, %v1251
      %v1285 = vpack.c.b16 %v1254, %v1253
      %v1286 = vpack.c.b16 %v1256, %v1255
      %v1287 = vpack.c.b16 %v1258, %v1257
      %v1288 = vpack.c.b16 %v1260, %v1259
      %v1289 = vpack.c.b16 %v1262, %v1261
      %v1290 = vpack.c.b16 %v1264, %v1263
      %v1291 = vpack.c.b16 %v1266, %v1265
      %v1292 = vpack.c.b16 %v1268, %v1267
      %1317 = vmatprep.subr.bf16.mxu0 0
      %1318 = vmatpush1.bf16.msra.mxu0 %v1276
      %1319 = vmatprep.subr.bf16.mxu0 0
      %1320 = vmatpush1.bf16.msra.mxu0 %v1275
      %1321 = vmatprep.subr.bf16.mxu0 0
      %1322 = vmatpush1.bf16.msra.mxu0 %v1274
      %1323 = vmatprep.subr.bf16.mxu0 0
      %1324 = vmatpush1.bf16.msra.mxu0 %v1273
      %1325 = vmatprep.subr.bf16.mxu0 0
      %1326 = vmatpush1.bf16.msra.mxu0 %v1272
      %1327 = vmatprep.subr.bf16.mxu0 0
      %1328 = vmatpush1.bf16.msra.mxu0 %v1271
      %1329 = vmatprep.subr.bf16.mxu0 0
      %1330 = vmatpush1.bf16.msra.mxu0 %v1270
      %1331 = vmatprep.subr.bf16.mxu0 0
      %1332 = vmatpush1.bf16.msra.mxu0 %v1269
      %1333 = vmatprep.subr.bf16.mxu0 0
      %1334 = vmatpush2.bf16.msra.mxu0 %v1284
      %1335 = vmatprep.subr.bf16.mxu0 0
      %1336 = vmatpush2.bf16.msra.mxu0 %v1283
      %1337 = vmatprep.subr.bf16.mxu0 0
      %1338 = vmatpush2.bf16.msra.mxu0 %v1282
      %1339 = vmatprep.subr.bf16.mxu0 0
      %1340 = vmatpush2.bf16.msra.mxu0 %v1281
      %1341 = vmatprep.subr.bf16.mxu0 0
      %1342 = vmatpush2.bf16.msra.mxu0 %v1280
      %1343 = vmatprep.subr.bf16.mxu0 0
      %1344 = vmatpush2.bf16.msra.mxu0 %v1279
      %1345 = vmatprep.subr.bf16.mxu0 0
      %1346 = vmatpush2.bf16.msra.mxu0 %v1278
      %1347 = vmatprep.subr.bf16.mxu0 0
      %1348 = vmatpush2.bf16.msra.mxu0 %v1277
      %1349 = vmatprep.mubr.bf16.mxu0 %v1150
      %1350 = vmatmul.mubr.bf16.gmra.mxu0 %v1149
      %v1351 = vpop.f32.mrf.mxu0
      %v1352 = vadd.f32 0.0, %v1351
      %v1353 = vpop.f32.mrf.mxu0
      %v1354 = vpop.f32.mrf.mxu0
      %v1355 = vadd.f32 0.0, %v1354
      %v1356 = vpop.f32.mrf.mxu0
      %1357 = vmatprep.mubr.bf16.mxu0 %v1153
      %1358 = vmatmul.mubr.bf16.gmra.mxu0 %v1152
      %v1359 = vpop.f32.mrf.mxu0
      %v1360 = vadd.f32 0.0, %v1359
      %v1361 = vpop.f32.mrf.mxu0
      %v1362 = vpop.f32.mrf.mxu0
      %v1363 = vadd.f32 0.0, %v1362
      %v1364 = vpop.f32.mrf.mxu0
      %1365 = vmatprep.mubr.bf16.mxu0 %v1156
      %1366 = vmatmul.mubr.bf16.gmra.mxu0 %v1155
      %v1367 = vpop.f32.mrf.mxu0
      %v1368 = vadd.f32 0.0, %v1367
      %v1369 = vpop.f32.mrf.mxu0
      %v1370 = vpop.f32.mrf.mxu0
      %v1371 = vadd.f32 0.0, %v1370
      %v1372 = vpop.f32.mrf.mxu0
      %1373 = vmatprep.mubr.bf16.mxu0 %v1159
      %1374 = vmatmul.mubr.bf16.gmra.mxu0 %v1158
      %v1375 = vpop.f32.mrf.mxu0
      %v1376 = vadd.f32 0.0, %v1375
      %v1377 = vpop.f32.mrf.mxu0
      %v1378 = vpop.f32.mrf.mxu0
      %v1379 = vadd.f32 0.0, %v1378
      %v1380 = vpop.f32.mrf.mxu0
      %1381 = vdwg.mxu0
      %1382 = vmatprep.subr.bf16.mxu0 0
      %1383 = vmatpush1.bf16.msra.mxu0 %v1292
      %1384 = vmatprep.subr.bf16.mxu0 0
      %1385 = vmatpush1.bf16.msra.mxu0 %v1291
      %1386 = vmatprep.subr.bf16.mxu0 0
      %1387 = vmatpush1.bf16.msra.mxu0 %v1290
      %1388 = vmatprep.subr.bf16.mxu0 0
      %1389 = vmatpush1.bf16.msra.mxu0 %v1289
      %1390 = vmatprep.subr.bf16.mxu0 0
      %1391 = vmatpush1.bf16.msra.mxu0 %v1288
      %1392 = vmatprep.subr.bf16.mxu0 0
      %1393 = vmatpush1.bf16.msra.mxu0 %v1287
      %1394 = vmatprep.subr.bf16.mxu0 0
      %1395 = vmatpush1.bf16.msra.mxu0 %v1286
      %1396 = vmatprep.subr.bf16.mxu0 0
      %1397 = vmatpush1.bf16.msra.mxu0 %v1285
      %1398 = vmatprep.subr.bf16.mxu0 0
      %1399 = vmatpush2.bf16.msra.mxu0 0
      %1400 = vmatprep.subr.bf16.mxu0 0
      %1401 = vmatpush2.bf16.msra.mxu0 0
      %1402 = vmatprep.subr.bf16.mxu0 0
      %1403 = vmatpush2.bf16.msra.mxu0 0
      %1404 = vmatprep.subr.bf16.mxu0 0
      %1405 = vmatpush2.bf16.msra.mxu0 0
      %1406 = vmatprep.subr.bf16.mxu0 0
      %1407 = vmatpush2.bf16.msra.mxu0 0
      %1408 = vmatprep.subr.bf16.mxu0 0
      %1409 = vmatpush2.bf16.msra.mxu0 0
      %1410 = vmatprep.subr.bf16.mxu0 0
      %1411 = vmatpush2.bf16.msra.mxu0 0
      %1412 = vmatprep.subr.bf16.mxu0 0
      %1413 = vmatpush2.bf16.msra.mxu0 0
      %1414 = vmatprep.mubr.bf16.mxu0 0
      %1415 = vmatmul.mubr.bf16.gmra.mxu0 %v1151
      %v1416 = vpop.f32.mrf.mxu0
      %v1417 = vadd.f32 %v1352, %v1416
      %v1418 = vpop.f32.mrf.mxu0
      %v1419 = vpop.f32.mrf.mxu0
      %v1420 = vadd.f32 %v1355, %v1419
      %v1421 = vpop.f32.mrf.mxu0
      %1422 = vmatprep.mubr.bf16.mxu0 0
      %1423 = vmatmul.mubr.bf16.gmra.mxu0 %v1154
      %v1424 = vpop.f32.mrf.mxu0
      %v1425 = vadd.f32 %v1360, %v1424
      %v1426 = vpop.f32.mrf.mxu0
      %v1427 = vpop.f32.mrf.mxu0
      %v1428 = vadd.f32 %v1363, %v1427
      %v1429 = vpop.f32.mrf.mxu0
      %1430 = vmatprep.mubr.bf16.mxu0 0
      %1431 = vmatmul.mubr.bf16.gmra.mxu0 %v1157
      %v1432 = vpop.f32.mrf.mxu0
      %v1433 = vadd.f32 %v1368, %v1432
      %v1434 = vpop.f32.mrf.mxu0
      %v1435 = vpop.f32.mrf.mxu0
      %v1436 = vadd.f32 %v1371, %v1435
      %v1437 = vpop.f32.mrf.mxu0
      %1438 = vmatprep.mubr.bf16.mxu0 0
      %1439 = vmatmul.mubr.bf16.gmra.mxu0 %v1160
      %v1440 = vpop.f32.mrf.mxu0
      %v1441 = vadd.f32 %v1376, %v1440
      %v1442 = vpop.f32.mrf.mxu0
      %v1443 = vpop.f32.mrf.mxu0
      %v1444 = vadd.f32 %v1379, %v1443
      %v1445 = vpop.f32.mrf.mxu0
      %1446 = vdwg.mxu0
      %v1447 = vadd.f32 %v1053, %v1417
      %v1448 = vadd.f32 %v1054, %v1420
      %v1449 = vadd.f32 %v1055, %v1425
      %v1450 = vadd.f32 %v1056, %v1428
      %v1451 = vadd.f32 %v1057, %v1433
      %v1452 = vadd.f32 %v1058, %v1436
      %v1453 = vadd.f32 %v1059, %v1441
      %v1454 = vadd.f32 %v1060, %v1444
      %1455 = vst [vmem:[#allocation2] sm:$0xff] %v1447
      %1456 = vst [vmem:[#allocation2 + $0x8] sm:$0xff] %v1448
      %1457 = vst [vmem:[#allocation2 + $0x10] sm:$0xff] %v1449
      %1458 = vst [vmem:[#allocation2 + $0x18] sm:$0xff] %v1450
      %1459 = vst [vmem:[#allocation2 + $0x20] sm:$0xff] %v1451
      %1460 = vst [vmem:[#allocation2 + $0x28] sm:$0xff] %v1452
      %1461 = vst [vmem:[#allocation2 + $0x30] sm:$0xff] %v1453
      %1462 = vst [vmem:[#allocation2 + $0x38] sm:$0xff] %v1454
      %s1463 = scalar_lea.vmem [#allocation3], 24
      %v1464 = vld [vmem:[%s1463] sm:$0xff]
      %v1465 = vld [vmem:[%s1463 + $0x8] sm:$0xf]
      %v1466 = vld [vmem:[%s1463 + $0xc] sm:$0xff]
      %v1467 = vld [vmem:[%s1463 + $0x14] sm:$0xf]
      %v1468 = vld [vmem:[%s1463 + $0x18] sm:$0xff]
      %v1469 = vld [vmem:[%s1463 + $0x20] sm:$0xf]
      %v1470 = vld [vmem:[%s1463 + $0x24] sm:$0xff]
      %v1471 = vld [vmem:[%s1463 + $0x2c] sm:$0xf]
      %v1472 = vld [vmem:[%s1463 + $0x30] sm:$0xff]
      %v1473 = vld [vmem:[%s1463 + $0x38] sm:$0xf]
      %v1474 = vld [vmem:[%s1463 + $0x3c] sm:$0xff]
      %v1475 = vld [vmem:[%s1463 + $0x44] sm:$0xf]
      %v1476 = vld [vmem:[%s1463 + $0x48] sm:$0xff]
      %v1477 = vld [vmem:[%s1463 + $0x50] sm:$0xf]
      %v1478 = vld [vmem:[%s1463 + $0x54] sm:$0xff]
      %v1479 = vld [vmem:[%s1463 + $0x5c] sm:$0xf]
      %v1480 = vld [vmem:[#allocation2] sm:$0xff]
      %v1481 = vld [vmem:[#allocation2 + $0x8] sm:$0xff]
      %v1482 = vld [vmem:[#allocation2 + $0x10] sm:$0xff]
      %v1483 = vld [vmem:[#allocation2 + $0x18] sm:$0xff]
      %v1484 = vld [vmem:[#allocation2 + $0x20] sm:$0xff]
      %v1485 = vld [vmem:[#allocation2 + $0x28] sm:$0xff]
      %v1486 = vld [vmem:[#allocation2 + $0x30] sm:$0xff]
      %v1487 = vld [vmem:[#allocation2 + $0x38] sm:$0xff]
      %s1488 = scalar_lea.vmem %s5, 192
      %v1489 = vld [vmem:[%s1488] sm:$0xf]
      %v1490 = vld [vmem:[%s1488 + $0x4] sm:$0xf]
      %v1491 = vld [vmem:[%s1488 + $0x8] sm:$0xf]
      %v1492 = vld [vmem:[%s1488 + $0xc] sm:$0xf]
      %v1493 = vld [vmem:[%s1488 + $0x10] sm:$0xf]
      %v1494 = vld [vmem:[%s1488 + $0x14] sm:$0xf]
      %v1495 = vld [vmem:[%s1488 + $0x18] sm:$0xf]
      %v1496 = vld [vmem:[%s1488 + $0x1c] sm:$0xf]
      %v1497 = vld [vmem:[%s1488 + $0x20] sm:$0xf]
      %v1498 = vld [vmem:[%s1488 + $0x24] sm:$0xf]
      %v1499 = vld [vmem:[%s1488 + $0x28] sm:$0xf]
      %v1500 = vld [vmem:[%s1488 + $0x2c] sm:$0xf]
      %v1501 = vld [vmem:[%s1488 + $0x30] sm:$0xf]
      %v1502 = vld [vmem:[%s1488 + $0x34] sm:$0xf]
      %v1503 = vld [vmem:[%s1488 + $0x38] sm:$0xf]
      %v1504 = vld [vmem:[%s1488 + $0x3c] sm:$0xf]
      %v1505 = vld [vmem:[%s1488 + $0x40] sm:$0xf]
      %v1506 = vld [vmem:[%s1488 + $0x44] sm:$0xf]
      %v1507 = vld [vmem:[%s1488 + $0x48] sm:$0xf]
      %v1508 = vld [vmem:[%s1488 + $0x4c] sm:$0xf]
      %v1509 = vld [vmem:[%s1488 + $0x50] sm:$0xf]
      %v1510 = vld [vmem:[%s1488 + $0x54] sm:$0xf]
      %v1511 = vld [vmem:[%s1488 + $0x58] sm:$0xf]
      %v1512 = vld [vmem:[%s1488 + $0x5c] sm:$0xf]
      %v1513 = vld [vmem:[%s1488 + $0x60] sm:$0xf]
      %v1514 = vld [vmem:[%s1488 + $0x64] sm:$0xf]
      %v1515 = vld [vmem:[%s1488 + $0x68] sm:$0xf]
      %v1516 = vld [vmem:[%s1488 + $0x6c] sm:$0xf]
      %v1517 = vld [vmem:[%s1488 + $0x70] sm:$0xf]
      %v1518 = vld [vmem:[%s1488 + $0x74] sm:$0xf]
      %v1519 = vld [vmem:[%s1488 + $0x78] sm:$0xf]
      %v1520 = vld [vmem:[%s1488 + $0x7c] sm:$0xf]
      %v1521 = vld [vmem:[%s1488 + $0x80] sm:$0xf]
      %v1522 = vld [vmem:[%s1488 + $0x84] sm:$0xf]
      %v1523 = vld [vmem:[%s1488 + $0x88] sm:$0xf]
      %v1524 = vld [vmem:[%s1488 + $0x8c] sm:$0xf]
      %v1525 = vld [vmem:[%s1488 + $0x90] sm:$0xf]
      %v1526 = vld [vmem:[%s1488 + $0x94] sm:$0xf]
      %v1527 = vld [vmem:[%s1488 + $0x98] sm:$0xf]
      %v1528 = vld [vmem:[%s1488 + $0x9c] sm:$0xf]
      %v1529 = vld [vmem:[%s1488 + $0xa0] sm:$0xf]
      %v1530 = vld [vmem:[%s1488 + $0xa4] sm:$0xf]
      %v1531 = vld [vmem:[%s1488 + $0xa8] sm:$0xf]
      %v1532 = vld [vmem:[%s1488 + $0xac] sm:$0xf]
      %v1533 = vld [vmem:[%s1488 + $0xb0] sm:$0xf]
      %v1534 = vld [vmem:[%s1488 + $0xb4] sm:$0xf]
      %v1535 = vld [vmem:[%s1488 + $0xb8] sm:$0xf]
      %v1536 = vld [vmem:[%s1488 + $0xbc] sm:$0xf]
      %v1553 = vunpack.c.l.b16 %v1464
      %v1554 = vunpack.c.h.b16 %v1464
      %v1555 = vunpack.c.l.b16 %v1465
      %v1556 = vunpack.c.l.b16 %v1466
      %v1557 = vunpack.c.h.b16 %v1466
      %v1558 = vunpack.c.l.b16 %v1467
      %v1559 = vunpack.c.l.b16 %v1468
      %v1560 = vunpack.c.h.b16 %v1468
      %v1561 = vunpack.c.l.b16 %v1469
      %v1562 = vunpack.c.l.b16 %v1470
      %v1563 = vunpack.c.h.b16 %v1470
      %v1564 = vunpack.c.l.b16 %v1471
      %v1565 = vunpack.c.l.b16 %v1472
      %v1566 = vunpack.c.h.b16 %v1472
      %v1567 = vunpack.c.l.b16 %v1473
      %v1568 = vunpack.c.l.b16 %v1474
      %v1569 = vunpack.c.h.b16 %v1474
      %v1570 = vunpack.c.l.b16 %v1475
      %v1571 = vunpack.c.l.b16 %v1476
      %v1572 = vunpack.c.h.b16 %v1476
      %v1573 = vunpack.c.l.b16 %v1477
      %v1574 = vunpack.c.l.b16 %v1478
      %v1575 = vunpack.c.h.b16 %v1478
      %v1576 = vunpack.c.l.b16 %v1479
      %v1577 = vpack.c.b16 %v1556, %v1553
      %v1578 = vpack.c.b16 %v1557, %v1554
      %v1579 = vpack.c.b16 %v1558, %v1555
      %v1580 = vpack.c.b16 %v1562, %v1559
      %v1581 = vpack.c.b16 %v1563, %v1560
      %v1582 = vpack.c.b16 %v1564, %v1561
      %v1583 = vpack.c.b16 %v1568, %v1565
      %v1584 = vpack.c.b16 %v1569, %v1566
      %v1585 = vpack.c.b16 %v1570, %v1567
      %v1586 = vpack.c.b16 %v1574, %v1571
      %v1587 = vpack.c.b16 %v1575, %v1572
      %v1588 = vpack.c.b16 %v1576, %v1573
      %v1649 = vunpack.c.l.b16 %v1489
      %v1650 = vunpack.c.l.b16 %v1490
      %v1651 = vunpack.c.l.b16 %v1491
      %v1652 = vunpack.c.l.b16 %v1492
      %v1653 = vunpack.c.l.b16 %v1493
      %v1654 = vunpack.c.l.b16 %v1494
      %v1655 = vunpack.c.l.b16 %v1495
      %v1656 = vunpack.c.l.b16 %v1496
      %v1657 = vunpack.c.l.b16 %v1497
      %v1658 = vunpack.c.l.b16 %v1498
      %v1659 = vunpack.c.l.b16 %v1499
      %v1660 = vunpack.c.l.b16 %v1500
      %v1661 = vunpack.c.l.b16 %v1501
      %v1662 = vunpack.c.l.b16 %v1502
      %v1663 = vunpack.c.l.b16 %v1503
      %v1664 = vunpack.c.l.b16 %v1504
      %v1665 = vunpack.c.l.b16 %v1505
      %v1666 = vunpack.c.l.b16 %v1506
      %v1667 = vunpack.c.l.b16 %v1507
      %v1668 = vunpack.c.l.b16 %v1508
      %v1669 = vunpack.c.l.b16 %v1509
      %v1670 = vunpack.c.l.b16 %v1510
      %v1671 = vunpack.c.l.b16 %v1511
      %v1672 = vunpack.c.l.b16 %v1512
      %v1673 = vunpack.c.l.b16 %v1513
      %v1674 = vunpack.c.l.b16 %v1514
      %v1675 = vunpack.c.l.b16 %v1515
      %v1676 = vunpack.c.l.b16 %v1516
      %v1677 = vunpack.c.l.b16 %v1517
      %v1678 = vunpack.c.l.b16 %v1518
      %v1679 = vunpack.c.l.b16 %v1519
      %v1680 = vunpack.c.l.b16 %v1520
      %v1681 = vunpack.c.l.b16 %v1521
      %v1682 = vunpack.c.l.b16 %v1522
      %v1683 = vunpack.c.l.b16 %v1523
      %v1684 = vunpack.c.l.b16 %v1524
      %v1685 = vunpack.c.l.b16 %v1525
      %v1686 = vunpack.c.l.b16 %v1526
      %v1687 = vunpack.c.l.b16 %v1527
      %v1688 = vunpack.c.l.b16 %v1528
      %v1689 = vunpack.c.l.b16 %v1529
      %v1690 = vunpack.c.l.b16 %v1530
      %v1691 = vunpack.c.l.b16 %v1531
      %v1692 = vunpack.c.l.b16 %v1532
      %v1693 = vunpack.c.l.b16 %v1533
      %v1694 = vunpack.c.l.b16 %v1534
      %v1695 = vunpack.c.l.b16 %v1535
      %v1696 = vunpack.c.l.b16 %v1536
      %v1697 = vpack.c.b16 %v1650, %v1649
      %v1698 = vpack.c.b16 %v1652, %v1651
      %v1699 = vpack.c.b16 %v1654, %v1653
      %v1700 = vpack.c.b16 %v1656, %v1655
      %v1701 = vpack.c.b16 %v1658, %v1657
      %v1702 = vpack.c.b16 %v1660, %v1659
      %v1703 = vpack.c.b16 %v1662, %v1661
      %v1704 = vpack.c.b16 %v1664, %v1663
      %v1705 = vpack.c.b16 %v1666, %v1665
      %v1706 = vpack.c.b16 %v1668, %v1667
      %v1707 = vpack.c.b16 %v1670, %v1669
      %v1708 = vpack.c.b16 %v1672, %v1671
      %v1709 = vpack.c.b16 %v1674, %v1673
      %v1710 = vpack.c.b16 %v1676, %v1675
      %v1711 = vpack.c.b16 %v1678, %v1677
      %v1712 = vpack.c.b16 %v1680, %v1679
      %v1713 = vpack.c.b16 %v1682, %v1681
      %v1714 = vpack.c.b16 %v1684, %v1683
      %v1715 = vpack.c.b16 %v1686, %v1685
      %v1716 = vpack.c.b16 %v1688, %v1687
      %v1717 = vpack.c.b16 %v1690, %v1689
      %v1718 = vpack.c.b16 %v1692, %v1691
      %v1719 = vpack.c.b16 %v1694, %v1693
      %v1720 = vpack.c.b16 %v1696, %v1695
      %1745 = vmatprep.subr.bf16.mxu0 0
      %1746 = vmatpush1.bf16.msra.mxu0 %v1704
      %1747 = vmatprep.subr.bf16.mxu0 0
      %1748 = vmatpush1.bf16.msra.mxu0 %v1703
      %1749 = vmatprep.subr.bf16.mxu0 0
      %1750 = vmatpush1.bf16.msra.mxu0 %v1702
      %1751 = vmatprep.subr.bf16.mxu0 0
      %1752 = vmatpush1.bf16.msra.mxu0 %v1701
      %1753 = vmatprep.subr.bf16.mxu0 0
      %1754 = vmatpush1.bf16.msra.mxu0 %v1700
      %1755 = vmatprep.subr.bf16.mxu0 0
      %1756 = vmatpush1.bf16.msra.mxu0 %v1699
      %1757 = vmatprep.subr.bf16.mxu0 0
      %1758 = vmatpush1.bf16.msra.mxu0 %v1698
      %1759 = vmatprep.subr.bf16.mxu0 0
      %1760 = vmatpush1.bf16.msra.mxu0 %v1697
      %1761 = vmatprep.subr.bf16.mxu0 0
      %1762 = vmatpush2.bf16.msra.mxu0 %v1712
      %1763 = vmatprep.subr.bf16.mxu0 0
      %1764 = vmatpush2.bf16.msra.mxu0 %v1711
      %1765 = vmatprep.subr.bf16.mxu0 0
      %1766 = vmatpush2.bf16.msra.mxu0 %v1710
      %1767 = vmatprep.subr.bf16.mxu0 0
      %1768 = vmatpush2.bf16.msra.mxu0 %v1709
      %1769 = vmatprep.subr.bf16.mxu0 0
      %1770 = vmatpush2.bf16.msra.mxu0 %v1708
      %1771 = vmatprep.subr.bf16.mxu0 0
      %1772 = vmatpush2.bf16.msra.mxu0 %v1707
      %1773 = vmatprep.subr.bf16.mxu0 0
      %1774 = vmatpush2.bf16.msra.mxu0 %v1706
      %1775 = vmatprep.subr.bf16.mxu0 0
      %1776 = vmatpush2.bf16.msra.mxu0 %v1705
      %1777 = vmatprep.mubr.bf16.mxu0 %v1578
      %1778 = vmatmul.mubr.bf16.gmra.mxu0 %v1577
      %v1779 = vpop.f32.mrf.mxu0
      %v1780 = vadd.f32 0.0, %v1779
      %v1781 = vpop.f32.mrf.mxu0
      %v1782 = vpop.f32.mrf.mxu0
      %v1783 = vadd.f32 0.0, %v1782
      %v1784 = vpop.f32.mrf.mxu0
      %1785 = vmatprep.mubr.bf16.mxu0 %v1581
      %1786 = vmatmul.mubr.bf16.gmra.mxu0 %v1580
      %v1787 = vpop.f32.mrf.mxu0
      %v1788 = vadd.f32 0.0, %v1787
      %v1789 = vpop.f32.mrf.mxu0
      %v1790 = vpop.f32.mrf.mxu0
      %v1791 = vadd.f32 0.0, %v1790
      %v1792 = vpop.f32.mrf.mxu0
      %1793 = vmatprep.mubr.bf16.mxu0 %v1584
      %1794 = vmatmul.mubr.bf16.gmra.mxu0 %v1583
      %v1795 = vpop.f32.mrf.mxu0
      %v1796 = vadd.f32 0.0, %v1795
      %v1797 = vpop.f32.mrf.mxu0
      %v1798 = vpop.f32.mrf.mxu0
      %v1799 = vadd.f32 0.0, %v1798
      %v1800 = vpop.f32.mrf.mxu0
      %1801 = vmatprep.mubr.bf16.mxu0 %v1587
      %1802 = vmatmul.mubr.bf16.gmra.mxu0 %v1586
      %v1803 = vpop.f32.mrf.mxu0
      %v1804 = vadd.f32 0.0, %v1803
      %v1805 = vpop.f32.mrf.mxu0
      %v1806 = vpop.f32.mrf.mxu0
      %v1807 = vadd.f32 0.0, %v1806
      %v1808 = vpop.f32.mrf.mxu0
      %1809 = vdwg.mxu0
      %1810 = vmatprep.subr.bf16.mxu0 0
      %1811 = vmatpush1.bf16.msra.mxu0 %v1720
      %1812 = vmatprep.subr.bf16.mxu0 0
      %1813 = vmatpush1.bf16.msra.mxu0 %v1719
      %1814 = vmatprep.subr.bf16.mxu0 0
      %1815 = vmatpush1.bf16.msra.mxu0 %v1718
      %1816 = vmatprep.subr.bf16.mxu0 0
      %1817 = vmatpush1.bf16.msra.mxu0 %v1717
      %1818 = vmatprep.subr.bf16.mxu0 0
      %1819 = vmatpush1.bf16.msra.mxu0 %v1716
      %1820 = vmatprep.subr.bf16.mxu0 0
      %1821 = vmatpush1.bf16.msra.mxu0 %v1715
      %1822 = vmatprep.subr.bf16.mxu0 0
      %1823 = vmatpush1.bf16.msra.mxu0 %v1714
      %1824 = vmatprep.subr.bf16.mxu0 0
      %1825 = vmatpush1.bf16.msra.mxu0 %v1713
      %1826 = vmatprep.subr.bf16.mxu0 0
      %1827 = vmatpush2.bf16.msra.mxu0 0
      %1828 = vmatprep.subr.bf16.mxu0 0
      %1829 = vmatpush2.bf16.msra.mxu0 0
      %1830 = vmatprep.subr.bf16.mxu0 0
      %1831 = vmatpush2.bf16.msra.mxu0 0
      %1832 = vmatprep.subr.bf16.mxu0 0
      %1833 = vmatpush2.bf16.msra.mxu0 0
      %1834 = vmatprep.subr.bf16.mxu0 0
      %1835 = vmatpush2.bf16.msra.mxu0 0
      %1836 = vmatprep.subr.bf16.mxu0 0
      %1837 = vmatpush2.bf16.msra.mxu0 0
      %1838 = vmatprep.subr.bf16.mxu0 0
      %1839 = vmatpush2.bf16.msra.mxu0 0
      %1840 = vmatprep.subr.bf16.mxu0 0
      %1841 = vmatpush2.bf16.msra.mxu0 0
      %1842 = vmatprep.mubr.bf16.mxu0 0
      %1843 = vmatmul.mubr.bf16.gmra.mxu0 %v1579
      %v1844 = vpop.f32.mrf.mxu0
      %v1845 = vadd.f32 %v1780, %v1844
      %v1846 = vpop.f32.mrf.mxu0
      %v1847 = vpop.f32.mrf.mxu0
      %v1848 = vadd.f32 %v1783, %v1847
      %v1849 = vpop.f32.mrf.mxu0
      %1850 = vmatprep.mubr.bf16.mxu0 0
      %1851 = vmatmul.mubr.bf16.gmra.mxu0 %v1582
      %v1852 = vpop.f32.mrf.mxu0
      %v1853 = vadd.f32 %v1788, %v1852
      %v1854 = vpop.f32.mrf.mxu0
      %v1855 = vpop.f32.mrf.mxu0
      %v1856 = vadd.f32 %v1791, %v1855
      %v1857 = vpop.f32.mrf.mxu0
      %1858 = vmatprep.mubr.bf16.mxu0 0
      %1859 = vmatmul.mubr.bf16.gmra.mxu0 %v1585
      %v1860 = vpop.f32.mrf.mxu0
      %v1861 = vadd.f32 %v1796, %v1860
      %v1862 = vpop.f32.mrf.mxu0
      %v1863 = vpop.f32.mrf.mxu0
      %v1864 = vadd.f32 %v1799, %v1863
      %v1865 = vpop.f32.mrf.mxu0
      %1866 = vmatprep.mubr.bf16.mxu0 0
      %1867 = vmatmul.mubr.bf16.gmra.mxu0 %v1588
      %v1868 = vpop.f32.mrf.mxu0
      %v1869 = vadd.f32 %v1804, %v1868
      %v1870 = vpop.f32.mrf.mxu0
      %v1871 = vpop.f32.mrf.mxu0
      %v1872 = vadd.f32 %v1807, %v1871
      %v1873 = vpop.f32.mrf.mxu0
      %1874 = vdwg.mxu0
      %v1875 = vadd.f32 %v1480, %v1845
      %v1876 = vadd.f32 %v1481, %v1848
      %v1877 = vadd.f32 %v1482, %v1853
      %v1878 = vadd.f32 %v1483, %v1856
      %v1879 = vadd.f32 %v1484, %v1861
      %v1880 = vadd.f32 %v1485, %v1864
      %v1881 = vadd.f32 %v1486, %v1869
      %v1882 = vadd.f32 %v1487, %v1872
      %1883 = vst [vmem:[#allocation2] sm:$0xff] %v1875
      %1884 = vst [vmem:[#allocation2 + $0x8] sm:$0xff] %v1876
      %1885 = vst [vmem:[#allocation2 + $0x10] sm:$0xff] %v1877
      %1886 = vst [vmem:[#allocation2 + $0x18] sm:$0xff] %v1878
      %1887 = vst [vmem:[#allocation2 + $0x20] sm:$0xff] %v1879
      %1888 = vst [vmem:[#allocation2 + $0x28] sm:$0xff] %v1880
      %1889 = vst [vmem:[#allocation2 + $0x30] sm:$0xff] %v1881
      %1890 = vst [vmem:[#allocation2 + $0x38] sm:$0xff] %v1882
      %s1891 = scalar_lea.vmem [#allocation3], 48
      %v1892 = vld [vmem:[%s1891] sm:$0xff]
      %v1893 = vld [vmem:[%s1891 + $0x8] sm:$0xf]
      %v1894 = vld [vmem:[%s1891 + $0xc] sm:$0xff]
      %v1895 = vld [vmem:[%s1891 + $0x14] sm:$0xf]
      %v1896 = vld [vmem:[%s1891 + $0x18] sm:$0xff]
      %v1897 = vld [vmem:[%s1891 + $0x20] sm:$0xf]
      %v1898 = vld [vmem:[%s1891 + $0x24] sm:$0xff]
      %v1899 = vld [vmem:[%s1891 + $0x2c] sm:$0xf]
      %v1900 = vld [vmem:[%s1891 + $0x30] sm:$0xff]
      %v1901 = vld [vmem:[%s1891 + $0x38] sm:$0xf]
      %v1902 = vld [vmem:[%s1891 + $0x3c] sm:$0xff]
      %v1903 = vld [vmem:[%s1891 + $0x44] sm:$0xf]
      %v1904 = vld [vmem:[%s1891 + $0x48] sm:$0xff]
      %v1905 = vld [vmem:[%s1891 + $0x50] sm:$0xf]
      %v1906 = vld [vmem:[%s1891 + $0x54] sm:$0xff]
      %v1907 = vld [vmem:[%s1891 + $0x5c] sm:$0xf]
      %v1908 = vld [vmem:[#allocation2] sm:$0xff]
      %v1909 = vld [vmem:[#allocation2 + $0x8] sm:$0xff]
      %v1910 = vld [vmem:[#allocation2 + $0x10] sm:$0xff]
      %v1911 = vld [vmem:[#allocation2 + $0x18] sm:$0xff]
      %v1912 = vld [vmem:[#allocation2 + $0x20] sm:$0xff]
      %v1913 = vld [vmem:[#allocation2 + $0x28] sm:$0xff]
      %v1914 = vld [vmem:[#allocation2 + $0x30] sm:$0xff]
      %v1915 = vld [vmem:[#allocation2 + $0x38] sm:$0xff]
      %s1916 = scalar_lea.vmem %s5, 384
      %v1917 = vld [vmem:[%s1916] sm:$0xf]
      %v1918 = vld [vmem:[%s1916 + $0x4] sm:$0xf]
      %v1919 = vld [vmem:[%s1916 + $0x8] sm:$0xf]
      %v1920 = vld [vmem:[%s1916 + $0xc] sm:$0xf]
      %v1921 = vld [vmem:[%s1916 + $0x10] sm:$0xf]
      %v1922 = vld [vmem:[%s1916 + $0x14] sm:$0xf]
      %v1923 = vld [vmem:[%s1916 + $0x18] sm:$0xf]
      %v1924 = vld [vmem:[%s1916 + $0x1c] sm:$0xf]
      %v1925 = vld [vmem:[%s1916 + $0x20] sm:$0xf]
      %v1926 = vld [vmem:[%s1916 + $0x24] sm:$0xf]
      %v1927 = vld [vmem:[%s1916 + $0x28] sm:$0xf]
      %v1928 = vld [vmem:[%s1916 + $0x2c] sm:$0xf]
      %v1929 = vld [vmem:[%s1916 + $0x30] sm:$0xf]
      %v1930 = vld [vmem:[%s1916 + $0x34] sm:$0xf]
      %v1931 = vld [vmem:[%s1916 + $0x38] sm:$0xf]
      %v1932 = vld [vmem:[%s1916 + $0x3c] sm:$0xf]
      %v1933 = vld [vmem:[%s1916 + $0x40] sm:$0xf]
      %v1934 = vld [vmem:[%s1916 + $0x44] sm:$0xf]
      %v1935 = vld [vmem:[%s1916 + $0x48] sm:$0xf]
      %v1936 = vld [vmem:[%s1916 + $0x4c] sm:$0xf]
      %v1937 = vld [vmem:[%s1916 + $0x50] sm:$0xf]
      %v1938 = vld [vmem:[%s1916 + $0x54] sm:$0xf]
      %v1939 = vld [vmem:[%s1916 + $0x58] sm:$0xf]
      %v1940 = vld [vmem:[%s1916 + $0x5c] sm:$0xf]
      %v1941 = vld [vmem:[%s1916 + $0x60] sm:$0xf]
      %v1942 = vld [vmem:[%s1916 + $0x64] sm:$0xf]
      %v1943 = vld [vmem:[%s1916 + $0x68] sm:$0xf]
      %v1944 = vld [vmem:[%s1916 + $0x6c] sm:$0xf]
      %v1945 = vld [vmem:[%s1916 + $0x70] sm:$0xf]
      %v1946 = vld [vmem:[%s1916 + $0x74] sm:$0xf]
      %v1947 = vld [vmem:[%s1916 + $0x78] sm:$0xf]
      %v1948 = vld [vmem:[%s1916 + $0x7c] sm:$0xf]
      %v1949 = vld [vmem:[%s1916 + $0x80] sm:$0xf]
      %v1950 = vld [vmem:[%s1916 + $0x84] sm:$0xf]
      %v1951 = vld [vmem:[%s1916 + $0x88] sm:$0xf]
      %v1952 = vld [vmem:[%s1916 + $0x8c] sm:$0xf]
      %v1953 = vld [vmem:[%s1916 + $0x90] sm:$0xf]
      %v1954 = vld [vmem:[%s1916 + $0x94] sm:$0xf]
      %v1955 = vld [vmem:[%s1916 + $0x98] sm:$0xf]
      %v1956 = vld [vmem:[%s1916 + $0x9c] sm:$0xf]
      %v1957 = vld [vmem:[%s1916 + $0xa0] sm:$0xf]
      %v1958 = vld [vmem:[%s1916 + $0xa4] sm:$0xf]
      %v1959 = vld [vmem:[%s1916 + $0xa8] sm:$0xf]
      %v1960 = vld [vmem:[%s1916 + $0xac] sm:$0xf]
      %v1961 = vld [vmem:[%s1916 + $0xb0] sm:$0xf]
      %v1962 = vld [vmem:[%s1916 + $0xb4] sm:$0xf]
      %v1963 = vld [vmem:[%s1916 + $0xb8] sm:$0xf]
      %v1964 = vld [vmem:[%s1916 + $0xbc] sm:$0xf]
      %v1981 = vunpack.c.l.b16 %v1892
      %v1982 = vunpack.c.h.b16 %v1892
      %v1983 = vunpack.c.l.b16 %v1893
      %v1984 = vunpack.c.l.b16 %v1894
      %v1985 = vunpack.c.h.b16 %v1894
      %v1986 = vunpack.c.l.b16 %v1895
      %v1987 = vunpack.c.l.b16 %v1896
      %v1988 = vunpack.c.h.b16 %v1896
      %v1989 = vunpack.c.l.b16 %v1897
      %v1990 = vunpack.c.l.b16 %v1898
      %v1991 = vunpack.c.h.b16 %v1898
      %v1992 = vunpack.c.l.b16 %v1899
      %v1993 = vunpack.c.l.b16 %v1900
      %v1994 = vunpack.c.h.b16 %v1900
      %v1995 = vunpack.c.l.b16 %v1901
      %v1996 = vunpack.c.l.b16 %v1902
      %v1997 = vunpack.c.h.b16 %v1902
      %v1998 = vunpack.c.l.b16 %v1903
      %v1999 = vunpack.c.l.b16 %v1904
      %v2000 = vunpack.c.h.b16 %v1904
      %v2001 = vunpack.c.l.b16 %v1905
      %v2002 = vunpack.c.l.b16 %v1906
      %v2003 = vunpack.c.h.b16 %v1906
      %v2004 = vunpack.c.l.b16 %v1907
      %v2005 = vpack.c.b16 %v1984, %v1981
      %v2006 = vpack.c.b16 %v1985, %v1982
      %v2007 = vpack.c.b16 %v1986, %v1983
      %v2008 = vpack.c.b16 %v1990, %v1987
      %v2009 = vpack.c.b16 %v1991, %v1988
      %v2010 = vpack.c.b16 %v1992, %v1989
      %v2011 = vpack.c.b16 %v1996, %v1993
      %v2012 = vpack.c.b16 %v1997, %v1994
      %v2013 = vpack.c.b16 %v1998, %v1995
      %v2014 = vpack.c.b16 %v2002, %v1999
      %v2015 = vpack.c.b16 %v2003, %v2000
      %v2016 = vpack.c.b16 %v2004, %v2001
      %v2077 = vunpack.c.l.b16 %v1917
      %v2078 = vunpack.c.l.b16 %v1918
      %v2079 = vunpack.c.l.b16 %v1919
      %v2080 = vunpack.c.l.b16 %v1920
      %v2081 = vunpack.c.l.b16 %v1921
      %v2082 = vunpack.c.l.b16 %v1922
      %v2083 = vunpack.c.l.b16 %v1923
      %v2084 = vunpack.c.l.b16 %v1924
      %v2085 = vunpack.c.l.b16 %v1925
      %v2086 = vunpack.c.l.b16 %v1926
      %v2087 = vunpack.c.l.b16 %v1927
      %v2088 = vunpack.c.l.b16 %v1928
      %v2089 = vunpack.c.l.b16 %v1929
      %v2090 = vunpack.c.l.b16 %v1930
      %v2091 = vunpack.c.l.b16 %v1931
      %v2092 = vunpack.c.l.b16 %v1932
      %v2093 = vunpack.c.l.b16 %v1933
      %v2094 = vunpack.c.l.b16 %v1934
      %v2095 = vunpack.c.l.b16 %v1935
      %v2096 = vunpack.c.l.b16 %v1936
      %v2097 = vunpack.c.l.b16 %v1937
      %v2098 = vunpack.c.l.b16 %v1938
      %v2099 = vunpack.c.l.b16 %v1939
      %v2100 = vunpack.c.l.b16 %v1940
      %v2101 = vunpack.c.l.b16 %v1941
      %v2102 = vunpack.c.l.b16 %v1942
      %v2103 = vunpack.c.l.b16 %v1943
      %v2104 = vunpack.c.l.b16 %v1944
      %v2105 = vunpack.c.l.b16 %v1945
      %v2106 = vunpack.c.l.b16 %v1946
      %v2107 = vunpack.c.l.b16 %v1947
      %v2108 = vunpack.c.l.b16 %v1948
      %v2109 = vunpack.c.l.b16 %v1949
      %v2110 = vunpack.c.l.b16 %v1950
      %v2111 = vunpack.c.l.b16 %v1951
      %v2112 = vunpack.c.l.b16 %v1952
      %v2113 = vunpack.c.l.b16 %v1953
      %v2114 = vunpack.c.l.b16 %v1954
      %v2115 = vunpack.c.l.b16 %v1955
      %v2116 = vunpack.c.l.b16 %v1956
      %v2117 = vunpack.c.l.b16 %v1957
      %v2118 = vunpack.c.l.b16 %v1958
      %v2119 = vunpack.c.l.b16 %v1959
      %v2120 = vunpack.c.l.b16 %v1960
      %v2121 = vunpack.c.l.b16 %v1961
      %v2122 = vunpack.c.l.b16 %v1962
      %v2123 = vunpack.c.l.b16 %v1963
      %v2124 = vunpack.c.l.b16 %v1964
      %v2125 = vpack.c.b16 %v2078, %v2077
      %v2126 = vpack.c.b16 %v2080, %v2079
      %v2127 = vpack.c.b16 %v2082, %v2081
      %v2128 = vpack.c.b16 %v2084, %v2083
      %v2129 = vpack.c.b16 %v2086, %v2085
      %v2130 = vpack.c.b16 %v2088, %v2087
      %v2131 = vpack.c.b16 %v2090, %v2089
      %v2132 = vpack.c.b16 %v2092, %v2091
      %v2133 = vpack.c.b16 %v2094, %v2093
      %v2134 = vpack.c.b16 %v2096, %v2095
      %v2135 = vpack.c.b16 %v2098, %v2097
      %v2136 = vpack.c.b16 %v2100, %v2099
      %v2137 = vpack.c.b16 %v2102, %v2101
      %v2138 = vpack.c.b16 %v2104, %v2103
      %v2139 = vpack.c.b16 %v2106, %v2105
      %v2140 = vpack.c.b16 %v2108, %v2107
      %v2141 = vpack.c.b16 %v2110, %v2109
      %v2142 = vpack.c.b16 %v2112, %v2111
      %v2143 = vpack.c.b16 %v2114, %v2113
      %v2144 = vpack.c.b16 %v2116, %v2115
      %v2145 = vpack.c.b16 %v2118, %v2117
      %v2146 = vpack.c.b16 %v2120, %v2119
      %v2147 = vpack.c.b16 %v2122, %v2121
      %v2148 = vpack.c.b16 %v2124, %v2123
      %2173 = vmatprep.subr.bf16.mxu0 0
      %2174 = vmatpush1.bf16.msra.mxu0 %v2132
      %2175 = vmatprep.subr.bf16.mxu0 0
      %2176 = vmatpush1.bf16.msra.mxu0 %v2131
      %2177 = vmatprep.subr.bf16.mxu0 0
      %2178 = vmatpush1.bf16.msra.mxu0 %v2130
      %2179 = vmatprep.subr.bf16.mxu0 0
      %2180 = vmatpush1.bf16.msra.mxu0 %v2129
      %2181 = vmatprep.subr.bf16.mxu0 0
      %2182 = vmatpush1.bf16.msra.mxu0 %v2128
      %2183 = vmatprep.subr.bf16.mxu0 0
      %2184 = vmatpush1.bf16.msra.mxu0 %v2127
      %2185 = vmatprep.subr.bf16.mxu0 0
      %2186 = vmatpush1.bf16.msra.mxu0 %v2126
      %2187 = vmatprep.subr.bf16.mxu0 0
      %2188 = vmatpush1.bf16.msra.mxu0 %v2125
      %2189 = vmatprep.subr.bf16.mxu0 0
      %2190 = vmatpush2.bf16.msra.mxu0 %v2140
      %2191 = vmatprep.subr.bf16.mxu0 0
      %2192 = vmatpush2.bf16.msra.mxu0 %v2139
      %2193 = vmatprep.subr.bf16.mxu0 0
      %2194 = vmatpush2.bf16.msra.mxu0 %v2138
      %2195 = vmatprep.subr.bf16.mxu0 0
      %2196 = vmatpush2.bf16.msra.mxu0 %v2137
      %2197 = vmatprep.subr.bf16.mxu0 0
      %2198 = vmatpush2.bf16.msra.mxu0 %v2136
      %2199 = vmatprep.subr.bf16.mxu0 0
      %2200 = vmatpush2.bf16.msra.mxu0 %v2135
      %2201 = vmatprep.subr.bf16.mxu0 0
      %2202 = vmatpush2.bf16.msra.mxu0 %v2134
      %2203 = vmatprep.subr.bf16.mxu0 0
      %2204 = vmatpush2.bf16.msra.mxu0 %v2133
      %2205 = vmatprep.mubr.bf16.mxu0 %v2006
      %2206 = vmatmul.mubr.bf16.gmra.mxu0 %v2005
      %v2207 = vpop.f32.mrf.mxu0
      %v2208 = vadd.f32 0.0, %v2207
      %v2209 = vpop.f32.mrf.mxu0
      %v2210 = vpop.f32.mrf.mxu0
      %v2211 = vadd.f32 0.0, %v2210
      %v2212 = vpop.f32.mrf.mxu0
      %2213 = vmatprep.mubr.bf16.mxu0 %v2009
      %2214 = vmatmul.mubr.bf16.gmra.mxu0 %v2008
      %v2215 = vpop.f32.mrf.mxu0
      %v2216 = vadd.f32 0.0, %v2215
      %v2217 = vpop.f32.mrf.mxu0
      %v2218 = vpop.f32.mrf.mxu0
      %v2219 = vadd.f32 0.0, %v2218
      %v2220 = vpop.f32.mrf.mxu0
      %2221 = vmatprep.mubr.bf16.mxu0 %v2012
      %2222 = vmatmul.mubr.bf16.gmra.mxu0 %v2011
      %v2223 = vpop.f32.mrf.mxu0
      %v2224 = vadd.f32 0.0, %v2223
      %v2225 = vpop.f32.mrf.mxu0
      %v2226 = vpop.f32.mrf.mxu0
      %v2227 = vadd.f32 0.0, %v2226
      %v2228 = vpop.f32.mrf.mxu0
      %2229 = vmatprep.mubr.bf16.mxu0 %v2015
      %2230 = vmatmul.mubr.bf16.gmra.mxu0 %v2014
      %v2231 = vpop.f32.mrf.mxu0
      %v2232 = vadd.f32 0.0, %v2231
      %v2233 = vpop.f32.mrf.mxu0
      %v2234 = vpop.f32.mrf.mxu0
      %v2235 = vadd.f32 0.0, %v2234
      %v2236 = vpop.f32.mrf.mxu0
      %2237 = vdwg.mxu0
      %2238 = vmatprep.subr.bf16.mxu0 0
      %2239 = vmatpush1.bf16.msra.mxu0 %v2148
      %2240 = vmatprep.subr.bf16.mxu0 0
      %2241 = vmatpush1.bf16.msra.mxu0 %v2147
      %2242 = vmatprep.subr.bf16.mxu0 0
      %2243 = vmatpush1.bf16.msra.mxu0 %v2146
      %2244 = vmatprep.subr.bf16.mxu0 0
      %2245 = vmatpush1.bf16.msra.mxu0 %v2145
      %2246 = vmatprep.subr.bf16.mxu0 0
      %2247 = vmatpush1.bf16.msra.mxu0 %v2144
      %2248 = vmatprep.subr.bf16.mxu0 0
      %2249 = vmatpush1.bf16.msra.mxu0 %v2143
      %2250 = vmatprep.subr.bf16.mxu0 0
      %2251 = vmatpush1.bf16.msra.mxu0 %v2142
      %2252 = vmatprep.subr.bf16.mxu0 0
      %2253 = vmatpush1.bf16.msra.mxu0 %v2141
      %2254 = vmatprep.subr.bf16.mxu0 0
      %2255 = vmatpush2.bf16.msra.mxu0 0
      %2256 = vmatprep.subr.bf16.mxu0 0
      %2257 = vmatpush2.bf16.msra.mxu0 0
      %2258 = vmatprep.subr.bf16.mxu0 0
      %2259 = vmatpush2.bf16.msra.mxu0 0
      %2260 = vmatprep.subr.bf16.mxu0 0
      %2261 = vmatpush2.bf16.msra.mxu0 0
      %2262 = vmatprep.subr.bf16.mxu0 0
      %2263 = vmatpush2.bf16.msra.mxu0 0
      %2264 = vmatprep.subr.bf16.mxu0 0
      %2265 = vmatpush2.bf16.msra.mxu0 0
      %2266 = vmatprep.subr.bf16.mxu0 0
      %2267 = vmatpush2.bf16.msra.mxu0 0
      %2268 = vmatprep.subr.bf16.mxu0 0
      %2269 = vmatpush2.bf16.msra.mxu0 0
      %2270 = vmatprep.mubr.bf16.mxu0 0
      %2271 = vmatmul.mubr.bf16.gmra.mxu0 %v2007
      %v2272 = vpop.f32.mrf.mxu0
      %v2273 = vadd.f32 %v2208, %v2272
      %v2274 = vpop.f32.mrf.mxu0
      %v2275 = vpop.f32.mrf.mxu0
      %v2276 = vadd.f32 %v2211, %v2275
      %v2277 = vpop.f32.mrf.mxu0
      %2278 = vmatprep.mubr.bf16.mxu0 0
      %2279 = vmatmul.mubr.bf16.gmra.mxu0 %v2010
      %v2280 = vpop.f32.mrf.mxu0
      %v2281 = vadd.f32 %v2216, %v2280
      %v2282 = vpop.f32.mrf.mxu0
      %v2283 = vpop.f32.mrf.mxu0
      %v2284 = vadd.f32 %v2219, %v2283
      %v2285 = vpop.f32.mrf.mxu0
      %2286 = vmatprep.mubr.bf16.mxu0 0
      %2287 = vmatmul.mubr.bf16.gmra.mxu0 %v2013
      %v2288 = vpop.f32.mrf.mxu0
      %v2289 = vadd.f32 %v2224, %v2288
      %v2290 = vpop.f32.mrf.mxu0
      %v2291 = vpop.f32.mrf.mxu0
      %v2292 = vadd.f32 %v2227, %v2291
      %v2293 = vpop.f32.mrf.mxu0
      %2294 = vmatprep.mubr.bf16.mxu0 0
      %2295 = vmatmul.mubr.bf16.gmra.mxu0 %v2016
      %v2296 = vpop.f32.mrf.mxu0
      %v2297 = vadd.f32 %v2232, %v2296
      %v2298 = vpop.f32.mrf.mxu0
      %v2299 = vpop.f32.mrf.mxu0
      %v2300 = vadd.f32 %v2235, %v2299
      %v2301 = vpop.f32.mrf.mxu0
      %2302 = vdwg.mxu0
      %v2303 = vadd.f32 %v1908, %v2273
      %v2304 = vadd.f32 %v1909, %v2276
      %v2305 = vadd.f32 %v1910, %v2281
      %v2306 = vadd.f32 %v1911, %v2284
      %v2307 = vadd.f32 %v1912, %v2289
      %v2308 = vadd.f32 %v1913, %v2292
      %v2309 = vadd.f32 %v1914, %v2297
      %v2310 = vadd.f32 %v1915, %v2300
      %2311 = vst [vmem:[#allocation2] sm:$0xff] %v2303
      %2312 = vst [vmem:[#allocation2 + $0x8] sm:$0xff] %v2304
      %2313 = vst [vmem:[#allocation2 + $0x10] sm:$0xff] %v2305
      %2314 = vst [vmem:[#allocation2 + $0x18] sm:$0xff] %v2306
      %2315 = vst [vmem:[#allocation2 + $0x20] sm:$0xff] %v2307
      %2316 = vst [vmem:[#allocation2 + $0x28] sm:$0xff] %v2308
      %2317 = vst [vmem:[#allocation2 + $0x30] sm:$0xff] %v2309
      %2318 = vst [vmem:[#allocation2 + $0x38] sm:$0xff] %v2310
      %p2319 = scmp.ge.s32.totalorder %s24, 0
      %p2320 = scmp.lt.s32.totalorder %s24, 8
      %p2321 = pnand %p2319, %p2320
      %p2322 = pneg %p2321
      %v2323 = vld [vmem:[%s388] sm:$0xf]
      %v2324 = vld [vmem:[%s388 + $0x8] sm:$0xf]
      %v2325 = vld [vmem:[%s388 + $0x10] sm:$0xf]
      %v2326 = vld [vmem:[%s388 + $0x18] sm:$0xf]
      %v2327 = vld [vmem:[%s388 + $0x20] sm:$0xf]
      %v2328 = vld [vmem:[%s388 + $0x28] sm:$0xf]
      %v2329 = vld [vmem:[%s388 + $0x30] sm:$0xf]
      %v2330 = vld [vmem:[%s388 + $0x38] sm:$0xf]
      %v2331 = vld [vmem:[%s388 + $0x40] sm:$0xf]
      %v2332 = vld [vmem:[%s388 + $0x48] sm:$0xf]
      %v2333 = vld [vmem:[%s388 + $0x50] sm:$0xf]
      %v2334 = vld [vmem:[%s388 + $0x58] sm:$0xf]
      %v2335 = vunpack.c.l.bf16 %v2323
      %v2336 = vunpack.c.l.bf16 %v2324
      %v2337 = vunpack.c.l.bf16 %v2325
      %v2338 = vunpack.c.l.bf16 %v2326
      %v2339 = vunpack.c.l.bf16 %v2327
      %v2340 = vunpack.c.l.bf16 %v2328
      %v2341 = vunpack.c.l.bf16 %v2329
      %v2342 = vunpack.c.l.bf16 %v2330
      %v2343 = vunpack.c.l.bf16 %v2331
      %v2344 = vunpack.c.l.bf16 %v2332
      %v2345 = vunpack.c.l.bf16 %v2333
      %v2346 = vunpack.c.l.bf16 %v2334
      %s2347 = scalar_select %p2322, 1, 0
      %v2348 = vstv %s2347
      %vm2349 = vcmp.eq.s32.totalorder %v2348, 1
      %vm2350 = vmand %vm464, %vm2349
      %vm2351 = vmand %vm465, %vm2349
      %v2352 = vmul.f32 %v2335, %v475
      %v2353 = vmul.f32 %v2336, %v475
      %v2354 = vmul.f32 %v2337, %v475
      %v2355 = vmul.f32 %v2338, %v475
      %v2356 = vmul.f32 %v2339, %v475
      %v2357 = vmul.f32 %v2340, %v475
      %v2358 = vmul.f32 %v2341, %v475
      %v2359 = vmul.f32 %v2342, %v475
      %v2360 = vmul.f32 %v2343, %v475
      %v2361 = vmul.f32 %v2344, %v475
      %v2362 = vmul.f32 %v2345, %v475
      %v2363 = vmul.f32 %v2346, %v475
      %v2364 = vadd.f32 %v2352, %v493
      %v2365 = vadd.f32 %v2353, %v493
      %v2366 = vadd.f32 %v2354, %v493
      %v2367 = vadd.f32 %v2355, %v493
      %v2368 = vadd.f32 %v2356, %v493
      %v2369 = vadd.f32 %v2357, %v493
      %v2370 = vadd.f32 %v2358, %v493
      %v2371 = vadd.f32 %v2359, %v493
      %v2372 = vadd.f32 %v2360, %v493
      %v2373 = vadd.f32 %v2361, %v493
      %v2374 = vadd.f32 %v2362, %v493
      %v2375 = vadd.f32 %v2363, %v493
      %v2376 = vmax.f32 %v2364, 0.0
      %v2377 = vmax.f32 %v2365, 0.0
      %v2378 = vmax.f32 %v2366, 0.0
      %v2379 = vmax.f32 %v2367, 0.0
      %v2380 = vmax.f32 %v2368, 0.0
      %v2381 = vmax.f32 %v2369, 0.0
      %v2382 = vmax.f32 %v2370, 0.0
      %v2383 = vmax.f32 %v2371, 0.0
      %v2384 = vmax.f32 %v2372, 0.0
      %v2385 = vmax.f32 %v2373, 0.0
      %v2386 = vmax.f32 %v2374, 0.0
      %v2387 = vmax.f32 %v2375, 0.0
      %v2388 = vsel %vm2350, 1, 0
      %v2389 = vsel %vm2351, 1, 0
      %vm2390 = vcmp.eq.s32.totalorder %v2388, 1
      %vm2391 = vcmp.eq.s32.totalorder %v2389, 1
      %v2392 = vsel %vm2390, %v2376, 0.0
      %v2393 = vsel %vm2390, %v2377, 0.0
      %v2394 = vsel %vm2391, %v2378, 0.0
      %v2395 = vsel %vm2391, %v2379, 0.0
      %v2396 = vsel %vm2391, %v2380, 0.0
      %v2397 = vsel %vm2391, %v2381, 0.0
      %v2398 = vsel %vm2391, %v2382, 0.0
      %v2399 = vsel %vm2391, %v2383, 0.0
      %v2400 = vsel %vm2391, %v2384, 0.0
      %v2401 = vsel %vm2391, %v2385, 0.0
      %v2402 = vsel %vm2390, %v2386, 0.0
      %v2403 = vsel %vm2390, %v2387, 0.0
      %v2404 = vpack.c.bf16 %v2392, %v2392
      %v2405 = vpack.c.bf16 %v2393, %v2393
      %v2406 = vpack.c.bf16 %v2394, %v2394
      %v2407 = vpack.c.bf16 %v2395, %v2395
      %v2408 = vpack.c.bf16 %v2396, %v2396
      %v2409 = vpack.c.bf16 %v2397, %v2397
      %v2410 = vpack.c.bf16 %v2398, %v2398
      %v2411 = vpack.c.bf16 %v2399, %v2399
      %v2412 = vpack.c.bf16 %v2400, %v2400
      %v2413 = vpack.c.bf16 %v2401, %v2401
      %v2414 = vpack.c.bf16 %v2402, %v2402
      %v2415 = vpack.c.bf16 %v2403, %v2403
      %2416 = vst [vmem:[#allocation3] sm:$0xf] %v2404
      %2417 = vst [vmem:[#allocation3 + $0xc] sm:$0xf] %v2405
      %2418 = vst [vmem:[#allocation3 + $0x18] sm:$0xf] %v2406
      %2419 = vst [vmem:[#allocation3 + $0x24] sm:$0xf] %v2407
      %2420 = vst [vmem:[#allocation3 + $0x30] sm:$0xf] %v2408
      %2421 = vst [vmem:[#allocation3 + $0x3c] sm:$0xf] %v2409
      %2422 = vst [vmem:[#allocation3 + $0x48] sm:$0xf] %v2410
      %2423 = vst [vmem:[#allocation3 + $0x54] sm:$0xf] %v2411
      %2424 = vst [vmem:[#allocation3 + $0x60] sm:$0xf] %v2412
      %2425 = vst [vmem:[#allocation3 + $0x6c] sm:$0xf] %v2413
      %2426 = vst [vmem:[#allocation3 + $0x78] sm:$0xf] %v2414
      %2427 = vst [vmem:[#allocation3 + $0x84] sm:$0xf] %v2415
      %v2428 = vld [vmem:[%s388] sm:$0xe]
      %v2429 = vld [vmem:[%s388 + $0x4] sm:$0x1]
      %v2430 = vld [vmem:[%s388 + $0x8] sm:$0xe]
      %v2431 = vld [vmem:[%s388 + $0xc] sm:$0x1]
      %v2432 = vld [vmem:[%s388 + $0x10] sm:$0xe]
      %v2433 = vld [vmem:[%s388 + $0x14] sm:$0x1]
      %v2434 = vld [vmem:[%s388 + $0x18] sm:$0xe]
      %v2435 = vld [vmem:[%s388 + $0x1c] sm:$0x1]
      %v2436 = vld [vmem:[%s388 + $0x20] sm:$0xe]
      %v2437 = vld [vmem:[%s388 + $0x24] sm:$0x1]
      %v2438 = vld [vmem:[%s388 + $0x28] sm:$0xe]
      %v2439 = vld [vmem:[%s388 + $0x2c] sm:$0x1]
      %v2440 = vld [vmem:[%s388 + $0x30] sm:$0xe]
      %v2441 = vld [vmem:[%s388 + $0x34] sm:$0x1]
      %v2442 = vld [vmem:[%s388 + $0x38] sm:$0xe]
      %v2443 = vld [vmem:[%s388 + $0x3c] sm:$0x1]
      %v2444 = vld [vmem:[%s388 + $0x40] sm:$0xe]
      %v2445 = vld [vmem:[%s388 + $0x44] sm:$0x1]
      %v2446 = vld [vmem:[%s388 + $0x48] sm:$0xe]
      %v2447 = vld [vmem:[%s388 + $0x4c] sm:$0x1]
      %v2448 = vld [vmem:[%s388 + $0x50] sm:$0xe]
      %v2449 = vld [vmem:[%s388 + $0x54] sm:$0x1]
      %v2450 = vld [vmem:[%s388 + $0x58] sm:$0xe]
      %v2451 = vld [vmem:[%s388 + $0x5c] sm:$0x1]
      %v2452 = vunpack.c.l.bf16 %v2428
      %v2453 = vunpack.c.l.bf16 %v2429
      %v2454 = vunpack.c.l.bf16 %v2430
      %v2455 = vunpack.c.l.bf16 %v2431
      %v2456 = vunpack.c.l.bf16 %v2432
      %v2457 = vunpack.c.l.bf16 %v2433
      %v2458 = vunpack.c.l.bf16 %v2434
      %v2459 = vunpack.c.l.bf16 %v2435
      %v2460 = vunpack.c.l.bf16 %v2436
      %v2461 = vunpack.c.l.bf16 %v2437
      %v2462 = vunpack.c.l.bf16 %v2438
      %v2463 = vunpack.c.l.bf16 %v2439
      %v2464 = vunpack.c.l.bf16 %v2440
      %v2465 = vunpack.c.l.bf16 %v2441
      %v2466 = vunpack.c.l.bf16 %v2442
      %v2467 = vunpack.c.l.bf16 %v2443
      %v2468 = vunpack.c.l.bf16 %v2444
      %v2469 = vunpack.c.l.bf16 %v2445
      %v2470 = vunpack.c.l.bf16 %v2446
      %v2471 = vunpack.c.l.bf16 %v2447
      %v2472 = vunpack.c.l.bf16 %v2448
      %v2473 = vunpack.c.l.bf16 %v2449
      %v2474 = vunpack.c.l.bf16 %v2450
      %v2475 = vunpack.c.l.bf16 %v2451
      %vm2476 = vmand %vm609, %vm2349
      %vm2477 = vmand %vm610, %vm2349
      %v2478 = vmul.f32 %v2452, %v475
      %v2479 = vmul.f32 %v2453, %v475
      %v2480 = vmul.f32 %v2454, %v475
      %v2481 = vmul.f32 %v2455, %v475
      %v2482 = vmul.f32 %v2456, %v475
      %v2483 = vmul.f32 %v2457, %v475
      %v2484 = vmul.f32 %v2458, %v475
      %v2485 = vmul.f32 %v2459, %v475
      %v2486 = vmul.f32 %v2460, %v475
      %v2487 = vmul.f32 %v2461, %v475
      %v2488 = vmul.f32 %v2462, %v475
      %v2489 = vmul.f32 %v2463, %v475
      %v2490 = vmul.f32 %v2464, %v475
      %v2491 = vmul.f32 %v2465, %v475
      %v2492 = vmul.f32 %v2466, %v475
      %v2493 = vmul.f32 %v2467, %v475
      %v2494 = vmul.f32 %v2468, %v475
      %v2495 = vmul.f32 %v2469, %v475
      %v2496 = vmul.f32 %v2470, %v475
      %v2497 = vmul.f32 %v2471, %v475
      %v2498 = vmul.f32 %v2472, %v475
      %v2499 = vmul.f32 %v2473, %v475
      %v2500 = vmul.f32 %v2474, %v475
      %v2501 = vmul.f32 %v2475, %v475
      %v2502 = vadd.f32 %v2478, %v493
      %v2503 = vadd.f32 %v2479, %v493
      %v2504 = vadd.f32 %v2480, %v493
      %v2505 = vadd.f32 %v2481, %v493
      %v2506 = vadd.f32 %v2482, %v493
      %v2507 = vadd.f32 %v2483, %v493
      %v2508 = vadd.f32 %v2484, %v493
      %v2509 = vadd.f32 %v2485, %v493
      %v2510 = vadd.f32 %v2486, %v493
      %v2511 = vadd.f32 %v2487, %v493
      %v2512 = vadd.f32 %v2488, %v493
      %v2513 = vadd.f32 %v2489, %v493
      %v2514 = vadd.f32 %v2490, %v493
      %v2515 = vadd.f32 %v2491, %v493
      %v2516 = vadd.f32 %v2492, %v493
      %v2517 = vadd.f32 %v2493, %v493
      %v2518 = vadd.f32 %v2494, %v493
      %v2519 = vadd.f32 %v2495, %v493
      %v2520 = vadd.f32 %v2496, %v493
      %v2521 = vadd.f32 %v2497, %v493
      %v2522 = vadd.f32 %v2498, %v493
      %v2523 = vadd.f32 %v2499, %v493
      %v2524 = vadd.f32 %v2500, %v493
      %v2525 = vadd.f32 %v2501, %v493
      %v2526 = vmax.f32 %v2502, 0.0
      %v2527 = vmax.f32 %v2503, 0.0
      %v2528 = vmax.f32 %v2504, 0.0
      %v2529 = vmax.f32 %v2505, 0.0
      %v2530 = vmax.f32 %v2506, 0.0
      %v2531 = vmax.f32 %v2507, 0.0
      %v2532 = vmax.f32 %v2508, 0.0
      %v2533 = vmax.f32 %v2509, 0.0
      %v2534 = vmax.f32 %v2510, 0.0
      %v2535 = vmax.f32 %v2511, 0.0
      %v2536 = vmax.f32 %v2512, 0.0
      %v2537 = vmax.f32 %v2513, 0.0
      %v2538 = vmax.f32 %v2514, 0.0
      %v2539 = vmax.f32 %v2515, 0.0
      %v2540 = vmax.f32 %v2516, 0.0
      %v2541 = vmax.f32 %v2517, 0.0
      %v2542 = vmax.f32 %v2518, 0.0
      %v2543 = vmax.f32 %v2519, 0.0
      %v2544 = vmax.f32 %v2520, 0.0
      %v2545 = vmax.f32 %v2521, 0.0
      %v2546 = vmax.f32 %v2522, 0.0
      %v2547 = vmax.f32 %v2523, 0.0
      %v2548 = vmax.f32 %v2524, 0.0
      %v2549 = vmax.f32 %v2525, 0.0
      %v2550 = vsel %vm2476, 1, 0
      %v2551 = vsel %vm2477, 1, 0
      %vm2552 = vcmp.eq.s32.totalorder %v2550, 1
      %vm2553 = vcmp.eq.s32.totalorder %v2551, 1
      %v2578 = vrot.slane %v2526, 2
      %v2579 = vrot.slane %v2527, 2
      %v2580 = vsel %vm713, %v2578, %v2579
      %v2581 = vrot.slane %v2528, 2
      %v2582 = vrot.slane %v2529, 2
      %v2583 = vsel %vm713, %v2581, %v2582
      %v2584 = vrot.slane %v2530, 2
      %v2585 = vrot.slane %v2531, 2
      %v2586 = vsel %vm713, %v2584, %v2585
      %v2587 = vrot.slane %v2532, 2
      %v2588 = vrot.slane %v2533, 2
      %v2589 = vsel %vm713, %v2587, %v2588
      %v2590 = vrot.slane %v2534, 2
      %v2591 = vrot.slane %v2535, 2
      %v2592 = vsel %vm713, %v2590, %v2591
      %v2593 = vrot.slane %v2536, 2
      %v2594 = vrot.slane %v2537, 2
      %v2595 = vsel %vm713, %v2593, %v2594
      %v2596 = vrot.slane %v2538, 2
      %v2597 = vrot.slane %v2539, 2
      %v2598 = vsel %vm713, %v2596, %v2597
      %v2599 = vrot.slane %v2540, 2
      %v2600 = vrot.slane %v2541, 2
      %v2601 = vsel %vm713, %v2599, %v2600
      %v2602 = vrot.slane %v2542, 2
      %v2603 = vrot.slane %v2543, 2
      %v2604 = vsel %vm713, %v2602, %v2603
      %v2605 = vrot.slane %v2544, 2
      %v2606 = vrot.slane %v2545, 2
      %v2607 = vsel %vm713, %v2605, %v2606
      %v2608 = vrot.slane %v2546, 2
      %v2609 = vrot.slane %v2547, 2
      %v2610 = vsel %vm713, %v2608, %v2609
      %v2611 = vrot.slane %v2548, 2
      %v2612 = vrot.slane %v2549, 2
      %v2613 = vsel %vm713, %v2611, %v2612
      %v2626 = vsel %vm2552, %v2580, 0.0
      %v2627 = vsel %vm2552, %v2583, 0.0
      %v2628 = vsel %vm2553, %v2586, 0.0
      %v2629 = vsel %vm2553, %v2589, 0.0
      %v2630 = vsel %vm2553, %v2592, 0.0
      %v2631 = vsel %vm2553, %v2595, 0.0
      %v2632 = vsel %vm2553, %v2598, 0.0
      %v2633 = vsel %vm2553, %v2601, 0.0
      %v2634 = vsel %vm2553, %v2604, 0.0
      %v2635 = vsel %vm2553, %v2607, 0.0
      %v2636 = vsel %vm2552, %v2610, 0.0
      %v2637 = vsel %vm2552, %v2613, 0.0
      %v2638 = vpack.c.bf16 %v2626, %v2626
      %v2639 = vpack.c.bf16 %v2627, %v2627
      %v2640 = vpack.c.bf16 %v2628, %v2628
      %v2641 = vpack.c.bf16 %v2629, %v2629
      %v2642 = vpack.c.bf16 %v2630, %v2630
      %v2643 = vpack.c.bf16 %v2631, %v2631
      %v2644 = vpack.c.bf16 %v2632, %v2632
      %v2645 = vpack.c.bf16 %v2633, %v2633
      %v2646 = vpack.c.bf16 %v2634, %v2634
      %v2647 = vpack.c.bf16 %v2635, %v2635
      %v2648 = vpack.c.bf16 %v2636, %v2636
      %v2649 = vpack.c.bf16 %v2637, %v2637
      %2650 = vst [vmem:[#allocation3 + $0x4] sm:$0xf] %v2638
      %2651 = vst [vmem:[#allocation3 + $0x10] sm:$0xf] %v2639
      %2652 = vst [vmem:[#allocation3 + $0x1c] sm:$0xf] %v2640
      %2653 = vst [vmem:[#allocation3 + $0x28] sm:$0xf] %v2641
      %2654 = vst [vmem:[#allocation3 + $0x34] sm:$0xf] %v2642
      %2655 = vst [vmem:[#allocation3 + $0x40] sm:$0xf] %v2643
      %2656 = vst [vmem:[#allocation3 + $0x4c] sm:$0xf] %v2644
      %2657 = vst [vmem:[#allocation3 + $0x58] sm:$0xf] %v2645
      %2658 = vst [vmem:[#allocation3 + $0x64] sm:$0xf] %v2646
      %2659 = vst [vmem:[#allocation3 + $0x70] sm:$0xf] %v2647
      %2660 = vst [vmem:[#allocation3 + $0x7c] sm:$0xf] %v2648
      %2661 = vst [vmem:[#allocation3 + $0x88] sm:$0xf] %v2649
      %v2662 = vld [vmem:[%s388] sm:$0xc]
      %v2663 = vld [vmem:[%s388 + $0x4] sm:$0x3]
      %v2664 = vld [vmem:[%s388 + $0x8] sm:$0xc]
      %v2665 = vld [vmem:[%s388 + $0xc] sm:$0x3]
      %v2666 = vld [vmem:[%s388 + $0x10] sm:$0xc]
      %v2667 = vld [vmem:[%s388 + $0x14] sm:$0x3]
      %v2668 = vld [vmem:[%s388 + $0x18] sm:$0xc]
      %v2669 = vld [vmem:[%s388 + $0x1c] sm:$0x3]
      %v2670 = vld [vmem:[%s388 + $0x20] sm:$0xc]
      %v2671 = vld [vmem:[%s388 + $0x24] sm:$0x3]
      %v2672 = vld [vmem:[%s388 + $0x28] sm:$0xc]
      %v2673 = vld [vmem:[%s388 + $0x2c] sm:$0x3]
      %v2674 = vld [vmem:[%s388 + $0x30] sm:$0xc]
      %v2675 = vld [vmem:[%s388 + $0x34] sm:$0x3]
      %v2676 = vld [vmem:[%s388 + $0x38] sm:$0xc]
      %v2677 = vld [vmem:[%s388 + $0x3c] sm:$0x3]
      %v2678 = vld [vmem:[%s388 + $0x40] sm:$0xc]
      %v2679 = vld [vmem:[%s388 + $0x44] sm:$0x3]
      %v2680 = vld [vmem:[%s388 + $0x48] sm:$0xc]
      %v2681 = vld [vmem:[%s388 + $0x4c] sm:$0x3]
      %v2682 = vld [vmem:[%s388 + $0x50] sm:$0xc]
      %v2683 = vld [vmem:[%s388 + $0x54] sm:$0x3]
      %v2684 = vld [vmem:[%s388 + $0x58] sm:$0xc]
      %v2685 = vld [vmem:[%s388 + $0x5c] sm:$0x3]
      %v2686 = vunpack.c.l.bf16 %v2662
      %v2687 = vunpack.c.l.bf16 %v2663
      %v2688 = vunpack.c.l.bf16 %v2664
      %v2689 = vunpack.c.l.bf16 %v2665
      %v2690 = vunpack.c.l.bf16 %v2666
      %v2691 = vunpack.c.l.bf16 %v2667
      %v2692 = vunpack.c.l.bf16 %v2668
      %v2693 = vunpack.c.l.bf16 %v2669
      %v2694 = vunpack.c.l.bf16 %v2670
      %v2695 = vunpack.c.l.bf16 %v2671
      %v2696 = vunpack.c.l.bf16 %v2672
      %v2697 = vunpack.c.l.bf16 %v2673
      %v2698 = vunpack.c.l.bf16 %v2674
      %v2699 = vunpack.c.l.bf16 %v2675
      %v2700 = vunpack.c.l.bf16 %v2676
      %v2701 = vunpack.c.l.bf16 %v2677
      %v2702 = vunpack.c.l.bf16 %v2678
      %v2703 = vunpack.c.l.bf16 %v2679
      %v2704 = vunpack.c.l.bf16 %v2680
      %v2705 = vunpack.c.l.bf16 %v2681
      %v2706 = vunpack.c.l.bf16 %v2682
      %v2707 = vunpack.c.l.bf16 %v2683
      %v2708 = vunpack.c.l.bf16 %v2684
      %v2709 = vunpack.c.l.bf16 %v2685
      %vm2710 = vmand %vm848, %vm2349
      %vm2711 = vmand %vm849, %vm2349
      %v2712 = vmul.f32 %v2686, %v475
      %v2713 = vmul.f32 %v2687, %v475
      %v2714 = vmul.f32 %v2688, %v475
      %v2715 = vmul.f32 %v2689, %v475
      %v2716 = vmul.f32 %v2690, %v475
      %v2717 = vmul.f32 %v2691, %v475
      %v2718 = vmul.f32 %v2692, %v475
      %v2719 = vmul.f32 %v2693, %v475
      %v2720 = vmul.f32 %v2694, %v475
      %v2721 = vmul.f32 %v2695, %v475
      %v2722 = vmul.f32 %v2696, %v475
      %v2723 = vmul.f32 %v2697, %v475
      %v2724 = vmul.f32 %v2698, %v475
      %v2725 = vmul.f32 %v2699, %v475
      %v2726 = vmul.f32 %v2700, %v475
      %v2727 = vmul.f32 %v2701, %v475
      %v2728 = vmul.f32 %v2702, %v475
      %v2729 = vmul.f32 %v2703, %v475
      %v2730 = vmul.f32 %v2704, %v475
      %v2731 = vmul.f32 %v2705, %v475
      %v2732 = vmul.f32 %v2706, %v475
      %v2733 = vmul.f32 %v2707, %v475
      %v2734 = vmul.f32 %v2708, %v475
      %v2735 = vmul.f32 %v2709, %v475
      %v2736 = vadd.f32 %v2712, %v493
      %v2737 = vadd.f32 %v2713, %v493
      %v2738 = vadd.f32 %v2714, %v493
      %v2739 = vadd.f32 %v2715, %v493
      %v2740 = vadd.f32 %v2716, %v493
      %v2741 = vadd.f32 %v2717, %v493
      %v2742 = vadd.f32 %v2718, %v493
      %v2743 = vadd.f32 %v2719, %v493
      %v2744 = vadd.f32 %v2720, %v493
      %v2745 = vadd.f32 %v2721, %v493
      %v2746 = vadd.f32 %v2722, %v493
      %v2747 = vadd.f32 %v2723, %v493
      %v2748 = vadd.f32 %v2724, %v493
      %v2749 = vadd.f32 %v2725, %v493
      %v2750 = vadd.f32 %v2726, %v493
      %v2751 = vadd.f32 %v2727, %v493
      %v2752 = vadd.f32 %v2728, %v493
      %v2753 = vadd.f32 %v2729, %v493
      %v2754 = vadd.f32 %v2730, %v493
      %v2755 = vadd.f32 %v2731, %v493
      %v2756 = vadd.f32 %v2732, %v493
      %v2757 = vadd.f32 %v2733, %v493
      %v2758 = vadd.f32 %v2734, %v493
      %v2759 = vadd.f32 %v2735, %v493
      %v2760 = vmax.f32 %v2736, 0.0
      %v2761 = vmax.f32 %v2737, 0.0
      %v2762 = vmax.f32 %v2738, 0.0
      %v2763 = vmax.f32 %v2739, 0.0
      %v2764 = vmax.f32 %v2740, 0.0
      %v2765 = vmax.f32 %v2741, 0.0
      %v2766 = vmax.f32 %v2742, 0.0
      %v2767 = vmax.f32 %v2743, 0.0
      %v2768 = vmax.f32 %v2744, 0.0
      %v2769 = vmax.f32 %v2745, 0.0
      %v2770 = vmax.f32 %v2746, 0.0
      %v2771 = vmax.f32 %v2747, 0.0
      %v2772 = vmax.f32 %v2748, 0.0
      %v2773 = vmax.f32 %v2749, 0.0
      %v2774 = vmax.f32 %v2750, 0.0
      %v2775 = vmax.f32 %v2751, 0.0
      %v2776 = vmax.f32 %v2752, 0.0
      %v2777 = vmax.f32 %v2753, 0.0
      %v2778 = vmax.f32 %v2754, 0.0
      %v2779 = vmax.f32 %v2755, 0.0
      %v2780 = vmax.f32 %v2756, 0.0
      %v2781 = vmax.f32 %v2757, 0.0
      %v2782 = vmax.f32 %v2758, 0.0
      %v2783 = vmax.f32 %v2759, 0.0
      %v2784 = vsel %vm2710, 1, 0
      %v2785 = vsel %vm2711, 1, 0
      %vm2786 = vcmp.eq.s32.totalorder %v2784, 1
      %vm2787 = vcmp.eq.s32.totalorder %v2785, 1
      %v2812 = vrot.slane %v2760, 4
      %v2813 = vrot.slane %v2761, 4
      %v2814 = vsel %vm952, %v2812, %v2813
      %v2815 = vrot.slane %v2762, 4
      %v2816 = vrot.slane %v2763, 4
      %v2817 = vsel %vm952, %v2815, %v2816
      %v2818 = vrot.slane %v2764, 4
      %v2819 = vrot.slane %v2765, 4
      %v2820 = vsel %vm952, %v2818, %v2819
      %v2821 = vrot.slane %v2766, 4
      %v2822 = vrot.slane %v2767, 4
      %v2823 = vsel %vm952, %v2821, %v2822
      %v2824 = vrot.slane %v2768, 4
      %v2825 = vrot.slane %v2769, 4
      %v2826 = vsel %vm952, %v2824, %v2825
      %v2827 = vrot.slane %v2770, 4
      %v2828 = vrot.slane %v2771, 4
      %v2829 = vsel %vm952, %v2827, %v2828
      %v2830 = vrot.slane %v2772, 4
      %v2831 = vrot.slane %v2773, 4
      %v2832 = vsel %vm952, %v2830, %v2831
      %v2833 = vrot.slane %v2774, 4
      %v2834 = vrot.slane %v2775, 4
      %v2835 = vsel %vm952, %v2833, %v2834
      %v2836 = vrot.slane %v2776, 4
      %v2837 = vrot.slane %v2777, 4
      %v2838 = vsel %vm952, %v2836, %v2837
      %v2839 = vrot.slane %v2778, 4
      %v2840 = vrot.slane %v2779, 4
      %v2841 = vsel %vm952, %v2839, %v2840
      %v2842 = vrot.slane %v2780, 4
      %v2843 = vrot.slane %v2781, 4
      %v2844 = vsel %vm952, %v2842, %v2843
      %v2845 = vrot.slane %v2782, 4
      %v2846 = vrot.slane %v2783, 4
      %v2847 = vsel %vm952, %v2845, %v2846
      %v2860 = vsel %vm2786, %v2814, 0.0
      %v2861 = vsel %vm2786, %v2817, 0.0
      %v2862 = vsel %vm2787, %v2820, 0.0
      %v2863 = vsel %vm2787, %v2823, 0.0
      %v2864 = vsel %vm2787, %v2826, 0.0
      %v2865 = vsel %vm2787, %v2829, 0.0
      %v2866 = vsel %vm2787, %v2832, 0.0
      %v2867 = vsel %vm2787, %v2835, 0.0
      %v2868 = vsel %vm2787, %v2838, 0.0
      %v2869 = vsel %vm2787, %v2841, 0.0
      %v2870 = vsel %vm2786, %v2844, 0.0
      %v2871 = vsel %vm2786, %v2847, 0.0
      %v2872 = vpack.c.bf16 %v2860, %v2860
      %v2873 = vpack.c.bf16 %v2861, %v2861
      %v2874 = vpack.c.bf16 %v2862, %v2862
      %v2875 = vpack.c.bf16 %v2863, %v2863
      %v2876 = vpack.c.bf16 %v2864, %v2864
      %v2877 = vpack.c.bf16 %v2865, %v2865
      %v2878 = vpack.c.bf16 %v2866, %v2866
      %v2879 = vpack.c.bf16 %v2867, %v2867
      %v2880 = vpack.c.bf16 %v2868, %v2868
      %v2881 = vpack.c.bf16 %v2869, %v2869
      %v2882 = vpack.c.bf16 %v2870, %v2870
      %v2883 = vpack.c.bf16 %v2871, %v2871
      %2884 = vst [vmem:[#allocation3 + $0x8] sm:$0xf] %v2872
      %2885 = vst [vmem:[#allocation3 + $0x14] sm:$0xf] %v2873
      %2886 = vst [vmem:[#allocation3 + $0x20] sm:$0xf] %v2874
      %2887 = vst [vmem:[#allocation3 + $0x2c] sm:$0xf] %v2875
      %2888 = vst [vmem:[#allocation3 + $0x38] sm:$0xf] %v2876
      %2889 = vst [vmem:[#allocation3 + $0x44] sm:$0xf] %v2877
      %2890 = vst [vmem:[#allocation3 + $0x50] sm:$0xf] %v2878
      %2891 = vst [vmem:[#allocation3 + $0x5c] sm:$0xf] %v2879
      %2892 = vst [vmem:[#allocation3 + $0x68] sm:$0xf] %v2880
      %2893 = vst [vmem:[#allocation3 + $0x74] sm:$0xf] %v2881
      %2894 = vst [vmem:[#allocation3 + $0x80] sm:$0xf] %v2882
      %2895 = vst [vmem:[#allocation3 + $0x8c] sm:$0xf] %v2883
      %v2896 = vld [vmem:[#allocation3] sm:$0xff]
      %v2897 = vld [vmem:[#allocation3 + $0x8] sm:$0xf]
      %v2898 = vld [vmem:[#allocation3 + $0xc] sm:$0xff]
      %v2899 = vld [vmem:[#allocation3 + $0x14] sm:$0xf]
      %v2900 = vld [vmem:[#allocation3 + $0x18] sm:$0xff]
      %v2901 = vld [vmem:[#allocation3 + $0x20] sm:$0xf]
      %v2902 = vld [vmem:[#allocation3 + $0x24] sm:$0xff]
      %v2903 = vld [vmem:[#allocation3 + $0x2c] sm:$0xf]
      %v2904 = vld [vmem:[#allocation3 + $0x30] sm:$0xff]
      %v2905 = vld [vmem:[#allocation3 + $0x38] sm:$0xf]
      %v2906 = vld [vmem:[#allocation3 + $0x3c] sm:$0xff]
      %v2907 = vld [vmem:[#allocation3 + $0x44] sm:$0xf]
      %v2908 = vld [vmem:[#allocation3 + $0x48] sm:$0xff]
      %v2909 = vld [vmem:[#allocation3 + $0x50] sm:$0xf]
      %v2910 = vld [vmem:[#allocation3 + $0x54] sm:$0xff]
      %v2911 = vld [vmem:[#allocation3 + $0x5c] sm:$0xf]
      %v2912 = vld [vmem:[#allocation2] sm:$0xff]
      %v2913 = vld [vmem:[#allocation2 + $0x8] sm:$0xff]
      %v2914 = vld [vmem:[#allocation2 + $0x10] sm:$0xff]
      %v2915 = vld [vmem:[#allocation2 + $0x18] sm:$0xff]
      %v2916 = vld [vmem:[#allocation2 + $0x20] sm:$0xff]
      %v2917 = vld [vmem:[#allocation2 + $0x28] sm:$0xff]
      %v2918 = vld [vmem:[#allocation2 + $0x30] sm:$0xff]
      %v2919 = vld [vmem:[#allocation2 + $0x38] sm:$0xff]
      %s2920 = scalar_lea.vmem %s5, 576
      %v2921 = vld [vmem:[%s2920] sm:$0xf]
      %v2922 = vld [vmem:[%s2920 + $0x4] sm:$0xf]
      %v2923 = vld [vmem:[%s2920 + $0x8] sm:$0xf]
      %v2924 = vld [vmem:[%s2920 + $0xc] sm:$0xf]
      %v2925 = vld [vmem:[%s2920 + $0x10] sm:$0xf]
      %v2926 = vld [vmem:[%s2920 + $0x14] sm:$0xf]
      %v2927 = vld [vmem:[%s2920 + $0x18] sm:$0xf]
      %v2928 = vld [vmem:[%s2920 + $0x1c] sm:$0xf]
      %v2929 = vld [vmem:[%s2920 + $0x20] sm:$0xf]
      %v2930 = vld [vmem:[%s2920 + $0x24] sm:$0xf]
      %v2931 = vld [vmem:[%s2920 + $0x28] sm:$0xf]
      %v2932 = vld [vmem:[%s2920 + $0x2c] sm:$0xf]
      %v2933 = vld [vmem:[%s2920 + $0x30] sm:$0xf]
      %v2934 = vld [vmem:[%s2920 + $0x34] sm:$0xf]
      %v2935 = vld [vmem:[%s2920 + $0x38] sm:$0xf]
      %v2936 = vld [vmem:[%s2920 + $0x3c] sm:$0xf]
      %v2937 = vld [vmem:[%s2920 + $0x40] sm:$0xf]
      %v2938 = vld [vmem:[%s2920 + $0x44] sm:$0xf]
      %v2939 = vld [vmem:[%s2920 + $0x48] sm:$0xf]
      %v2940 = vld [vmem:[%s2920 + $0x4c] sm:$0xf]
      %v2941 = vld [vmem:[%s2920 + $0x50] sm:$0xf]
      %v2942 = vld [vmem:[%s2920 + $0x54] sm:$0xf]
      %v2943 = vld [vmem:[%s2920 + $0x58] sm:$0xf]
      %v2944 = vld [vmem:[%s2920 + $0x5c] sm:$0xf]
      %v2945 = vld [vmem:[%s2920 + $0x60] sm:$0xf]
      %v2946 = vld [vmem:[%s2920 + $0x64] sm:$0xf]
      %v2947 = vld [vmem:[%s2920 + $0x68] sm:$0xf]
      %v2948 = vld [vmem:[%s2920 + $0x6c] sm:$0xf]
      %v2949 = vld [vmem:[%s2920 + $0x70] sm:$0xf]
      %v2950 = vld [vmem:[%s2920 + $0x74] sm:$0xf]
      %v2951 = vld [vmem:[%s2920 + $0x78] sm:$0xf]
      %v2952 = vld [vmem:[%s2920 + $0x7c] sm:$0xf]
      %v2953 = vld [vmem:[%s2920 + $0x80] sm:$0xf]
      %v2954 = vld [vmem:[%s2920 + $0x84] sm:$0xf]
      %v2955 = vld [vmem:[%s2920 + $0x88] sm:$0xf]
      %v2956 = vld [vmem:[%s2920 + $0x8c] sm:$0xf]
      %v2957 = vld [vmem:[%s2920 + $0x90] sm:$0xf]
      %v2958 = vld [vmem:[%s2920 + $0x94] sm:$0xf]
      %v2959 = vld [vmem:[%s2920 + $0x98] sm:$0xf]
      %v2960 = vld [vmem:[%s2920 + $0x9c] sm:$0xf]
      %v2961 = vld [vmem:[%s2920 + $0xa0] sm:$0xf]
      %v2962 = vld [vmem:[%s2920 + $0xa4] sm:$0xf]
      %v2963 = vld [vmem:[%s2920 + $0xa8] sm:$0xf]
      %v2964 = vld [vmem:[%s2920 + $0xac] sm:$0xf]
      %v2965 = vld [vmem:[%s2920 + $0xb0] sm:$0xf]
      %v2966 = vld [vmem:[%s2920 + $0xb4] sm:$0xf]
      %v2967 = vld [vmem:[%s2920 + $0xb8] sm:$0xf]
      %v2968 = vld [vmem:[%s2920 + $0xbc] sm:$0xf]
      %v2985 = vunpack.c.l.b16 %v2896
      %v2986 = vunpack.c.h.b16 %v2896
      %v2987 = vunpack.c.l.b16 %v2897
      %v2988 = vunpack.c.l.b16 %v2898
      %v2989 = vunpack.c.h.b16 %v2898
      %v2990 = vunpack.c.l.b16 %v2899
      %v2991 = vunpack.c.l.b16 %v2900
      %v2992 = vunpack.c.h.b16 %v2900
      %v2993 = vunpack.c.l.b16 %v2901
      %v2994 = vunpack.c.l.b16 %v2902
      %v2995 = vunpack.c.h.b16 %v2902
      %v2996 = vunpack.c.l.b16 %v2903
      %v2997 = vunpack.c.l.b16 %v2904
      %v2998 = vunpack.c.h.b16 %v2904
      %v2999 = vunpack.c.l.b16 %v2905
      %v3000 = vunpack.c.l.b16 %v2906
      %v3001 = vunpack.c.h.b16 %v2906
      %v3002 = vunpack.c.l.b16 %v2907
      %v3003 = vunpack.c.l.b16 %v2908
      %v3004 = vunpack.c.h.b16 %v2908
      %v3005 = vunpack.c.l.b16 %v2909
      %v3006 = vunpack.c.l.b16 %v2910
      %v3007 = vunpack.c.h.b16 %v2910
      %v3008 = vunpack.c.l.b16 %v2911
      %v3009 = vpack.c.b16 %v2988, %v2985
      %v3010 = vpack.c.b16 %v2989, %v2986
      %v3011 = vpack.c.b16 %v2990, %v2987
      %v3012 = vpack.c.b16 %v2994, %v2991
      %v3013 = vpack.c.b16 %v2995, %v2992
      %v3014 = vpack.c.b16 %v2996, %v2993
      %v3015 = vpack.c.b16 %v3000, %v2997
      %v3016 = vpack.c.b16 %v3001, %v2998
      %v3017 = vpack.c.b16 %v3002, %v2999
      %v3018 = vpack.c.b16 %v3006, %v3003
      %v3019 = vpack.c.b16 %v3007, %v3004
      %v3020 = vpack.c.b16 %v3008, %v3005
      %v3081 = vunpack.c.l.b16 %v2921
      %v3082 = vunpack.c.l.b16 %v2922
      %v3083 = vunpack.c.l.b16 %v2923
      %v3084 = vunpack.c.l.b16 %v2924
      %v3085 = vunpack.c.l.b16 %v2925
      %v3086 = vunpack.c.l.b16 %v2926
      %v3087 = vunpack.c.l.b16 %v2927
      %v3088 = vunpack.c.l.b16 %v2928
      %v3089 = vunpack.c.l.b16 %v2929
      %v3090 = vunpack.c.l.b16 %v2930
      %v3091 = vunpack.c.l.b16 %v2931
      %v3092 = vunpack.c.l.b16 %v2932
      %v3093 = vunpack.c.l.b16 %v2933
      %v3094 = vunpack.c.l.b16 %v2934
      %v3095 = vunpack.c.l.b16 %v2935
      %v3096 = vunpack.c.l.b16 %v2936
      %v3097 = vunpack.c.l.b16 %v2937
      %v3098 = vunpack.c.l.b16 %v2938
      %v3099 = vunpack.c.l.b16 %v2939
      %v3100 = vunpack.c.l.b16 %v2940
      %v3101 = vunpack.c.l.b16 %v2941
      %v3102 = vunpack.c.l.b16 %v2942
      %v3103 = vunpack.c.l.b16 %v2943
      %v3104 = vunpack.c.l.b16 %v2944
      %v3105 = vunpack.c.l.b16 %v2945
      %v3106 = vunpack.c.l.b16 %v2946
      %v3107 = vunpack.c.l.b16 %v2947
      %v3108 = vunpack.c.l.b16 %v2948
      %v3109 = vunpack.c.l.b16 %v2949
      %v3110 = vunpack.c.l.b16 %v2950
      %v3111 = vunpack.c.l.b16 %v2951
      %v3112 = vunpack.c.l.b16 %v2952
      %v3113 = vunpack.c.l.b16 %v2953
      %v3114 = vunpack.c.l.b16 %v2954
      %v3115 = vunpack.c.l.b16 %v2955
      %v3116 = vunpack.c.l.b16 %v2956
      %v3117 = vunpack.c.l.b16 %v2957
      %v3118 = vunpack.c.l.b16 %v2958
      %v3119 = vunpack.c.l.b16 %v2959
      %v3120 = vunpack.c.l.b16 %v2960
      %v3121 = vunpack.c.l.b16 %v2961
      %v3122 = vunpack.c.l.b16 %v2962
      %v3123 = vunpack.c.l.b16 %v2963
      %v3124 = vunpack.c.l.b16 %v2964
      %v3125 = vunpack.c.l.b16 %v2965
      %v3126 = vunpack.c.l.b16 %v2966
      %v3127 = vunpack.c.l.b16 %v2967
      %v3128 = vunpack.c.l.b16 %v2968
      %v3129 = vpack.c.b16 %v3082, %v3081
      %v3130 = vpack.c.b16 %v3084, %v3083
      %v3131 = vpack.c.b16 %v3086, %v3085
      %v3132 = vpack.c.b16 %v3088, %v3087
      %v3133 = vpack.c.b16 %v3090, %v3089
      %v3134 = vpack.c.b16 %v3092, %v3091
      %v3135 = vpack.c.b16 %v3094, %v3093
      %v3136 = vpack.c.b16 %v3096, %v3095
      %v3137 = vpack.c.b16 %v3098, %v3097
      %v3138 = vpack.c.b16 %v3100, %v3099
      %v3139 = vpack.c.b16 %v3102, %v3101
      %v3140 = vpack.c.b16 %v3104, %v3103
      %v3141 = vpack.c.b16 %v3106, %v3105
      %v3142 = vpack.c.b16 %v3108, %v3107
      %v3143 = vpack.c.b16 %v3110, %v3109
      %v3144 = vpack.c.b16 %v3112, %v3111
      %v3145 = vpack.c.b16 %v3114, %v3113
      %v3146 = vpack.c.b16 %v3116, %v3115
      %v3147 = vpack.c.b16 %v3118, %v3117
      %v3148 = vpack.c.b16 %v3120, %v3119
      %v3149 = vpack.c.b16 %v3122, %v3121
      %v3150 = vpack.c.b16 %v3124, %v3123
      %v3151 = vpack.c.b16 %v3126, %v3125
      %v3152 = vpack.c.b16 %v3128, %v3127
      %3177 = vmatprep.subr.bf16.mxu0 0
      %3178 = vmatpush1.bf16.msra.mxu0 %v3136
      %3179 = vmatprep.subr.bf16.mxu0 0
      %3180 = vmatpush1.bf16.msra.mxu0 %v3135
      %3181 = vmatprep.subr.bf16.mxu0 0
      %3182 = vmatpush1.bf16.msra.mxu0 %v3134
      %3183 = vmatprep.subr.bf16.mxu0 0
      %3184 = vmatpush1.bf16.msra.mxu0 %v3133
      %3185 = vmatprep.subr.bf16.mxu0 0
      %3186 = vmatpush1.bf16.msra.mxu0 %v3132
      %3187 = vmatprep.subr.bf16.mxu0 0
      %3188 = vmatpush1.bf16.msra.mxu0 %v3131
      %3189 = vmatprep.subr.bf16.mxu0 0
      %3190 = vmatpush1.bf16.msra.mxu0 %v3130
      %3191 = vmatprep.subr.bf16.mxu0 0
      %3192 = vmatpush1.bf16.msra.mxu0 %v3129
      %3193 = vmatprep.subr.bf16.mxu0 0
      %3194 = vmatpush2.bf16.msra.mxu0 %v3144
      %3195 = vmatprep.subr.bf16.mxu0 0
      %3196 = vmatpush2.bf16.msra.mxu0 %v3143
      %3197 = vmatprep.subr.bf16.mxu0 0
      %3198 = vmatpush2.bf16.msra.mxu0 %v3142
      %3199 = vmatprep.subr.bf16.mxu0 0
      %3200 = vmatpush2.bf16.msra.mxu0 %v3141
      %3201 = vmatprep.subr.bf16.mxu0 0
      %3202 = vmatpush2.bf16.msra.mxu0 %v3140
      %3203 = vmatprep.subr.bf16.mxu0 0
      %3204 = vmatpush2.bf16.msra.mxu0 %v3139
      %3205 = vmatprep.subr.bf16.mxu0 0
      %3206 = vmatpush2.bf16.msra.mxu0 %v3138
      %3207 = vmatprep.subr.bf16.mxu0 0
      %3208 = vmatpush2.bf16.msra.mxu0 %v3137
      %3209 = vmatprep.mubr.bf16.mxu0 %v3010
      %3210 = vmatmul.mubr.bf16.gmra.mxu0 %v3009
      %v3211 = vpop.f32.mrf.mxu0
      %v3212 = vadd.f32 0.0, %v3211
      %v3213 = vpop.f32.mrf.mxu0
      %v3214 = vpop.f32.mrf.mxu0
      %v3215 = vadd.f32 0.0, %v3214
      %v3216 = vpop.f32.mrf.mxu0
      %3217 = vmatprep.mubr.bf16.mxu0 %v3013
      %3218 = vmatmul.mubr.bf16.gmra.mxu0 %v3012
      %v3219 = vpop.f32.mrf.mxu0
      %v3220 = vadd.f32 0.0, %v3219
      %v3221 = vpop.f32.mrf.mxu0
      %v3222 = vpop.f32.mrf.mxu0
      %v3223 = vadd.f32 0.0, %v3222
      %v3224 = vpop.f32.mrf.mxu0
      %3225 = vmatprep.mubr.bf16.mxu0 %v3016
      %3226 = vmatmul.mubr.bf16.gmra.mxu0 %v3015
      %v3227 = vpop.f32.mrf.mxu0
      %v3228 = vadd.f32 0.0, %v3227
      %v3229 = vpop.f32.mrf.mxu0
      %v3230 = vpop.f32.mrf.mxu0
      %v3231 = vadd.f32 0.0, %v3230
      %v3232 = vpop.f32.mrf.mxu0
      %3233 = vmatprep.mubr.bf16.mxu0 %v3019
      %3234 = vmatmul.mubr.bf16.gmra.mxu0 %v3018
      %v3235 = vpop.f32.mrf.mxu0
      %v3236 = vadd.f32 0.0, %v3235
      %v3237 = vpop.f32.mrf.mxu0
      %v3238 = vpop.f32.mrf.mxu0
      %v3239 = vadd.f32 0.0, %v3238
      %v3240 = vpop.f32.mrf.mxu0
      %3241 = vdwg.mxu0
      %3242 = vmatprep.subr.bf16.mxu0 0
      %3243 = vmatpush1.bf16.msra.mxu0 %v3152
      %3244 = vmatprep.subr.bf16.mxu0 0
      %3245 = vmatpush1.bf16.msra.mxu0 %v3151
      %3246 = vmatprep.subr.bf16.mxu0 0
      %3247 = vmatpush1.bf16.msra.mxu0 %v3150
      %3248 = vmatprep.subr.bf16.mxu0 0
      %3249 = vmatpush1.bf16.msra.mxu0 %v3149
      %3250 = vmatprep.subr.bf16.mxu0 0
      %3251 = vmatpush1.bf16.msra.mxu0 %v3148
      %3252 = vmatprep.subr.bf16.mxu0 0
      %3253 = vmatpush1.bf16.msra.mxu0 %v3147
      %3254 = vmatprep.subr.bf16.mxu0 0
      %3255 = vmatpush1.bf16.msra.mxu0 %v3146
      %3256 = vmatprep.subr.bf16.mxu0 0
      %3257 = vmatpush1.bf16.msra.mxu0 %v3145
      %3258 = vmatprep.subr.bf16.mxu0 0
      %3259 = vmatpush2.bf16.msra.mxu0 0
      %3260 = vmatprep.subr.bf16.mxu0 0
      %3261 = vmatpush2.bf16.msra.mxu0 0
      %3262 = vmatprep.subr.bf16.mxu0 0
      %3263 = vmatpush2.bf16.msra.mxu0 0
      %3264 = vmatprep.subr.bf16.mxu0 0
      %3265 = vmatpush2.bf16.msra.mxu0 0
      %3266 = vmatprep.subr.bf16.mxu0 0
      %3267 = vmatpush2.bf16.msra.mxu0 0
      %3268 = vmatprep.subr.bf16.mxu0 0
      %3269 = vmatpush2.bf16.msra.mxu0 0
      %3270 = vmatprep.subr.bf16.mxu0 0
      %3271 = vmatpush2.bf16.msra.mxu0 0
      %3272 = vmatprep.subr.bf16.mxu0 0
      %3273 = vmatpush2.bf16.msra.mxu0 0
      %3274 = vmatprep.mubr.bf16.mxu0 0
      %3275 = vmatmul.mubr.bf16.gmra.mxu0 %v3011
      %v3276 = vpop.f32.mrf.mxu0
      %v3277 = vadd.f32 %v3212, %v3276
      %v3278 = vpop.f32.mrf.mxu0
      %v3279 = vpop.f32.mrf.mxu0
      %v3280 = vadd.f32 %v3215, %v3279
      %v3281 = vpop.f32.mrf.mxu0
      %3282 = vmatprep.mubr.bf16.mxu0 0
      %3283 = vmatmul.mubr.bf16.gmra.mxu0 %v3014
      %v3284 = vpop.f32.mrf.mxu0
      %v3285 = vadd.f32 %v3220, %v3284
      %v3286 = vpop.f32.mrf.mxu0
      %v3287 = vpop.f32.mrf.mxu0
      %v3288 = vadd.f32 %v3223, %v3287
      %v3289 = vpop.f32.mrf.mxu0
      %3290 = vmatprep.mubr.bf16.mxu0 0
      %3291 = vmatmul.mubr.bf16.gmra.mxu0 %v3017
      %v3292 = vpop.f32.mrf.mxu0
      %v3293 = vadd.f32 %v3228, %v3292
      %v3294 = vpop.f32.mrf.mxu0
      %v3295 = vpop.f32.mrf.mxu0
      %v3296 = vadd.f32 %v3231, %v3295
      %v3297 = vpop.f32.mrf.mxu0
      %3298 = vmatprep.mubr.bf16.mxu0 0
      %3299 = vmatmul.mubr.bf16.gmra.mxu0 %v3020
      %v3300 = vpop.f32.mrf.mxu0
      %v3301 = vadd.f32 %v3236, %v3300
      %v3302 = vpop.f32.mrf.mxu0
      %v3303 = vpop.f32.mrf.mxu0
      %v3304 = vadd.f32 %v3239, %v3303
      %v3305 = vpop.f32.mrf.mxu0
      %3306 = vdwg.mxu0
      %v3307 = vadd.f32 %v2912, %v3277
      %v3308 = vadd.f32 %v2913, %v3280
      %v3309 = vadd.f32 %v2914, %v3285
      %v3310 = vadd.f32 %v2915, %v3288
      %v3311 = vadd.f32 %v2916, %v3293
      %v3312 = vadd.f32 %v2917, %v3296
      %v3313 = vadd.f32 %v2918, %v3301
      %v3314 = vadd.f32 %v2919, %v3304
      %3315 = vst [vmem:[#allocation2] sm:$0xff] %v3307
      %3316 = vst [vmem:[#allocation2 + $0x8] sm:$0xff] %v3308
      %3317 = vst [vmem:[#allocation2 + $0x10] sm:$0xff] %v3309
      %3318 = vst [vmem:[#allocation2 + $0x18] sm:$0xff] %v3310
      %3319 = vst [vmem:[#allocation2 + $0x20] sm:$0xff] %v3311
      %3320 = vst [vmem:[#allocation2 + $0x28] sm:$0xff] %v3312
      %3321 = vst [vmem:[#allocation2 + $0x30] sm:$0xff] %v3313
      %3322 = vst [vmem:[#allocation2 + $0x38] sm:$0xff] %v3314
      %v3323 = vld [vmem:[%s1463] sm:$0xff]
      %v3324 = vld [vmem:[%s1463 + $0x8] sm:$0xf]
      %v3325 = vld [vmem:[%s1463 + $0xc] sm:$0xff]
      %v3326 = vld [vmem:[%s1463 + $0x14] sm:$0xf]
      %v3327 = vld [vmem:[%s1463 + $0x18] sm:$0xff]
      %v3328 = vld [vmem:[%s1463 + $0x20] sm:$0xf]
      %v3329 = vld [vmem:[%s1463 + $0x24] sm:$0xff]
      %v3330 = vld [vmem:[%s1463 + $0x2c] sm:$0xf]
      %v3331 = vld [vmem:[%s1463 + $0x30] sm:$0xff]
      %v3332 = vld [vmem:[%s1463 + $0x38] sm:$0xf]
      %v3333 = vld [vmem:[%s1463 + $0x3c] sm:$0xff]
      %v3334 = vld [vmem:[%s1463 + $0x44] sm:$0xf]
      %v3335 = vld [vmem:[%s1463 + $0x48] sm:$0xff]
      %v3336 = vld [vmem:[%s1463 + $0x50] sm:$0xf]
      %v3337 = vld [vmem:[%s1463 + $0x54] sm:$0xff]
      %v3338 = vld [vmem:[%s1463 + $0x5c] sm:$0xf]
      %v3339 = vld [vmem:[#allocation2] sm:$0xff]
      %v3340 = vld [vmem:[#allocation2 + $0x8] sm:$0xff]
      %v3341 = vld [vmem:[#allocation2 + $0x10] sm:$0xff]
      %v3342 = vld [vmem:[#allocation2 + $0x18] sm:$0xff]
      %v3343 = vld [vmem:[#allocation2 + $0x20] sm:$0xff]
      %v3344 = vld [vmem:[#allocation2 + $0x28] sm:$0xff]
      %v3345 = vld [vmem:[#allocation2 + $0x30] sm:$0xff]
      %v3346 = vld [vmem:[#allocation2 + $0x38] sm:$0xff]
      %s3347 = scalar_lea.vmem %s5, 768
      %v3348 = vld [vmem:[%s3347] sm:$0xf]
      %v3349 = vld [vmem:[%s3347 + $0x4] sm:$0xf]
      %v3350 = vld [vmem:[%s3347 + $0x8] sm:$0xf]
      %v3351 = vld [vmem:[%s3347 + $0xc] sm:$0xf]
      %v3352 = vld [vmem:[%s3347 + $0x10] sm:$0xf]
      %v3353 = vld [vmem:[%s3347 + $0x14] sm:$0xf]
      %v3354 = vld [vmem:[%s3347 + $0x18] sm:$0xf]
      %v3355 = vld [vmem:[%s3347 + $0x1c] sm:$0xf]
      %v3356 = vld [vmem:[%s3347 + $0x20] sm:$0xf]
      %v3357 = vld [vmem:[%s3347 + $0x24] sm:$0xf]
      %v3358 = vld [vmem:[%s3347 + $0x28] sm:$0xf]
      %v3359 = vld [vmem:[%s3347 + $0x2c] sm:$0xf]
      %v3360 = vld [vmem:[%s3347 + $0x30] sm:$0xf]
      %v3361 = vld [vmem:[%s3347 + $0x34] sm:$0xf]
      %v3362 = vld [vmem:[%s3347 + $0x38] sm:$0xf]
      %v3363 = vld [vmem:[%s3347 + $0x3c] sm:$0xf]
      %v3364 = vld [vmem:[%s3347 + $0x40] sm:$0xf]
      %v3365 = vld [vmem:[%s3347 + $0x44] sm:$0xf]
      %v3366 = vld [vmem:[%s3347 + $0x48] sm:$0xf]
      %v3367 = vld [vmem:[%s3347 + $0x4c] sm:$0xf]
      %v3368 = vld [vmem:[%s3347 + $0x50] sm:$0xf]
      %v3369 = vld [vmem:[%s3347 + $0x54] sm:$0xf]
      %v3370 = vld [vmem:[%s3347 + $0x58] sm:$0xf]
      %v3371 = vld [vmem:[%s3347 + $0x5c] sm:$0xf]
      %v3372 = vld [vmem:[%s3347 + $0x60] sm:$0xf]
      %v3373 = vld [vmem:[%s3347 + $0x64] sm:$0xf]
      %v3374 = vld [vmem:[%s3347 + $0x68] sm:$0xf]
      %v3375 = vld [vmem:[%s3347 + $0x6c] sm:$0xf]
      %v3376 = vld [vmem:[%s3347 + $0x70] sm:$0xf]
      %v3377 = vld [vmem:[%s3347 + $0x74] sm:$0xf]
      %v3378 = vld [vmem:[%s3347 + $0x78] sm:$0xf]
      %v3379 = vld [vmem:[%s3347 + $0x7c] sm:$0xf]
      %v3380 = vld [vmem:[%s3347 + $0x80] sm:$0xf]
      %v3381 = vld [vmem:[%s3347 + $0x84] sm:$0xf]
      %v3382 = vld [vmem:[%s3347 + $0x88] sm:$0xf]
      %v3383 = vld [vmem:[%s3347 + $0x8c] sm:$0xf]
      %v3384 = vld [vmem:[%s3347 + $0x90] sm:$0xf]
      %v3385 = vld [vmem:[%s3347 + $0x94] sm:$0xf]
      %v3386 = vld [vmem:[%s3347 + $0x98] sm:$0xf]
      %v3387 = vld [vmem:[%s3347 + $0x9c] sm:$0xf]
      %v3388 = vld [vmem:[%s3347 + $0xa0] sm:$0xf]
      %v3389 = vld [vmem:[%s3347 + $0xa4] sm:$0xf]
      %v3390 = vld [vmem:[%s3347 + $0xa8] sm:$0xf]
      %v3391 = vld [vmem:[%s3347 + $0xac] sm:$0xf]
      %v3392 = vld [vmem:[%s3347 + $0xb0] sm:$0xf]
      %v3393 = vld [vmem:[%s3347 + $0xb4] sm:$0xf]
      %v3394 = vld [vmem:[%s3347 + $0xb8] sm:$0xf]
      %v3395 = vld [vmem:[%s3347 + $0xbc] sm:$0xf]
      %v3412 = vunpack.c.l.b16 %v3323
      %v3413 = vunpack.c.h.b16 %v3323
      %v3414 = vunpack.c.l.b16 %v3324
      %v3415 = vunpack.c.l.b16 %v3325
      %v3416 = vunpack.c.h.b16 %v3325
      %v3417 = vunpack.c.l.b16 %v3326
      %v3418 = vunpack.c.l.b16 %v3327
      %v3419 = vunpack.c.h.b16 %v3327
      %v3420 = vunpack.c.l.b16 %v3328
      %v3421 = vunpack.c.l.b16 %v3329
      %v3422 = vunpack.c.h.b16 %v3329
      %v3423 = vunpack.c.l.b16 %v3330
      %v3424 = vunpack.c.l.b16 %v3331
      %v3425 = vunpack.c.h.b16 %v3331
      %v3426 = vunpack.c.l.b16 %v3332
      %v3427 = vunpack.c.l.b16 %v3333
      %v3428 = vunpack.c.h.b16 %v3333
      %v3429 = vunpack.c.l.b16 %v3334
      %v3430 = vunpack.c.l.b16 %v3335
      %v3431 = vunpack.c.h.b16 %v3335
      %v3432 = vunpack.c.l.b16 %v3336
      %v3433 = vunpack.c.l.b16 %v3337
      %v3434 = vunpack.c.h.b16 %v3337
      %v3435 = vunpack.c.l.b16 %v3338
      %v3436 = vpack.c.b16 %v3415, %v3412
      %v3437 = vpack.c.b16 %v3416, %v3413
      %v3438 = vpack.c.b16 %v3417, %v3414
      %v3439 = vpack.c.b16 %v3421, %v3418
      %v3440 = vpack.c.b16 %v3422, %v3419
      %v3441 = vpack.c.b16 %v3423, %v3420
      %v3442 = vpack.c.b16 %v3427, %v3424
      %v3443 = vpack.c.b16 %v3428, %v3425
      %v3444 = vpack.c.b16 %v3429, %v3426
      %v3445 = vpack.c.b16 %v3433, %v3430
      %v3446 = vpack.c.b16 %v3434, %v3431
      %v3447 = vpack.c.b16 %v3435, %v3432
      %v3508 = vunpack.c.l.b16 %v3348
      %v3509 = vunpack.c.l.b16 %v3349
      %v3510 = vunpack.c.l.b16 %v3350
      %v3511 = vunpack.c.l.b16 %v3351
      %v3512 = vunpack.c.l.b16 %v3352
      %v3513 = vunpack.c.l.b16 %v3353
      %v3514 = vunpack.c.l.b16 %v3354
      %v3515 = vunpack.c.l.b16 %v3355
      %v3516 = vunpack.c.l.b16 %v3356
      %v3517 = vunpack.c.l.b16 %v3357
      %v3518 = vunpack.c.l.b16 %v3358
      %v3519 = vunpack.c.l.b16 %v3359
      %v3520 = vunpack.c.l.b16 %v3360
      %v3521 = vunpack.c.l.b16 %v3361
      %v3522 = vunpack.c.l.b16 %v3362
      %v3523 = vunpack.c.l.b16 %v3363
      %v3524 = vunpack.c.l.b16 %v3364
      %v3525 = vunpack.c.l.b16 %v3365
      %v3526 = vunpack.c.l.b16 %v3366
      %v3527 = vunpack.c.l.b16 %v3367
      %v3528 = vunpack.c.l.b16 %v3368
      %v3529 = vunpack.c.l.b16 %v3369
      %v3530 = vunpack.c.l.b16 %v3370
      %v3531 = vunpack.c.l.b16 %v3371
      %v3532 = vunpack.c.l.b16 %v3372
      %v3533 = vunpack.c.l.b16 %v3373
      %v3534 = vunpack.c.l.b16 %v3374
      %v3535 = vunpack.c.l.b16 %v3375
      %v3536 = vunpack.c.l.b16 %v3376
      %v3537 = vunpack.c.l.b16 %v3377
      %v3538 = vunpack.c.l.b16 %v3378
      %v3539 = vunpack.c.l.b16 %v3379
      %v3540 = vunpack.c.l.b16 %v3380
      %v3541 = vunpack.c.l.b16 %v3381
      %v3542 = vunpack.c.l.b16 %v3382
      %v3543 = vunpack.c.l.b16 %v3383
      %v3544 = vunpack.c.l.b16 %v3384
      %v3545 = vunpack.c.l.b16 %v3385
      %v3546 = vunpack.c.l.b16 %v3386
      %v3547 = vunpack.c.l.b16 %v3387
      %v3548 = vunpack.c.l.b16 %v3388
      %v3549 = vunpack.c.l.b16 %v3389
      %v3550 = vunpack.c.l.b16 %v3390
      %v3551 = vunpack.c.l.b16 %v3391
      %v3552 = vunpack.c.l.b16 %v3392
      %v3553 = vunpack.c.l.b16 %v3393
      %v3554 = vunpack.c.l.b16 %v3394
      %v3555 = vunpack.c.l.b16 %v3395
      %v3556 = vpack.c.b16 %v3509, %v3508
      %v3557 = vpack.c.b16 %v3511, %v3510
      %v3558 = vpack.c.b16 %v3513, %v3512
      %v3559 = vpack.c.b16 %v3515, %v3514
      %v3560 = vpack.c.b16 %v3517, %v3516
      %v3561 = vpack.c.b16 %v3519, %v3518
      %v3562 = vpack.c.b16 %v3521, %v3520
      %v3563 = vpack.c.b16 %v3523, %v3522
      %v3564 = vpack.c.b16 %v3525, %v3524
      %v3565 = vpack.c.b16 %v3527, %v3526
      %v3566 = vpack.c.b16 %v3529, %v3528
      %v3567 = vpack.c.b16 %v3531, %v3530
      %v3568 = vpack.c.b16 %v3533, %v3532
      %v3569 = vpack.c.b16 %v3535, %v3534
      %v3570 = vpack.c.b16 %v3537, %v3536
      %v3571 = vpack.c.b16 %v3539, %v3538
      %v3572 = vpack.c.b16 %v3541, %v3540
      %v3573 = vpack.c.b16 %v3543, %v3542
      %v3574 = vpack.c.b16 %v3545, %v3544
      %v3575 = vpack.c.b16 %v3547, %v3546
      %v3576 = vpack.c.b16 %v3549, %v3548
      %v3577 = vpack.c.b16 %v3551, %v3550
      %v3578 = vpack.c.b16 %v3553, %v3552
      %v3579 = vpack.c.b16 %v3555, %v3554
      %3604 = vmatprep.subr.bf16.mxu0 0
      %3605 = vmatpush1.bf16.msra.mxu0 %v3563
      %3606 = vmatprep.subr.bf16.mxu0 0
      %3607 = vmatpush1.bf16.msra.mxu0 %v3562
      %3608 = vmatprep.subr.bf16.mxu0 0
      %3609 = vmatpush1.bf16.msra.mxu0 %v3561
      %3610 = vmatprep.subr.bf16.mxu0 0
      %3611 = vmatpush1.bf16.msra.mxu0 %v3560
      %3612 = vmatprep.subr.bf16.mxu0 0
      %3613 = vmatpush1.bf16.msra.mxu0 %v3559
      %3614 = vmatprep.subr.bf16.mxu0 0
      %3615 = vmatpush1.bf16.msra.mxu0 %v3558
      %3616 = vmatprep.subr.bf16.mxu0 0
      %3617 = vmatpush1.bf16.msra.mxu0 %v3557
      %3618 = vmatprep.subr.bf16.mxu0 0
      %3619 = vmatpush1.bf16.msra.mxu0 %v3556
      %3620 = vmatprep.subr.bf16.mxu0 0
      %3621 = vmatpush2.bf16.msra.mxu0 %v3571
      %3622 = vmatprep.subr.bf16.mxu0 0
      %3623 = vmatpush2.bf16.msra.mxu0 %v3570
      %3624 = vmatprep.subr.bf16.mxu0 0
      %3625 = vmatpush2.bf16.msra.mxu0 %v3569
      %3626 = vmatprep.subr.bf16.mxu0 0
      %3627 = vmatpush2.bf16.msra.mxu0 %v3568
      %3628 = vmatprep.subr.bf16.mxu0 0
      %3629 = vmatpush2.bf16.msra.mxu0 %v3567
      %3630 = vmatprep.subr.bf16.mxu0 0
      %3631 = vmatpush2.bf16.msra.mxu0 %v3566
      %3632 = vmatprep.subr.bf16.mxu0 0
      %3633 = vmatpush2.bf16.msra.mxu0 %v3565
      %3634 = vmatprep.subr.bf16.mxu0 0
      %3635 = vmatpush2.bf16.msra.mxu0 %v3564
      %3636 = vmatprep.mubr.bf16.mxu0 %v3437
      %3637 = vmatmul.mubr.bf16.gmra.mxu0 %v3436
      %v3638 = vpop.f32.mrf.mxu0
      %v3639 = vadd.f32 0.0, %v3638
      %v3640 = vpop.f32.mrf.mxu0
      %v3641 = vpop.f32.mrf.mxu0
      %v3642 = vadd.f32 0.0, %v3641
      %v3643 = vpop.f32.mrf.mxu0
      %3644 = vmatprep.mubr.bf16.mxu0 %v3440
      %3645 = vmatmul.mubr.bf16.gmra.mxu0 %v3439
      %v3646 = vpop.f32.mrf.mxu0
      %v3647 = vadd.f32 0.0, %v3646
      %v3648 = vpop.f32.mrf.mxu0
      %v3649 = vpop.f32.mrf.mxu0
      %v3650 = vadd.f32 0.0, %v3649
      %v3651 = vpop.f32.mrf.mxu0
      %3652 = vmatprep.mubr.bf16.mxu0 %v3443
      %3653 = vmatmul.mubr.bf16.gmra.mxu0 %v3442
      %v3654 = vpop.f32.mrf.mxu0
      %v3655 = vadd.f32 0.0, %v3654
      %v3656 = vpop.f32.mrf.mxu0
      %v3657 = vpop.f32.mrf.mxu0
      %v3658 = vadd.f32 0.0, %v3657
      %v3659 = vpop.f32.mrf.mxu0
      %3660 = vmatprep.mubr.bf16.mxu0 %v3446
      %3661 = vmatmul.mubr.bf16.gmra.mxu0 %v3445
      %v3662 = vpop.f32.mrf.mxu0
      %v3663 = vadd.f32 0.0, %v3662
      %v3664 = vpop.f32.mrf.mxu0
      %v3665 = vpop.f32.mrf.mxu0
      %v3666 = vadd.f32 0.0, %v3665
      %v3667 = vpop.f32.mrf.mxu0
      %3668 = vdwg.mxu0
      %3669 = vmatprep.subr.bf16.mxu0 0
      %3670 = vmatpush1.bf16.msra.mxu0 %v3579
      %3671 = vmatprep.subr.bf16.mxu0 0
      %3672 = vmatpush1.bf16.msra.mxu0 %v3578
      %3673 = vmatprep.subr.bf16.mxu0 0
      %3674 = vmatpush1.bf16.msra.mxu0 %v3577
      %3675 = vmatprep.subr.bf16.mxu0 0
      %3676 = vmatpush1.bf16.msra.mxu0 %v3576
      %3677 = vmatprep.subr.bf16.mxu0 0
      %3678 = vmatpush1.bf16.msra.mxu0 %v3575
      %3679 = vmatprep.subr.bf16.mxu0 0
      %3680 = vmatpush1.bf16.msra.mxu0 %v3574
      %3681 = vmatprep.subr.bf16.mxu0 0
      %3682 = vmatpush1.bf16.msra.mxu0 %v3573
      %3683 = vmatprep.subr.bf16.mxu0 0
      %3684 = vmatpush1.bf16.msra.mxu0 %v3572
      %3685 = vmatprep.subr.bf16.mxu0 0
      %3686 = vmatpush2.bf16.msra.mxu0 0
      %3687 = vmatprep.subr.bf16.mxu0 0
      %3688 = vmatpush2.bf16.msra.mxu0 0
      %3689 = vmatprep.subr.bf16.mxu0 0
      %3690 = vmatpush2.bf16.msra.mxu0 0
      %3691 = vmatprep.subr.bf16.mxu0 0
      %3692 = vmatpush2.bf16.msra.mxu0 0
      %3693 = vmatprep.subr.bf16.mxu0 0
      %3694 = vmatpush2.bf16.msra.mxu0 0
      %3695 = vmatprep.subr.bf16.mxu0 0
      %3696 = vmatpush2.bf16.msra.mxu0 0
      %3697 = vmatprep.subr.bf16.mxu0 0
      %3698 = vmatpush2.bf16.msra.mxu0 0
      %3699 = vmatprep.subr.bf16.mxu0 0
      %3700 = vmatpush2.bf16.msra.mxu0 0
      %3701 = vmatprep.mubr.bf16.mxu0 0
      %3702 = vmatmul.mubr.bf16.gmra.mxu0 %v3438
      %v3703 = vpop.f32.mrf.mxu0
      %v3704 = vadd.f32 %v3639, %v3703
      %v3705 = vpop.f32.mrf.mxu0
      %v3706 = vpop.f32.mrf.mxu0
      %v3707 = vadd.f32 %v3642, %v3706
      %v3708 = vpop.f32.mrf.mxu0
      %3709 = vmatprep.mubr.bf16.mxu0 0
      %3710 = vmatmul.mubr.bf16.gmra.mxu0 %v3441
      %v3711 = vpop.f32.mrf.mxu0
      %v3712 = vadd.f32 %v3647, %v3711
      %v3713 = vpop.f32.mrf.mxu0
      %v3714 = vpop.f32.mrf.mxu0
      %v3715 = vadd.f32 %v3650, %v3714
      %v3716 = vpop.f32.mrf.mxu0
      %3717 = vmatprep.mubr.bf16.mxu0 0
      %3718 = vmatmul.mubr.bf16.gmra.mxu0 %v3444
      %v3719 = vpop.f32.mrf.mxu0
      %v3720 = vadd.f32 %v3655, %v3719
      %v3721 = vpop.f32.mrf.mxu0
      %v3722 = vpop.f32.mrf.mxu0
      %v3723 = vadd.f32 %v3658, %v3722
      %v3724 = vpop.f32.mrf.mxu0
      %3725 = vmatprep.mubr.bf16.mxu0 0
      %3726 = vmatmul.mubr.bf16.gmra.mxu0 %v3447
      %v3727 = vpop.f32.mrf.mxu0
      %v3728 = vadd.f32 %v3663, %v3727
      %v3729 = vpop.f32.mrf.mxu0
      %v3730 = vpop.f32.mrf.mxu0
      %v3731 = vadd.f32 %v3666, %v3730
      %v3732 = vpop.f32.mrf.mxu0
      %3733 = vdwg.mxu0
      %v3734 = vadd.f32 %v3339, %v3704
      %v3735 = vadd.f32 %v3340, %v3707
      %v3736 = vadd.f32 %v3341, %v3712
      %v3737 = vadd.f32 %v3342, %v3715
      %v3738 = vadd.f32 %v3343, %v3720
      %v3739 = vadd.f32 %v3344, %v3723
      %v3740 = vadd.f32 %v3345, %v3728
      %v3741 = vadd.f32 %v3346, %v3731
      %3742 = vst [vmem:[#allocation2] sm:$0xff] %v3734
      %3743 = vst [vmem:[#allocation2 + $0x8] sm:$0xff] %v3735
      %3744 = vst [vmem:[#allocation2 + $0x10] sm:$0xff] %v3736
      %3745 = vst [vmem:[#allocation2 + $0x18] sm:$0xff] %v3737
      %3746 = vst [vmem:[#allocation2 + $0x20] sm:$0xff] %v3738
      %3747 = vst [vmem:[#allocation2 + $0x28] sm:$0xff] %v3739
      %3748 = vst [vmem:[#allocation2 + $0x30] sm:$0xff] %v3740
      %3749 = vst [vmem:[#allocation2 + $0x38] sm:$0xff] %v3741
      %v3750 = vld [vmem:[%s1891] sm:$0xff]
      %v3751 = vld [vmem:[%s1891 + $0x8] sm:$0xf]
      %v3752 = vld [vmem:[%s1891 + $0xc] sm:$0xff]
      %v3753 = vld [vmem:[%s1891 + $0x14] sm:$0xf]
      %v3754 = vld [vmem:[%s1891 + $0x18] sm:$0xff]
      %v3755 = vld [vmem:[%s1891 + $0x20] sm:$0xf]
      %v3756 = vld [vmem:[%s1891 + $0x24] sm:$0xff]
      %v3757 = vld [vmem:[%s1891 + $0x2c] sm:$0xf]
      %v3758 = vld [vmem:[%s1891 + $0x30] sm:$0xff]
      %v3759 = vld [vmem:[%s1891 + $0x38] sm:$0xf]
      %v3760 = vld [vmem:[%s1891 + $0x3c] sm:$0xff]
      %v3761 = vld [vmem:[%s1891 + $0x44] sm:$0xf]
      %v3762 = vld [vmem:[%s1891 + $0x48] sm:$0xff]
      %v3763 = vld [vmem:[%s1891 + $0x50] sm:$0xf]
      %v3764 = vld [vmem:[%s1891 + $0x54] sm:$0xff]
      %v3765 = vld [vmem:[%s1891 + $0x5c] sm:$0xf]
      %v3766 = vld [vmem:[#allocation2] sm:$0xff]
      %v3767 = vld [vmem:[#allocation2 + $0x8] sm:$0xff]
      %v3768 = vld [vmem:[#allocation2 + $0x10] sm:$0xff]
      %v3769 = vld [vmem:[#allocation2 + $0x18] sm:$0xff]
      %v3770 = vld [vmem:[#allocation2 + $0x20] sm:$0xff]
      %v3771 = vld [vmem:[#allocation2 + $0x28] sm:$0xff]
      %v3772 = vld [vmem:[#allocation2 + $0x30] sm:$0xff]
      %v3773 = vld [vmem:[#allocation2 + $0x38] sm:$0xff]
      %s3774 = scalar_lea.vmem %s5, 960
      %v3775 = vld [vmem:[%s3774] sm:$0xf]
      %v3776 = vld [vmem:[%s3774 + $0x4] sm:$0xf]
      %v3777 = vld [vmem:[%s3774 + $0x8] sm:$0xf]
      %v3778 = vld [vmem:[%s3774 + $0xc] sm:$0xf]
      %v3779 = vld [vmem:[%s3774 + $0x10] sm:$0xf]
      %v3780 = vld [vmem:[%s3774 + $0x14] sm:$0xf]
      %v3781 = vld [vmem:[%s3774 + $0x18] sm:$0xf]
      %v3782 = vld [vmem:[%s3774 + $0x1c] sm:$0xf]
      %v3783 = vld [vmem:[%s3774 + $0x20] sm:$0xf]
      %v3784 = vld [vmem:[%s3774 + $0x24] sm:$0xf]
      %v3785 = vld [vmem:[%s3774 + $0x28] sm:$0xf]
      %v3786 = vld [vmem:[%s3774 + $0x2c] sm:$0xf]
      %v3787 = vld [vmem:[%s3774 + $0x30] sm:$0xf]
      %v3788 = vld [vmem:[%s3774 + $0x34] sm:$0xf]
      %v3789 = vld [vmem:[%s3774 + $0x38] sm:$0xf]
      %v3790 = vld [vmem:[%s3774 + $0x3c] sm:$0xf]
      %v3791 = vld [vmem:[%s3774 + $0x40] sm:$0xf]
      %v3792 = vld [vmem:[%s3774 + $0x44] sm:$0xf]
      %v3793 = vld [vmem:[%s3774 + $0x48] sm:$0xf]
      %v3794 = vld [vmem:[%s3774 + $0x4c] sm:$0xf]
      %v3795 = vld [vmem:[%s3774 + $0x50] sm:$0xf]
      %v3796 = vld [vmem:[%s3774 + $0x54] sm:$0xf]
      %v3797 = vld [vmem:[%s3774 + $0x58] sm:$0xf]
      %v3798 = vld [vmem:[%s3774 + $0x5c] sm:$0xf]
      %v3799 = vld [vmem:[%s3774 + $0x60] sm:$0xf]
      %v3800 = vld [vmem:[%s3774 + $0x64] sm:$0xf]
      %v3801 = vld [vmem:[%s3774 + $0x68] sm:$0xf]
      %v3802 = vld [vmem:[%s3774 + $0x6c] sm:$0xf]
      %v3803 = vld [vmem:[%s3774 + $0x70] sm:$0xf]
      %v3804 = vld [vmem:[%s3774 + $0x74] sm:$0xf]
      %v3805 = vld [vmem:[%s3774 + $0x78] sm:$0xf]
      %v3806 = vld [vmem:[%s3774 + $0x7c] sm:$0xf]
      %v3807 = vld [vmem:[%s3774 + $0x80] sm:$0xf]
      %v3808 = vld [vmem:[%s3774 + $0x84] sm:$0xf]
      %v3809 = vld [vmem:[%s3774 + $0x88] sm:$0xf]
      %v3810 = vld [vmem:[%s3774 + $0x8c] sm:$0xf]
      %v3811 = vld [vmem:[%s3774 + $0x90] sm:$0xf]
      %v3812 = vld [vmem:[%s3774 + $0x94] sm:$0xf]
      %v3813 = vld [vmem:[%s3774 + $0x98] sm:$0xf]
      %v3814 = vld [vmem:[%s3774 + $0x9c] sm:$0xf]
      %v3815 = vld [vmem:[%s3774 + $0xa0] sm:$0xf]
      %v3816 = vld [vmem:[%s3774 + $0xa4] sm:$0xf]
      %v3817 = vld [vmem:[%s3774 + $0xa8] sm:$0xf]
      %v3818 = vld [vmem:[%s3774 + $0xac] sm:$0xf]
      %v3819 = vld [vmem:[%s3774 + $0xb0] sm:$0xf]
      %v3820 = vld [vmem:[%s3774 + $0xb4] sm:$0xf]
      %v3821 = vld [vmem:[%s3774 + $0xb8] sm:$0xf]
      %v3822 = vld [vmem:[%s3774 + $0xbc] sm:$0xf]
      %v3839 = vunpack.c.l.b16 %v3750
      %v3840 = vunpack.c.h.b16 %v3750
      %v3841 = vunpack.c.l.b16 %v3751
      %v3842 = vunpack.c.l.b16 %v3752
      %v3843 = vunpack.c.h.b16 %v3752
      %v3844 = vunpack.c.l.b16 %v3753
      %v3845 = vunpack.c.l.b16 %v3754
      %v3846 = vunpack.c.h.b16 %v3754
      %v3847 = vunpack.c.l.b16 %v3755
      %v3848 = vunpack.c.l.b16 %v3756
      %v3849 = vunpack.c.h.b16 %v3756
      %v3850 = vunpack.c.l.b16 %v3757
      %v3851 = vunpack.c.l.b16 %v3758
      %v3852 = vunpack.c.h.b16 %v3758
      %v3853 = vunpack.c.l.b16 %v3759
      %v3854 = vunpack.c.l.b16 %v3760
      %v3855 = vunpack.c.h.b16 %v3760
      %v3856 = vunpack.c.l.b16 %v3761
      %v3857 = vunpack.c.l.b16 %v3762
      %v3858 = vunpack.c.h.b16 %v3762
      %v3859 = vunpack.c.l.b16 %v3763
      %v3860 = vunpack.c.l.b16 %v3764
      %v3861 = vunpack.c.h.b16 %v3764
      %v3862 = vunpack.c.l.b16 %v3765
      %v3863 = vpack.c.b16 %v3842, %v3839
      %v3864 = vpack.c.b16 %v3843, %v3840
      %v3865 = vpack.c.b16 %v3844, %v3841
      %v3866 = vpack.c.b16 %v3848, %v3845
      %v3867 = vpack.c.b16 %v3849, %v3846
      %v3868 = vpack.c.b16 %v3850, %v3847
      %v3869 = vpack.c.b16 %v3854, %v3851
      %v3870 = vpack.c.b16 %v3855, %v3852
      %v3871 = vpack.c.b16 %v3856, %v3853
      %v3872 = vpack.c.b16 %v3860, %v3857
      %v3873 = vpack.c.b16 %v3861, %v3858
      %v3874 = vpack.c.b16 %v3862, %v3859
      %v3935 = vunpack.c.l.b16 %v3775
      %v3936 = vunpack.c.l.b16 %v3776
      %v3937 = vunpack.c.l.b16 %v3777
      %v3938 = vunpack.c.l.b16 %v3778
      %v3939 = vunpack.c.l.b16 %v3779
      %v3940 = vunpack.c.l.b16 %v3780
      %v3941 = vunpack.c.l.b16 %v3781
      %v3942 = vunpack.c.l.b16 %v3782
      %v3943 = vunpack.c.l.b16 %v3783
      %v3944 = vunpack.c.l.b16 %v3784
      %v3945 = vunpack.c.l.b16 %v3785
      %v3946 = vunpack.c.l.b16 %v3786
      %v3947 = vunpack.c.l.b16 %v3787
      %v3948 = vunpack.c.l.b16 %v3788
      %v3949 = vunpack.c.l.b16 %v3789
      %v3950 = vunpack.c.l.b16 %v3790
      %v3951 = vunpack.c.l.b16 %v3791
      %v3952 = vunpack.c.l.b16 %v3792
      %v3953 = vunpack.c.l.b16 %v3793
      %v3954 = vunpack.c.l.b16 %v3794
      %v3955 = vunpack.c.l.b16 %v3795
      %v3956 = vunpack.c.l.b16 %v3796
      %v3957 = vunpack.c.l.b16 %v3797
      %v3958 = vunpack.c.l.b16 %v3798
      %v3959 = vunpack.c.l.b16 %v3799
      %v3960 = vunpack.c.l.b16 %v3800
      %v3961 = vunpack.c.l.b16 %v3801
      %v3962 = vunpack.c.l.b16 %v3802
      %v3963 = vunpack.c.l.b16 %v3803
      %v3964 = vunpack.c.l.b16 %v3804
      %v3965 = vunpack.c.l.b16 %v3805
      %v3966 = vunpack.c.l.b16 %v3806
      %v3967 = vunpack.c.l.b16 %v3807
      %v3968 = vunpack.c.l.b16 %v3808
      %v3969 = vunpack.c.l.b16 %v3809
      %v3970 = vunpack.c.l.b16 %v3810
      %v3971 = vunpack.c.l.b16 %v3811
      %v3972 = vunpack.c.l.b16 %v3812
      %v3973 = vunpack.c.l.b16 %v3813
      %v3974 = vunpack.c.l.b16 %v3814
      %v3975 = vunpack.c.l.b16 %v3815
      %v3976 = vunpack.c.l.b16 %v3816
      %v3977 = vunpack.c.l.b16 %v3817
      %v3978 = vunpack.c.l.b16 %v3818
      %v3979 = vunpack.c.l.b16 %v3819
      %v3980 = vunpack.c.l.b16 %v3820
      %v3981 = vunpack.c.l.b16 %v3821
      %v3982 = vunpack.c.l.b16 %v3822
      %v3983 = vpack.c.b16 %v3936, %v3935
      %v3984 = vpack.c.b16 %v3938, %v3937
      %v3985 = vpack.c.b16 %v3940, %v3939
      %v3986 = vpack.c.b16 %v3942, %v3941
      %v3987 = vpack.c.b16 %v3944, %v3943
      %v3988 = vpack.c.b16 %v3946, %v3945
      %v3989 = vpack.c.b16 %v3948, %v3947
      %v3990 = vpack.c.b16 %v3950, %v3949
      %v3991 = vpack.c.b16 %v3952, %v3951
      %v3992 = vpack.c.b16 %v3954, %v3953
      %v3993 = vpack.c.b16 %v3956, %v3955
      %v3994 = vpack.c.b16 %v3958, %v3957
      %v3995 = vpack.c.b16 %v3960, %v3959
      %v3996 = vpack.c.b16 %v3962, %v3961
      %v3997 = vpack.c.b16 %v3964, %v3963
      %v3998 = vpack.c.b16 %v3966, %v3965
      %v3999 = vpack.c.b16 %v3968, %v3967
      %v4000 = vpack.c.b16 %v3970, %v3969
      %v4001 = vpack.c.b16 %v3972, %v3971
      %v4002 = vpack.c.b16 %v3974, %v3973
      %v4003 = vpack.c.b16 %v3976, %v3975
      %v4004 = vpack.c.b16 %v3978, %v3977
      %v4005 = vpack.c.b16 %v3980, %v3979
      %v4006 = vpack.c.b16 %v3982, %v3981
      %4031 = vmatprep.subr.bf16.mxu0 0
      %4032 = vmatpush1.bf16.msra.mxu0 %v3990
      %4033 = vmatprep.subr.bf16.mxu0 0
      %4034 = vmatpush1.bf16.msra.mxu0 %v3989
      %4035 = vmatprep.subr.bf16.mxu0 0
      %4036 = vmatpush1.bf16.msra.mxu0 %v3988
      %4037 = vmatprep.subr.bf16.mxu0 0
      %4038 = vmatpush1.bf16.msra.mxu0 %v3987
      %4039 = vmatprep.subr.bf16.mxu0 0
      %4040 = vmatpush1.bf16.msra.mxu0 %v3986
      %4041 = vmatprep.subr.bf16.mxu0 0
      %4042 = vmatpush1.bf16.msra.mxu0 %v3985
      %4043 = vmatprep.subr.bf16.mxu0 0
      %4044 = vmatpush1.bf16.msra.mxu0 %v3984
      %4045 = vmatprep.subr.bf16.mxu0 0
      %4046 = vmatpush1.bf16.msra.mxu0 %v3983
      %4047 = vmatprep.subr.bf16.mxu0 0
      %4048 = vmatpush2.bf16.msra.mxu0 %v3998
      %4049 = vmatprep.subr.bf16.mxu0 0
      %4050 = vmatpush2.bf16.msra.mxu0 %v3997
      %4051 = vmatprep.subr.bf16.mxu0 0
      %4052 = vmatpush2.bf16.msra.mxu0 %v3996
      %4053 = vmatprep.subr.bf16.mxu0 0
      %4054 = vmatpush2.bf16.msra.mxu0 %v3995
      %4055 = vmatprep.subr.bf16.mxu0 0
      %4056 = vmatpush2.bf16.msra.mxu0 %v3994
      %4057 = vmatprep.subr.bf16.mxu0 0
      %4058 = vmatpush2.bf16.msra.mxu0 %v3993
      %4059 = vmatprep.subr.bf16.mxu0 0
      %4060 = vmatpush2.bf16.msra.mxu0 %v3992
      %4061 = vmatprep.subr.bf16.mxu0 0
      %4062 = vmatpush2.bf16.msra.mxu0 %v3991
      %4063 = vmatprep.mubr.bf16.mxu0 %v3864
      %4064 = vmatmul.mubr.bf16.gmra.mxu0 %v3863
      %v4065 = vpop.f32.mrf.mxu0
      %v4066 = vadd.f32 0.0, %v4065
      %v4067 = vpop.f32.mrf.mxu0
      %v4068 = vpop.f32.mrf.mxu0
      %v4069 = vadd.f32 0.0, %v4068
      %v4070 = vpop.f32.mrf.mxu0
      %4071 = vmatprep.mubr.bf16.mxu0 %v3867
      %4072 = vmatmul.mubr.bf16.gmra.mxu0 %v3866
      %v4073 = vpop.f32.mrf.mxu0
      %v4074 = vadd.f32 0.0, %v4073
      %v4075 = vpop.f32.mrf.mxu0
      %v4076 = vpop.f32.mrf.mxu0
      %v4077 = vadd.f32 0.0, %v4076
      %v4078 = vpop.f32.mrf.mxu0
      %4079 = vmatprep.mubr.bf16.mxu0 %v3870
      %4080 = vmatmul.mubr.bf16.gmra.mxu0 %v3869
      %v4081 = vpop.f32.mrf.mxu0
      %v4082 = vadd.f32 0.0, %v4081
      %v4083 = vpop.f32.mrf.mxu0
      %v4084 = vpop.f32.mrf.mxu0
      %v4085 = vadd.f32 0.0, %v4084
      %v4086 = vpop.f32.mrf.mxu0
      %4087 = vmatprep.mubr.bf16.mxu0 %v3873
      %4088 = vmatmul.mubr.bf16.gmra.mxu0 %v3872
      %v4089 = vpop.f32.mrf.mxu0
      %v4090 = vadd.f32 0.0, %v4089
      %v4091 = vpop.f32.mrf.mxu0
      %v4092 = vpop.f32.mrf.mxu0
      %v4093 = vadd.f32 0.0, %v4092
      %v4094 = vpop.f32.mrf.mxu0
      %4095 = vdwg.mxu0
      %4096 = vmatprep.subr.bf16.mxu0 0
      %4097 = vmatpush1.bf16.msra.mxu0 %v4006
      %4098 = vmatprep.subr.bf16.mxu0 0
      %4099 = vmatpush1.bf16.msra.mxu0 %v4005
      %4100 = vmatprep.subr.bf16.mxu0 0
      %4101 = vmatpush1.bf16.msra.mxu0 %v4004
      %4102 = vmatprep.subr.bf16.mxu0 0
      %4103 = vmatpush1.bf16.msra.mxu0 %v4003
      %4104 = vmatprep.subr.bf16.mxu0 0
      %4105 = vmatpush1.bf16.msra.mxu0 %v4002
      %4106 = vmatprep.subr.bf16.mxu0 0
      %4107 = vmatpush1.bf16.msra.mxu0 %v4001
      %4108 = vmatprep.subr.bf16.mxu0 0
      %4109 = vmatpush1.bf16.msra.mxu0 %v4000
      %4110 = vmatprep.subr.bf16.mxu0 0
      %4111 = vmatpush1.bf16.msra.mxu0 %v3999
      %4112 = vmatprep.subr.bf16.mxu0 0
      %4113 = vmatpush2.bf16.msra.mxu0 0
      %4114 = vmatprep.subr.bf16.mxu0 0
      %4115 = vmatpush2.bf16.msra.mxu0 0
      %4116 = vmatprep.subr.bf16.mxu0 0
      %4117 = vmatpush2.bf16.msra.mxu0 0
      %4118 = vmatprep.subr.bf16.mxu0 0
      %4119 = vmatpush2.bf16.msra.mxu0 0
      %4120 = vmatprep.subr.bf16.mxu0 0
      %4121 = vmatpush2.bf16.msra.mxu0 0
      %4122 = vmatprep.subr.bf16.mxu0 0
      %4123 = vmatpush2.bf16.msra.mxu0 0
      %4124 = vmatprep.subr.bf16.mxu0 0
      %4125 = vmatpush2.bf16.msra.mxu0 0
      %4126 = vmatprep.subr.bf16.mxu0 0
      %4127 = vmatpush2.bf16.msra.mxu0 0
      %4128 = vmatprep.mubr.bf16.mxu0 0
      %4129 = vmatmul.mubr.bf16.gmra.mxu0 %v3865
      %v4130 = vpop.f32.mrf.mxu0
      %v4131 = vadd.f32 %v4066, %v4130
      %v4132 = vpop.f32.mrf.mxu0
      %v4133 = vpop.f32.mrf.mxu0
      %v4134 = vadd.f32 %v4069, %v4133
      %v4135 = vpop.f32.mrf.mxu0
      %4136 = vmatprep.mubr.bf16.mxu0 0
      %4137 = vmatmul.mubr.bf16.gmra.mxu0 %v3868
      %v4138 = vpop.f32.mrf.mxu0
      %v4139 = vadd.f32 %v4074, %v4138
      %v4140 = vpop.f32.mrf.mxu0
      %v4141 = vpop.f32.mrf.mxu0
      %v4142 = vadd.f32 %v4077, %v4141
      %v4143 = vpop.f32.mrf.mxu0
      %4144 = vmatprep.mubr.bf16.mxu0 0
      %4145 = vmatmul.mubr.bf16.gmra.mxu0 %v3871
      %v4146 = vpop.f32.mrf.mxu0
      %v4147 = vadd.f32 %v4082, %v4146
      %v4148 = vpop.f32.mrf.mxu0
      %v4149 = vpop.f32.mrf.mxu0
      %v4150 = vadd.f32 %v4085, %v4149
      %v4151 = vpop.f32.mrf.mxu0
      %4152 = vmatprep.mubr.bf16.mxu0 0
      %4153 = vmatmul.mubr.bf16.gmra.mxu0 %v3874
      %v4154 = vpop.f32.mrf.mxu0
      %v4155 = vadd.f32 %v4090, %v4154
      %v4156 = vpop.f32.mrf.mxu0
      %v4157 = vpop.f32.mrf.mxu0
      %v4158 = vadd.f32 %v4093, %v4157
      %v4159 = vpop.f32.mrf.mxu0
      %4160 = vdwg.mxu0
      %v4161 = vadd.f32 %v3766, %v4131
      %v4162 = vadd.f32 %v3767, %v4134
      %v4163 = vadd.f32 %v3768, %v4139
      %v4164 = vadd.f32 %v3769, %v4142
      %v4165 = vadd.f32 %v3770, %v4147
      %v4166 = vadd.f32 %v3771, %v4150
      %v4167 = vadd.f32 %v3772, %v4155
      %v4168 = vadd.f32 %v3773, %v4158
      %4169 = vst [vmem:[#allocation2] sm:$0xff] %v4161
      %4170 = vst [vmem:[#allocation2 + $0x8] sm:$0xff] %v4162
      %4171 = vst [vmem:[#allocation2 + $0x10] sm:$0xff] %v4163
      %4172 = vst [vmem:[#allocation2 + $0x18] sm:$0xff] %v4164
      %4173 = vst [vmem:[#allocation2 + $0x20] sm:$0xff] %v4165
      %4174 = vst [vmem:[#allocation2 + $0x28] sm:$0xff] %v4166
      %4175 = vst [vmem:[#allocation2 + $0x30] sm:$0xff] %v4167
      %4176 = vst [vmem:[#allocation2 + $0x38] sm:$0xff] %v4168
      %s4177 = sadd.s32 %s24, 2
      %p4178 = scmp.ge.s32.totalorder %s4177, 0
      %p4179 = scmp.lt.s32.totalorder %s4177, 8
      %p4180 = pnand %p4178, %p4179
      %p4181 = pneg %p4180
      %v4182 = vld [vmem:[%s399] sm:$0xf]
      %v4183 = vld [vmem:[%s399 + $0x8] sm:$0xf]
      %v4184 = vld [vmem:[%s399 + $0x10] sm:$0xf]
      %v4185 = vld [vmem:[%s399 + $0x18] sm:$0xf]
      %v4186 = vld [vmem:[%s399 + $0x20] sm:$0xf]
      %v4187 = vld [vmem:[%s399 + $0x28] sm:$0xf]
      %v4188 = vld [vmem:[%s399 + $0x30] sm:$0xf]
      %v4189 = vld [vmem:[%s399 + $0x38] sm:$0xf]
      %v4190 = vld [vmem:[%s399 + $0x40] sm:$0xf]
      %v4191 = vld [vmem:[%s399 + $0x48] sm:$0xf]
      %v4192 = vld [vmem:[%s399 + $0x50] sm:$0xf]
      %v4193 = vld [vmem:[%s399 + $0x58] sm:$0xf]
      %v4194 = vunpack.c.l.bf16 %v4182
      %v4195 = vunpack.c.l.bf16 %v4183
      %v4196 = vunpack.c.l.bf16 %v4184
      %v4197 = vunpack.c.l.bf16 %v4185
      %v4198 = vunpack.c.l.bf16 %v4186
      %v4199 = vunpack.c.l.bf16 %v4187
      %v4200 = vunpack.c.l.bf16 %v4188
      %v4201 = vunpack.c.l.bf16 %v4189
      %v4202 = vunpack.c.l.bf16 %v4190
      %v4203 = vunpack.c.l.bf16 %v4191
      %v4204 = vunpack.c.l.bf16 %v4192
      %v4205 = vunpack.c.l.bf16 %v4193
      %s4206 = scalar_select %p4181, 1, 0
      %v4207 = vstv %s4206
      %vm4208 = vcmp.eq.s32.totalorder %v4207, 1
      %vm4209 = vmand %vm464, %vm4208
      %vm4210 = vmand %vm465, %vm4208
      %v4211 = vmul.f32 %v4194, %v475
      %v4212 = vmul.f32 %v4195, %v475
      %v4213 = vmul.f32 %v4196, %v475
      %v4214 = vmul.f32 %v4197, %v475
      %v4215 = vmul.f32 %v4198, %v475
      %v4216 = vmul.f32 %v4199, %v475
      %v4217 = vmul.f32 %v4200, %v475
      %v4218 = vmul.f32 %v4201, %v475
      %v4219 = vmul.f32 %v4202, %v475
      %v4220 = vmul.f32 %v4203, %v475
      %v4221 = vmul.f32 %v4204, %v475
      %v4222 = vmul.f32 %v4205, %v475
      %v4223 = vadd.f32 %v4211, %v493
      %v4224 = vadd.f32 %v4212, %v493
      %v4225 = vadd.f32 %v4213, %v493
      %v4226 = vadd.f32 %v4214, %v493
      %v4227 = vadd.f32 %v4215, %v493
      %v4228 = vadd.f32 %v4216, %v493
      %v4229 = vadd.f32 %v4217, %v493
      %v4230 = vadd.f32 %v4218, %v493
      %v4231 = vadd.f32 %v4219, %v493
      %v4232 = vadd.f32 %v4220, %v493
      %v4233 = vadd.f32 %v4221, %v493
      %v4234 = vadd.f32 %v4222, %v493
      %v4235 = vmax.f32 %v4223, 0.0
      %v4236 = vmax.f32 %v4224, 0.0
      %v4237 = vmax.f32 %v4225, 0.0
      %v4238 = vmax.f32 %v4226, 0.0
      %v4239 = vmax.f32 %v4227, 0.0
      %v4240 = vmax.f32 %v4228, 0.0
      %v4241 = vmax.f32 %v4229, 0.0
      %v4242 = vmax.f32 %v4230, 0.0
      %v4243 = vmax.f32 %v4231, 0.0
      %v4244 = vmax.f32 %v4232, 0.0
      %v4245 = vmax.f32 %v4233, 0.0
      %v4246 = vmax.f32 %v4234, 0.0
      %v4247 = vsel %vm4209, 1, 0
      %v4248 = vsel %vm4210, 1, 0
      %vm4249 = vcmp.eq.s32.totalorder %v4247, 1
      %vm4250 = vcmp.eq.s32.totalorder %v4248, 1
      %v4251 = vsel %vm4249, %v4235, 0.0
      %v4252 = vsel %vm4249, %v4236, 0.0
      %v4253 = vsel %vm4250, %v4237, 0.0
      %v4254 = vsel %vm4250, %v4238, 0.0
      %v4255 = vsel %vm4250, %v4239, 0.0
      %v4256 = vsel %vm4250, %v4240, 0.0
      %v4257 = vsel %vm4250, %v4241, 0.0
      %v4258 = vsel %vm4250, %v4242, 0.0
      %v4259 = vsel %vm4250, %v4243, 0.0
      %v4260 = vsel %vm4250, %v4244, 0.0
      %v4261 = vsel %vm4249, %v4245, 0.0
      %v4262 = vsel %vm4249, %v4246, 0.0
      %v4263 = vpack.c.bf16 %v4251, %v4251
      %v4264 = vpack.c.bf16 %v4252, %v4252
      %v4265 = vpack.c.bf16 %v4253, %v4253
      %v4266 = vpack.c.bf16 %v4254, %v4254
      %v4267 = vpack.c.bf16 %v4255, %v4255
      %v4268 = vpack.c.bf16 %v4256, %v4256
      %v4269 = vpack.c.bf16 %v4257, %v4257
      %v4270 = vpack.c.bf16 %v4258, %v4258
      %v4271 = vpack.c.bf16 %v4259, %v4259
      %v4272 = vpack.c.bf16 %v4260, %v4260
      %v4273 = vpack.c.bf16 %v4261, %v4261
      %v4274 = vpack.c.bf16 %v4262, %v4262
      %4275 = vst [vmem:[#allocation3] sm:$0xf] %v4263
      %4276 = vst [vmem:[#allocation3 + $0xc] sm:$0xf] %v4264
      %4277 = vst [vmem:[#allocation3 + $0x18] sm:$0xf] %v4265
      %4278 = vst [vmem:[#allocation3 + $0x24] sm:$0xf] %v4266
      %4279 = vst [vmem:[#allocation3 + $0x30] sm:$0xf] %v4267
      %4280 = vst [vmem:[#allocation3 + $0x3c] sm:$0xf] %v4268
      %4281 = vst [vmem:[#allocation3 + $0x48] sm:$0xf] %v4269
      %4282 = vst [vmem:[#allocation3 + $0x54] sm:$0xf] %v4270
      %4283 = vst [vmem:[#allocation3 + $0x60] sm:$0xf] %v4271
      %4284 = vst [vmem:[#allocation3 + $0x6c] sm:$0xf] %v4272
      %4285 = vst [vmem:[#allocation3 + $0x78] sm:$0xf] %v4273
      %4286 = vst [vmem:[#allocation3 + $0x84] sm:$0xf] %v4274
      %v4287 = vld [vmem:[%s399] sm:$0xe]
      %v4288 = vld [vmem:[%s399 + $0x4] sm:$0x1]
      %v4289 = vld [vmem:[%s399 + $0x8] sm:$0xe]
      %v4290 = vld [vmem:[%s399 + $0xc] sm:$0x1]
      %v4291 = vld [vmem:[%s399 + $0x10] sm:$0xe]
      %v4292 = vld [vmem:[%s399 + $0x14] sm:$0x1]
      %v4293 = vld [vmem:[%s399 + $0x18] sm:$0xe]
      %v4294 = vld [vmem:[%s399 + $0x1c] sm:$0x1]
      %v4295 = vld [vmem:[%s399 + $0x20] sm:$0xe]
      %v4296 = vld [vmem:[%s399 + $0x24] sm:$0x1]
      %v4297 = vld [vmem:[%s399 + $0x28] sm:$0xe]
      %v4298 = vld [vmem:[%s399 + $0x2c] sm:$0x1]
      %v4299 = vld [vmem:[%s399 + $0x30] sm:$0xe]
      %v4300 = vld [vmem:[%s399 + $0x34] sm:$0x1]
      %v4301 = vld [vmem:[%s399 + $0x38] sm:$0xe]
      %v4302 = vld [vmem:[%s399 + $0x3c] sm:$0x1]
      %v4303 = vld [vmem:[%s399 + $0x40] sm:$0xe]
      %v4304 = vld [vmem:[%s399 + $0x44] sm:$0x1]
      %v4305 = vld [vmem:[%s399 + $0x48] sm:$0xe]
      %v4306 = vld [vmem:[%s399 + $0x4c] sm:$0x1]
      %v4307 = vld [vmem:[%s399 + $0x50] sm:$0xe]
      %v4308 = vld [vmem:[%s399 + $0x54] sm:$0x1]
      %v4309 = vld [vmem:[%s399 + $0x58] sm:$0xe]
      %v4310 = vld [vmem:[%s399 + $0x5c] sm:$0x1]
      %v4311 = vunpack.c.l.bf16 %v4287
      %v4312 = vunpack.c.l.bf16 %v4288
      %v4313 = vunpack.c.l.bf16 %v4289
      %v4314 = vunpack.c.l.bf16 %v4290
      %v4315 = vunpack.c.l.bf16 %v4291
      %v4316 = vunpack.c.l.bf16 %v4292
      %v4317 = vunpack.c.l.bf16 %v4293
      %v4318 = vunpack.c.l.bf16 %v4294
      %v4319 = vunpack.c.l.bf16 %v4295
      %v4320 = vunpack.c.l.bf16 %v4296
      %v4321 = vunpack.c.l.bf16 %v4297
      %v4322 = vunpack.c.l.bf16 %v4298
      %v4323 = vunpack.c.l.bf16 %v4299
      %v4324 = vunpack.c.l.bf16 %v4300
      %v4325 = vunpack.c.l.bf16 %v4301
      %v4326 = vunpack.c.l.bf16 %v4302
      %v4327 = vunpack.c.l.bf16 %v4303
      %v4328 = vunpack.c.l.bf16 %v4304
      %v4329 = vunpack.c.l.bf16 %v4305
      %v4330 = vunpack.c.l.bf16 %v4306
      %v4331 = vunpack.c.l.bf16 %v4307
      %v4332 = vunpack.c.l.bf16 %v4308
      %v4333 = vunpack.c.l.bf16 %v4309
      %v4334 = vunpack.c.l.bf16 %v4310
      %vm4335 = vmand %vm609, %vm4208
      %vm4336 = vmand %vm610, %vm4208
      %v4337 = vmul.f32 %v4311, %v475
      %v4338 = vmul.f32 %v4312, %v475
      %v4339 = vmul.f32 %v4313, %v475
      %v4340 = vmul.f32 %v4314, %v475
      %v4341 = vmul.f32 %v4315, %v475
      %v4342 = vmul.f32 %v4316, %v475
      %v4343 = vmul.f32 %v4317, %v475
      %v4344 = vmul.f32 %v4318, %v475
      %v4345 = vmul.f32 %v4319, %v475
      %v4346 = vmul.f32 %v4320, %v475
      %v4347 = vmul.f32 %v4321, %v475
      %v4348 = vmul.f32 %v4322, %v475
      %v4349 = vmul.f32 %v4323, %v475
      %v4350 = vmul.f32 %v4324, %v475
      %v4351 = vmul.f32 %v4325, %v475
      %v4352 = vmul.f32 %v4326, %v475
      %v4353 = vmul.f32 %v4327, %v475
      %v4354 = vmul.f32 %v4328, %v475
      %v4355 = vmul.f32 %v4329, %v475
      %v4356 = vmul.f32 %v4330, %v475
      %v4357 = vmul.f32 %v4331, %v475
      %v4358 = vmul.f32 %v4332, %v475
      %v4359 = vmul.f32 %v4333, %v475
      %v4360 = vmul.f32 %v4334, %v475
      %v4361 = vadd.f32 %v4337, %v493
      %v4362 = vadd.f32 %v4338, %v493
      %v4363 = vadd.f32 %v4339, %v493
      %v4364 = vadd.f32 %v4340, %v493
      %v4365 = vadd.f32 %v4341, %v493
      %v4366 = vadd.f32 %v4342, %v493
      %v4367 = vadd.f32 %v4343, %v493
      %v4368 = vadd.f32 %v4344, %v493
      %v4369 = vadd.f32 %v4345, %v493
      %v4370 = vadd.f32 %v4346, %v493
      %v4371 = vadd.f32 %v4347, %v493
      %v4372 = vadd.f32 %v4348, %v493
      %v4373 = vadd.f32 %v4349, %v493
      %v4374 = vadd.f32 %v4350, %v493
      %v4375 = vadd.f32 %v4351, %v493
      %v4376 = vadd.f32 %v4352, %v493
      %v4377 = vadd.f32 %v4353, %v493
      %v4378 = vadd.f32 %v4354, %v493
      %v4379 = vadd.f32 %v4355, %v493
      %v4380 = vadd.f32 %v4356, %v493
      %v4381 = vadd.f32 %v4357, %v493
      %v4382 = vadd.f32 %v4358, %v493
      %v4383 = vadd.f32 %v4359, %v493
      %v4384 = vadd.f32 %v4360, %v493
      %v4385 = vmax.f32 %v4361, 0.0
      %v4386 = vmax.f32 %v4362, 0.0
      %v4387 = vmax.f32 %v4363, 0.0
      %v4388 = vmax.f32 %v4364, 0.0
      %v4389 = vmax.f32 %v4365, 0.0
      %v4390 = vmax.f32 %v4366, 0.0
      %v4391 = vmax.f32 %v4367, 0.0
      %v4392 = vmax.f32 %v4368, 0.0
      %v4393 = vmax.f32 %v4369, 0.0
      %v4394 = vmax.f32 %v4370, 0.0
      %v4395 = vmax.f32 %v4371, 0.0
      %v4396 = vmax.f32 %v4372, 0.0
      %v4397 = vmax.f32 %v4373, 0.0
      %v4398 = vmax.f32 %v4374, 0.0
      %v4399 = vmax.f32 %v4375, 0.0
      %v4400 = vmax.f32 %v4376, 0.0
      %v4401 = vmax.f32 %v4377, 0.0
      %v4402 = vmax.f32 %v4378, 0.0
      %v4403 = vmax.f32 %v4379, 0.0
      %v4404 = vmax.f32 %v4380, 0.0
      %v4405 = vmax.f32 %v4381, 0.0
      %v4406 = vmax.f32 %v4382, 0.0
      %v4407 = vmax.f32 %v4383, 0.0
      %v4408 = vmax.f32 %v4384, 0.0
      %v4409 = vsel %vm4335, 1, 0
      %v4410 = vsel %vm4336, 1, 0
      %vm4411 = vcmp.eq.s32.totalorder %v4409, 1
      %vm4412 = vcmp.eq.s32.totalorder %v4410, 1
      %v4437 = vrot.slane %v4385, 2
      %v4438 = vrot.slane %v4386, 2
      %v4439 = vsel %vm713, %v4437, %v4438
      %v4440 = vrot.slane %v4387, 2
      %v4441 = vrot.slane %v4388, 2
      %v4442 = vsel %vm713, %v4440, %v4441
      %v4443 = vrot.slane %v4389, 2
      %v4444 = vrot.slane %v4390, 2
      %v4445 = vsel %vm713, %v4443, %v4444
      %v4446 = vrot.slane %v4391, 2
      %v4447 = vrot.slane %v4392, 2
      %v4448 = vsel %vm713, %v4446, %v4447
      %v4449 = vrot.slane %v4393, 2
      %v4450 = vrot.slane %v4394, 2
      %v4451 = vsel %vm713, %v4449, %v4450
      %v4452 = vrot.slane %v4395, 2
      %v4453 = vrot.slane %v4396, 2
      %v4454 = vsel %vm713, %v4452, %v4453
      %v4455 = vrot.slane %v4397, 2
      %v4456 = vrot.slane %v4398, 2
      %v4457 = vsel %vm713, %v4455, %v4456
      %v4458 = vrot.slane %v4399, 2
      %v4459 = vrot.slane %v4400, 2
      %v4460 = vsel %vm713, %v4458, %v4459
      %v4461 = vrot.slane %v4401, 2
      %v4462 = vrot.slane %v4402, 2
      %v4463 = vsel %vm713, %v4461, %v4462
      %v4464 = vrot.slane %v4403, 2
      %v4465 = vrot.slane %v4404, 2
      %v4466 = vsel %vm713, %v4464, %v4465
      %v4467 = vrot.slane %v4405, 2
      %v4468 = vrot.slane %v4406, 2
      %v4469 = vsel %vm713, %v4467, %v4468
      %v4470 = vrot.slane %v4407, 2
      %v4471 = vrot.slane %v4408, 2
      %v4472 = vsel %vm713, %v4470, %v4471
      %v4485 = vsel %vm4411, %v4439, 0.0
      %v4486 = vsel %vm4411, %v4442, 0.0
      %v4487 = vsel %vm4412, %v4445, 0.0
      %v4488 = vsel %vm4412, %v4448, 0.0
      %v4489 = vsel %vm4412, %v4451, 0.0
      %v4490 = vsel %vm4412, %v4454, 0.0
      %v4491 = vsel %vm4412, %v4457, 0.0
      %v4492 = vsel %vm4412, %v4460, 0.0
      %v4493 = vsel %vm4412, %v4463, 0.0
      %v4494 = vsel %vm4412, %v4466, 0.0
      %v4495 = vsel %vm4411, %v4469, 0.0
      %v4496 = vsel %vm4411, %v4472, 0.0
      %v4497 = vpack.c.bf16 %v4485, %v4485
      %v4498 = vpack.c.bf16 %v4486, %v4486
      %v4499 = vpack.c.bf16 %v4487, %v4487
      %v4500 = vpack.c.bf16 %v4488, %v4488
      %v4501 = vpack.c.bf16 %v4489, %v4489
      %v4502 = vpack.c.bf16 %v4490, %v4490
      %v4503 = vpack.c.bf16 %v4491, %v4491
      %v4504 = vpack.c.bf16 %v4492, %v4492
      %v4505 = vpack.c.bf16 %v4493, %v4493
      %v4506 = vpack.c.bf16 %v4494, %v4494
      %v4507 = vpack.c.bf16 %v4495, %v4495
      %v4508 = vpack.c.bf16 %v4496, %v4496
      %4509 = vst [vmem:[#allocation3 + $0x4] sm:$0xf] %v4497
      %4510 = vst [vmem:[#allocation3 + $0x10] sm:$0xf] %v4498
      %4511 = vst [vmem:[#allocation3 + $0x1c] sm:$0xf] %v4499
      %4512 = vst [vmem:[#allocation3 + $0x28] sm:$0xf] %v4500
      %4513 = vst [vmem:[#allocation3 + $0x34] sm:$0xf] %v4501
      %4514 = vst [vmem:[#allocation3 + $0x40] sm:$0xf] %v4502
      %4515 = vst [vmem:[#allocation3 + $0x4c] sm:$0xf] %v4503
      %4516 = vst [vmem:[#allocation3 + $0x58] sm:$0xf] %v4504
      %4517 = vst [vmem:[#allocation3 + $0x64] sm:$0xf] %v4505
      %4518 = vst [vmem:[#allocation3 + $0x70] sm:$0xf] %v4506
      %4519 = vst [vmem:[#allocation3 + $0x7c] sm:$0xf] %v4507
      %4520 = vst [vmem:[#allocation3 + $0x88] sm:$0xf] %v4508
      %v4521 = vld [vmem:[%s399] sm:$0xc]
      %v4522 = vld [vmem:[%s399 + $0x4] sm:$0x3]
      %v4523 = vld [vmem:[%s399 + $0x8] sm:$0xc]
      %v4524 = vld [vmem:[%s399 + $0xc] sm:$0x3]
      %v4525 = vld [vmem:[%s399 + $0x10] sm:$0xc]
      %v4526 = vld [vmem:[%s399 + $0x14] sm:$0x3]
      %v4527 = vld [vmem:[%s399 + $0x18] sm:$0xc]
      %v4528 = vld [vmem:[%s399 + $0x1c] sm:$0x3]
      %v4529 = vld [vmem:[%s399 + $0x20] sm:$0xc]
      %v4530 = vld [vmem:[%s399 + $0x24] sm:$0x3]
      %v4531 = vld [vmem:[%s399 + $0x28] sm:$0xc]
      %v4532 = vld [vmem:[%s399 + $0x2c] sm:$0x3]
      %v4533 = vld [vmem:[%s399 + $0x30] sm:$0xc]
      %v4534 = vld [vmem:[%s399 + $0x34] sm:$0x3]
      %v4535 = vld [vmem:[%s399 + $0x38] sm:$0xc]
      %v4536 = vld [vmem:[%s399 + $0x3c] sm:$0x3]
      %v4537 = vld [vmem:[%s399 + $0x40] sm:$0xc]
      %v4538 = vld [vmem:[%s399 + $0x44] sm:$0x3]
      %v4539 = vld [vmem:[%s399 + $0x48] sm:$0xc]
      %v4540 = vld [vmem:[%s399 + $0x4c] sm:$0x3]
      %v4541 = vld [vmem:[%s399 + $0x50] sm:$0xc]
      %v4542 = vld [vmem:[%s399 + $0x54] sm:$0x3]
      %v4543 = vld [vmem:[%s399 + $0x58] sm:$0xc]
      %v4544 = vld [vmem:[%s399 + $0x5c] sm:$0x3]
      %v4545 = vunpack.c.l.bf16 %v4521
      %v4546 = vunpack.c.l.bf16 %v4522
      %v4547 = vunpack.c.l.bf16 %v4523
      %v4548 = vunpack.c.l.bf16 %v4524
      %v4549 = vunpack.c.l.bf16 %v4525
      %v4550 = vunpack.c.l.bf16 %v4526
      %v4551 = vunpack.c.l.bf16 %v4527
      %v4552 = vunpack.c.l.bf16 %v4528
      %v4553 = vunpack.c.l.bf16 %v4529
      %v4554 = vunpack.c.l.bf16 %v4530
      %v4555 = vunpack.c.l.bf16 %v4531
      %v4556 = vunpack.c.l.bf16 %v4532
      %v4557 = vunpack.c.l.bf16 %v4533
      %v4558 = vunpack.c.l.bf16 %v4534
      %v4559 = vunpack.c.l.bf16 %v4535
      %v4560 = vunpack.c.l.bf16 %v4536
      %v4561 = vunpack.c.l.bf16 %v4537
      %v4562 = vunpack.c.l.bf16 %v4538
      %v4563 = vunpack.c.l.bf16 %v4539
      %v4564 = vunpack.c.l.bf16 %v4540
      %v4565 = vunpack.c.l.bf16 %v4541
      %v4566 = vunpack.c.l.bf16 %v4542
      %v4567 = vunpack.c.l.bf16 %v4543
      %v4568 = vunpack.c.l.bf16 %v4544
      %vm4569 = vmand %vm848, %vm4208
      %vm4570 = vmand %vm849, %vm4208
      %v4571 = vmul.f32 %v4545, %v475
      %v4572 = vmul.f32 %v4546, %v475
      %v4573 = vmul.f32 %v4547, %v475
      %v4574 = vmul.f32 %v4548, %v475
      %v4575 = vmul.f32 %v4549, %v475
      %v4576 = vmul.f32 %v4550, %v475
      %v4577 = vmul.f32 %v4551, %v475
      %v4578 = vmul.f32 %v4552, %v475
      %v4579 = vmul.f32 %v4553, %v475
      %v4580 = vmul.f32 %v4554, %v475
      %v4581 = vmul.f32 %v4555, %v475
      %v4582 = vmul.f32 %v4556, %v475
      %v4583 = vmul.f32 %v4557, %v475
      %v4584 = vmul.f32 %v4558, %v475
      %v4585 = vmul.f32 %v4559, %v475
      %v4586 = vmul.f32 %v4560, %v475
      %v4587 = vmul.f32 %v4561, %v475
      %v4588 = vmul.f32 %v4562, %v475
      %v4589 = vmul.f32 %v4563, %v475
      %v4590 = vmul.f32 %v4564, %v475
      %v4591 = vmul.f32 %v4565, %v475
      %v4592 = vmul.f32 %v4566, %v475
      %v4593 = vmul.f32 %v4567, %v475
      %v4594 = vmul.f32 %v4568, %v475
      %v4595 = vadd.f32 %v4571, %v493
      %v4596 = vadd.f32 %v4572, %v493
      %v4597 = vadd.f32 %v4573, %v493
      %v4598 = vadd.f32 %v4574, %v493
      %v4599 = vadd.f32 %v4575, %v493
      %v4600 = vadd.f32 %v4576, %v493
      %v4601 = vadd.f32 %v4577, %v493
      %v4602 = vadd.f32 %v4578, %v493
      %v4603 = vadd.f32 %v4579, %v493
      %v4604 = vadd.f32 %v4580, %v493
      %v4605 = vadd.f32 %v4581, %v493
      %v4606 = vadd.f32 %v4582, %v493
      %v4607 = vadd.f32 %v4583, %v493
      %v4608 = vadd.f32 %v4584, %v493
      %v4609 = vadd.f32 %v4585, %v493
      %v4610 = vadd.f32 %v4586, %v493
      %v4611 = vadd.f32 %v4587, %v493
      %v4612 = vadd.f32 %v4588, %v493
      %v4613 = vadd.f32 %v4589, %v493
      %v4614 = vadd.f32 %v4590, %v493
      %v4615 = vadd.f32 %v4591, %v493
      %v4616 = vadd.f32 %v4592, %v493
      %v4617 = vadd.f32 %v4593, %v493
      %v4618 = vadd.f32 %v4594, %v493
      %v4619 = vmax.f32 %v4595, 0.0
      %v4620 = vmax.f32 %v4596, 0.0
      %v4621 = vmax.f32 %v4597, 0.0
      %v4622 = vmax.f32 %v4598, 0.0
      %v4623 = vmax.f32 %v4599, 0.0
      %v4624 = vmax.f32 %v4600, 0.0
      %v4625 = vmax.f32 %v4601, 0.0
      %v4626 = vmax.f32 %v4602, 0.0
      %v4627 = vmax.f32 %v4603, 0.0
      %v4628 = vmax.f32 %v4604, 0.0
      %v4629 = vmax.f32 %v4605, 0.0
      %v4630 = vmax.f32 %v4606, 0.0
      %v4631 = vmax.f32 %v4607, 0.0
      %v4632 = vmax.f32 %v4608, 0.0
      %v4633 = vmax.f32 %v4609, 0.0
      %v4634 = vmax.f32 %v4610, 0.0
      %v4635 = vmax.f32 %v4611, 0.0
      %v4636 = vmax.f32 %v4612, 0.0
      %v4637 = vmax.f32 %v4613, 0.0
      %v4638 = vmax.f32 %v4614, 0.0
      %v4639 = vmax.f32 %v4615, 0.0
      %v4640 = vmax.f32 %v4616, 0.0
      %v4641 = vmax.f32 %v4617, 0.0
      %v4642 = vmax.f32 %v4618, 0.0
      %v4643 = vsel %vm4569, 1, 0
      %v4644 = vsel %vm4570, 1, 0
      %vm4645 = vcmp.eq.s32.totalorder %v4643, 1
      %vm4646 = vcmp.eq.s32.totalorder %v4644, 1
      %v4671 = vrot.slane %v4619, 4
      %v4672 = vrot.slane %v4620, 4
      %v4673 = vsel %vm952, %v4671, %v4672
      %v4674 = vrot.slane %v4621, 4
      %v4675 = vrot.slane %v4622, 4
      %v4676 = vsel %vm952, %v4674, %v4675
      %v4677 = vrot.slane %v4623, 4
      %v4678 = vrot.slane %v4624, 4
      %v4679 = vsel %vm952, %v4677, %v4678
      %v4680 = vrot.slane %v4625, 4
      %v4681 = vrot.slane %v4626, 4
      %v4682 = vsel %vm952, %v4680, %v4681
      %v4683 = vrot.slane %v4627, 4
      %v4684 = vrot.slane %v4628, 4
      %v4685 = vsel %vm952, %v4683, %v4684
      %v4686 = vrot.slane %v4629, 4
      %v4687 = vrot.slane %v4630, 4
      %v4688 = vsel %vm952, %v4686, %v4687
      %v4689 = vrot.slane %v4631, 4
      %v4690 = vrot.slane %v4632, 4
      %v4691 = vsel %vm952, %v4689, %v4690
      %v4692 = vrot.slane %v4633, 4
      %v4693 = vrot.slane %v4634, 4
      %v4694 = vsel %vm952, %v4692, %v4693
      %v4695 = vrot.slane %v4635, 4
      %v4696 = vrot.slane %v4636, 4
      %v4697 = vsel %vm952, %v4695, %v4696
      %v4698 = vrot.slane %v4637, 4
      %v4699 = vrot.slane %v4638, 4
      %v4700 = vsel %vm952, %v4698, %v4699
      %v4701 = vrot.slane %v4639, 4
      %v4702 = vrot.slane %v4640, 4
      %v4703 = vsel %vm952, %v4701, %v4702
      %v4704 = vrot.slane %v4641, 4
      %v4705 = vrot.slane %v4642, 4
      %v4706 = vsel %vm952, %v4704, %v4705
      %v4719 = vsel %vm4645, %v4673, 0.0
      %v4720 = vsel %vm4645, %v4676, 0.0
      %v4721 = vsel %vm4646, %v4679, 0.0
      %v4722 = vsel %vm4646, %v4682, 0.0
      %v4723 = vsel %vm4646, %v4685, 0.0
      %v4724 = vsel %vm4646, %v4688, 0.0
      %v4725 = vsel %vm4646, %v4691, 0.0
      %v4726 = vsel %vm4646, %v4694, 0.0
      %v4727 = vsel %vm4646, %v4697, 0.0
      %v4728 = vsel %vm4646, %v4700, 0.0
      %v4729 = vsel %vm4645, %v4703, 0.0
      %v4730 = vsel %vm4645, %v4706, 0.0
      %v4731 = vpack.c.bf16 %v4719, %v4719
      %v4732 = vpack.c.bf16 %v4720, %v4720
      %v4733 = vpack.c.bf16 %v4721, %v4721
      %v4734 = vpack.c.bf16 %v4722, %v4722
      %v4735 = vpack.c.bf16 %v4723, %v4723
      %v4736 = vpack.c.bf16 %v4724, %v4724
      %v4737 = vpack.c.bf16 %v4725, %v4725
      %v4738 = vpack.c.bf16 %v4726, %v4726
      %v4739 = vpack.c.bf16 %v4727, %v4727
      %v4740 = vpack.c.bf16 %v4728, %v4728
      %v4741 = vpack.c.bf16 %v4729, %v4729
      %v4742 = vpack.c.bf16 %v4730, %v4730
      %4743 = vst [vmem:[#allocation3 + $0x8] sm:$0xf] %v4731
      %4744 = vst [vmem:[#allocation3 + $0x14] sm:$0xf] %v4732
      %4745 = vst [vmem:[#allocation3 + $0x20] sm:$0xf] %v4733
      %4746 = vst [vmem:[#allocation3 + $0x2c] sm:$0xf] %v4734
      %4747 = vst [vmem:[#allocation3 + $0x38] sm:$0xf] %v4735
      %4748 = vst [vmem:[#allocation3 + $0x44] sm:$0xf] %v4736
      %4749 = vst [vmem:[#allocation3 + $0x50] sm:$0xf] %v4737
      %4750 = vst [vmem:[#allocation3 + $0x5c] sm:$0xf] %v4738
      %4751 = vst [vmem:[#allocation3 + $0x68] sm:$0xf] %v4739
      %4752 = vst [vmem:[#allocation3 + $0x74] sm:$0xf] %v4740
      %4753 = vst [vmem:[#allocation3 + $0x80] sm:$0xf] %v4741
      %4754 = vst [vmem:[#allocation3 + $0x8c] sm:$0xf] %v4742
      %v4755 = vld [vmem:[#allocation3] sm:$0xff]
      %v4756 = vld [vmem:[#allocation3 + $0x8] sm:$0xf]
      %v4757 = vld [vmem:[#allocation3 + $0xc] sm:$0xff]
      %v4758 = vld [vmem:[#allocation3 + $0x14] sm:$0xf]
      %v4759 = vld [vmem:[#allocation3 + $0x18] sm:$0xff]
      %v4760 = vld [vmem:[#allocation3 + $0x20] sm:$0xf]
      %v4761 = vld [vmem:[#allocation3 + $0x24] sm:$0xff]
      %v4762 = vld [vmem:[#allocation3 + $0x2c] sm:$0xf]
      %v4763 = vld [vmem:[#allocation3 + $0x30] sm:$0xff]
      %v4764 = vld [vmem:[#allocation3 + $0x38] sm:$0xf]
      %v4765 = vld [vmem:[#allocation3 + $0x3c] sm:$0xff]
      %v4766 = vld [vmem:[#allocation3 + $0x44] sm:$0xf]
      %v4767 = vld [vmem:[#allocation3 + $0x48] sm:$0xff]
      %v4768 = vld [vmem:[#allocation3 + $0x50] sm:$0xf]
      %v4769 = vld [vmem:[#allocation3 + $0x54] sm:$0xff]
      %v4770 = vld [vmem:[#allocation3 + $0x5c] sm:$0xf]
      %v4771 = vld [vmem:[#allocation2] sm:$0xff]
      %v4772 = vld [vmem:[#allocation2 + $0x8] sm:$0xff]
      %v4773 = vld [vmem:[#allocation2 + $0x10] sm:$0xff]
      %v4774 = vld [vmem:[#allocation2 + $0x18] sm:$0xff]
      %v4775 = vld [vmem:[#allocation2 + $0x20] sm:$0xff]
      %v4776 = vld [vmem:[#allocation2 + $0x28] sm:$0xff]
      %v4777 = vld [vmem:[#allocation2 + $0x30] sm:$0xff]
      %v4778 = vld [vmem:[#allocation2 + $0x38] sm:$0xff]
      %s4779 = scalar_lea.vmem %s5, 1152
      %v4780 = vld [vmem:[%s4779] sm:$0xf]
      %v4781 = vld [vmem:[%s4779 + $0x4] sm:$0xf]
      %v4782 = vld [vmem:[%s4779 + $0x8] sm:$0xf]
      %v4783 = vld [vmem:[%s4779 + $0xc] sm:$0xf]
      %v4784 = vld [vmem:[%s4779 + $0x10] sm:$0xf]
      %v4785 = vld [vmem:[%s4779 + $0x14] sm:$0xf]
      %v4786 = vld [vmem:[%s4779 + $0x18] sm:$0xf]
      %v4787 = vld [vmem:[%s4779 + $0x1c] sm:$0xf]
      %v4788 = vld [vmem:[%s4779 + $0x20] sm:$0xf]
      %v4789 = vld [vmem:[%s4779 + $0x24] sm:$0xf]
      %v4790 = vld [vmem:[%s4779 + $0x28] sm:$0xf]
      %v4791 = vld [vmem:[%s4779 + $0x2c] sm:$0xf]
      %v4792 = vld [vmem:[%s4779 + $0x30] sm:$0xf]
      %v4793 = vld [vmem:[%s4779 + $0x34] sm:$0xf]
      %v4794 = vld [vmem:[%s4779 + $0x38] sm:$0xf]
      %v4795 = vld [vmem:[%s4779 + $0x3c] sm:$0xf]
      %v4796 = vld [vmem:[%s4779 + $0x40] sm:$0xf]
      %v4797 = vld [vmem:[%s4779 + $0x44] sm:$0xf]
      %v4798 = vld [vmem:[%s4779 + $0x48] sm:$0xf]
      %v4799 = vld [vmem:[%s4779 + $0x4c] sm:$0xf]
      %v4800 = vld [vmem:[%s4779 + $0x50] sm:$0xf]
      %v4801 = vld [vmem:[%s4779 + $0x54] sm:$0xf]
      %v4802 = vld [vmem:[%s4779 + $0x58] sm:$0xf]
      %v4803 = vld [vmem:[%s4779 + $0x5c] sm:$0xf]
      %v4804 = vld [vmem:[%s4779 + $0x60] sm:$0xf]
      %v4805 = vld [vmem:[%s4779 + $0x64] sm:$0xf]
      %v4806 = vld [vmem:[%s4779 + $0x68] sm:$0xf]
      %v4807 = vld [vmem:[%s4779 + $0x6c] sm:$0xf]
      %v4808 = vld [vmem:[%s4779 + $0x70] sm:$0xf]
      %v4809 = vld [vmem:[%s4779 + $0x74] sm:$0xf]
      %v4810 = vld [vmem:[%s4779 + $0x78] sm:$0xf]
      %v4811 = vld [vmem:[%s4779 + $0x7c] sm:$0xf]
      %v4812 = vld [vmem:[%s4779 + $0x80] sm:$0xf]
      %v4813 = vld [vmem:[%s4779 + $0x84] sm:$0xf]
      %v4814 = vld [vmem:[%s4779 + $0x88] sm:$0xf]
      %v4815 = vld [vmem:[%s4779 + $0x8c] sm:$0xf]
      %v4816 = vld [vmem:[%s4779 + $0x90] sm:$0xf]
      %v4817 = vld [vmem:[%s4779 + $0x94] sm:$0xf]
      %v4818 = vld [vmem:[%s4779 + $0x98] sm:$0xf]
      %v4819 = vld [vmem:[%s4779 + $0x9c] sm:$0xf]
      %v4820 = vld [vmem:[%s4779 + $0xa0] sm:$0xf]
      %v4821 = vld [vmem:[%s4779 + $0xa4] sm:$0xf]
      %v4822 = vld [vmem:[%s4779 + $0xa8] sm:$0xf]
      %v4823 = vld [vmem:[%s4779 + $0xac] sm:$0xf]
      %v4824 = vld [vmem:[%s4779 + $0xb0] sm:$0xf]
      %v4825 = vld [vmem:[%s4779 + $0xb4] sm:$0xf]
      %v4826 = vld [vmem:[%s4779 + $0xb8] sm:$0xf]
      %v4827 = vld [vmem:[%s4779 + $0xbc] sm:$0xf]
      %v4844 = vunpack.c.l.b16 %v4755
      %v4845 = vunpack.c.h.b16 %v4755
      %v4846 = vunpack.c.l.b16 %v4756
      %v4847 = vunpack.c.l.b16 %v4757
      %v4848 = vunpack.c.h.b16 %v4757
      %v4849 = vunpack.c.l.b16 %v4758
      %v4850 = vunpack.c.l.b16 %v4759
      %v4851 = vunpack.c.h.b16 %v4759
      %v4852 = vunpack.c.l.b16 %v4760
      %v4853 = vunpack.c.l.b16 %v4761
      %v4854 = vunpack.c.h.b16 %v4761
      %v4855 = vunpack.c.l.b16 %v4762
      %v4856 = vunpack.c.l.b16 %v4763
      %v4857 = vunpack.c.h.b16 %v4763
      %v4858 = vunpack.c.l.b16 %v4764
      %v4859 = vunpack.c.l.b16 %v4765
      %v4860 = vunpack.c.h.b16 %v4765
      %v4861 = vunpack.c.l.b16 %v4766
      %v4862 = vunpack.c.l.b16 %v4767
      %v4863 = vunpack.c.h.b16 %v4767
      %v4864 = vunpack.c.l.b16 %v4768
      %v4865 = vunpack.c.l.b16 %v4769
      %v4866 = vunpack.c.h.b16 %v4769
      %v4867 = vunpack.c.l.b16 %v4770
      %v4868 = vpack.c.b16 %v4847, %v4844
      %v4869 = vpack.c.b16 %v4848, %v4845
      %v4870 = vpack.c.b16 %v4849, %v4846
      %v4871 = vpack.c.b16 %v4853, %v4850
      %v4872 = vpack.c.b16 %v4854, %v4851
      %v4873 = vpack.c.b16 %v4855, %v4852
      %v4874 = vpack.c.b16 %v4859, %v4856
      %v4875 = vpack.c.b16 %v4860, %v4857
      %v4876 = vpack.c.b16 %v4861, %v4858
      %v4877 = vpack.c.b16 %v4865, %v4862
      %v4878 = vpack.c.b16 %v4866, %v4863
      %v4879 = vpack.c.b16 %v4867, %v4864
      %v4940 = vunpack.c.l.b16 %v4780
      %v4941 = vunpack.c.l.b16 %v4781
      %v4942 = vunpack.c.l.b16 %v4782
      %v4943 = vunpack.c.l.b16 %v4783
      %v4944 = vunpack.c.l.b16 %v4784
      %v4945 = vunpack.c.l.b16 %v4785
      %v4946 = vunpack.c.l.b16 %v4786
      %v4947 = vunpack.c.l.b16 %v4787
      %v4948 = vunpack.c.l.b16 %v4788
      %v4949 = vunpack.c.l.b16 %v4789
      %v4950 = vunpack.c.l.b16 %v4790
      %v4951 = vunpack.c.l.b16 %v4791
      %v4952 = vunpack.c.l.b16 %v4792
      %v4953 = vunpack.c.l.b16 %v4793
      %v4954 = vunpack.c.l.b16 %v4794
      %v4955 = vunpack.c.l.b16 %v4795
      %v4956 = vunpack.c.l.b16 %v4796
      %v4957 = vunpack.c.l.b16 %v4797
      %v4958 = vunpack.c.l.b16 %v4798
      %v4959 = vunpack.c.l.b16 %v4799
      %v4960 = vunpack.c.l.b16 %v4800
      %v4961 = vunpack.c.l.b16 %v4801
      %v4962 = vunpack.c.l.b16 %v4802
      %v4963 = vunpack.c.l.b16 %v4803
      %v4964 = vunpack.c.l.b16 %v4804
      %v4965 = vunpack.c.l.b16 %v4805
      %v4966 = vunpack.c.l.b16 %v4806
      %v4967 = vunpack.c.l.b16 %v4807
      %v4968 = vunpack.c.l.b16 %v4808
      %v4969 = vunpack.c.l.b16 %v4809
      %v4970 = vunpack.c.l.b16 %v4810
      %v4971 = vunpack.c.l.b16 %v4811
      %v4972 = vunpack.c.l.b16 %v4812
      %v4973 = vunpack.c.l.b16 %v4813
      %v4974 = vunpack.c.l.b16 %v4814
      %v4975 = vunpack.c.l.b16 %v4815
      %v4976 = vunpack.c.l.b16 %v4816
      %v4977 = vunpack.c.l.b16 %v4817
      %v4978 = vunpack.c.l.b16 %v4818
      %v4979 = vunpack.c.l.b16 %v4819
      %v4980 = vunpack.c.l.b16 %v4820
      %v4981 = vunpack.c.l.b16 %v4821
      %v4982 = vunpack.c.l.b16 %v4822
      %v4983 = vunpack.c.l.b16 %v4823
      %v4984 = vunpack.c.l.b16 %v4824
      %v4985 = vunpack.c.l.b16 %v4825
      %v4986 = vunpack.c.l.b16 %v4826
      %v4987 = vunpack.c.l.b16 %v4827
      %v4988 = vpack.c.b16 %v4941, %v4940
      %v4989 = vpack.c.b16 %v4943, %v4942
      %v4990 = vpack.c.b16 %v4945, %v4944
      %v4991 = vpack.c.b16 %v4947, %v4946
      %v4992 = vpack.c.b16 %v4949, %v4948
      %v4993 = vpack.c.b16 %v4951, %v4950
      %v4994 = vpack.c.b16 %v4953, %v4952
      %v4995 = vpack.c.b16 %v4955, %v4954
      %v4996 = vpack.c.b16 %v4957, %v4956
      %v4997 = vpack.c.b16 %v4959, %v4958
      %v4998 = vpack.c.b16 %v4961, %v4960
      %v4999 = vpack.c.b16 %v4963, %v4962
      %v5000 = vpack.c.b16 %v4965, %v4964
      %v5001 = vpack.c.b16 %v4967, %v4966
      %v5002 = vpack.c.b16 %v4969, %v4968
      %v5003 = vpack.c.b16 %v4971, %v4970
      %v5004 = vpack.c.b16 %v4973, %v4972
      %v5005 = vpack.c.b16 %v4975, %v4974
      %v5006 = vpack.c.b16 %v4977, %v4976
      %v5007 = vpack.c.b16 %v4979, %v4978
      %v5008 = vpack.c.b16 %v4981, %v4980
      %v5009 = vpack.c.b16 %v4983, %v4982
      %v5010 = vpack.c.b16 %v4985, %v4984
      %v5011 = vpack.c.b16 %v4987, %v4986
      %5036 = vmatprep.subr.bf16.mxu0 0
      %5037 = vmatpush1.bf16.msra.mxu0 %v4995
      %5038 = vmatprep.subr.bf16.mxu0 0
      %5039 = vmatpush1.bf16.msra.mxu0 %v4994
      %5040 = vmatprep.subr.bf16.mxu0 0
      %5041 = vmatpush1.bf16.msra.mxu0 %v4993
      %5042 = vmatprep.subr.bf16.mxu0 0
      %5043 = vmatpush1.bf16.msra.mxu0 %v4992
      %5044 = vmatprep.subr.bf16.mxu0 0
      %5045 = vmatpush1.bf16.msra.mxu0 %v4991
      %5046 = vmatprep.subr.bf16.mxu0 0
      %5047 = vmatpush1.bf16.msra.mxu0 %v4990
      %5048 = vmatprep.subr.bf16.mxu0 0
      %5049 = vmatpush1.bf16.msra.mxu0 %v4989
      %5050 = vmatprep.subr.bf16.mxu0 0
      %5051 = vmatpush1.bf16.msra.mxu0 %v4988
      %5052 = vmatprep.subr.bf16.mxu0 0
      %5053 = vmatpush2.bf16.msra.mxu0 %v5003
      %5054 = vmatprep.subr.bf16.mxu0 0
      %5055 = vmatpush2.bf16.msra.mxu0 %v5002
      %5056 = vmatprep.subr.bf16.mxu0 0
      %5057 = vmatpush2.bf16.msra.mxu0 %v5001
      %5058 = vmatprep.subr.bf16.mxu0 0
      %5059 = vmatpush2.bf16.msra.mxu0 %v5000
      %5060 = vmatprep.subr.bf16.mxu0 0
      %5061 = vmatpush2.bf16.msra.mxu0 %v4999
      %5062 = vmatprep.subr.bf16.mxu0 0
      %5063 = vmatpush2.bf16.msra.mxu0 %v4998
      %5064 = vmatprep.subr.bf16.mxu0 0
      %5065 = vmatpush2.bf16.msra.mxu0 %v4997
      %5066 = vmatprep.subr.bf16.mxu0 0
      %5067 = vmatpush2.bf16.msra.mxu0 %v4996
      %5068 = vmatprep.mubr.bf16.mxu0 %v4869
      %5069 = vmatmul.mubr.bf16.gmra.mxu0 %v4868
      %v5070 = vpop.f32.mrf.mxu0
      %v5071 = vadd.f32 0.0, %v5070
      %v5072 = vpop.f32.mrf.mxu0
      %v5073 = vpop.f32.mrf.mxu0
      %v5074 = vadd.f32 0.0, %v5073
      %v5075 = vpop.f32.mrf.mxu0
      %5076 = vmatprep.mubr.bf16.mxu0 %v4872
      %5077 = vmatmul.mubr.bf16.gmra.mxu0 %v4871
      %v5078 = vpop.f32.mrf.mxu0
      %v5079 = vadd.f32 0.0, %v5078
      %v5080 = vpop.f32.mrf.mxu0
      %v5081 = vpop.f32.mrf.mxu0
      %v5082 = vadd.f32 0.0, %v5081
      %v5083 = vpop.f32.mrf.mxu0
      %5084 = vmatprep.mubr.bf16.mxu0 %v4875
      %5085 = vmatmul.mubr.bf16.gmra.mxu0 %v4874
      %v5086 = vpop.f32.mrf.mxu0
      %v5087 = vadd.f32 0.0, %v5086
      %v5088 = vpop.f32.mrf.mxu0
      %v5089 = vpop.f32.mrf.mxu0
      %v5090 = vadd.f32 0.0, %v5089
      %v5091 = vpop.f32.mrf.mxu0
      %5092 = vmatprep.mubr.bf16.mxu0 %v4878
      %5093 = vmatmul.mubr.bf16.gmra.mxu0 %v4877
      %v5094 = vpop.f32.mrf.mxu0
      %v5095 = vadd.f32 0.0, %v5094
      %v5096 = vpop.f32.mrf.mxu0
      %v5097 = vpop.f32.mrf.mxu0
      %v5098 = vadd.f32 0.0, %v5097
      %v5099 = vpop.f32.mrf.mxu0
      %5100 = vdwg.mxu0
      %5101 = vmatprep.subr.bf16.mxu0 0
      %5102 = vmatpush1.bf16.msra.mxu0 %v5011
      %5103 = vmatprep.subr.bf16.mxu0 0
      %5104 = vmatpush1.bf16.msra.mxu0 %v5010
      %5105 = vmatprep.subr.bf16.mxu0 0
      %5106 = vmatpush1.bf16.msra.mxu0 %v5009
      %5107 = vmatprep.subr.bf16.mxu0 0
      %5108 = vmatpush1.bf16.msra.mxu0 %v5008
      %5109 = vmatprep.subr.bf16.mxu0 0
      %5110 = vmatpush1.bf16.msra.mxu0 %v5007
      %5111 = vmatprep.subr.bf16.mxu0 0
      %5112 = vmatpush1.bf16.msra.mxu0 %v5006
      %5113 = vmatprep.subr.bf16.mxu0 0
      %5114 = vmatpush1.bf16.msra.mxu0 %v5005
      %5115 = vmatprep.subr.bf16.mxu0 0
      %5116 = vmatpush1.bf16.msra.mxu0 %v5004
      %5117 = vmatprep.subr.bf16.mxu0 0
      %5118 = vmatpush2.bf16.msra.mxu0 0
      %5119 = vmatprep.subr.bf16.mxu0 0
      %5120 = vmatpush2.bf16.msra.mxu0 0
      %5121 = vmatprep.subr.bf16.mxu0 0
      %5122 = vmatpush2.bf16.msra.mxu0 0
      %5123 = vmatprep.subr.bf16.mxu0 0
      %5124 = vmatpush2.bf16.msra.mxu0 0
      %5125 = vmatprep.subr.bf16.mxu0 0
      %5126 = vmatpush2.bf16.msra.mxu0 0
      %5127 = vmatprep.subr.bf16.mxu0 0
      %5128 = vmatpush2.bf16.msra.mxu0 0
      %5129 = vmatprep.subr.bf16.mxu0 0
      %5130 = vmatpush2.bf16.msra.mxu0 0
      %5131 = vmatprep.subr.bf16.mxu0 0
      %5132 = vmatpush2.bf16.msra.mxu0 0
      %5133 = vmatprep.mubr.bf16.mxu0 0
      %5134 = vmatmul.mubr.bf16.gmra.mxu0 %v4870
      %v5135 = vpop.f32.mrf.mxu0
      %v5136 = vadd.f32 %v5071, %v5135
      %v5137 = vpop.f32.mrf.mxu0
      %v5138 = vpop.f32.mrf.mxu0
      %v5139 = vadd.f32 %v5074, %v5138
      %v5140 = vpop.f32.mrf.mxu0
      %5141 = vmatprep.mubr.bf16.mxu0 0
      %5142 = vmatmul.mubr.bf16.gmra.mxu0 %v4873
      %v5143 = vpop.f32.mrf.mxu0
      %v5144 = vadd.f32 %v5079, %v5143
      %v5145 = vpop.f32.mrf.mxu0
      %v5146 = vpop.f32.mrf.mxu0
      %v5147 = vadd.f32 %v5082, %v5146
      %v5148 = vpop.f32.mrf.mxu0
      %5149 = vmatprep.mubr.bf16.mxu0 0
      %5150 = vmatmul.mubr.bf16.gmra.mxu0 %v4876
      %v5151 = vpop.f32.mrf.mxu0
      %v5152 = vadd.f32 %v5087, %v5151
      %v5153 = vpop.f32.mrf.mxu0
      %v5154 = vpop.f32.mrf.mxu0
      %v5155 = vadd.f32 %v5090, %v5154
      %v5156 = vpop.f32.mrf.mxu0
      %5157 = vmatprep.mubr.bf16.mxu0 0
      %5158 = vmatmul.mubr.bf16.gmra.mxu0 %v4879
      %v5159 = vpop.f32.mrf.mxu0
      %v5160 = vadd.f32 %v5095, %v5159
      %v5161 = vpop.f32.mrf.mxu0
      %v5162 = vpop.f32.mrf.mxu0
      %v5163 = vadd.f32 %v5098, %v5162
      %v5164 = vpop.f32.mrf.mxu0
      %5165 = vdwg.mxu0
      %v5166 = vadd.f32 %v4771, %v5136
      %v5167 = vadd.f32 %v4772, %v5139
      %v5168 = vadd.f32 %v4773, %v5144
      %v5169 = vadd.f32 %v4774, %v5147
      %v5170 = vadd.f32 %v4775, %v5152
      %v5171 = vadd.f32 %v4776, %v5155
      %v5172 = vadd.f32 %v4777, %v5160
      %v5173 = vadd.f32 %v4778, %v5163
      %5174 = vst [vmem:[#allocation2] sm:$0xff] %v5166
      %5175 = vst [vmem:[#allocation2 + $0x8] sm:$0xff] %v5167
      %5176 = vst [vmem:[#allocation2 + $0x10] sm:$0xff] %v5168
      %5177 = vst [vmem:[#allocation2 + $0x18] sm:$0xff] %v5169
      %5178 = vst [vmem:[#allocation2 + $0x20] sm:$0xff] %v5170
      %5179 = vst [vmem:[#allocation2 + $0x28] sm:$0xff] %v5171
      %5180 = vst [vmem:[#allocation2 + $0x30] sm:$0xff] %v5172
      %5181 = vst [vmem:[#allocation2 + $0x38] sm:$0xff] %v5173
      %v5182 = vld [vmem:[%s1463] sm:$0xff]
      %v5183 = vld [vmem:[%s1463 + $0x8] sm:$0xf]
      %v5184 = vld [vmem:[%s1463 + $0xc] sm:$0xff]
      %v5185 = vld [vmem:[%s1463 + $0x14] sm:$0xf]
      %v5186 = vld [vmem:[%s1463 + $0x18] sm:$0xff]
      %v5187 = vld [vmem:[%s1463 + $0x20] sm:$0xf]
      %v5188 = vld [vmem:[%s1463 + $0x24] sm:$0xff]
      %v5189 = vld [vmem:[%s1463 + $0x2c] sm:$0xf]
      %v5190 = vld [vmem:[%s1463 + $0x30] sm:$0xff]
      %v5191 = vld [vmem:[%s1463 + $0x38] sm:$0xf]
      %v5192 = vld [vmem:[%s1463 + $0x3c] sm:$0xff]
      %v5193 = vld [vmem:[%s1463 + $0x44] sm:$0xf]
      %v5194 = vld [vmem:[%s1463 + $0x48] sm:$0xff]
      %v5195 = vld [vmem:[%s1463 + $0x50] sm:$0xf]
      %v5196 = vld [vmem:[%s1463 + $0x54] sm:$0xff]
      %v5197 = vld [vmem:[%s1463 + $0x5c] sm:$0xf]
      %v5198 = vld [vmem:[#allocation2] sm:$0xff]
      %v5199 = vld [vmem:[#allocation2 + $0x8] sm:$0xff]
      %v5200 = vld [vmem:[#allocation2 + $0x10] sm:$0xff]
      %v5201 = vld [vmem:[#allocation2 + $0x18] sm:$0xff]
      %v5202 = vld [vmem:[#allocation2 + $0x20] sm:$0xff]
      %v5203 = vld [vmem:[#allocation2 + $0x28] sm:$0xff]
      %v5204 = vld [vmem:[#allocation2 + $0x30] sm:$0xff]
      %v5205 = vld [vmem:[#allocation2 + $0x38] sm:$0xff]
      %s5206 = scalar_lea.vmem %s5, 1344
      %v5207 = vld [vmem:[%s5206] sm:$0xf]
      %v5208 = vld [vmem:[%s5206 + $0x4] sm:$0xf]
      %v5209 = vld [vmem:[%s5206 + $0x8] sm:$0xf]
      %v5210 = vld [vmem:[%s5206 + $0xc] sm:$0xf]
      %v5211 = vld [vmem:[%s5206 + $0x10] sm:$0xf]
      %v5212 = vld [vmem:[%s5206 + $0x14] sm:$0xf]
      %v5213 = vld [vmem:[%s5206 + $0x18] sm:$0xf]
      %v5214 = vld [vmem:[%s5206 + $0x1c] sm:$0xf]
      %v5215 = vld [vmem:[%s5206 + $0x20] sm:$0xf]
      %v5216 = vld [vmem:[%s5206 + $0x24] sm:$0xf]
      %v5217 = vld [vmem:[%s5206 + $0x28] sm:$0xf]
      %v5218 = vld [vmem:[%s5206 + $0x2c] sm:$0xf]
      %v5219 = vld [vmem:[%s5206 + $0x30] sm:$0xf]
      %v5220 = vld [vmem:[%s5206 + $0x34] sm:$0xf]
      %v5221 = vld [vmem:[%s5206 + $0x38] sm:$0xf]
      %v5222 = vld [vmem:[%s5206 + $0x3c] sm:$0xf]
      %v5223 = vld [vmem:[%s5206 + $0x40] sm:$0xf]
      %v5224 = vld [vmem:[%s5206 + $0x44] sm:$0xf]
      %v5225 = vld [vmem:[%s5206 + $0x48] sm:$0xf]
      %v5226 = vld [vmem:[%s5206 + $0x4c] sm:$0xf]
      %v5227 = vld [vmem:[%s5206 + $0x50] sm:$0xf]
      %v5228 = vld [vmem:[%s5206 + $0x54] sm:$0xf]
      %v5229 = vld [vmem:[%s5206 + $0x58] sm:$0xf]
      %v5230 = vld [vmem:[%s5206 + $0x5c] sm:$0xf]
      %v5231 = vld [vmem:[%s5206 + $0x60] sm:$0xf]
      %v5232 = vld [vmem:[%s5206 + $0x64] sm:$0xf]
      %v5233 = vld [vmem:[%s5206 + $0x68] sm:$0xf]
      %v5234 = vld [vmem:[%s5206 + $0x6c] sm:$0xf]
      %v5235 = vld [vmem:[%s5206 + $0x70] sm:$0xf]
      %v5236 = vld [vmem:[%s5206 + $0x74] sm:$0xf]
      %v5237 = vld [vmem:[%s5206 + $0x78] sm:$0xf]
      %v5238 = vld [vmem:[%s5206 + $0x7c] sm:$0xf]
      %v5239 = vld [vmem:[%s5206 + $0x80] sm:$0xf]
      %v5240 = vld [vmem:[%s5206 + $0x84] sm:$0xf]
      %v5241 = vld [vmem:[%s5206 + $0x88] sm:$0xf]
      %v5242 = vld [vmem:[%s5206 + $0x8c] sm:$0xf]
      %v5243 = vld [vmem:[%s5206 + $0x90] sm:$0xf]
      %v5244 = vld [vmem:[%s5206 + $0x94] sm:$0xf]
      %v5245 = vld [vmem:[%s5206 + $0x98] sm:$0xf]
      %v5246 = vld [vmem:[%s5206 + $0x9c] sm:$0xf]
      %v5247 = vld [vmem:[%s5206 + $0xa0] sm:$0xf]
      %v5248 = vld [vmem:[%s5206 + $0xa4] sm:$0xf]
      %v5249 = vld [vmem:[%s5206 + $0xa8] sm:$0xf]
      %v5250 = vld [vmem:[%s5206 + $0xac] sm:$0xf]
      %v5251 = vld [vmem:[%s5206 + $0xb0] sm:$0xf]
      %v5252 = vld [vmem:[%s5206 + $0xb4] sm:$0xf]
      %v5253 = vld [vmem:[%s5206 + $0xb8] sm:$0xf]
      %v5254 = vld [vmem:[%s5206 + $0xbc] sm:$0xf]
      %v5271 = vunpack.c.l.b16 %v5182
      %v5272 = vunpack.c.h.b16 %v5182
      %v5273 = vunpack.c.l.b16 %v5183
      %v5274 = vunpack.c.l.b16 %v5184
      %v5275 = vunpack.c.h.b16 %v5184
      %v5276 = vunpack.c.l.b16 %v5185
      %v5277 = vunpack.c.l.b16 %v5186
      %v5278 = vunpack.c.h.b16 %v5186
      %v5279 = vunpack.c.l.b16 %v5187
      %v5280 = vunpack.c.l.b16 %v5188
      %v5281 = vunpack.c.h.b16 %v5188
      %v5282 = vunpack.c.l.b16 %v5189
      %v5283 = vunpack.c.l.b16 %v5190
      %v5284 = vunpack.c.h.b16 %v5190
      %v5285 = vunpack.c.l.b16 %v5191
      %v5286 = vunpack.c.l.b16 %v5192
      %v5287 = vunpack.c.h.b16 %v5192
      %v5288 = vunpack.c.l.b16 %v5193
      %v5289 = vunpack.c.l.b16 %v5194
      %v5290 = vunpack.c.h.b16 %v5194
      %v5291 = vunpack.c.l.b16 %v5195
      %v5292 = vunpack.c.l.b16 %v5196
      %v5293 = vunpack.c.h.b16 %v5196
      %v5294 = vunpack.c.l.b16 %v5197
      %v5295 = vpack.c.b16 %v5274, %v5271
      %v5296 = vpack.c.b16 %v5275, %v5272
      %v5297 = vpack.c.b16 %v5276, %v5273
      %v5298 = vpack.c.b16 %v5280, %v5277
      %v5299 = vpack.c.b16 %v5281, %v5278
      %v5300 = vpack.c.b16 %v5282, %v5279
      %v5301 = vpack.c.b16 %v5286, %v5283
      %v5302 = vpack.c.b16 %v5287, %v5284
      %v5303 = vpack.c.b16 %v5288, %v5285
      %v5304 = vpack.c.b16 %v5292, %v5289
      %v5305 = vpack.c.b16 %v5293, %v5290
      %v5306 = vpack.c.b16 %v5294, %v5291
      %v5367 = vunpack.c.l.b16 %v5207
      %v5368 = vunpack.c.l.b16 %v5208
      %v5369 = vunpack.c.l.b16 %v5209
      %v5370 = vunpack.c.l.b16 %v5210
      %v5371 = vunpack.c.l.b16 %v5211
      %v5372 = vunpack.c.l.b16 %v5212
      %v5373 = vunpack.c.l.b16 %v5213
      %v5374 = vunpack.c.l.b16 %v5214
      %v5375 = vunpack.c.l.b16 %v5215
      %v5376 = vunpack.c.l.b16 %v5216
      %v5377 = vunpack.c.l.b16 %v5217
      %v5378 = vunpack.c.l.b16 %v5218
      %v5379 = vunpack.c.l.b16 %v5219
      %v5380 = vunpack.c.l.b16 %v5220
      %v5381 = vunpack.c.l.b16 %v5221
      %v5382 = vunpack.c.l.b16 %v5222
      %v5383 = vunpack.c.l.b16 %v5223
      %v5384 = vunpack.c.l.b16 %v5224
      %v5385 = vunpack.c.l.b16 %v5225
      %v5386 = vunpack.c.l.b16 %v5226
      %v5387 = vunpack.c.l.b16 %v5227
      %v5388 = vunpack.c.l.b16 %v5228
      %v5389 = vunpack.c.l.b16 %v5229
      %v5390 = vunpack.c.l.b16 %v5230
      %v5391 = vunpack.c.l.b16 %v5231
      %v5392 = vunpack.c.l.b16 %v5232
      %v5393 = vunpack.c.l.b16 %v5233
      %v5394 = vunpack.c.l.b16 %v5234
      %v5395 = vunpack.c.l.b16 %v5235
      %v5396 = vunpack.c.l.b16 %v5236
      %v5397 = vunpack.c.l.b16 %v5237
      %v5398 = vunpack.c.l.b16 %v5238
      %v5399 = vunpack.c.l.b16 %v5239
      %v5400 = vunpack.c.l.b16 %v5240
      %v5401 = vunpack.c.l.b16 %v5241
      %v5402 = vunpack.c.l.b16 %v5242
      %v5403 = vunpack.c.l.b16 %v5243
      %v5404 = vunpack.c.l.b16 %v5244
      %v5405 = vunpack.c.l.b16 %v5245
      %v5406 = vunpack.c.l.b16 %v5246
      %v5407 = vunpack.c.l.b16 %v5247
      %v5408 = vunpack.c.l.b16 %v5248
      %v5409 = vunpack.c.l.b16 %v5249
      %v5410 = vunpack.c.l.b16 %v5250
      %v5411 = vunpack.c.l.b16 %v5251
      %v5412 = vunpack.c.l.b16 %v5252
      %v5413 = vunpack.c.l.b16 %v5253
      %v5414 = vunpack.c.l.b16 %v5254
      %v5415 = vpack.c.b16 %v5368, %v5367
      %v5416 = vpack.c.b16 %v5370, %v5369
      %v5417 = vpack.c.b16 %v5372, %v5371
      %v5418 = vpack.c.b16 %v5374, %v5373
      %v5419 = vpack.c.b16 %v5376, %v5375
      %v5420 = vpack.c.b16 %v5378, %v5377
      %v5421 = vpack.c.b16 %v5380, %v5379
      %v5422 = vpack.c.b16 %v5382, %v5381
      %v5423 = vpack.c.b16 %v5384, %v5383
      %v5424 = vpack.c.b16 %v5386, %v5385
      %v5425 = vpack.c.b16 %v5388, %v5387
      %v5426 = vpack.c.b16 %v5390, %v5389
      %v5427 = vpack.c.b16 %v5392, %v5391
      %v5428 = vpack.c.b16 %v5394, %v5393
      %v5429 = vpack.c.b16 %v5396, %v5395
      %v5430 = vpack.c.b16 %v5398, %v5397
      %v5431 = vpack.c.b16 %v5400, %v5399
      %v5432 = vpack.c.b16 %v5402, %v5401
      %v5433 = vpack.c.b16 %v5404, %v5403
      %v5434 = vpack.c.b16 %v5406, %v5405
      %v5435 = vpack.c.b16 %v5408, %v5407
      %v5436 = vpack.c.b16 %v5410, %v5409
      %v5437 = vpack.c.b16 %v5412, %v5411
      %v5438 = vpack.c.b16 %v5414, %v5413
      %5463 = vmatprep.subr.bf16.mxu0 0
      %5464 = vmatpush1.bf16.msra.mxu0 %v5422
      %5465 = vmatprep.subr.bf16.mxu0 0
      %5466 = vmatpush1.bf16.msra.mxu0 %v5421
      %5467 = vmatprep.subr.bf16.mxu0 0
      %5468 = vmatpush1.bf16.msra.mxu0 %v5420
      %5469 = vmatprep.subr.bf16.mxu0 0
      %5470 = vmatpush1.bf16.msra.mxu0 %v5419
      %5471 = vmatprep.subr.bf16.mxu0 0
      %5472 = vmatpush1.bf16.msra.mxu0 %v5418
      %5473 = vmatprep.subr.bf16.mxu0 0
      %5474 = vmatpush1.bf16.msra.mxu0 %v5417
      %5475 = vmatprep.subr.bf16.mxu0 0
      %5476 = vmatpush1.bf16.msra.mxu0 %v5416
      %5477 = vmatprep.subr.bf16.mxu0 0
      %5478 = vmatpush1.bf16.msra.mxu0 %v5415
      %5479 = vmatprep.subr.bf16.mxu0 0
      %5480 = vmatpush2.bf16.msra.mxu0 %v5430
      %5481 = vmatprep.subr.bf16.mxu0 0
      %5482 = vmatpush2.bf16.msra.mxu0 %v5429
      %5483 = vmatprep.subr.bf16.mxu0 0
      %5484 = vmatpush2.bf16.msra.mxu0 %v5428
      %5485 = vmatprep.subr.bf16.mxu0 0
      %5486 = vmatpush2.bf16.msra.mxu0 %v5427
      %5487 = vmatprep.subr.bf16.mxu0 0
      %5488 = vmatpush2.bf16.msra.mxu0 %v5426
      %5489 = vmatprep.subr.bf16.mxu0 0
      %5490 = vmatpush2.bf16.msra.mxu0 %v5425
      %5491 = vmatprep.subr.bf16.mxu0 0
      %5492 = vmatpush2.bf16.msra.mxu0 %v5424
      %5493 = vmatprep.subr.bf16.mxu0 0
      %5494 = vmatpush2.bf16.msra.mxu0 %v5423
      %5495 = vmatprep.mubr.bf16.mxu0 %v5296
      %5496 = vmatmul.mubr.bf16.gmra.mxu0 %v5295
      %v5497 = vpop.f32.mrf.mxu0
      %v5498 = vadd.f32 0.0, %v5497
      %v5499 = vpop.f32.mrf.mxu0
      %v5500 = vpop.f32.mrf.mxu0
      %v5501 = vadd.f32 0.0, %v5500
      %v5502 = vpop.f32.mrf.mxu0
      %5503 = vmatprep.mubr.bf16.mxu0 %v5299
      %5504 = vmatmul.mubr.bf16.gmra.mxu0 %v5298
      %v5505 = vpop.f32.mrf.mxu0
      %v5506 = vadd.f32 0.0, %v5505
      %v5507 = vpop.f32.mrf.mxu0
      %v5508 = vpop.f32.mrf.mxu0
      %v5509 = vadd.f32 0.0, %v5508
      %v5510 = vpop.f32.mrf.mxu0
      %5511 = vmatprep.mubr.bf16.mxu0 %v5302
      %5512 = vmatmul.mubr.bf16.gmra.mxu0 %v5301
      %v5513 = vpop.f32.mrf.mxu0
      %v5514 = vadd.f32 0.0, %v5513
      %v5515 = vpop.f32.mrf.mxu0
      %v5516 = vpop.f32.mrf.mxu0
      %v5517 = vadd.f32 0.0, %v5516
      %v5518 = vpop.f32.mrf.mxu0
      %5519 = vmatprep.mubr.bf16.mxu0 %v5305
      %5520 = vmatmul.mubr.bf16.gmra.mxu0 %v5304
      %v5521 = vpop.f32.mrf.mxu0
      %v5522 = vadd.f32 0.0, %v5521
      %v5523 = vpop.f32.mrf.mxu0
      %v5524 = vpop.f32.mrf.mxu0
      %v5525 = vadd.f32 0.0, %v5524
      %v5526 = vpop.f32.mrf.mxu0
      %5527 = vdwg.mxu0
      %5528 = vmatprep.subr.bf16.mxu0 0
      %5529 = vmatpush1.bf16.msra.mxu0 %v5438
      %5530 = vmatprep.subr.bf16.mxu0 0
      %5531 = vmatpush1.bf16.msra.mxu0 %v5437
      %5532 = vmatprep.subr.bf16.mxu0 0
      %5533 = vmatpush1.bf16.msra.mxu0 %v5436
      %5534 = vmatprep.subr.bf16.mxu0 0
      %5535 = vmatpush1.bf16.msra.mxu0 %v5435
      %5536 = vmatprep.subr.bf16.mxu0 0
      %5537 = vmatpush1.bf16.msra.mxu0 %v5434
      %5538 = vmatprep.subr.bf16.mxu0 0
      %5539 = vmatpush1.bf16.msra.mxu0 %v5433
      %5540 = vmatprep.subr.bf16.mxu0 0
      %5541 = vmatpush1.bf16.msra.mxu0 %v5432
      %5542 = vmatprep.subr.bf16.mxu0 0
      %5543 = vmatpush1.bf16.msra.mxu0 %v5431
      %5544 = vmatprep.subr.bf16.mxu0 0
      %5545 = vmatpush2.bf16.msra.mxu0 0
      %5546 = vmatprep.subr.bf16.mxu0 0
      %5547 = vmatpush2.bf16.msra.mxu0 0
      %5548 = vmatprep.subr.bf16.mxu0 0
      %5549 = vmatpush2.bf16.msra.mxu0 0
      %5550 = vmatprep.subr.bf16.mxu0 0
      %5551 = vmatpush2.bf16.msra.mxu0 0
      %5552 = vmatprep.subr.bf16.mxu0 0
      %5553 = vmatpush2.bf16.msra.mxu0 0
      %5554 = vmatprep.subr.bf16.mxu0 0
      %5555 = vmatpush2.bf16.msra.mxu0 0
      %5556 = vmatprep.subr.bf16.mxu0 0
      %5557 = vmatpush2.bf16.msra.mxu0 0
      %5558 = vmatprep.subr.bf16.mxu0 0
      %5559 = vmatpush2.bf16.msra.mxu0 0
      %5560 = vmatprep.mubr.bf16.mxu0 0
      %5561 = vmatmul.mubr.bf16.gmra.mxu0 %v5297
      %v5562 = vpop.f32.mrf.mxu0
      %v5563 = vadd.f32 %v5498, %v5562
      %v5564 = vpop.f32.mrf.mxu0
      %v5565 = vpop.f32.mrf.mxu0
      %v5566 = vadd.f32 %v5501, %v5565
      %v5567 = vpop.f32.mrf.mxu0
      %5568 = vmatprep.mubr.bf16.mxu0 0
      %5569 = vmatmul.mubr.bf16.gmra.mxu0 %v5300
      %v5570 = vpop.f32.mrf.mxu0
      %v5571 = vadd.f32 %v5506, %v5570
      %v5572 = vpop.f32.mrf.mxu0
      %v5573 = vpop.f32.mrf.mxu0
      %v5574 = vadd.f32 %v5509, %v5573
      %v5575 = vpop.f32.mrf.mxu0
      %5576 = vmatprep.mubr.bf16.mxu0 0
      %5577 = vmatmul.mubr.bf16.gmra.mxu0 %v5303
      %v5578 = vpop.f32.mrf.mxu0
      %v5579 = vadd.f32 %v5514, %v5578
      %v5580 = vpop.f32.mrf.mxu0
      %v5581 = vpop.f32.mrf.mxu0
      %v5582 = vadd.f32 %v5517, %v5581
      %v5583 = vpop.f32.mrf.mxu0
      %5584 = vmatprep.mubr.bf16.mxu0 0
      %5585 = vmatmul.mubr.bf16.gmra.mxu0 %v5306
      %v5586 = vpop.f32.mrf.mxu0
      %v5587 = vadd.f32 %v5522, %v5586
      %v5588 = vpop.f32.mrf.mxu0
      %v5589 = vpop.f32.mrf.mxu0
      %v5590 = vadd.f32 %v5525, %v5589
      %v5591 = vpop.f32.mrf.mxu0
      %5592 = vdwg.mxu0
      %v5593 = vadd.f32 %v5198, %v5563
      %v5594 = vadd.f32 %v5199, %v5566
      %v5595 = vadd.f32 %v5200, %v5571
      %v5596 = vadd.f32 %v5201, %v5574
      %v5597 = vadd.f32 %v5202, %v5579
      %v5598 = vadd.f32 %v5203, %v5582
      %v5599 = vadd.f32 %v5204, %v5587
      %v5600 = vadd.f32 %v5205, %v5590
      %5601 = vst [vmem:[#allocation2] sm:$0xff] %v5593
      %5602 = vst [vmem:[#allocation2 + $0x8] sm:$0xff] %v5594
      %5603 = vst [vmem:[#allocation2 + $0x10] sm:$0xff] %v5595
      %5604 = vst [vmem:[#allocation2 + $0x18] sm:$0xff] %v5596
      %5605 = vst [vmem:[#allocation2 + $0x20] sm:$0xff] %v5597
      %5606 = vst [vmem:[#allocation2 + $0x28] sm:$0xff] %v5598
      %5607 = vst [vmem:[#allocation2 + $0x30] sm:$0xff] %v5599
      %5608 = vst [vmem:[#allocation2 + $0x38] sm:$0xff] %v5600
      %v5609 = vld [vmem:[%s1891] sm:$0xff]
      %v5610 = vld [vmem:[%s1891 + $0x8] sm:$0xf]
      %v5611 = vld [vmem:[%s1891 + $0xc] sm:$0xff]
      %v5612 = vld [vmem:[%s1891 + $0x14] sm:$0xf]
      %v5613 = vld [vmem:[%s1891 + $0x18] sm:$0xff]
      %v5614 = vld [vmem:[%s1891 + $0x20] sm:$0xf]
      %v5615 = vld [vmem:[%s1891 + $0x24] sm:$0xff]
      %v5616 = vld [vmem:[%s1891 + $0x2c] sm:$0xf]
      %v5617 = vld [vmem:[%s1891 + $0x30] sm:$0xff]
      %v5618 = vld [vmem:[%s1891 + $0x38] sm:$0xf]
      %v5619 = vld [vmem:[%s1891 + $0x3c] sm:$0xff]
      %v5620 = vld [vmem:[%s1891 + $0x44] sm:$0xf]
      %v5621 = vld [vmem:[%s1891 + $0x48] sm:$0xff]
      %v5622 = vld [vmem:[%s1891 + $0x50] sm:$0xf]
      %v5623 = vld [vmem:[%s1891 + $0x54] sm:$0xff]
      %v5624 = vld [vmem:[%s1891 + $0x5c] sm:$0xf]
      %v5625 = vld [vmem:[#allocation2] sm:$0xff]
      %v5626 = vld [vmem:[#allocation2 + $0x8] sm:$0xff]
      %v5627 = vld [vmem:[#allocation2 + $0x10] sm:$0xff]
      %v5628 = vld [vmem:[#allocation2 + $0x18] sm:$0xff]
      %v5629 = vld [vmem:[#allocation2 + $0x20] sm:$0xff]
      %v5630 = vld [vmem:[#allocation2 + $0x28] sm:$0xff]
      %v5631 = vld [vmem:[#allocation2 + $0x30] sm:$0xff]
      %v5632 = vld [vmem:[#allocation2 + $0x38] sm:$0xff]
      %s5633 = scalar_lea.vmem %s5, 1536
      %v5634 = vld [vmem:[%s5633] sm:$0xf]
      %v5635 = vld [vmem:[%s5633 + $0x4] sm:$0xf]
      %v5636 = vld [vmem:[%s5633 + $0x8] sm:$0xf]
      %v5637 = vld [vmem:[%s5633 + $0xc] sm:$0xf]
      %v5638 = vld [vmem:[%s5633 + $0x10] sm:$0xf]
      %v5639 = vld [vmem:[%s5633 + $0x14] sm:$0xf]
      %v5640 = vld [vmem:[%s5633 + $0x18] sm:$0xf]
      %v5641 = vld [vmem:[%s5633 + $0x1c] sm:$0xf]
      %v5642 = vld [vmem:[%s5633 + $0x20] sm:$0xf]
      %v5643 = vld [vmem:[%s5633 + $0x24] sm:$0xf]
      %v5644 = vld [vmem:[%s5633 + $0x28] sm:$0xf]
      %v5645 = vld [vmem:[%s5633 + $0x2c] sm:$0xf]
      %v5646 = vld [vmem:[%s5633 + $0x30] sm:$0xf]
      %v5647 = vld [vmem:[%s5633 + $0x34] sm:$0xf]
      %v5648 = vld [vmem:[%s5633 + $0x38] sm:$0xf]
      %v5649 = vld [vmem:[%s5633 + $0x3c] sm:$0xf]
      %v5650 = vld [vmem:[%s5633 + $0x40] sm:$0xf]
      %v5651 = vld [vmem:[%s5633 + $0x44] sm:$0xf]
      %v5652 = vld [vmem:[%s5633 + $0x48] sm:$0xf]
      %v5653 = vld [vmem:[%s5633 + $0x4c] sm:$0xf]
      %v5654 = vld [vmem:[%s5633 + $0x50] sm:$0xf]
      %v5655 = vld [vmem:[%s5633 + $0x54] sm:$0xf]
      %v5656 = vld [vmem:[%s5633 + $0x58] sm:$0xf]
      %v5657 = vld [vmem:[%s5633 + $0x5c] sm:$0xf]
      %v5658 = vld [vmem:[%s5633 + $0x60] sm:$0xf]
      %v5659 = vld [vmem:[%s5633 + $0x64] sm:$0xf]
      %v5660 = vld [vmem:[%s5633 + $0x68] sm:$0xf]
      %v5661 = vld [vmem:[%s5633 + $0x6c] sm:$0xf]
      %v5662 = vld [vmem:[%s5633 + $0x70] sm:$0xf]
      %v5663 = vld [vmem:[%s5633 + $0x74] sm:$0xf]
      %v5664 = vld [vmem:[%s5633 + $0x78] sm:$0xf]
      %v5665 = vld [vmem:[%s5633 + $0x7c] sm:$0xf]
      %v5666 = vld [vmem:[%s5633 + $0x80] sm:$0xf]
      %v5667 = vld [vmem:[%s5633 + $0x84] sm:$0xf]
      %v5668 = vld [vmem:[%s5633 + $0x88] sm:$0xf]
      %v5669 = vld [vmem:[%s5633 + $0x8c] sm:$0xf]
      %v5670 = vld [vmem:[%s5633 + $0x90] sm:$0xf]
      %v5671 = vld [vmem:[%s5633 + $0x94] sm:$0xf]
      %v5672 = vld [vmem:[%s5633 + $0x98] sm:$0xf]
      %v5673 = vld [vmem:[%s5633 + $0x9c] sm:$0xf]
      %v5674 = vld [vmem:[%s5633 + $0xa0] sm:$0xf]
      %v5675 = vld [vmem:[%s5633 + $0xa4] sm:$0xf]
      %v5676 = vld [vmem:[%s5633 + $0xa8] sm:$0xf]
      %v5677 = vld [vmem:[%s5633 + $0xac] sm:$0xf]
      %v5678 = vld [vmem:[%s5633 + $0xb0] sm:$0xf]
      %v5679 = vld [vmem:[%s5633 + $0xb4] sm:$0xf]
      %v5680 = vld [vmem:[%s5633 + $0xb8] sm:$0xf]
      %v5681 = vld [vmem:[%s5633 + $0xbc] sm:$0xf]
      %v5698 = vunpack.c.l.b16 %v5609
      %v5699 = vunpack.c.h.b16 %v5609
      %v5700 = vunpack.c.l.b16 %v5610
      %v5701 = vunpack.c.l.b16 %v5611
      %v5702 = vunpack.c.h.b16 %v5611
      %v5703 = vunpack.c.l.b16 %v5612
      %v5704 = vunpack.c.l.b16 %v5613
      %v5705 = vunpack.c.h.b16 %v5613
      %v5706 = vunpack.c.l.b16 %v5614
      %v5707 = vunpack.c.l.b16 %v5615
      %v5708 = vunpack.c.h.b16 %v5615
      %v5709 = vunpack.c.l.b16 %v5616
      %v5710 = vunpack.c.l.b16 %v5617
      %v5711 = vunpack.c.h.b16 %v5617
      %v5712 = vunpack.c.l.b16 %v5618
      %v5713 = vunpack.c.l.b16 %v5619
      %v5714 = vunpack.c.h.b16 %v5619
      %v5715 = vunpack.c.l.b16 %v5620
      %v5716 = vunpack.c.l.b16 %v5621
      %v5717 = vunpack.c.h.b16 %v5621
      %v5718 = vunpack.c.l.b16 %v5622
      %v5719 = vunpack.c.l.b16 %v5623
      %v5720 = vunpack.c.h.b16 %v5623
      %v5721 = vunpack.c.l.b16 %v5624
      %v5722 = vpack.c.b16 %v5701, %v5698
      %v5723 = vpack.c.b16 %v5702, %v5699
      %v5724 = vpack.c.b16 %v5703, %v5700
      %v5725 = vpack.c.b16 %v5707, %v5704
      %v5726 = vpack.c.b16 %v5708, %v5705
      %v5727 = vpack.c.b16 %v5709, %v5706
      %v5728 = vpack.c.b16 %v5713, %v5710
      %v5729 = vpack.c.b16 %v5714, %v5711
      %v5730 = vpack.c.b16 %v5715, %v5712
      %v5731 = vpack.c.b16 %v5719, %v5716
      %v5732 = vpack.c.b16 %v5720, %v5717
      %v5733 = vpack.c.b16 %v5721, %v5718
      %v5794 = vunpack.c.l.b16 %v5634
      %v5795 = vunpack.c.l.b16 %v5635
      %v5796 = vunpack.c.l.b16 %v5636
      %v5797 = vunpack.c.l.b16 %v5637
      %v5798 = vunpack.c.l.b16 %v5638
      %v5799 = vunpack.c.l.b16 %v5639
      %v5800 = vunpack.c.l.b16 %v5640
      %v5801 = vunpack.c.l.b16 %v5641
      %v5802 = vunpack.c.l.b16 %v5642
      %v5803 = vunpack.c.l.b16 %v5643
      %v5804 = vunpack.c.l.b16 %v5644
      %v5805 = vunpack.c.l.b16 %v5645
      %v5806 = vunpack.c.l.b16 %v5646
      %v5807 = vunpack.c.l.b16 %v5647
      %v5808 = vunpack.c.l.b16 %v5648
      %v5809 = vunpack.c.l.b16 %v5649
      %v5810 = vunpack.c.l.b16 %v5650
      %v5811 = vunpack.c.l.b16 %v5651
      %v5812 = vunpack.c.l.b16 %v5652
      %v5813 = vunpack.c.l.b16 %v5653
      %v5814 = vunpack.c.l.b16 %v5654
      %v5815 = vunpack.c.l.b16 %v5655
      %v5816 = vunpack.c.l.b16 %v5656
      %v5817 = vunpack.c.l.b16 %v5657
      %v5818 = vunpack.c.l.b16 %v5658
      %v5819 = vunpack.c.l.b16 %v5659
      %v5820 = vunpack.c.l.b16 %v5660
      %v5821 = vunpack.c.l.b16 %v5661
      %v5822 = vunpack.c.l.b16 %v5662
      %v5823 = vunpack.c.l.b16 %v5663
      %v5824 = vunpack.c.l.b16 %v5664
      %v5825 = vunpack.c.l.b16 %v5665
      %v5826 = vunpack.c.l.b16 %v5666
      %v5827 = vunpack.c.l.b16 %v5667
      %v5828 = vunpack.c.l.b16 %v5668
      %v5829 = vunpack.c.l.b16 %v5669
      %v5830 = vunpack.c.l.b16 %v5670
      %v5831 = vunpack.c.l.b16 %v5671
      %v5832 = vunpack.c.l.b16 %v5672
      %v5833 = vunpack.c.l.b16 %v5673
      %v5834 = vunpack.c.l.b16 %v5674
      %v5835 = vunpack.c.l.b16 %v5675
      %v5836 = vunpack.c.l.b16 %v5676
      %v5837 = vunpack.c.l.b16 %v5677
      %v5838 = vunpack.c.l.b16 %v5678
      %v5839 = vunpack.c.l.b16 %v5679
      %v5840 = vunpack.c.l.b16 %v5680
      %v5841 = vunpack.c.l.b16 %v5681
      %v5842 = vpack.c.b16 %v5795, %v5794
      %v5843 = vpack.c.b16 %v5797, %v5796
      %v5844 = vpack.c.b16 %v5799, %v5798
      %v5845 = vpack.c.b16 %v5801, %v5800
      %v5846 = vpack.c.b16 %v5803, %v5802
      %v5847 = vpack.c.b16 %v5805, %v5804
      %v5848 = vpack.c.b16 %v5807, %v5806
      %v5849 = vpack.c.b16 %v5809, %v5808
      %v5850 = vpack.c.b16 %v5811, %v5810
      %v5851 = vpack.c.b16 %v5813, %v5812
      %v5852 = vpack.c.b16 %v5815, %v5814
      %v5853 = vpack.c.b16 %v5817, %v5816
      %v5854 = vpack.c.b16 %v5819, %v5818
      %v5855 = vpack.c.b16 %v5821, %v5820
      %v5856 = vpack.c.b16 %v5823, %v5822
      %v5857 = vpack.c.b16 %v5825, %v5824
      %v5858 = vpack.c.b16 %v5827, %v5826
      %v5859 = vpack.c.b16 %v5829, %v5828
      %v5860 = vpack.c.b16 %v5831, %v5830
      %v5861 = vpack.c.b16 %v5833, %v5832
      %v5862 = vpack.c.b16 %v5835, %v5834
      %v5863 = vpack.c.b16 %v5837, %v5836
      %v5864 = vpack.c.b16 %v5839, %v5838
      %v5865 = vpack.c.b16 %v5841, %v5840
      %5890 = vmatprep.subr.bf16.mxu0 0
      %5891 = vmatpush1.bf16.msra.mxu0 %v5849
      %5892 = vmatprep.subr.bf16.mxu0 0
      %5893 = vmatpush1.bf16.msra.mxu0 %v5848
      %5894 = vmatprep.subr.bf16.mxu0 0
      %5895 = vmatpush1.bf16.msra.mxu0 %v5847
      %5896 = vmatprep.subr.bf16.mxu0 0
      %5897 = vmatpush1.bf16.msra.mxu0 %v5846
      %5898 = vmatprep.subr.bf16.mxu0 0
      %5899 = vmatpush1.bf16.msra.mxu0 %v5845
      %5900 = vmatprep.subr.bf16.mxu0 0
      %5901 = vmatpush1.bf16.msra.mxu0 %v5844
      %5902 = vmatprep.subr.bf16.mxu0 0
      %5903 = vmatpush1.bf16.msra.mxu0 %v5843
      %5904 = vmatprep.subr.bf16.mxu0 0
      %5905 = vmatpush1.bf16.msra.mxu0 %v5842
      %5906 = vmatprep.subr.bf16.mxu0 0
      %5907 = vmatpush2.bf16.msra.mxu0 %v5857
      %5908 = vmatprep.subr.bf16.mxu0 0
      %5909 = vmatpush2.bf16.msra.mxu0 %v5856
      %5910 = vmatprep.subr.bf16.mxu0 0
      %5911 = vmatpush2.bf16.msra.mxu0 %v5855
      %5912 = vmatprep.subr.bf16.mxu0 0
      %5913 = vmatpush2.bf16.msra.mxu0 %v5854
      %5914 = vmatprep.subr.bf16.mxu0 0
      %5915 = vmatpush2.bf16.msra.mxu0 %v5853
      %5916 = vmatprep.subr.bf16.mxu0 0
      %5917 = vmatpush2.bf16.msra.mxu0 %v5852
      %5918 = vmatprep.subr.bf16.mxu0 0
      %5919 = vmatpush2.bf16.msra.mxu0 %v5851
      %5920 = vmatprep.subr.bf16.mxu0 0
      %5921 = vmatpush2.bf16.msra.mxu0 %v5850
      %5922 = vmatprep.mubr.bf16.mxu0 %v5723
      %5923 = vmatmul.mubr.bf16.gmra.mxu0 %v5722
      %v5924 = vpop.f32.mrf.mxu0
      %v5925 = vadd.f32 0.0, %v5924
      %v5926 = vpop.f32.mrf.mxu0
      %v5927 = vpop.f32.mrf.mxu0
      %v5928 = vadd.f32 0.0, %v5927
      %v5929 = vpop.f32.mrf.mxu0
      %5930 = vmatprep.mubr.bf16.mxu0 %v5726
      %5931 = vmatmul.mubr.bf16.gmra.mxu0 %v5725
      %v5932 = vpop.f32.mrf.mxu0
      %v5933 = vadd.f32 0.0, %v5932
      %v5934 = vpop.f32.mrf.mxu0
      %v5935 = vpop.f32.mrf.mxu0
      %v5936 = vadd.f32 0.0, %v5935
      %v5937 = vpop.f32.mrf.mxu0
      %5938 = vmatprep.mubr.bf16.mxu0 %v5729
      %5939 = vmatmul.mubr.bf16.gmra.mxu0 %v5728
      %v5940 = vpop.f32.mrf.mxu0
      %v5941 = vadd.f32 0.0, %v5940
      %v5942 = vpop.f32.mrf.mxu0
      %v5943 = vpop.f32.mrf.mxu0
      %v5944 = vadd.f32 0.0, %v5943
      %v5945 = vpop.f32.mrf.mxu0
      %5946 = vmatprep.mubr.bf16.mxu0 %v5732
      %5947 = vmatmul.mubr.bf16.gmra.mxu0 %v5731
      %v5948 = vpop.f32.mrf.mxu0
      %v5949 = vadd.f32 0.0, %v5948
      %v5950 = vpop.f32.mrf.mxu0
      %v5951 = vpop.f32.mrf.mxu0
      %v5952 = vadd.f32 0.0, %v5951
      %v5953 = vpop.f32.mrf.mxu0
      %5954 = vdwg.mxu0
      %5955 = vmatprep.subr.bf16.mxu0 0
      %5956 = vmatpush1.bf16.msra.mxu0 %v5865
      %5957 = vmatprep.subr.bf16.mxu0 0
      %5958 = vmatpush1.bf16.msra.mxu0 %v5864
      %5959 = vmatprep.subr.bf16.mxu0 0
      %5960 = vmatpush1.bf16.msra.mxu0 %v5863
      %5961 = vmatprep.subr.bf16.mxu0 0
      %5962 = vmatpush1.bf16.msra.mxu0 %v5862
      %5963 = vmatprep.subr.bf16.mxu0 0
      %5964 = vmatpush1.bf16.msra.mxu0 %v5861
      %5965 = vmatprep.subr.bf16.mxu0 0
      %5966 = vmatpush1.bf16.msra.mxu0 %v5860
      %5967 = vmatprep.subr.bf16.mxu0 0
      %5968 = vmatpush1.bf16.msra.mxu0 %v5859
      %5969 = vmatprep.subr.bf16.mxu0 0
      %5970 = vmatpush1.bf16.msra.mxu0 %v5858
      %5971 = vmatprep.subr.bf16.mxu0 0
      %5972 = vmatpush2.bf16.msra.mxu0 0
      %5973 = vmatprep.subr.bf16.mxu0 0
      %5974 = vmatpush2.bf16.msra.mxu0 0
      %5975 = vmatprep.subr.bf16.mxu0 0
      %5976 = vmatpush2.bf16.msra.mxu0 0
      %5977 = vmatprep.subr.bf16.mxu0 0
      %5978 = vmatpush2.bf16.msra.mxu0 0
      %5979 = vmatprep.subr.bf16.mxu0 0
      %5980 = vmatpush2.bf16.msra.mxu0 0
      %5981 = vmatprep.subr.bf16.mxu0 0
      %5982 = vmatpush2.bf16.msra.mxu0 0
      %5983 = vmatprep.subr.bf16.mxu0 0
      %5984 = vmatpush2.bf16.msra.mxu0 0
      %5985 = vmatprep.subr.bf16.mxu0 0
      %5986 = vmatpush2.bf16.msra.mxu0 0
      %5987 = vmatprep.mubr.bf16.mxu0 0
      %5988 = vmatmul.mubr.bf16.gmra.mxu0 %v5724
      %v5989 = vpop.f32.mrf.mxu0
      %v5990 = vadd.f32 %v5925, %v5989
      %v5991 = vpop.f32.mrf.mxu0
      %v5992 = vpop.f32.mrf.mxu0
      %v5993 = vadd.f32 %v5928, %v5992
      %v5994 = vpop.f32.mrf.mxu0
      %5995 = vmatprep.mubr.bf16.mxu0 0
      %5996 = vmatmul.mubr.bf16.gmra.mxu0 %v5727
      %v5997 = vpop.f32.mrf.mxu0
      %v5998 = vadd.f32 %v5933, %v5997
      %v5999 = vpop.f32.mrf.mxu0
      %v6000 = vpop.f32.mrf.mxu0
      %v6001 = vadd.f32 %v5936, %v6000
      %v6002 = vpop.f32.mrf.mxu0
      %6003 = vmatprep.mubr.bf16.mxu0 0
      %6004 = vmatmul.mubr.bf16.gmra.mxu0 %v5730
      %v6005 = vpop.f32.mrf.mxu0
      %v6006 = vadd.f32 %v5941, %v6005
      %v6007 = vpop.f32.mrf.mxu0
      %v6008 = vpop.f32.mrf.mxu0
      %v6009 = vadd.f32 %v5944, %v6008
      %v6010 = vpop.f32.mrf.mxu0
      %6011 = vmatprep.mubr.bf16.mxu0 0
      %6012 = vmatmul.mubr.bf16.gmra.mxu0 %v5733
      %v6013 = vpop.f32.mrf.mxu0
      %v6014 = vadd.f32 %v5949, %v6013
      %v6015 = vpop.f32.mrf.mxu0
      %v6016 = vpop.f32.mrf.mxu0
      %v6017 = vadd.f32 %v5952, %v6016
      %v6018 = vpop.f32.mrf.mxu0
      %6019 = vdwg.mxu0
      %v6020 = vadd.f32 %v5625, %v5990
      %v6021 = vadd.f32 %v5626, %v5993
      %v6022 = vadd.f32 %v5627, %v5998
      %v6023 = vadd.f32 %v5628, %v6001
      %v6024 = vadd.f32 %v5629, %v6006
      %v6025 = vadd.f32 %v5630, %v6009
      %v6026 = vadd.f32 %v5631, %v6014
      %v6027 = vadd.f32 %v5632, %v6017
      %6028 = vst [vmem:[#allocation2] sm:$0xff] %v6020
      %6029 = vst [vmem:[#allocation2 + $0x8] sm:$0xff] %v6021
      %6030 = vst [vmem:[#allocation2 + $0x10] sm:$0xff] %v6022
      %6031 = vst [vmem:[#allocation2 + $0x18] sm:$0xff] %v6023
      %6032 = vst [vmem:[#allocation2 + $0x20] sm:$0xff] %v6024
      %6033 = vst [vmem:[#allocation2 + $0x28] sm:$0xff] %v6025
      %6034 = vst [vmem:[#allocation2 + $0x30] sm:$0xff] %v6026
      %6035 = vst [vmem:[#allocation2 + $0x38] sm:$0xff] %v6027
      %v6036 = vld [vmem:[#allocation2] sm:$0xff]
      %v6037 = vld [vmem:[#allocation2 + $0x8] sm:$0xff]
      %v6038 = vld [vmem:[#allocation2 + $0x10] sm:$0xff]
      %v6039 = vld [vmem:[#allocation2 + $0x18] sm:$0xff]
      %v6040 = vld [vmem:[#allocation2 + $0x20] sm:$0xff]
      %v6041 = vld [vmem:[#allocation2 + $0x28] sm:$0xff]
      %v6042 = vld [vmem:[#allocation2 + $0x30] sm:$0xff]
      %v6043 = vld [vmem:[#allocation2 + $0x38] sm:$0xff]
      %v6044 = vadd.f32 %v6036, %v6037
      %v6045 = vadd.f32 %v6044, %v6038
      %v6046 = vadd.f32 %v6045, %v6039
      %v6047 = vadd.f32 %v6046, %v6040
      %v6048 = vadd.f32 %v6047, %v6041
      %v6049 = vadd.f32 %v6048, %v6042
      %v6050 = vadd.f32 %v6049, %v6043
      %v6051 = vrot.slane %v6050, 4
      %v6052 = vadd.f32 %v6050, %v6051
      %v6053 = vrot.slane %v6052, 2
      %v6054 = vadd.f32 %v6052, %v6053
      %v6055 = vrot.slane %v6054, 1
      %v6056 = vadd.f32 %v6054, %v6055
      %v6057 = vmul.f32 %v6036, %v6036
      %v6058 = vmul.f32 %v6037, %v6037
      %v6059 = vmul.f32 %v6038, %v6038
      %v6060 = vmul.f32 %v6039, %v6039
      %v6061 = vmul.f32 %v6040, %v6040
      %v6062 = vmul.f32 %v6041, %v6041
      %v6063 = vmul.f32 %v6042, %v6042
      %v6064 = vmul.f32 %v6043, %v6043
      %v6065 = vadd.f32 %v6057, %v6058
      %v6066 = vadd.f32 %v6065, %v6059
      %v6067 = vadd.f32 %v6066, %v6060
      %v6068 = vadd.f32 %v6067, %v6061
      %v6069 = vadd.f32 %v6068, %v6062
      %v6070 = vadd.f32 %v6069, %v6063
      %v6071 = vadd.f32 %v6070, %v6064
      %v6072 = vrot.slane %v6071, 4
      %v6073 = vadd.f32 %v6071, %v6072
      %v6074 = vrot.slane %v6073, 2
      %v6075 = vadd.f32 %v6073, %v6074
      %v6076 = vrot.slane %v6075, 1
      %v6077 = vadd.f32 %v6075, %v6076
      %vm6078 = vcmp.eq.s32.totalorder %v431, 0
      %vm6079 = vcmp.eq.s32.totalorder %v431, 1
      %v6080 = vsel %vm6079, %v6077, 0.0
      %v6081 = vsel %vm6078, %v6056, %v6080
      %6082 = vst [vmem:[%s418] sm:$0xff] %v6081
      %v6083 = vpack.c.bf16 %v6037, %v6036
      %v6084 = vpack.c.bf16 %v6039, %v6038
      %v6085 = vpack.c.bf16 %v6041, %v6040
      %v6086 = vpack.c.bf16 %v6043, %v6042
      %v6091 = vunpack.c.l.b16 %v6083
      %v6092 = vunpack.c.h.b16 %v6083
      %v6093 = vunpack.c.l.b16 %v6084
      %v6094 = vunpack.c.h.b16 %v6084
      %v6095 = vunpack.c.l.b16 %v6085
      %v6096 = vunpack.c.h.b16 %v6085
      %v6097 = vunpack.c.l.b16 %v6086
      %v6098 = vunpack.c.h.b16 %v6086
      %v6099 = vpack.c.b16 %v6091, %v6091
      %v6100 = vpack.c.b16 %v6092, %v6092
      %v6101 = vpack.c.b16 %v6093, %v6093
      %v6102 = vpack.c.b16 %v6094, %v6094
      %v6103 = vpack.c.b16 %v6095, %v6095
      %v6104 = vpack.c.b16 %v6096, %v6096
      %v6105 = vpack.c.b16 %v6097, %v6097
      %v6106 = vpack.c.b16 %v6098, %v6098
      %6115 = vst [vmem:[%s407] sm:$0xf] %v6099
      %6116 = vst [vmem:[%s407 + $0x4] sm:$0xf] %v6100
      %6117 = vst [vmem:[%s407 + $0x8] sm:$0xf] %v6101
      %6118 = vst [vmem:[%s407 + $0xc] sm:$0xf] %v6102
      %6119 = vst [vmem:[%s407 + $0x10] sm:$0xf] %v6103
      %6120 = vst [vmem:[%s407 + $0x14] sm:$0xf] %v6104
      %6121 = vst [vmem:[%s407 + $0x18] sm:$0xf] %v6105
      %6122 = vst [vmem:[%s407 + $0x1c] sm:$0xf] %v6106
      %s6123 = smul.u32 %s23, 8
      %s6124 = sadd.s32 %s6123, %s24
      %s6125 = smul.u32 8, %s6124
      %p6126 = scmp.lt.s32.totalorder %s6125, 127
      %s6127 = scalar_select %p6126, %s6125, 127
      %s6128 = smul.addr %s6127, 4
      %s6129 = scalar_lea.vmem %s6, %s6128
      %p6130 = scmp.lt.s32.totalorder %s23, 1
      %s6131 = scalar_select %p6130, %s23, 1
      %p6132 = scmp.lt.s32.totalorder %s24, 7
      %s6133 = scalar_select %p6132, %s24, 7
      %s6134 = smul.addr %s6131, 8
      %s6135 = sadd.s32 %s6133, %s6134
      %s6136 = smul.addr %s6135, 8
      %s6137 = scalar_lea.vmem %s7, %s6136
      // Predicated region
      $region45: #{dilated_residual_unit_3d.5} parent=43 // pred_check
        %p6138 = pneg %p204
      $region46: #{dilated_residual_unit_3d.5} parent=43 // pred_check_branch
        %6140 = sbr.rel (%p6138) target = $region48
      $region47: #{dilated_residual_unit_3d.5} parent=43 // pred_region
        %s6141 = smul.u32 %s23, 8
        %s6142 = sadd.s32 %s6141, %s24
        %s6143 = smul.u32 8, %s6142
      $region48: #{dilated_residual_unit_3d.5} parent=43 // pred_fallthru
        _
      // Predicated region
      $region49: #{dilated_residual_unit_3d.5} parent=43 // pred_check
        %p6144 = pneg %p232
      $region50: #{dilated_residual_unit_3d.5} parent=43 // pred_check_branch
        %6146 = sbr.rel (%p6144) target = $region52
      $region51: #{dilated_residual_unit_3d.5} parent=43 // pred_region
        _
      $region52: #{dilated_residual_unit_3d.5} parent=43 // pred_fallthru
        _
    $region44: #{dilated_residual_unit_3d.5} parent=5 // pred_fallthru
      _
    %p6147 = scmp.le.s32.totalorder 2, %s14
    // Predicated region
    $region53: #{dilated_residual_unit_3d.5} parent=5 // pred_check
      %p6148 = pneg %p6147
    $region54: #{dilated_residual_unit_3d.5} parent=5 // pred_check_branch
      %6150 = sbr.rel (%p6148) target = $region56
    $region55: #{dilated_residual_unit_3d.5} parent=5 // pred_region
      %s6151 = ssub.s32 %s14, 2
      // Predicated region
      $region57: #{dilated_residual_unit_3d.5} parent=55 // pred_check
        %p6152 = pneg %p210
      $region58: #{dilated_residual_unit_3d.5} parent=55 // pred_check_branch
        %6154 = sbr.rel (%p6152) target = $region60
      $region59: #{dilated_residual_unit_3d.5} parent=55 // pred_region
        %s6155 = smul.u32 %s25, 8
        %s6156 = sadd.s32 %s6155, %s26
        %s6157 = smul.u32 8, %s6156
        %p6158 = scmp.lt.s32.totalorder %s6157, 127
        %s6159 = scalar_select %p6158, %s6157, 127
        %s6160 = smul.addr %s6159, 4
        %s6161 = scalar_lea.vmem %s6, %s6160
      $region60: #{dilated_residual_unit_3d.5} parent=55 // pred_fallthru
        _
      // Predicated region
      $region61: #{dilated_residual_unit_3d.5} parent=55 // pred_check
        %p6162 = pneg %p238
      $region62: #{dilated_residual_unit_3d.5} parent=55 // pred_check_branch
        %6164 = sbr.rel (%p6162) target = $region64
      $region63: #{dilated_residual_unit_3d.5} parent=55 // pred_region
        %p6165 = scmp.lt.s32.totalorder %s25, 1
        %s6166 = scalar_select %p6165, %s25, 1
        %p6167 = scmp.lt.s32.totalorder %s26, 7
        %s6168 = scalar_select %p6167, %s26, 7
        %s6169 = smul.addr %s6166, 8
        %s6170 = sadd.s32 %s6168, %s6169
        %s6171 = smul.addr %s6170, 8
        %s6172 = scalar_lea.vmem %s7, %s6171
      $region64: #{dilated_residual_unit_3d.5} parent=55 // pred_fallthru
        _
    $region56: #{dilated_residual_unit_3d.5} parent=5 // pred_fallthru
      _
  $region6: #{dilated_residual_unit_3d.5} parent=0 // loop_footer
    %s18 = sadd.s32 1, %s14
  $region7: #{dilated_residual_unit_3d.5} parent=0 // loop_footer_branch
    %13 = sbr.rel target = $region3
  $region8: #{dilated_residual_unit_3d.5} parent=0 // loop_exit
    _

</llo_original>
